<compile_context>
chip_gen: v6e
topology: v6e:2x2x1
jax: 0.10.0
libtpu: 0.0.40
codegen_flags: <defaults>
</compile_context>

<pallas_src>
import functools

import jax
import jax.numpy as jnp
from jax.experimental import pallas as pl
from jax.experimental.pallas import tpu as pltpu


# ----------------------------------------------------------------------------
# Pallas kernel: one grid step == `block_t` LSTM time steps for one batch block
#   xg_ref  : (bb, block_t, 4H)  precomputed x_t @ W_ih^T + b   (compute dtype)
#   whh_hbm : (H, 4H)            recurrent weight, left in HBM (pl.ANY)
#   h_ref   : (bb, block_t, H)   hidden states written per step (compute dtype)
#   h_sc/c_sc : (bb, H) f32 VMEM scratch carried across time grid steps
#   whh_vmem  : (H, 4H) single-buffered resident copy of W_hh
#   sem       : DMA semaphore for the one-time W_hh copy
# Gate column order is (i, f, o, g)  [pre-permuted in the wrapper].
# ----------------------------------------------------------------------------
def _lstm_recurrence_kernel(xg_ref, whh_hbm, h_ref, h_sc, c_sc, whh_vmem, sem,
                            *, hidden_size, block_t):
    H = hidden_size

    # At the start of each batch block's time sequence: zero the carried state
    # (init_hidden in the PyTorch module) and pull W_hh into VMEM exactly once
    # (single-buffered; scratch persists across the "arbitrary" time axis).
    @pl.when(pl.program_id(1) == 0)
    def _():
        cp = pltpu.make_async_copy(whh_hbm, whh_vmem, sem)
        cp.start()
        cp.wait()
        h_sc[...] = jnp.zeros_like(h_sc)
        c_sc[...] = jnp.zeros_like(c_sc)

    # Statically unrolled loop over the time block: only the recurrent matmul
    # (MXU) + gate VPU/EUP work lives here.
    for j in range(block_t):
        gates = (xg_ref[:, j, :].astype(jnp.float32)
                 + jnp.dot(h_sc[...].astype(whh_vmem.dtype), whh_vmem[...],
                           preferred_element_type=jnp.float32))      # (bb, 4H)

        # (i, f, o) are contiguous -> one wide sigmoid push; g is the tail.
        sig = jax.nn.sigmoid(gates[:, 0:3 * H])
        i = sig[:, 0 * H:1 * H]
        f = sig[:, 1 * H:2 * H]
        o = sig[:, 2 * H:3 * H]
        g = jnp.tanh(gates[:, 3 * H:4 * H])

        c = f * c_sc[...] + i * g
        h = o * jnp.tanh(c)
        c_sc[...] = c
        h_sc[...] = h
        h_ref[:, j, :] = h.astype(h_ref.dtype)


# ----------------------------------------------------------------------------
# Wrapper: embedding + hoisted batched matmuls in JAX, recurrence in Pallas
# ----------------------------------------------------------------------------
def decoder_rnn_forward(params, features, captions, *, block_t=32, block_b=8,
                        compute_dtype=jnp.float32):
    """features: (B, E) f32, captions: (B, Tc) int32 -> (B, Tc, V) f32."""
    cdt = compute_dtype

    # embedded = embed(captions[:, :-1]); prepend image features at t=0
    emb = params["embed"][captions[:, :-1]]                        # (B, Tc-1, E)
    x = jnp.concatenate([features[:, None, :], emb], axis=1)       # (B, T, E)
    B, T, E = x.shape
    H = params["w_hh_t"].shape[0]
    V = params["fc_w_t"].shape[1]
    # NOTE: gate slices are lane-aligned when H % 128 == 0; other H values are
    # correct but pay masked sub-lane slicing -- pad H for production use.

    # Permute gate columns from PyTorch (i, f, g, o) -> (i, f, o, g) so the
    # three sigmoid gates form one contiguous slice inside the kernel.
    def permute_gates(w):
        lead = w.shape[:-1]
        return (w.reshape(*lead, 4, H)[..., (0, 1, 3, 2), :]
                 .reshape(*lead, 4 * H))

    w_ih_p = permute_gates(params["w_ih_t"])                        # (E, 4H)
    w_hh_p = permute_gates(params["w_hh_t"])                        # (H, 4H)
    b_p = permute_gates(params["b"])                                # (1, 4H)

    # ---- Hoisted input projection for ALL timesteps (one big matmul) -------
    # Accumulate in f32, then stream the (B, T, 4H) intermediate in the
    # compute dtype (halves HBM<->VMEM traffic on the bf16 path).
    xg = (jnp.dot(x.reshape(B * T, E).astype(cdt), w_ih_p.astype(cdt),
                  preferred_element_type=jnp.float32) + b_p)
    xg = xg.reshape(B, T, 4 * H).astype(cdt)                        # batch-major

    # ---- Block the time and batch axes --------------------------------------
    # Short sequences: one time block (no padding waste, one grid step).
    # Long sequences: multiple-of-8 time blocks (8,128)-legal blocks.
    if T <= block_t:
        tb = T
    else:
        tb = max(8, (block_t // 8) * 8)
    nt = -(-T // tb)
    t_pad = nt * tb

    bb = min(block_b, B)
    nb = -(-B // bb)
    b_pad = nb * bb

    if (t_pad != T) or (b_pad != B):
        # Padded tail steps run the recurrence on zero inputs; the sliced
        # output below is correct (final state is not returned/reused).
        xg = jnp.pad(xg, ((0, b_pad - B), (0, t_pad - T), (0, 0)))

    h = pl.pallas_call(
        functools.partial(_lstm_recurrence_kernel, hidden_size=H, block_t=tb),
        out_shape=jax.ShapeDtypeStruct((b_pad, t_pad, H), cdt),
        grid=(nb, nt),
        in_specs=[
            pl.BlockSpec((bb, tb, 4 * H), lambda bi, ti: (bi, ti, 0)),  # xg
            pl.BlockSpec(memory_space=pl.ANY),                          # W_hh
        ],
        out_specs=pl.BlockSpec((bb, tb, H), lambda bi, ti: (bi, ti, 0)),
        scratch_shapes=[
            pltpu.VMEM((bb, H), jnp.float32),        # h state (f32 carry)
            pltpu.VMEM((bb, H), jnp.float32),        # c state (f32 carry)
            pltpu.VMEM((H, 4 * H), cdt),             # resident W_hh (1 buffer)
            pltpu.SemaphoreType.DMA(()),             # W_hh copy semaphore
        ],
        compiler_params=pltpu.CompilerParams(
            dimension_semantics=("parallel", "arbitrary")),
    )(xg, w_hh_p.astype(cdt))

    h = h[:B, :T]                                                   # (B, T, H)

    # ---- Hoisted fc projection (one big matmul), output already (B, T, V) --
    logits = (jnp.dot(h.reshape(B * T, H).astype(cdt),
                      params["fc_w_t"].astype(cdt),
                      preferred_element_type=jnp.float32)
              + params["fc_b"]).reshape(B, T, V)
    return logits


# ----------------------------------------------------------------------------
# Pure-JAX reference (per-step lax.scan, original structure) for correctness
# ----------------------------------------------------------------------------
def decoder_rnn_reference(params, features, captions):
    emb = params["embed"][captions[:, :-1]]
    x = jnp.concatenate([features[:, None, :], emb], axis=1)
    B = x.shape[0]
    H = params["w_hh_t"].shape[0]

    def step(carry, x_t):
        h, c = carry
        gates = x_t @ params["w_ih_t"] + h @ params["w_hh_t"] + params["b"][0]
        i = jax.nn.sigmoid(gates[:, 0 * H:1 * H])
        f = jax.nn.sigmoid(gates[:, 1 * H:2 * H])
        g = jnp.tanh(gates[:, 2 * H:3 * H])
        o = jax.nn.sigmoid(gates[:, 3 * H:4 * H])
        c = f * c + i * g
        h = o * jnp.tanh(c)
        return (h, c), h @ params["fc_w_t"] + params["fc_b"][0]

    init = (jnp.zeros((B, H), jnp.float32), jnp.zeros((B, H), jnp.float32))
    _, outs = jax.lax.scan(step, init, jnp.transpose(x, (1, 0, 2)))
    return jnp.transpose(outs, (1, 0, 2))


# ----------------------------------------------------------------------------
def make_params(key, embed_size, hidden_size, vocab_size):
    ks = jax.random.split(key, 7)
    s = 0.1
    # PyTorch shapes: embed (V, E); W_ih (4H, E); W_hh (4H, H); fc (V, H).
    # Stored as matmul-ready transposes; gate order is PyTorch's (i, f, g, o).
    return {
        "embed":  s * jax.random.normal(ks[0], (vocab_size, embed_size), jnp.float32),
        "w_ih_t": s * jax.random.normal(ks[1], (embed_size, 4 * hidden_size), jnp.float32),
        "w_hh_t": s * jax.random.normal(ks[2], (hidden_size, 4 * hidden_size), jnp.float32),
        "b": (s * jax.random.normal(ks[3], (1, 4 * hidden_size), jnp.float32)
              + s * jax.random.normal(ks[4], (1, 4 * hidden_size), jnp.float32)),
        "fc_w_t": s * jax.random.normal(ks[5], (hidden_size, vocab_size), jnp.float32),
        "fc_b":   s * jax.random.normal(ks[6], (1, vocab_size), jnp.float32),
    }


if __name__ == "__main__":
    # batch, embed, hidden, vocab, caption length.  T = Tc = 13 exercises the
    # "single time block, no padding" path; H = 128 keeps gate slices
    # lane-aligned.
    B, E, H, V, Tc = 8, 64, 128, 256, 13

    key = jax.random.PRNGKey(0)
    k_par, k_feat, k_cap = jax.random.split(key, 3)
    params = make_params(k_par, E, H, V)
    features = jax.random.normal(k_feat, (B, E), jnp.float32)
    captions = jax.random.randint(k_cap, (B, Tc), 0, V, dtype=jnp.int32)

    ref = decoder_rnn_reference(params, features, captions)

    # f32 compute path: tight check against the scan reference.
    fwd_f32 = jax.jit(functools.partial(decoder_rnn_forward,
                                        compute_dtype=jnp.float32))
    out = jax.block_until_ready(fwd_f32(params, features, captions))
    assert out.shape == (B, Tc, V)
    assert jnp.allclose(out, ref, atol=1e-3, rtol=1e-3), "f32 mismatch vs reference"

    # bf16 path (recommended on v5e/v6e/v7x): bf16 MXU operands and bf16
    # xg/h streaming, f32 state/accumulation.
    fwd_bf16 = jax.jit(functools.partial(decoder_rnn_forward,
                                         compute_dtype=jnp.bfloat16))
    out_bf16 = jax.block_until_ready(fwd_bf16(params, features, captions))
    assert out_bf16.shape == (B, Tc, V)
    assert jnp.allclose(out_bf16, ref, atol=1e-1, rtol=1e-1), "bf16 path diverged"

    print("KERNEL_OK")
</pallas_src>

<mosaic_0001>
module attributes {stable_mosaic.version = 11 : i64} {
  func.func @_lstm_recurrence_kernel(%arg0: i32, %arg1: i32, %arg2: memref<8x13x512xf32, #tpu.memory_space<vmem>>, %arg3: memref<128x512xf32, #tpu.memory_space<any>>, %arg4: memref<8x13x128xf32, #tpu.memory_space<vmem>>, %arg5: memref<8x128xf32, #tpu.memory_space<vmem>>, %arg6: memref<8x128xf32, #tpu.memory_space<vmem>>, %arg7: memref<128x512xf32, #tpu.memory_space<vmem>>, %arg8: memref<!tpu.dma_semaphore, #tpu.memory_space<semaphore_mem>>) attributes {dimension_semantics = [#tpu.dimension_semantics<parallel>, #tpu.dimension_semantics<arbitrary>], iteration_bounds = array<i64: 1, 1>, scalar_prefetch = 0 : i64, scratch_operands = 4 : i64, tpu.core_type = #tpu.core_type<tc>, window_params = [{transform_indices = @transform_0, window_bounds = array<i64: 8, 13, 512>}, {}, {transform_indices = @transform_2, window_bounds = array<i64: 8, 13, 128>}]} {
    %c0_i32 = arith.constant 0 : i32
    %0 = arith.cmpi eq, %arg1, %c0_i32 : i32
    %1 = arith.extui %0 : i1 to i32
    %c0_i32_0 = arith.constant 0 : i32
    %2 = arith.cmpi ne, %1, %c0_i32_0 : i32
    scf.if %2 {
      tpu.enqueue_dma source(%arg3 : memref<128x512xf32, #tpu.memory_space<any>>) target(%arg7 : memref<128x512xf32, #tpu.memory_space<vmem>>) target_semaphore(%arg8 : memref<!tpu.dma_semaphore, #tpu.memory_space<semaphore_mem>>)
      tpu.wait_dma2 semaphore(%arg8 : memref<!tpu.dma_semaphore, #tpu.memory_space<semaphore_mem>>) src(%arg3 : memref<128x512xf32, #tpu.memory_space<any>>) dst(%arg7 : memref<128x512xf32, #tpu.memory_space<vmem>>)
      %cst_221 = arith.constant 0.000000e+00 : f32
      %367 = vector.broadcast %cst_221 : f32 to vector<8x128xf32>
      %c0_222 = arith.constant 0 : index
      %c0_223 = arith.constant 0 : index
      %368 = vector.load %arg5[%c0_222, %c0_223] : memref<8x128xf32, #tpu.memory_space<vmem>>, vector<8x128xf32>
      tpu.vector_store %arg5[%c0_222, %c0_223], %367 {strides = array<i32>} : memref<8x128xf32, #tpu.memory_space<vmem>>, vector<8x128xf32>,
      %cst_224 = arith.constant 0.000000e+00 : f32
      %369 = vector.broadcast %cst_224 : f32 to vector<8x128xf32>
      %c0_225 = arith.constant 0 : index
      %c0_226 = arith.constant 0 : index
      %370 = vector.load %arg6[%c0_225, %c0_226] : memref<8x128xf32, #tpu.memory_space<vmem>>, vector<8x128xf32>
      tpu.vector_store %arg6[%c0_225, %c0_226], %369 {strides = array<i32>} : memref<8x128xf32, #tpu.memory_space<vmem>>, vector<8x128xf32>,
    } else {
    }
    %c0 = arith.constant 0 : index
    %c0_1 = arith.constant 0 : index
    %c0_2 = arith.constant 0 : index
    %3 = vector.load %arg2[%c0, %c0_1, %c0_2] : memref<8x13x512xf32, #tpu.memory_space<vmem>>, vector<8x1x512xf32>
    %4 = vector.shape_cast %3 : vector<8x1x512xf32> to vector<8x512xf32>
    %c0_3 = arith.constant 0 : index
    %c0_4 = arith.constant 0 : index
    %5 = vector.load %arg5[%c0_3, %c0_4] : memref<8x128xf32, #tpu.memory_space<vmem>>, vector<8x128xf32>
    %c0_5 = arith.constant 0 : index
    %c0_6 = arith.constant 0 : index
    %6 = vector.load %arg7[%c0_5, %c0_6] : memref<128x512xf32, #tpu.memory_space<vmem>>, vector<128x512xf32>
    %cst = arith.constant dense<0.000000e+00> : vector<8x512xf32>
    %7 = tpu.matmul %5, %6, %cst {dimension_numbers = #tpu.dot_dimension_numbers<[1], [0], [0], [1], [0, 0, 1, 1], [], []>} : vector<8x128xf32>, vector<128x512xf32>, vector<8x512xf32> -> vector<8x512xf32>
    %8 = arith.addf %4, %7 : vector<8x512xf32>
    %9 = vector.extract_strided_slice %8 {offsets = [0, 0], sizes = [8, 384], strides = [1, 1]} : vector<8x512xf32> to vector<8x384xf32>
    %10 = arith.negf %9 : vector<8x384xf32>
    %11 = math.exp %10 : vector<8x384xf32>
    %cst_7 = arith.constant 1.000000e+00 : f32
    %12 = vector.broadcast %cst_7 : f32 to vector<8x384xf32>
    %13 = arith.addf %12, %11 : vector<8x384xf32>
    %14 = arith.divf %12, %13 : vector<8x384xf32>
    %15 = vector.extract_strided_slice %14 {offsets = [0, 0], sizes = [8, 128], strides = [1, 1]} : vector<8x384xf32> to vector<8x128xf32>
    %16 = vector.extract_strided_slice %14 {offsets = [0, 128], sizes = [8, 128], strides = [1, 1]} : vector<8x384xf32> to vector<8x128xf32>
    %17 = vector.extract_strided_slice %14 {offsets = [0, 256], sizes = [8, 128], strides = [1, 1]} : vector<8x384xf32> to vector<8x128xf32>
    %18 = vector.extract_strided_slice %8 {offsets = [0, 384], sizes = [8, 128], strides = [1, 1]} : vector<8x512xf32> to vector<8x128xf32>
    %19 = math.tanh %18 : vector<8x128xf32>
    %c0_8 = arith.constant 0 : index
    %c0_9 = arith.constant 0 : index
    %20 = vector.load %arg6[%c0_8, %c0_9] : memref<8x128xf32, #tpu.memory_space<vmem>>, vector<8x128xf32>
    %21 = arith.mulf %16, %20 : vector<8x128xf32>
    %22 = arith.mulf %15, %19 : vector<8x128xf32>
    %23 = arith.addf %21, %22 : vector<8x128xf32>
    %24 = math.tanh %23 : vector<8x128xf32>
    %25 = arith.mulf %17, %24 : vector<8x128xf32>
    %c0_10 = arith.constant 0 : index
    %c0_11 = arith.constant 0 : index
    %26 = vector.load %arg6[%c0_10, %c0_11] : memref<8x128xf32, #tpu.memory_space<vmem>>, vector<8x128xf32>
    tpu.vector_store %arg6[%c0_10, %c0_11], %23 {strides = array<i32>} : memref<8x128xf32, #tpu.memory_space<vmem>>, vector<8x128xf32>,
    %c0_12 = arith.constant 0 : index
    %c0_13 = arith.constant 0 : index
    %27 = vector.load %arg5[%c0_12, %c0_13] : memref<8x128xf32, #tpu.memory_space<vmem>>, vector<8x128xf32>
    tpu.vector_store %arg5[%c0_12, %c0_13], %25 {strides = array<i32>} : memref<8x128xf32, #tpu.memory_space<vmem>>, vector<8x128xf32>,
    %c0_14 = arith.constant 0 : index
    %c0_15 = arith.constant 0 : index
    %c0_16 = arith.constant 0 : index
    %28 = vector.load %arg4[%c0_14, %c0_15, %c0_16] : memref<8x13x128xf32, #tpu.memory_space<vmem>>, vector<8x1x128xf32>
    %29 = vector.shape_cast %28 : vector<8x1x128xf32> to vector<8x128xf32>
    %30 = vector.shape_cast %25 : vector<8x128xf32> to vector<8x1x128xf32>
    tpu.vector_store %arg4[%c0_14, %c0_15, %c0_16], %30 {strides = array<i32>} : memref<8x13x128xf32, #tpu.memory_space<vmem>>, vector<8x1x128xf32>,
    %c0_17 = arith.constant 0 : index
    %c1 = arith.constant 1 : index
    %c0_18 = arith.constant 0 : index
    %31 = vector.load %arg2[%c0_17, %c1, %c0_18] : memref<8x13x512xf32, #tpu.memory_space<vmem>>, vector<8x1x512xf32>
    %32 = vector.shape_cast %31 : vector<8x1x512xf32> to vector<8x512xf32>
    %c0_19 = arith.constant 0 : index
    %c0_20 = arith.constant 0 : index
    %33 = vector.load %arg5[%c0_19, %c0_20] : memref<8x128xf32, #tpu.memory_space<vmem>>, vector<8x128xf32>
    %c0_21 = arith.constant 0 : index
    %c0_22 = arith.constant 0 : index
    %34 = vector.load %arg7[%c0_21, %c0_22] : memref<128x512xf32, #tpu.memory_space<vmem>>, vector<128x512xf32>
    %cst_23 = arith.constant dense<0.000000e+00> : vector<8x512xf32>
    %35 = tpu.matmul %33, %34, %cst_23 {dimension_numbers = #tpu.dot_dimension_numbers<[1], [0], [0], [1], [0, 0, 1, 1], [], []>} : vector<8x128xf32>, vector<128x512xf32>, vector<8x512xf32> -> vector<8x512xf32>
    %36 = arith.addf %32, %35 : vector<8x512xf32>
    %37 = vector.extract_strided_slice %36 {offsets = [0, 0], sizes = [8, 384], strides = [1, 1]} : vector<8x512xf32> to vector<8x384xf32>
    %38 = arith.negf %37 : vector<8x384xf32>
    %39 = math.exp %38 : vector<8x384xf32>
    %cst_24 = arith.constant 1.000000e+00 : f32
    %40 = vector.broadcast %cst_24 : f32 to vector<8x384xf32>
    %41 = arith.addf %40, %39 : vector<8x384xf32>
    %42 = arith.divf %40, %41 : vector<8x384xf32>
    %43 = vector.extract_strided_slice %42 {offsets = [0, 0], sizes = [8, 128], strides = [1, 1]} : vector<8x384xf32> to vector<8x128xf32>
    %44 = vector.extract_strided_slice %42 {offsets = [0, 128], sizes = [8, 128], strides = [1, 1]} : vector<8x384xf32> to vector<8x128xf32>
    %45 = vector.extract_strided_slice %42 {offsets = [0, 256], sizes = [8, 128], strides = [1, 1]} : vector<8x384xf32> to vector<8x128xf32>
    %46 = vector.extract_strided_slice %36 {offsets = [0, 384], sizes = [8, 128], strides = [1, 1]} : vector<8x512xf32> to vector<8x128xf32>
    %47 = math.tanh %46 : vector<8x128xf32>
    %c0_25 = arith.constant 0 : index
    %c0_26 = arith.constant 0 : index
    %48 = vector.load %arg6[%c0_25, %c0_26] : memref<8x128xf32, #tpu.memory_space<vmem>>, vector<8x128xf32>
    %49 = arith.mulf %44, %48 : vector<8x128xf32>
    %50 = arith.mulf %43, %47 : vector<8x128xf32>
    %51 = arith.addf %49, %50 : vector<8x128xf32>
    %52 = math.tanh %51 : vector<8x128xf32>
    %53 = arith.mulf %45, %52 : vector<8x128xf32>
    %c0_27 = arith.constant 0 : index
    %c0_28 = arith.constant 0 : index
    %54 = vector.load %arg6[%c0_27, %c0_28] : memref<8x128xf32, #tpu.memory_space<vmem>>, vector<8x128xf32>
    tpu.vector_store %arg6[%c0_27, %c0_28], %51 {strides = array<i32>} : memref<8x128xf32, #tpu.memory_space<vmem>>, vector<8x128xf32>,
    %c0_29 = arith.constant 0 : index
    %c0_30 = arith.constant 0 : index
    %55 = vector.load %arg5[%c0_29, %c0_30] : memref<8x128xf32, #tpu.memory_space<vmem>>, vector<8x128xf32>
    tpu.vector_store %arg5[%c0_29, %c0_30], %53 {strides = array<i32>} : memref<8x128xf32, #tpu.memory_space<vmem>>, vector<8x128xf32>,
    %c0_31 = arith.constant 0 : index
    %c1_32 = arith.constant 1 : index
    %c0_33 = arith.constant 0 : index
    %56 = vector.load %arg4[%c0_31, %c1_32, %c0_33] : memref<8x13x128xf32, #tpu.memory_space<vmem>>, vector<8x1x128xf32>
    %57 = vector.shape_cast %56 : vector<8x1x128xf32> to vector<8x128xf32>
    %58 = vector.shape_cast %53 : vector<8x128xf32> to vector<8x1x128xf32>
    tpu.vector_store %arg4[%c0_31, %c1_32, %c0_33], %58 {strides = array<i32>} : memref<8x13x128xf32, #tpu.memory_space<vmem>>, vector<8x1x128xf32>,
    %c0_34 = arith.constant 0 : index
    %c2 = arith.constant 2 : index
    %c0_35 = arith.constant 0 : index
    %59 = vector.load %arg2[%c0_34, %c2, %c0_35] : memref<8x13x512xf32, #tpu.memory_space<vmem>>, vector<8x1x512xf32>
    %60 = vector.shape_cast %59 : vector<8x1x512xf32> to vector<8x512xf32>
    %c0_36 = arith.constant 0 : index
    %c0_37 = arith.constant 0 : index
    %61 = vector.load %arg5[%c0_36, %c0_37] : memref<8x128xf32, #tpu.memory_space<vmem>>, vector<8x128xf32>
    %c0_38 = arith.constant 0 : index
    %c0_39 = arith.constant 0 : index
    %62 = vector.load %arg7[%c0_38, %c0_39] : memref<128x512xf32, #tpu.memory_space<vmem>>, vector<128x512xf32>
    %cst_40 = arith.constant dense<0.000000e+00> : vector<8x512xf32>
    %63 = tpu.matmul %61, %62, %cst_40 {dimension_numbers = #tpu.dot_dimension_numbers<[1], [0], [0], [1], [0, 0, 1, 1], [], []>} : vector<8x128xf32>, vector<128x512xf32>, vector<8x512xf32> -> vector<8x512xf32>
    %64 = arith.addf %60, %63 : vector<8x512xf32>
    %65 = vector.extract_strided_slice %64 {offsets = [0, 0], sizes = [8, 384], strides = [1, 1]} : vector<8x512xf32> to vector<8x384xf32>
    %66 = arith.negf %65 : vector<8x384xf32>
    %67 = math.exp %66 : vector<8x384xf32>
    %cst_41 = arith.constant 1.000000e+00 : f32
    %68 = vector.broadcast %cst_41 : f32 to vector<8x384xf32>
    %69 = arith.addf %68, %67 : vector<8x384xf32>
    %70 = arith.divf %68, %69 : vector<8x384xf32>
    %71 = vector.extract_strided_slice %70 {offsets = [0, 0], sizes = [8, 128], strides = [1, 1]} : vector<8x384xf32> to vector<8x128xf32>
    %72 = vector.extract_strided_slice %70 {offsets = [0, 128], sizes = [8, 128], strides = [1, 1]} : vector<8x384xf32> to vector<8x128xf32>
    %73 = vector.extract_strided_slice %70 {offsets = [0, 256], sizes = [8, 128], strides = [1, 1]} : vector<8x384xf32> to vector<8x128xf32>
    %74 = vector.extract_strided_slice %64 {offsets = [0, 384], sizes = [8, 128], strides = [1, 1]} : vector<8x512xf32> to vector<8x128xf32>
    %75 = math.tanh %74 : vector<8x128xf32>
    %c0_42 = arith.constant 0 : index
    %c0_43 = arith.constant 0 : index
    %76 = vector.load %arg6[%c0_42, %c0_43] : memref<8x128xf32, #tpu.memory_space<vmem>>, vector<8x128xf32>
    %77 = arith.mulf %72, %76 : vector<8x128xf32>
    %78 = arith.mulf %71, %75 : vector<8x128xf32>
    %79 = arith.addf %77, %78 : vector<8x128xf32>
    %80 = math.tanh %79 : vector<8x128xf32>
    %81 = arith.mulf %73, %80 : vector<8x128xf32>
    %c0_44 = arith.constant 0 : index
    %c0_45 = arith.constant 0 : index
    %82 = vector.load %arg6[%c0_44, %c0_45] : memref<8x128xf32, #tpu.memory_space<vmem>>, vector<8x128xf32>
    tpu.vector_store %arg6[%c0_44, %c0_45], %79 {strides = array<i32>} : memref<8x128xf32, #tpu.memory_space<vmem>>, vector<8x128xf32>,
    %c0_46 = arith.constant 0 : index
    %c0_47 = arith.constant 0 : index
    %83 = vector.load %arg5[%c0_46, %c0_47] : memref<8x128xf32, #tpu.memory_space<vmem>>, vector<8x128xf32>
    tpu.vector_store %arg5[%c0_46, %c0_47], %81 {strides = array<i32>} : memref<8x128xf32, #tpu.memory_space<vmem>>, vector<8x128xf32>,
    %c0_48 = arith.constant 0 : index
    %c2_49 = arith.constant 2 : index
    %c0_50 = arith.constant 0 : index
    %84 = vector.load %arg4[%c0_48, %c2_49, %c0_50] : memref<8x13x128xf32, #tpu.memory_space<vmem>>, vector<8x1x128xf32>
    %85 = vector.shape_cast %84 : vector<8x1x128xf32> to vector<8x128xf32>
    %86 = vector.shape_cast %81 : vector<8x128xf32> to vector<8x1x128xf32>
    tpu.vector_store %arg4[%c0_48, %c2_49, %c0_50], %86 {strides = array<i32>} : memref<8x13x128xf32, #tpu.memory_space<vmem>>, vector<8x1x128xf32>,
    %c0_51 = arith.constant 0 : index
    %c3 = arith.constant 3 : index
    %c0_52 = arith.constant 0 : index
    %87 = vector.load %arg2[%c0_51, %c3, %c0_52] : memref<8x13x512xf32, #tpu.memory_space<vmem>>, vector<8x1x512xf32>
    %88 = vector.shape_cast %87 : vector<8x1x512xf32> to vector<8x512xf32>
    %c0_53 = arith.constant 0 : index
    %c0_54 = arith.constant 0 : index
    %89 = vector.load %arg5[%c0_53, %c0_54] : memref<8x128xf32, #tpu.memory_space<vmem>>, vector<8x128xf32>
    %c0_55 = arith.constant 0 : index
    %c0_56 = arith.constant 0 : index
    %90 = vector.load %arg7[%c0_55, %c0_56] : memref<128x512xf32, #tpu.memory_space<vmem>>, vector<128x512xf32>
    %cst_57 = arith.constant dense<0.000000e+00> : vector<8x512xf32>
    %91 = tpu.matmul %89, %90, %cst_57 {dimension_numbers = #tpu.dot_dimension_numbers<[1], [0], [0], [1], [0, 0, 1, 1], [], []>} : vector<8x128xf32>, vector<128x512xf32>, vector<8x512xf32> -> vector<8x512xf32>
    %92 = arith.addf %88, %91 : vector<8x512xf32>
    %93 = vector.extract_strided_slice %92 {offsets = [0, 0], sizes = [8, 384], strides = [1, 1]} : vector<8x512xf32> to vector<8x384xf32>
    %94 = arith.negf %93 : vector<8x384xf32>
    %95 = math.exp %94 : vector<8x384xf32>
    %cst_58 = arith.constant 1.000000e+00 : f32
    %96 = vector.broadcast %cst_58 : f32 to vector<8x384xf32>
    %97 = arith.addf %96, %95 : vector<8x384xf32>
    %98 = arith.divf %96, %97 : vector<8x384xf32>
    %99 = vector.extract_strided_slice %98 {offsets = [0, 0], sizes = [8, 128], strides = [1, 1]} : vector<8x384xf32> to vector<8x128xf32>
    %100 = vector.extract_strided_slice %98 {offsets = [0, 128], sizes = [8, 128], strides = [1, 1]} : vector<8x384xf32> to vector<8x128xf32>
    %101 = vector.extract_strided_slice %98 {offsets = [0, 256], sizes = [8, 128], strides = [1, 1]} : vector<8x384xf32> to vector<8x128xf32>
    %102 = vector.extract_strided_slice %92 {offsets = [0, 384], sizes = [8, 128], strides = [1, 1]} : vector<8x512xf32> to vector<8x128xf32>
    %103 = math.tanh %102 : vector<8x128xf32>
    %c0_59 = arith.constant 0 : index
    %c0_60 = arith.constant 0 : index
    %104 = vector.load %arg6[%c0_59, %c0_60] : memref<8x128xf32, #tpu.memory_space<vmem>>, vector<8x128xf32>
    %105 = arith.mulf %100, %104 : vector<8x128xf32>
    %106 = arith.mulf %99, %103 : vector<8x128xf32>
    %107 = arith.addf %105, %106 : vector<8x128xf32>
    %108 = math.tanh %107 : vector<8x128xf32>
    %109 = arith.mulf %101, %108 : vector<8x128xf32>
    %c0_61 = arith.constant 0 : index
    %c0_62 = arith.constant 0 : index
    %110 = vector.load %arg6[%c0_61, %c0_62] : memref<8x128xf32, #tpu.memory_space<vmem>>, vector<8x128xf32>
    tpu.vector_store %arg6[%c0_61, %c0_62], %107 {strides = array<i32>} : memref<8x128xf32, #tpu.memory_space<vmem>>, vector<8x128xf32>,
    %c0_63 = arith.constant 0 : index
    %c0_64 = arith.constant 0 : index
    %111 = vector.load %arg5[%c0_63, %c0_64] : memref<8x128xf32, #tpu.memory_space<vmem>>, vector<8x128xf32>
    tpu.vector_store %arg5[%c0_63, %c0_64], %109 {strides = array<i32>} : memref<8x128xf32, #tpu.memory_space<vmem>>, vector<8x128xf32>,
    %c0_65 = arith.constant 0 : index
    %c3_66 = arith.constant 3 : index
    %c0_67 = arith.constant 0 : index
    %112 = vector.load %arg4[%c0_65, %c3_66, %c0_67] : memref<8x13x128xf32, #tpu.memory_space<vmem>>, vector<8x1x128xf32>
    %113 = vector.shape_cast %112 : vector<8x1x128xf32> to vector<8x128xf32>
    %114 = vector.shape_cast %109 : vector<8x128xf32> to vector<8x1x128xf32>
    tpu.vector_store %arg4[%c0_65, %c3_66, %c0_67], %114 {strides = array<i32>} : memref<8x13x128xf32, #tpu.memory_space<vmem>>, vector<8x1x128xf32>,
    %c0_68 = arith.constant 0 : index
    %c4 = arith.constant 4 : index
    %c0_69 = arith.constant 0 : index
    %115 = vector.load %arg2[%c0_68, %c4, %c0_69] : memref<8x13x512xf32, #tpu.memory_space<vmem>>, vector<8x1x512xf32>
    %116 = vector.shape_cast %115 : vector<8x1x512xf32> to vector<8x512xf32>
    %c0_70 = arith.constant 0 : index
    %c0_71 = arith.constant 0 : index
    %117 = vector.load %arg5[%c0_70, %c0_71] : memref<8x128xf32, #tpu.memory_space<vmem>>, vector<8x128xf32>
    %c0_72 = arith.constant 0 : index
    %c0_73 = arith.constant 0 : index
    %118 = vector.load %arg7[%c0_72, %c0_73] : memref<128x512xf32, #tpu.memory_space<vmem>>, vector<128x512xf32>
    %cst_74 = arith.constant dense<0.000000e+00> : vector<8x512xf32>
    %119 = tpu.matmul %117, %118, %cst_74 {dimension_numbers = #tpu.dot_dimension_numbers<[1], [0], [0], [1], [0, 0, 1, 1], [], []>} : vector<8x128xf32>, vector<128x512xf32>, vector<8x512xf32> -> vector<8x512xf32>
    %120 = arith.addf %116, %119 : vector<8x512xf32>
    %121 = vector.extract_strided_slice %120 {offsets = [0, 0], sizes = [8, 384], strides = [1, 1]} : vector<8x512xf32> to vector<8x384xf32>
    %122 = arith.negf %121 : vector<8x384xf32>
    %123 = math.exp %122 : vector<8x384xf32>
    %cst_75 = arith.constant 1.000000e+00 : f32
    %124 = vector.broadcast %cst_75 : f32 to vector<8x384xf32>
    %125 = arith.addf %124, %123 : vector<8x384xf32>
    %126 = arith.divf %124, %125 : vector<8x384xf32>
    %127 = vector.extract_strided_slice %126 {offsets = [0, 0], sizes = [8, 128], strides = [1, 1]} : vector<8x384xf32> to vector<8x128xf32>
    %128 = vector.extract_strided_slice %126 {offsets = [0, 128], sizes = [8, 128], strides = [1, 1]} : vector<8x384xf32> to vector<8x128xf32>
    %129 = vector.extract_strided_slice %126 {offsets = [0, 256], sizes = [8, 128], strides = [1, 1]} : vector<8x384xf32> to vector<8x128xf32>
    %130 = vector.extract_strided_slice %120 {offsets = [0, 384], sizes = [8, 128], strides = [1, 1]} : vector<8x512xf32> to vector<8x128xf32>
    %131 = math.tanh %130 : vector<8x128xf32>
    %c0_76 = arith.constant 0 : index
    %c0_77 = arith.constant 0 : index
    %132 = vector.load %arg6[%c0_76, %c0_77] : memref<8x128xf32, #tpu.memory_space<vmem>>, vector<8x128xf32>
    %133 = arith.mulf %128, %132 : vector<8x128xf32>
    %134 = arith.mulf %127, %131 : vector<8x128xf32>
    %135 = arith.addf %133, %134 : vector<8x128xf32>
    %136 = math.tanh %135 : vector<8x128xf32>
    %137 = arith.mulf %129, %136 : vector<8x128xf32>
    %c0_78 = arith.constant 0 : index
    %c0_79 = arith.constant 0 : index
    %138 = vector.load %arg6[%c0_78, %c0_79] : memref<8x128xf32, #tpu.memory_space<vmem>>, vector<8x128xf32>
    tpu.vector_store %arg6[%c0_78, %c0_79], %135 {strides = array<i32>} : memref<8x128xf32, #tpu.memory_space<vmem>>, vector<8x128xf32>,
    %c0_80 = arith.constant 0 : index
    %c0_81 = arith.constant 0 : index
    %139 = vector.load %arg5[%c0_80, %c0_81] : memref<8x128xf32, #tpu.memory_space<vmem>>, vector<8x128xf32>
    tpu.vector_store %arg5[%c0_80, %c0_81], %137 {strides = array<i32>} : memref<8x128xf32, #tpu.memory_space<vmem>>, vector<8x128xf32>,
    %c0_82 = arith.constant 0 : index
    %c4_83 = arith.constant 4 : index
    %c0_84 = arith.constant 0 : index
    %140 = vector.load %arg4[%c0_82, %c4_83, %c0_84] : memref<8x13x128xf32, #tpu.memory_space<vmem>>, vector<8x1x128xf32>
    %141 = vector.shape_cast %140 : vector<8x1x128xf32> to vector<8x128xf32>
    %142 = vector.shape_cast %137 : vector<8x128xf32> to vector<8x1x128xf32>
    tpu.vector_store %arg4[%c0_82, %c4_83, %c0_84], %142 {strides = array<i32>} : memref<8x13x128xf32, #tpu.memory_space<vmem>>, vector<8x1x128xf32>,
    %c0_85 = arith.constant 0 : index
    %c5 = arith.constant 5 : index
    %c0_86 = arith.constant 0 : index
    %143 = vector.load %arg2[%c0_85, %c5, %c0_86] : memref<8x13x512xf32, #tpu.memory_space<vmem>>, vector<8x1x512xf32>
    %144 = vector.shape_cast %143 : vector<8x1x512xf32> to vector<8x512xf32>
    %c0_87 = arith.constant 0 : index
    %c0_88 = arith.constant 0 : index
    %145 = vector.load %arg5[%c0_87, %c0_88] : memref<8x128xf32, #tpu.memory_space<vmem>>, vector<8x128xf32>
    %c0_89 = arith.constant 0 : index
    %c0_90 = arith.constant 0 : index
    %146 = vector.load %arg7[%c0_89, %c0_90] : memref<128x512xf32, #tpu.memory_space<vmem>>, vector<128x512xf32>
    %cst_91 = arith.constant dense<0.000000e+00> : vector<8x512xf32>
    %147 = tpu.matmul %145, %146, %cst_91 {dimension_numbers = #tpu.dot_dimension_numbers<[1], [0], [0], [1], [0, 0, 1, 1], [], []>} : vector<8x128xf32>, vector<128x512xf32>, vector<8x512xf32> -> vector<8x512xf32>
    %148 = arith.addf %144, %147 : vector<8x512xf32>
    %149 = vector.extract_strided_slice %148 {offsets = [0, 0], sizes = [8, 384], strides = [1, 1]} : vector<8x512xf32> to vector<8x384xf32>
    %150 = arith.negf %149 : vector<8x384xf32>
    %151 = math.exp %150 : vector<8x384xf32>
    %cst_92 = arith.constant 1.000000e+00 : f32
    %152 = vector.broadcast %cst_92 : f32 to vector<8x384xf32>
    %153 = arith.addf %152, %151 : vector<8x384xf32>
    %154 = arith.divf %152, %153 : vector<8x384xf32>
    %155 = vector.extract_strided_slice %154 {offsets = [0, 0], sizes = [8, 128], strides = [1, 1]} : vector<8x384xf32> to vector<8x128xf32>
    %156 = vector.extract_strided_slice %154 {offsets = [0, 128], sizes = [8, 128], strides = [1, 1]} : vector<8x384xf32> to vector<8x128xf32>
    %157 = vector.extract_strided_slice %154 {offsets = [0, 256], sizes = [8, 128], strides = [1, 1]} : vector<8x384xf32> to vector<8x128xf32>
    %158 = vector.extract_strided_slice %148 {offsets = [0, 384], sizes = [8, 128], strides = [1, 1]} : vector<8x512xf32> to vector<8x128xf32>
    %159 = math.tanh %158 : vector<8x128xf32>
    %c0_93 = arith.constant 0 : index
    %c0_94 = arith.constant 0 : index
    %160 = vector.load %arg6[%c0_93, %c0_94] : memref<8x128xf32, #tpu.memory_space<vmem>>, vector<8x128xf32>
    %161 = arith.mulf %156, %160 : vector<8x128xf32>
    %162 = arith.mulf %155, %159 : vector<8x128xf32>
    %163 = arith.addf %161, %162 : vector<8x128xf32>
    %164 = math.tanh %163 : vector<8x128xf32>
    %165 = arith.mulf %157, %164 : vector<8x128xf32>
    %c0_95 = arith.constant 0 : index
    %c0_96 = arith.constant 0 : index
    %166 = vector.load %arg6[%c0_95, %c0_96] : memref<8x128xf32, #tpu.memory_space<vmem>>, vector<8x128xf32>
    tpu.vector_store %arg6[%c0_95, %c0_96], %163 {strides = array<i32>} : memref<8x128xf32, #tpu.memory_space<vmem>>, vector<8x128xf32>,
    %c0_97 = arith.constant 0 : index
    %c0_98 = arith.constant 0 : index
    %167 = vector.load %arg5[%c0_97, %c0_98] : memref<8x128xf32, #tpu.memory_space<vmem>>, vector<8x128xf32>
    tpu.vector_store %arg5[%c0_97, %c0_98], %165 {strides = array<i32>} : memref<8x128xf32, #tpu.memory_space<vmem>>, vector<8x128xf32>,
    %c0_99 = arith.constant 0 : index
    %c5_100 = arith.constant 5 : index
    %c0_101 = arith.constant 0 : index
    %168 = vector.load %arg4[%c0_99, %c5_100, %c0_101] : memref<8x13x128xf32, #tpu.memory_space<vmem>>, vector<8x1x128xf32>
    %169 = vector.shape_cast %168 : vector<8x1x128xf32> to vector<8x128xf32>
    %170 = vector.shape_cast %165 : vector<8x128xf32> to vector<8x1x128xf32>
    tpu.vector_store %arg4[%c0_99, %c5_100, %c0_101], %170 {strides = array<i32>} : memref<8x13x128xf32, #tpu.memory_space<vmem>>, vector<8x1x128xf32>,
    %c0_102 = arith.constant 0 : index
    %c6 = arith.constant 6 : index
    %c0_103 = arith.constant 0 : index
    %171 = vector.load %arg2[%c0_102, %c6, %c0_103] : memref<8x13x512xf32, #tpu.memory_space<vmem>>, vector<8x1x512xf32>
    %172 = vector.shape_cast %171 : vector<8x1x512xf32> to vector<8x512xf32>
    %c0_104 = arith.constant 0 : index
    %c0_105 = arith.constant 0 : index
    %173 = vector.load %arg5[%c0_104, %c0_105] : memref<8x128xf32, #tpu.memory_space<vmem>>, vector<8x128xf32>
    %c0_106 = arith.constant 0 : index
    %c0_107 = arith.constant 0 : index
    %174 = vector.load %arg7[%c0_106, %c0_107] : memref<128x512xf32, #tpu.memory_space<vmem>>, vector<128x512xf32>
    %cst_108 = arith.constant dense<0.000000e+00> : vector<8x512xf32>
    %175 = tpu.matmul %173, %174, %cst_108 {dimension_numbers = #tpu.dot_dimension_numbers<[1], [0], [0], [1], [0, 0, 1, 1], [], []>} : vector<8x128xf32>, vector<128x512xf32>, vector<8x512xf32> -> vector<8x512xf32>
    %176 = arith.addf %172, %175 : vector<8x512xf32>
    %177 = vector.extract_strided_slice %176 {offsets = [0, 0], sizes = [8, 384], strides = [1, 1]} : vector<8x512xf32> to vector<8x384xf32>
    %178 = arith.negf %177 : vector<8x384xf32>
    %179 = math.exp %178 : vector<8x384xf32>
    %cst_109 = arith.constant 1.000000e+00 : f32
    %180 = vector.broadcast %cst_109 : f32 to vector<8x384xf32>
    %181 = arith.addf %180, %179 : vector<8x384xf32>
    %182 = arith.divf %180, %181 : vector<8x384xf32>
    %183 = vector.extract_strided_slice %182 {offsets = [0, 0], sizes = [8, 128], strides = [1, 1]} : vector<8x384xf32> to vector<8x128xf32>
    %184 = vector.extract_strided_slice %182 {offsets = [0, 128], sizes = [8, 128], strides = [1, 1]} : vector<8x384xf32> to vector<8x128xf32>
    %185 = vector.extract_strided_slice %182 {offsets = [0, 256], sizes = [8, 128], strides = [1, 1]} : vector<8x384xf32> to vector<8x128xf32>
    %186 = vector.extract_strided_slice %176 {offsets = [0, 384], sizes = [8, 128], strides = [1, 1]} : vector<8x512xf32> to vector<8x128xf32>
    %187 = math.tanh %186 : vector<8x128xf32>
    %c0_110 = arith.constant 0 : index
    %c0_111 = arith.constant 0 : index
    %188 = vector.load %arg6[%c0_110, %c0_111] : memref<8x128xf32, #tpu.memory_space<vmem>>, vector<8x128xf32>
    %189 = arith.mulf %184, %188 : vector<8x128xf32>
    %190 = arith.mulf %183, %187 : vector<8x128xf32>
    %191 = arith.addf %189, %190 : vector<8x128xf32>
    %192 = math.tanh %191 : vector<8x128xf32>
    %193 = arith.mulf %185, %192 : vector<8x128xf32>
    %c0_112 = arith.constant 0 : index
    %c0_113 = arith.constant 0 : index
    %194 = vector.load %arg6[%c0_112, %c0_113] : memref<8x128xf32, #tpu.memory_space<vmem>>, vector<8x128xf32>
    tpu.vector_store %arg6[%c0_112, %c0_113], %191 {strides = array<i32>} : memref<8x128xf32, #tpu.memory_space<vmem>>, vector<8x128xf32>,
    %c0_114 = arith.constant 0 : index
    %c0_115 = arith.constant 0 : index
    %195 = vector.load %arg5[%c0_114, %c0_115] : memref<8x128xf32, #tpu.memory_space<vmem>>, vector<8x128xf32>
    tpu.vector_store %arg5[%c0_114, %c0_115], %193 {strides = array<i32>} : memref<8x128xf32, #tpu.memory_space<vmem>>, vector<8x128xf32>,
    %c0_116 = arith.constant 0 : index
    %c6_117 = arith.constant 6 : index
    %c0_118 = arith.constant 0 : index
    %196 = vector.load %arg4[%c0_116, %c6_117, %c0_118] : memref<8x13x128xf32, #tpu.memory_space<vmem>>, vector<8x1x128xf32>
    %197 = vector.shape_cast %196 : vector<8x1x128xf32> to vector<8x128xf32>
    %198 = vector.shape_cast %193 : vector<8x128xf32> to vector<8x1x128xf32>
    tpu.vector_store %arg4[%c0_116, %c6_117, %c0_118], %198 {strides = array<i32>} : memref<8x13x128xf32, #tpu.memory_space<vmem>>, vector<8x1x128xf32>,
    %c0_119 = arith.constant 0 : index
    %c7 = arith.constant 7 : index
    %c0_120 = arith.constant 0 : index
    %199 = vector.load %arg2[%c0_119, %c7, %c0_120] : memref<8x13x512xf32, #tpu.memory_space<vmem>>, vector<8x1x512xf32>
    %200 = vector.shape_cast %199 : vector<8x1x512xf32> to vector<8x512xf32>
    %c0_121 = arith.constant 0 : index
    %c0_122 = arith.constant 0 : index
    %201 = vector.load %arg5[%c0_121, %c0_122] : memref<8x128xf32, #tpu.memory_space<vmem>>, vector<8x128xf32>
    %c0_123 = arith.constant 0 : index
    %c0_124 = arith.constant 0 : index
    %202 = vector.load %arg7[%c0_123, %c0_124] : memref<128x512xf32, #tpu.memory_space<vmem>>, vector<128x512xf32>
    %cst_125 = arith.constant dense<0.000000e+00> : vector<8x512xf32>
    %203 = tpu.matmul %201, %202, %cst_125 {dimension_numbers = #tpu.dot_dimension_numbers<[1], [0], [0], [1], [0, 0, 1, 1], [], []>} : vector<8x128xf32>, vector<128x512xf32>, vector<8x512xf32> -> vector<8x512xf32>
    %204 = arith.addf %200, %203 : vector<8x512xf32>
    %205 = vector.extract_strided_slice %204 {offsets = [0, 0], sizes = [8, 384], strides = [1, 1]} : vector<8x512xf32> to vector<8x384xf32>
    %206 = arith.negf %205 : vector<8x384xf32>
    %207 = math.exp %206 : vector<8x384xf32>
    %cst_126 = arith.constant 1.000000e+00 : f32
    %208 = vector.broadcast %cst_126 : f32 to vector<8x384xf32>
    %209 = arith.addf %208, %207 : vector<8x384xf32>
    %210 = arith.divf %208, %209 : vector<8x384xf32>
    %211 = vector.extract_strided_slice %210 {offsets = [0, 0], sizes = [8, 128], strides = [1, 1]} : vector<8x384xf32> to vector<8x128xf32>
    %212 = vector.extract_strided_slice %210 {offsets = [0, 128], sizes = [8, 128], strides = [1, 1]} : vector<8x384xf32> to vector<8x128xf32>
    %213 = vector.extract_strided_slice %210 {offsets = [0, 256], sizes = [8, 128], strides = [1, 1]} : vector<8x384xf32> to vector<8x128xf32>
    %214 = vector.extract_strided_slice %204 {offsets = [0, 384], sizes = [8, 128], strides = [1, 1]} : vector<8x512xf32> to vector<8x128xf32>
    %215 = math.tanh %214 : vector<8x128xf32>
    %c0_127 = arith.constant 0 : index
    %c0_128 = arith.constant 0 : index
    %216 = vector.load %arg6[%c0_127, %c0_128] : memref<8x128xf32, #tpu.memory_space<vmem>>, vector<8x128xf32>
    %217 = arith.mulf %212, %216 : vector<8x128xf32>
    %218 = arith.mulf %211, %215 : vector<8x128xf32>
    %219 = arith.addf %217, %218 : vector<8x128xf32>
    %220 = math.tanh %219 : vector<8x128xf32>
    %221 = arith.mulf %213, %220 : vector<8x128xf32>
    %c0_129 = arith.constant 0 : index
    %c0_130 = arith.constant 0 : index
    %222 = vector.load %arg6[%c0_129, %c0_130] : memref<8x128xf32, #tpu.memory_space<vmem>>, vector<8x128xf32>
    tpu.vector_store %arg6[%c0_129, %c0_130], %219 {strides = array<i32>} : memref<8x128xf32, #tpu.memory_space<vmem>>, vector<8x128xf32>,
    %c0_131 = arith.constant 0 : index
    %c0_132 = arith.constant 0 : index
    %223 = vector.load %arg5[%c0_131, %c0_132] : memref<8x128xf32, #tpu.memory_space<vmem>>, vector<8x128xf32>
    tpu.vector_store %arg5[%c0_131, %c0_132], %221 {strides = array<i32>} : memref<8x128xf32, #tpu.memory_space<vmem>>, vector<8x128xf32>,
    %c0_133 = arith.constant 0 : index
    %c7_134 = arith.constant 7 : index
    %c0_135 = arith.constant 0 : index
    %224 = vector.load %arg4[%c0_133, %c7_134, %c0_135] : memref<8x13x128xf32, #tpu.memory_space<vmem>>, vector<8x1x128xf32>
    %225 = vector.shape_cast %224 : vector<8x1x128xf32> to vector<8x128xf32>
    %226 = vector.shape_cast %221 : vector<8x128xf32> to vector<8x1x128xf32>
    tpu.vector_store %arg4[%c0_133, %c7_134, %c0_135], %226 {strides = array<i32>} : memref<8x13x128xf32, #tpu.memory_space<vmem>>, vector<8x1x128xf32>,
    %c0_136 = arith.constant 0 : index
    %c8 = arith.constant 8 : index
    %c0_137 = arith.constant 0 : index
    %227 = vector.load %arg2[%c0_136, %c8, %c0_137] : memref<8x13x512xf32, #tpu.memory_space<vmem>>, vector<8x1x512xf32>
    %228 = vector.shape_cast %227 : vector<8x1x512xf32> to vector<8x512xf32>
    %c0_138 = arith.constant 0 : index
    %c0_139 = arith.constant 0 : index
    %229 = vector.load %arg5[%c0_138, %c0_139] : memref<8x128xf32, #tpu.memory_space<vmem>>, vector<8x128xf32>
    %c0_140 = arith.constant 0 : index
    %c0_141 = arith.constant 0 : index
    %230 = vector.load %arg7[%c0_140, %c0_141] : memref<128x512xf32, #tpu.memory_space<vmem>>, vector<128x512xf32>
    %cst_142 = arith.constant dense<0.000000e+00> : vector<8x512xf32>
    %231 = tpu.matmul %229, %230, %cst_142 {dimension_numbers = #tpu.dot_dimension_numbers<[1], [0], [0], [1], [0, 0, 1, 1], [], []>} : vector<8x128xf32>, vector<128x512xf32>, vector<8x512xf32> -> vector<8x512xf32>
    %232 = arith.addf %228, %231 : vector<8x512xf32>
    %233 = vector.extract_strided_slice %232 {offsets = [0, 0], sizes = [8, 384], strides = [1, 1]} : vector<8x512xf32> to vector<8x384xf32>
    %234 = arith.negf %233 : vector<8x384xf32>
    %235 = math.exp %234 : vector<8x384xf32>
    %cst_143 = arith.constant 1.000000e+00 : f32
    %236 = vector.broadcast %cst_143 : f32 to vector<8x384xf32>
    %237 = arith.addf %236, %235 : vector<8x384xf32>
    %238 = arith.divf %236, %237 : vector<8x384xf32>
    %239 = vector.extract_strided_slice %238 {offsets = [0, 0], sizes = [8, 128], strides = [1, 1]} : vector<8x384xf32> to vector<8x128xf32>
    %240 = vector.extract_strided_slice %238 {offsets = [0, 128], sizes = [8, 128], strides = [1, 1]} : vector<8x384xf32> to vector<8x128xf32>
    %241 = vector.extract_strided_slice %238 {offsets = [0, 256], sizes = [8, 128], strides = [1, 1]} : vector<8x384xf32> to vector<8x128xf32>
    %242 = vector.extract_strided_slice %232 {offsets = [0, 384], sizes = [8, 128], strides = [1, 1]} : vector<8x512xf32> to vector<8x128xf32>
    %243 = math.tanh %242 : vector<8x128xf32>
    %c0_144 = arith.constant 0 : index
    %c0_145 = arith.constant 0 : index
    %244 = vector.load %arg6[%c0_144, %c0_145] : memref<8x128xf32, #tpu.memory_space<vmem>>, vector<8x128xf32>
    %245 = arith.mulf %240, %244 : vector<8x128xf32>
    %246 = arith.mulf %239, %243 : vector<8x128xf32>
    %247 = arith.addf %245, %246 : vector<8x128xf32>
    %248 = math.tanh %247 : vector<8x128xf32>
    %249 = arith.mulf %241, %248 : vector<8x128xf32>
    %c0_146 = arith.constant 0 : index
    %c0_147 = arith.constant 0 : index
    %250 = vector.load %arg6[%c0_146, %c0_147] : memref<8x128xf32, #tpu.memory_space<vmem>>, vector<8x128xf32>
    tpu.vector_store %arg6[%c0_146, %c0_147], %247 {strides = array<i32>} : memref<8x128xf32, #tpu.memory_space<vmem>>, vector<8x128xf32>,
    %c0_148 = arith.constant 0 : index
    %c0_149 = arith.constant 0 : index
    %251 = vector.load %arg5[%c0_148, %c0_149] : memref<8x128xf32, #tpu.memory_space<vmem>>, vector<8x128xf32>
    tpu.vector_store %arg5[%c0_148, %c0_149], %249 {strides = array<i32>} : memref<8x128xf32, #tpu.memory_space<vmem>>, vector<8x128xf32>,
    %c0_150 = arith.constant 0 : index
    %c8_151 = arith.constant 8 : index
    %c0_152 = arith.constant 0 : index
    %252 = vector.load %arg4[%c0_150, %c8_151, %c0_152] : memref<8x13x128xf32, #tpu.memory_space<vmem>>, vector<8x1x128xf32>
    %253 = vector.shape_cast %252 : vector<8x1x128xf32> to vector<8x128xf32>
    %254 = vector.shape_cast %249 : vector<8x128xf32> to vector<8x1x128xf32>
    tpu.vector_store %arg4[%c0_150, %c8_151, %c0_152], %254 {strides = array<i32>} : memref<8x13x128xf32, #tpu.memory_space<vmem>>, vector<8x1x128xf32>,
    %c0_153 = arith.constant 0 : index
    %c9 = arith.constant 9 : index
    %c0_154 = arith.constant 0 : index
    %255 = vector.load %arg2[%c0_153, %c9, %c0_154] : memref<8x13x512xf32, #tpu.memory_space<vmem>>, vector<8x1x512xf32>
    %256 = vector.shape_cast %255 : vector<8x1x512xf32> to vector<8x512xf32>
    %c0_155 = arith.constant 0 : index
    %c0_156 = arith.constant 0 : index
    %257 = vector.load %arg5[%c0_155, %c0_156] : memref<8x128xf32, #tpu.memory_space<vmem>>, vector<8x128xf32>
    %c0_157 = arith.constant 0 : index
    %c0_158 = arith.constant 0 : index
    %258 = vector.load %arg7[%c0_157, %c0_158] : memref<128x512xf32, #tpu.memory_space<vmem>>, vector<128x512xf32>
    %cst_159 = arith.constant dense<0.000000e+00> : vector<8x512xf32>
    %259 = tpu.matmul %257, %258, %cst_159 {dimension_numbers = #tpu.dot_dimension_numbers<[1], [0], [0], [1], [0, 0, 1, 1], [], []>} : vector<8x128xf32>, vector<128x512xf32>, vector<8x512xf32> -> vector<8x512xf32>
    %260 = arith.addf %256, %259 : vector<8x512xf32>
    %261 = vector.extract_strided_slice %260 {offsets = [0, 0], sizes = [8, 384], strides = [1, 1]} : vector<8x512xf32> to vector<8x384xf32>
    %262 = arith.negf %261 : vector<8x384xf32>
    %263 = math.exp %262 : vector<8x384xf32>
    %cst_160 = arith.constant 1.000000e+00 : f32
    %264 = vector.broadcast %cst_160 : f32 to vector<8x384xf32>
    %265 = arith.addf %264, %263 : vector<8x384xf32>
    %266 = arith.divf %264, %265 : vector<8x384xf32>
    %267 = vector.extract_strided_slice %266 {offsets = [0, 0], sizes = [8, 128], strides = [1, 1]} : vector<8x384xf32> to vector<8x128xf32>
    %268 = vector.extract_strided_slice %266 {offsets = [0, 128], sizes = [8, 128], strides = [1, 1]} : vector<8x384xf32> to vector<8x128xf32>
    %269 = vector.extract_strided_slice %266 {offsets = [0, 256], sizes = [8, 128], strides = [1, 1]} : vector<8x384xf32> to vector<8x128xf32>
    %270 = vector.extract_strided_slice %260 {offsets = [0, 384], sizes = [8, 128], strides = [1, 1]} : vector<8x512xf32> to vector<8x128xf32>
    %271 = math.tanh %270 : vector<8x128xf32>
    %c0_161 = arith.constant 0 : index
    %c0_162 = arith.constant 0 : index
    %272 = vector.load %arg6[%c0_161, %c0_162] : memref<8x128xf32, #tpu.memory_space<vmem>>, vector<8x128xf32>
    %273 = arith.mulf %268, %272 : vector<8x128xf32>
    %274 = arith.mulf %267, %271 : vector<8x128xf32>
    %275 = arith.addf %273, %274 : vector<8x128xf32>
    %276 = math.tanh %275 : vector<8x128xf32>
    %277 = arith.mulf %269, %276 : vector<8x128xf32>
    %c0_163 = arith.constant 0 : index
    %c0_164 = arith.constant 0 : index
    %278 = vector.load %arg6[%c0_163, %c0_164] : memref<8x128xf32, #tpu.memory_space<vmem>>, vector<8x128xf32>
    tpu.vector_store %arg6[%c0_163, %c0_164], %275 {strides = array<i32>} : memref<8x128xf32, #tpu.memory_space<vmem>>, vector<8x128xf32>,
    %c0_165 = arith.constant 0 : index
    %c0_166 = arith.constant 0 : index
    %279 = vector.load %arg5[%c0_165, %c0_166] : memref<8x128xf32, #tpu.memory_space<vmem>>, vector<8x128xf32>
    tpu.vector_store %arg5[%c0_165, %c0_166], %277 {strides = array<i32>} : memref<8x128xf32, #tpu.memory_space<vmem>>, vector<8x128xf32>,
    %c0_167 = arith.constant 0 : index
    %c9_168 = arith.constant 9 : index
    %c0_169 = arith.constant 0 : index
    %280 = vector.load %arg4[%c0_167, %c9_168, %c0_169] : memref<8x13x128xf32, #tpu.memory_space<vmem>>, vector<8x1x128xf32>
    %281 = vector.shape_cast %280 : vector<8x1x128xf32> to vector<8x128xf32>
    %282 = vector.shape_cast %277 : vector<8x128xf32> to vector<8x1x128xf32>
    tpu.vector_store %arg4[%c0_167, %c9_168, %c0_169], %282 {strides = array<i32>} : memref<8x13x128xf32, #tpu.memory_space<vmem>>, vector<8x1x128xf32>,
    %c0_170 = arith.constant 0 : index
    %c10 = arith.constant 10 : index
    %c0_171 = arith.constant 0 : index
    %283 = vector.load %arg2[%c0_170, %c10, %c0_171] : memref<8x13x512xf32, #tpu.memory_space<vmem>>, vector<8x1x512xf32>
    %284 = vector.shape_cast %283 : vector<8x1x512xf32> to vector<8x512xf32>
    %c0_172 = arith.constant 0 : index
    %c0_173 = arith.constant 0 : index
    %285 = vector.load %arg5[%c0_172, %c0_173] : memref<8x128xf32, #tpu.memory_space<vmem>>, vector<8x128xf32>
    %c0_174 = arith.constant 0 : index
    %c0_175 = arith.constant 0 : index
    %286 = vector.load %arg7[%c0_174, %c0_175] : memref<128x512xf32, #tpu.memory_space<vmem>>, vector<128x512xf32>
    %cst_176 = arith.constant dense<0.000000e+00> : vector<8x512xf32>
    %287 = tpu.matmul %285, %286, %cst_176 {dimension_numbers = #tpu.dot_dimension_numbers<[1], [0], [0], [1], [0, 0, 1, 1], [], []>} : vector<8x128xf32>, vector<128x512xf32>, vector<8x512xf32> -> vector<8x512xf32>
    %288 = arith.addf %284, %287 : vector<8x512xf32>
    %289 = vector.extract_strided_slice %288 {offsets = [0, 0], sizes = [8, 384], strides = [1, 1]} : vector<8x512xf32> to vector<8x384xf32>
    %290 = arith.negf %289 : vector<8x384xf32>
    %291 = math.exp %290 : vector<8x384xf32>
    %cst_177 = arith.constant 1.000000e+00 : f32
    %292 = vector.broadcast %cst_177 : f32 to vector<8x384xf32>
    %293 = arith.addf %292, %291 : vector<8x384xf32>
    %294 = arith.divf %292, %293 : vector<8x384xf32>
    %295 = vector.extract_strided_slice %294 {offsets = [0, 0], sizes = [8, 128], strides = [1, 1]} : vector<8x384xf32> to vector<8x128xf32>
    %296 = vector.extract_strided_slice %294 {offsets = [0, 128], sizes = [8, 128], strides = [1, 1]} : vector<8x384xf32> to vector<8x128xf32>
    %297 = vector.extract_strided_slice %294 {offsets = [0, 256], sizes = [8, 128], strides = [1, 1]} : vector<8x384xf32> to vector<8x128xf32>
    %298 = vector.extract_strided_slice %288 {offsets = [0, 384], sizes = [8, 128], strides = [1, 1]} : vector<8x512xf32> to vector<8x128xf32>
    %299 = math.tanh %298 : vector<8x128xf32>
    %c0_178 = arith.constant 0 : index
    %c0_179 = arith.constant 0 : index
    %300 = vector.load %arg6[%c0_178, %c0_179] : memref<8x128xf32, #tpu.memory_space<vmem>>, vector<8x128xf32>
    %301 = arith.mulf %296, %300 : vector<8x128xf32>
    %302 = arith.mulf %295, %299 : vector<8x128xf32>
    %303 = arith.addf %301, %302 : vector<8x128xf32>
    %304 = math.tanh %303 : vector<8x128xf32>
    %305 = arith.mulf %297, %304 : vector<8x128xf32>
    %c0_180 = arith.constant 0 : index
    %c0_181 = arith.constant 0 : index
    %306 = vector.load %arg6[%c0_180, %c0_181] : memref<8x128xf32, #tpu.memory_space<vmem>>, vector<8x128xf32>
    tpu.vector_store %arg6[%c0_180, %c0_181], %303 {strides = array<i32>} : memref<8x128xf32, #tpu.memory_space<vmem>>, vector<8x128xf32>,
    %c0_182 = arith.constant 0 : index
    %c0_183 = arith.constant 0 : index
    %307 = vector.load %arg5[%c0_182, %c0_183] : memref<8x128xf32, #tpu.memory_space<vmem>>, vector<8x128xf32>
    tpu.vector_store %arg5[%c0_182, %c0_183], %305 {strides = array<i32>} : memref<8x128xf32, #tpu.memory_space<vmem>>, vector<8x128xf32>,
    %c0_184 = arith.constant 0 : index
    %c10_185 = arith.constant 10 : index
    %c0_186 = arith.constant 0 : index
    %308 = vector.load %arg4[%c0_184, %c10_185, %c0_186] : memref<8x13x128xf32, #tpu.memory_space<vmem>>, vector<8x1x128xf32>
    %309 = vector.shape_cast %308 : vector<8x1x128xf32> to vector<8x128xf32>
    %310 = vector.shape_cast %305 : vector<8x128xf32> to vector<8x1x128xf32>
    tpu.vector_store %arg4[%c0_184, %c10_185, %c0_186], %310 {strides = array<i32>} : memref<8x13x128xf32, #tpu.memory_space<vmem>>, vector<8x1x128xf32>,
    %c0_187 = arith.constant 0 : index
    %c11 = arith.constant 11 : index
    %c0_188 = arith.constant 0 : index
    %311 = vector.load %arg2[%c0_187, %c11, %c0_188] : memref<8x13x512xf32, #tpu.memory_space<vmem>>, vector<8x1x512xf32>
    %312 = vector.shape_cast %311 : vector<8x1x512xf32> to vector<8x512xf32>
    %c0_189 = arith.constant 0 : index
    %c0_190 = arith.constant 0 : index
    %313 = vector.load %arg5[%c0_189, %c0_190] : memref<8x128xf32, #tpu.memory_space<vmem>>, vector<8x128xf32>
    %c0_191 = arith.constant 0 : index
    %c0_192 = arith.constant 0 : index
    %314 = vector.load %arg7[%c0_191, %c0_192] : memref<128x512xf32, #tpu.memory_space<vmem>>, vector<128x512xf32>
    %cst_193 = arith.constant dense<0.000000e+00> : vector<8x512xf32>
    %315 = tpu.matmul %313, %314, %cst_193 {dimension_numbers = #tpu.dot_dimension_numbers<[1], [0], [0], [1], [0, 0, 1, 1], [], []>} : vector<8x128xf32>, vector<128x512xf32>, vector<8x512xf32> -> vector<8x512xf32>
    %316 = arith.addf %312, %315 : vector<8x512xf32>
    %317 = vector.extract_strided_slice %316 {offsets = [0, 0], sizes = [8, 384], strides = [1, 1]} : vector<8x512xf32> to vector<8x384xf32>
    %318 = arith.negf %317 : vector<8x384xf32>
    %319 = math.exp %318 : vector<8x384xf32>
    %cst_194 = arith.constant 1.000000e+00 : f32
    %320 = vector.broadcast %cst_194 : f32 to vector<8x384xf32>
    %321 = arith.addf %320, %319 : vector<8x384xf32>
    %322 = arith.divf %320, %321 : vector<8x384xf32>
    %323 = vector.extract_strided_slice %322 {offsets = [0, 0], sizes = [8, 128], strides = [1, 1]} : vector<8x384xf32> to vector<8x128xf32>
    %324 = vector.extract_strided_slice %322 {offsets = [0, 128], sizes = [8, 128], strides = [1, 1]} : vector<8x384xf32> to vector<8x128xf32>
    %325 = vector.extract_strided_slice %322 {offsets = [0, 256], sizes = [8, 128], strides = [1, 1]} : vector<8x384xf32> to vector<8x128xf32>
    %326 = vector.extract_strided_slice %316 {offsets = [0, 384], sizes = [8, 128], strides = [1, 1]} : vector<8x512xf32> to vector<8x128xf32>
    %327 = math.tanh %326 : vector<8x128xf32>
    %c0_195 = arith.constant 0 : index
    %c0_196 = arith.constant 0 : index
    %328 = vector.load %arg6[%c0_195, %c0_196] : memref<8x128xf32, #tpu.memory_space<vmem>>, vector<8x128xf32>
    %329 = arith.mulf %324, %328 : vector<8x128xf32>
    %330 = arith.mulf %323, %327 : vector<8x128xf32>
    %331 = arith.addf %329, %330 : vector<8x128xf32>
    %332 = math.tanh %331 : vector<8x128xf32>
    %333 = arith.mulf %325, %332 : vector<8x128xf32>
    %c0_197 = arith.constant 0 : index
    %c0_198 = arith.constant 0 : index
    %334 = vector.load %arg6[%c0_197, %c0_198] : memref<8x128xf32, #tpu.memory_space<vmem>>, vector<8x128xf32>
    tpu.vector_store %arg6[%c0_197, %c0_198], %331 {strides = array<i32>} : memref<8x128xf32, #tpu.memory_space<vmem>>, vector<8x128xf32>,
    %c0_199 = arith.constant 0 : index
    %c0_200 = arith.constant 0 : index
    %335 = vector.load %arg5[%c0_199, %c0_200] : memref<8x128xf32, #tpu.memory_space<vmem>>, vector<8x128xf32>
    tpu.vector_store %arg5[%c0_199, %c0_200], %333 {strides = array<i32>} : memref<8x128xf32, #tpu.memory_space<vmem>>, vector<8x128xf32>,
    %c0_201 = arith.constant 0 : index
    %c11_202 = arith.constant 11 : index
    %c0_203 = arith.constant 0 : index
    %336 = vector.load %arg4[%c0_201, %c11_202, %c0_203] : memref<8x13x128xf32, #tpu.memory_space<vmem>>, vector<8x1x128xf32>
    %337 = vector.shape_cast %336 : vector<8x1x128xf32> to vector<8x128xf32>
    %338 = vector.shape_cast %333 : vector<8x128xf32> to vector<8x1x128xf32>
    tpu.vector_store %arg4[%c0_201, %c11_202, %c0_203], %338 {strides = array<i32>} : memref<8x13x128xf32, #tpu.memory_space<vmem>>, vector<8x1x128xf32>,
    %c0_204 = arith.constant 0 : index
    %c12 = arith.constant 12 : index
    %c0_205 = arith.constant 0 : index
    %339 = vector.load %arg2[%c0_204, %c12, %c0_205] : memref<8x13x512xf32, #tpu.memory_space<vmem>>, vector<8x1x512xf32>
    %340 = vector.shape_cast %339 : vector<8x1x512xf32> to vector<8x512xf32>
    %c0_206 = arith.constant 0 : index
    %c0_207 = arith.constant 0 : index
    %341 = vector.load %arg5[%c0_206, %c0_207] : memref<8x128xf32, #tpu.memory_space<vmem>>, vector<8x128xf32>
    %c0_208 = arith.constant 0 : index
    %c0_209 = arith.constant 0 : index
    %342 = vector.load %arg7[%c0_208, %c0_209] : memref<128x512xf32, #tpu.memory_space<vmem>>, vector<128x512xf32>
    %cst_210 = arith.constant dense<0.000000e+00> : vector<8x512xf32>
    %343 = tpu.matmul %341, %342, %cst_210 {dimension_numbers = #tpu.dot_dimension_numbers<[1], [0], [0], [1], [0, 0, 1, 1], [], []>} : vector<8x128xf32>, vector<128x512xf32>, vector<8x512xf32> -> vector<8x512xf32>
    %344 = arith.addf %340, %343 : vector<8x512xf32>
    %345 = vector.extract_strided_slice %344 {offsets = [0, 0], sizes = [8, 384], strides = [1, 1]} : vector<8x512xf32> to vector<8x384xf32>
    %346 = arith.negf %345 : vector<8x384xf32>
    %347 = math.exp %346 : vector<8x384xf32>
    %cst_211 = arith.constant 1.000000e+00 : f32
    %348 = vector.broadcast %cst_211 : f32 to vector<8x384xf32>
    %349 = arith.addf %348, %347 : vector<8x384xf32>
    %350 = arith.divf %348, %349 : vector<8x384xf32>
    %351 = vector.extract_strided_slice %350 {offsets = [0, 0], sizes = [8, 128], strides = [1, 1]} : vector<8x384xf32> to vector<8x128xf32>
    %352 = vector.extract_strided_slice %350 {offsets = [0, 128], sizes = [8, 128], strides = [1, 1]} : vector<8x384xf32> to vector<8x128xf32>
    %353 = vector.extract_strided_slice %350 {offsets = [0, 256], sizes = [8, 128], strides = [1, 1]} : vector<8x384xf32> to vector<8x128xf32>
    %354 = vector.extract_strided_slice %344 {offsets = [0, 384], sizes = [8, 128], strides = [1, 1]} : vector<8x512xf32> to vector<8x128xf32>
    %355 = math.tanh %354 : vector<8x128xf32>
    %c0_212 = arith.constant 0 : index
    %c0_213 = arith.constant 0 : index
    %356 = vector.load %arg6[%c0_212, %c0_213] : memref<8x128xf32, #tpu.memory_space<vmem>>, vector<8x128xf32>
    %357 = arith.mulf %352, %356 : vector<8x128xf32>
    %358 = arith.mulf %351, %355 : vector<8x128xf32>
    %359 = arith.addf %357, %358 : vector<8x128xf32>
    %360 = math.tanh %359 : vector<8x128xf32>
    %361 = arith.mulf %353, %360 : vector<8x128xf32>
    %c0_214 = arith.constant 0 : index
    %c0_215 = arith.constant 0 : index
    %362 = vector.load %arg6[%c0_214, %c0_215] : memref<8x128xf32, #tpu.memory_space<vmem>>, vector<8x128xf32>
    tpu.vector_store %arg6[%c0_214, %c0_215], %359 {strides = array<i32>} : memref<8x128xf32, #tpu.memory_space<vmem>>, vector<8x128xf32>,
    %c0_216 = arith.constant 0 : index
    %c0_217 = arith.constant 0 : index
    %363 = vector.load %arg5[%c0_216, %c0_217] : memref<8x128xf32, #tpu.memory_space<vmem>>, vector<8x128xf32>
    tpu.vector_store %arg5[%c0_216, %c0_217], %361 {strides = array<i32>} : memref<8x128xf32, #tpu.memory_space<vmem>>, vector<8x128xf32>,
    %c0_218 = arith.constant 0 : index
    %c12_219 = arith.constant 12 : index
    %c0_220 = arith.constant 0 : index
    %364 = vector.load %arg4[%c0_218, %c12_219, %c0_220] : memref<8x13x128xf32, #tpu.memory_space<vmem>>, vector<8x1x128xf32>
    %365 = vector.shape_cast %364 : vector<8x1x128xf32> to vector<8x128xf32>
    %366 = vector.shape_cast %361 : vector<8x128xf32> to vector<8x1x128xf32>
    tpu.vector_store %arg4[%c0_218, %c12_219, %c0_220], %366 {strides = array<i32>} : memref<8x13x128xf32, #tpu.memory_space<vmem>>, vector<8x1x128xf32>,
    return
  }
  func.func @transform_0(%arg0: i32, %arg1: i32) -> (i32, i32, i32) {
    %c0_i32 = arith.constant 0 : i32
    %c0_i32_0 = arith.constant 0 : i32
    return %arg0, %arg1, %c0_i32 : i32, i32, i32
  }
  func.func @transform_2(%arg0: i32, %arg1: i32) -> (i32, i32, i32) {
    %c0_i32 = arith.constant 0 : i32
    %c0_i32_0 = arith.constant 0 : i32
    return %arg0, %arg1, %c0_i32 : i32, i32, i32
  }
}

</mosaic_0001>

<llo_original>
// kernel: decoder_rnn_forward.1
$region0: #{decoder_rnn_forward.1}
  #allocation0 [shape = 'u32[]', space=smem, size = 0x4, offset = 0x4, fixed_abs, tag = 'smem constant byte address 0x4 - core index']
  #allocation1 [shape = 'u32[144,128]{1,0:T(1,128)}', space=vmem, size = 0x12000, scoped, tag = 'internal scratch']
  #allocation2 [shape = 'f32[8,128]{1,0:T(8,128)}', space=vmem, size = 0x1000, scoped, tag = 'scratch operand']
  #allocation3 [shape = 'f32[8,128]{1,0:T(8,128)}', space=vmem, size = 0x1000, scoped, tag = 'scratch operand']
  #allocation4 [shape = 'f32[128,512]{1,0:T(8,128)}', space=vmem, size = 0x40000, scoped, tag = 'scratch operand']
  #allocation5 [shape = 's32[1]{0}', space=sflag, size = 0x4, scoped, tag = 'scratch operand']
  #allocation6 [shape = 's32[]', space=sflag, size = 0x4, offset = 0, fixed_abs, tag = 'sflag constant byte address 0x0 - dummy sync flag']
  %s0 = inlined_call_operand.vmem [shape: f32[8,13,512], index: 0, kind: input, shape index: {}]
  %s1 = inlined_call_operand.vmem [shape: f32[128,512], index: 1, kind: input, shape index: {}]
  %s2 = inlined_call_operand.vmem [shape: f32[8,13,128], index: 2, kind: output, shape index: {}]
  %s3 = sld [smem:[#allocation0]]
  $region52: #{decoder_rnn_forward.1} parent=0
    _
  %s5 = ssub.s32 1, %s3
  %s6 = scalar_select 0, %s5, %s3
  // Predicated region
  $region2: #{decoder_rnn_forward.1} parent=0 // pred_check
    _
  $region3: #{decoder_rnn_forward.1} parent=0 // pred_check_branch
    %8 = sbr.rel (0) target = $region5
  $region4: #{decoder_rnn_forward.1} parent=0 // pred_region
    _
  $region5: #{decoder_rnn_forward.1} parent=0 // pred_fallthru
    _
  %p9 = scmp.eq.s32.totalorder 0, 0
  // Predicated region
  $region6: #{decoder_rnn_forward.1} parent=0 // pred_check
    %p10 = pneg %p9
  $region7: #{decoder_rnn_forward.1} parent=0 // pred_check_branch
    %12 = sbr.rel (%p10) target = $region9
  $region8: #{decoder_rnn_forward.1} parent=0 // pred_region
    %p14 = scmp.lt.u32.totalorder 512, 8
    %p15 = pneg %p14
    // Predicated region
    $region10: #{decoder_rnn_forward.1} parent=8 // pred_check
      _
    $region11: #{decoder_rnn_forward.1} parent=8 // pred_check_branch
      %17 = sbr.rel (%p14) target = $region13
    $region12: #{decoder_rnn_forward.1} parent=8 // pred_region
      %s33 = sand.u32 512, 7
      %p34 = scmp.eq.s32.totalorder %s33, 0
      // Predicated region
      $region25: #{decoder_rnn_forward.1} parent=12 // pred_check
        %p35 = pneg %p34
      $region26: #{decoder_rnn_forward.1} parent=12 // pred_check_branch
        %37 = sbr.rel (%p35) target = $region28
      $region27: #{decoder_rnn_forward.1} parent=12 // pred_region
        loop: start=0, step=1, limit=1
        $region29: #{decoder_rnn_forward.1} parent=27 // loop_pre_header
          _
        $region30: #{decoder_rnn_forward.1} parent=27 // loop_header
          %s39 = sphi 0, %s43
          %p40 = scmp.ge.s32.totalorder %s39, 1
          %s44 = sphi %s1, %s1
          %s45 = sphi [#allocation4], [#allocation4]
        $region31: #{decoder_rnn_forward.1} parent=27 // loop_header_branch
          %42 = sbr.rel (%p40) target = $region35
        $region32: #{decoder_rnn_forward.1} parent=27 // loop_body
          %v46 = vld [vmem:[%s44] sm:$0xff]
          %47 = vst [vmem:[%s45] sm:$0xff] %v46
          %v48 = vld [vmem:[%s44 + $0x8] sm:$0xff]
          %49 = vst [vmem:[%s45 + $0x8] sm:$0xff] %v48
          %v50 = vld [vmem:[%s44 + $0x10] sm:$0xff]
          %51 = vst [vmem:[%s45 + $0x10] sm:$0xff] %v50
          %v52 = vld [vmem:[%s44 + $0x18] sm:$0xff]
          %53 = vst [vmem:[%s45 + $0x18] sm:$0xff] %v52
          %v54 = vld [vmem:[%s44 + $0x20] sm:$0xff]
          %55 = vst [vmem:[%s45 + $0x20] sm:$0xff] %v54
          %v56 = vld [vmem:[%s44 + $0x28] sm:$0xff]
          %57 = vst [vmem:[%s45 + $0x28] sm:$0xff] %v56
          %v58 = vld [vmem:[%s44 + $0x30] sm:$0xff]
          %59 = vst [vmem:[%s45 + $0x30] sm:$0xff] %v58
          %v60 = vld [vmem:[%s44 + $0x38] sm:$0xff]
          %61 = vst [vmem:[%s45 + $0x38] sm:$0xff] %v60
          %v62 = vld [vmem:[%s44 + $0x40] sm:$0xff]
          %63 = vst [vmem:[%s45 + $0x40] sm:$0xff] %v62
          %v64 = vld [vmem:[%s44 + $0x48] sm:$0xff]
          %65 = vst [vmem:[%s45 + $0x48] sm:$0xff] %v64
          %v66 = vld [vmem:[%s44 + $0x50] sm:$0xff]
          %67 = vst [vmem:[%s45 + $0x50] sm:$0xff] %v66
          %v68 = vld [vmem:[%s44 + $0x58] sm:$0xff]
          %69 = vst [vmem:[%s45 + $0x58] sm:$0xff] %v68
          %v70 = vld [vmem:[%s44 + $0x60] sm:$0xff]
          %71 = vst [vmem:[%s45 + $0x60] sm:$0xff] %v70
          %v72 = vld [vmem:[%s44 + $0x68] sm:$0xff]
          %73 = vst [vmem:[%s45 + $0x68] sm:$0xff] %v72
          %v74 = vld [vmem:[%s44 + $0x70] sm:$0xff]
          %75 = vst [vmem:[%s45 + $0x70] sm:$0xff] %v74
          %v76 = vld [vmem:[%s44 + $0x78] sm:$0xff]
          %77 = vst [vmem:[%s45 + $0x78] sm:$0xff] %v76
          %v78 = vld [vmem:[%s44 + $0x80] sm:$0xff]
          %79 = vst [vmem:[%s45 + $0x80] sm:$0xff] %v78
          %v80 = vld [vmem:[%s44 + $0x88] sm:$0xff]
          %81 = vst [vmem:[%s45 + $0x88] sm:$0xff] %v80
          %v82 = vld [vmem:[%s44 + $0x90] sm:$0xff]
          %83 = vst [vmem:[%s45 + $0x90] sm:$0xff] %v82
          %v84 = vld [vmem:[%s44 + $0x98] sm:$0xff]
          %85 = vst [vmem:[%s45 + $0x98] sm:$0xff] %v84
          %v86 = vld [vmem:[%s44 + $0xa0] sm:$0xff]
          %87 = vst [vmem:[%s45 + $0xa0] sm:$0xff] %v86
          %v88 = vld [vmem:[%s44 + $0xa8] sm:$0xff]
          %89 = vst [vmem:[%s45 + $0xa8] sm:$0xff] %v88
          %v90 = vld [vmem:[%s44 + $0xb0] sm:$0xff]
          %91 = vst [vmem:[%s45 + $0xb0] sm:$0xff] %v90
          %v92 = vld [vmem:[%s44 + $0xb8] sm:$0xff]
          %93 = vst [vmem:[%s45 + $0xb8] sm:$0xff] %v92
          %v94 = vld [vmem:[%s44 + $0xc0] sm:$0xff]
          %95 = vst [vmem:[%s45 + $0xc0] sm:$0xff] %v94
          %v96 = vld [vmem:[%s44 + $0xc8] sm:$0xff]
          %97 = vst [vmem:[%s45 + $0xc8] sm:$0xff] %v96
          %v98 = vld [vmem:[%s44 + $0xd0] sm:$0xff]
          %99 = vst [vmem:[%s45 + $0xd0] sm:$0xff] %v98
          %v100 = vld [vmem:[%s44 + $0xd8] sm:$0xff]
          %101 = vst [vmem:[%s45 + $0xd8] sm:$0xff] %v100
          %v102 = vld [vmem:[%s44 + $0xe0] sm:$0xff]
          %103 = vst [vmem:[%s45 + $0xe0] sm:$0xff] %v102
          %v104 = vld [vmem:[%s44 + $0xe8] sm:$0xff]
          %105 = vst [vmem:[%s45 + $0xe8] sm:$0xff] %v104
          %v106 = vld [vmem:[%s44 + $0xf0] sm:$0xff]
          %107 = vst [vmem:[%s45 + $0xf0] sm:$0xff] %v106
          %v108 = vld [vmem:[%s44 + $0xf8] sm:$0xff]
          %109 = vst [vmem:[%s45 + $0xf8] sm:$0xff] %v108
          %v110 = vld [vmem:[%s44 + $0x100] sm:$0xff]
          %111 = vst [vmem:[%s45 + $0x100] sm:$0xff] %v110
          %v112 = vld [vmem:[%s44 + $0x108] sm:$0xff]
          %113 = vst [vmem:[%s45 + $0x108] sm:$0xff] %v112
          %v114 = vld [vmem:[%s44 + $0x110] sm:$0xff]
          %115 = vst [vmem:[%s45 + $0x110] sm:$0xff] %v114
          %v116 = vld [vmem:[%s44 + $0x118] sm:$0xff]
          %117 = vst [vmem:[%s45 + $0x118] sm:$0xff] %v116
          %v118 = vld [vmem:[%s44 + $0x120] sm:$0xff]
          %119 = vst [vmem:[%s45 + $0x120] sm:$0xff] %v118
          %v120 = vld [vmem:[%s44 + $0x128] sm:$0xff]
          %121 = vst [vmem:[%s45 + $0x128] sm:$0xff] %v120
          %v122 = vld [vmem:[%s44 + $0x130] sm:$0xff]
          %123 = vst [vmem:[%s45 + $0x130] sm:$0xff] %v122
          %v124 = vld [vmem:[%s44 + $0x138] sm:$0xff]
          %125 = vst [vmem:[%s45 + $0x138] sm:$0xff] %v124
          %v126 = vld [vmem:[%s44 + $0x140] sm:$0xff]
          %127 = vst [vmem:[%s45 + $0x140] sm:$0xff] %v126
          %v128 = vld [vmem:[%s44 + $0x148] sm:$0xff]
          %129 = vst [vmem:[%s45 + $0x148] sm:$0xff] %v128
          %v130 = vld [vmem:[%s44 + $0x150] sm:$0xff]
          %131 = vst [vmem:[%s45 + $0x150] sm:$0xff] %v130
          %v132 = vld [vmem:[%s44 + $0x158] sm:$0xff]
          %133 = vst [vmem:[%s45 + $0x158] sm:$0xff] %v132
          %v134 = vld [vmem:[%s44 + $0x160] sm:$0xff]
          %135 = vst [vmem:[%s45 + $0x160] sm:$0xff] %v134
          %v136 = vld [vmem:[%s44 + $0x168] sm:$0xff]
          %137 = vst [vmem:[%s45 + $0x168] sm:$0xff] %v136
          %v138 = vld [vmem:[%s44 + $0x170] sm:$0xff]
          %139 = vst [vmem:[%s45 + $0x170] sm:$0xff] %v138
          %v140 = vld [vmem:[%s44 + $0x178] sm:$0xff]
          %141 = vst [vmem:[%s45 + $0x178] sm:$0xff] %v140
          %v142 = vld [vmem:[%s44 + $0x180] sm:$0xff]
          %143 = vst [vmem:[%s45 + $0x180] sm:$0xff] %v142
          %v144 = vld [vmem:[%s44 + $0x188] sm:$0xff]
          %145 = vst [vmem:[%s45 + $0x188] sm:$0xff] %v144
          %v146 = vld [vmem:[%s44 + $0x190] sm:$0xff]
          %147 = vst [vmem:[%s45 + $0x190] sm:$0xff] %v146
          %v148 = vld [vmem:[%s44 + $0x198] sm:$0xff]
          %149 = vst [vmem:[%s45 + $0x198] sm:$0xff] %v148
          %v150 = vld [vmem:[%s44 + $0x1a0] sm:$0xff]
          %151 = vst [vmem:[%s45 + $0x1a0] sm:$0xff] %v150
          %v152 = vld [vmem:[%s44 + $0x1a8] sm:$0xff]
          %153 = vst [vmem:[%s45 + $0x1a8] sm:$0xff] %v152
          %v154 = vld [vmem:[%s44 + $0x1b0] sm:$0xff]
          %155 = vst [vmem:[%s45 + $0x1b0] sm:$0xff] %v154
          %v156 = vld [vmem:[%s44 + $0x1b8] sm:$0xff]
          %157 = vst [vmem:[%s45 + $0x1b8] sm:$0xff] %v156
          %v158 = vld [vmem:[%s44 + $0x1c0] sm:$0xff]
          %159 = vst [vmem:[%s45 + $0x1c0] sm:$0xff] %v158
          %v160 = vld [vmem:[%s44 + $0x1c8] sm:$0xff]
          %161 = vst [vmem:[%s45 + $0x1c8] sm:$0xff] %v160
          %v162 = vld [vmem:[%s44 + $0x1d0] sm:$0xff]
          %163 = vst [vmem:[%s45 + $0x1d0] sm:$0xff] %v162
          %v164 = vld [vmem:[%s44 + $0x1d8] sm:$0xff]
          %165 = vst [vmem:[%s45 + $0x1d8] sm:$0xff] %v164
          %v166 = vld [vmem:[%s44 + $0x1e0] sm:$0xff]
          %167 = vst [vmem:[%s45 + $0x1e0] sm:$0xff] %v166
          %v168 = vld [vmem:[%s44 + $0x1e8] sm:$0xff]
          %169 = vst [vmem:[%s45 + $0x1e8] sm:$0xff] %v168
          %v170 = vld [vmem:[%s44 + $0x1f0] sm:$0xff]
          %171 = vst [vmem:[%s45 + $0x1f0] sm:$0xff] %v170
          %v172 = vld [vmem:[%s44 + $0x1f8] sm:$0xff]
          %173 = vst [vmem:[%s45 + $0x1f8] sm:$0xff] %v172
        $region33: #{decoder_rnn_forward.1} parent=27 // loop_footer
          %s43 = sadd.s32 1, %s39
        $region34: #{decoder_rnn_forward.1} parent=27 // loop_footer_branch
          %38 = sbr.rel target = $region30
        $region35: #{decoder_rnn_forward.1} parent=27 // loop_exit
          _
      $region28: #{decoder_rnn_forward.1} parent=12 // pred_fallthru
        _
      %p174 = pneg %p34
      // Predicated region
      $region36: #{decoder_rnn_forward.1} parent=12 // pred_check
        _
      $region37: #{decoder_rnn_forward.1} parent=12 // pred_check_branch
        %176 = sbr.rel (%p34) target = $region39
      $region38: #{decoder_rnn_forward.1} parent=12 // pred_region
        %s177 = sand.u32 512, 7
      $region39: #{decoder_rnn_forward.1} parent=12 // pred_fallthru
        _
    $region13: #{decoder_rnn_forward.1} parent=8 // pred_fallthru
      _
    // Predicated region
    $region14: #{decoder_rnn_forward.1} parent=8 // pred_check
      %p18 = pneg %p14
    $region15: #{decoder_rnn_forward.1} parent=8 // pred_check_branch
      %20 = sbr.rel (%p18) target = $region17
    $region16: #{decoder_rnn_forward.1} parent=8 // pred_region
      %s21 = sshll.u32 1, 512
      %s22 = ssub.s32 %s21, 1
      loop: start=0, step=1, limit=1
      $region18: #{decoder_rnn_forward.1} parent=16 // loop_pre_header
        _
      $region19: #{decoder_rnn_forward.1} parent=16 // loop_header
        %s24 = sphi 0, %s28
        %p25 = scmp.ge.s32.totalorder %s24, 1
        %s29 = sphi %s1, %s1
        %s30 = sphi [#allocation4], [#allocation4]
      $region20: #{decoder_rnn_forward.1} parent=16 // loop_header_branch
        %27 = sbr.rel (%p25) target = $region24
      $region21: #{decoder_rnn_forward.1} parent=16 // loop_body
        %v31 = vld [vmem:[%s29] sm:%s22]
        %32 = vst [vmem:[%s30] sm:%s22] %v31
      $region22: #{decoder_rnn_forward.1} parent=16 // loop_footer
        %s28 = sadd.s32 1, %s24
      $region23: #{decoder_rnn_forward.1} parent=16 // loop_footer_branch
        %23 = sbr.rel target = $region19
      $region24: #{decoder_rnn_forward.1} parent=16 // loop_exit
        _
    $region17: #{decoder_rnn_forward.1} parent=8 // pred_fallthru
      _
    // Predicated region
    $region40: #{decoder_rnn_forward.1} parent=8 // pred_check
      _
    $region41: #{decoder_rnn_forward.1} parent=8 // pred_check_branch
      %180 = sbr.rel (0) target = $region43
    $region42: #{decoder_rnn_forward.1} parent=8 // pred_region
      %181 = vsyncadd [#allocation5], 8192
    $region43: #{decoder_rnn_forward.1} parent=8 // pred_fallthru
      _
    %s182 = smul.u32 8, 16
    %s183 = smul.u32 %s182, 4
    %s184 = sshll.u32 %s183, 4
    %185 = dma.done [#allocation5], %s184
    %186 = vst [vmem:[#allocation2] sm:$0xff] 0.0
    %187 = vst [vmem:[#allocation3] sm:$0xff] 0.0
  $region9: #{decoder_rnn_forward.1} parent=0 // pred_fallthru
    _
  %v188 = vld [vmem:[%s0] ss:$8 sm:$0xf]
  %s189 = scalar_lea.vmem %s0, 64
  %v190 = vld [vmem:[%s189] ss:$8 sm:$0xf]
  %s191 = scalar_lea.vmem %s0, 128
  %v192 = vld [vmem:[%s191] ss:$8 sm:$0xf]
  %s193 = scalar_lea.vmem %s0, 192
  %v194 = vld [vmem:[%s193] ss:$8 sm:$0xf]
  %s195 = scalar_lea.vmem %s0, 256
  %v196 = vld [vmem:[%s195] ss:$8 sm:$0xf]
  %s197 = scalar_lea.vmem %s0, 320
  %v198 = vld [vmem:[%s197] ss:$8 sm:$0xf]
  %s199 = scalar_lea.vmem %s0, 384
  %v200 = vld [vmem:[%s199] ss:$8 sm:$0xf]
  %s201 = scalar_lea.vmem %s0, 448
  %v202 = vld [vmem:[%s201] ss:$8 sm:$0xf]
  %v203 = vld [vmem:[#allocation2] sm:$0xff]
  %v204 = vld [vmem:[#allocation4] sm:$0xff]
  %v205 = vld [vmem:[#allocation4 + $0x8] sm:$0xff]
  %v206 = vld [vmem:[#allocation4 + $0x10] sm:$0xff]
  %v207 = vld [vmem:[#allocation4 + $0x18] sm:$0xff]
  %v208 = vld [vmem:[#allocation4 + $0x20] sm:$0xff]
  %v209 = vld [vmem:[#allocation4 + $0x28] sm:$0xff]
  %v210 = vld [vmem:[#allocation4 + $0x30] sm:$0xff]
  %v211 = vld [vmem:[#allocation4 + $0x38] sm:$0xff]
  %v212 = vld [vmem:[#allocation4 + $0x40] sm:$0xff]
  %v213 = vld [vmem:[#allocation4 + $0x48] sm:$0xff]
  %v214 = vld [vmem:[#allocation4 + $0x50] sm:$0xff]
  %v215 = vld [vmem:[#allocation4 + $0x58] sm:$0xff]
  %v216 = vld [vmem:[#allocation4 + $0x60] sm:$0xff]
  %v217 = vld [vmem:[#allocation4 + $0x68] sm:$0xff]
  %v218 = vld [vmem:[#allocation4 + $0x70] sm:$0xff]
  %v219 = vld [vmem:[#allocation4 + $0x78] sm:$0xff]
  %v220 = vld [vmem:[#allocation4 + $0x80] sm:$0xff]
  %v221 = vld [vmem:[#allocation4 + $0x88] sm:$0xff]
  %v222 = vld [vmem:[#allocation4 + $0x90] sm:$0xff]
  %v223 = vld [vmem:[#allocation4 + $0x98] sm:$0xff]
  %v224 = vld [vmem:[#allocation4 + $0xa0] sm:$0xff]
  %v225 = vld [vmem:[#allocation4 + $0xa8] sm:$0xff]
  %v226 = vld [vmem:[#allocation4 + $0xb0] sm:$0xff]
  %v227 = vld [vmem:[#allocation4 + $0xb8] sm:$0xff]
  %v228 = vld [vmem:[#allocation4 + $0xc0] sm:$0xff]
  %v229 = vld [vmem:[#allocation4 + $0xc8] sm:$0xff]
  %v230 = vld [vmem:[#allocation4 + $0xd0] sm:$0xff]
  %v231 = vld [vmem:[#allocation4 + $0xd8] sm:$0xff]
  %v232 = vld [vmem:[#allocation4 + $0xe0] sm:$0xff]
  %v233 = vld [vmem:[#allocation4 + $0xe8] sm:$0xff]
  %v234 = vld [vmem:[#allocation4 + $0xf0] sm:$0xff]
  %v235 = vld [vmem:[#allocation4 + $0xf8] sm:$0xff]
  %v236 = vld [vmem:[#allocation4 + $0x100] sm:$0xff]
  %v237 = vld [vmem:[#allocation4 + $0x108] sm:$0xff]
  %v238 = vld [vmem:[#allocation4 + $0x110] sm:$0xff]
  %v239 = vld [vmem:[#allocation4 + $0x118] sm:$0xff]
  %v240 = vld [vmem:[#allocation4 + $0x120] sm:$0xff]
  %v241 = vld [vmem:[#allocation4 + $0x128] sm:$0xff]
  %v242 = vld [vmem:[#allocation4 + $0x130] sm:$0xff]
  %v243 = vld [vmem:[#allocation4 + $0x138] sm:$0xff]
  %v244 = vld [vmem:[#allocation4 + $0x140] sm:$0xff]
  %v245 = vld [vmem:[#allocation4 + $0x148] sm:$0xff]
  %v246 = vld [vmem:[#allocation4 + $0x150] sm:$0xff]
  %v247 = vld [vmem:[#allocation4 + $0x158] sm:$0xff]
  %v248 = vld [vmem:[#allocation4 + $0x160] sm:$0xff]
  %v249 = vld [vmem:[#allocation4 + $0x168] sm:$0xff]
  %v250 = vld [vmem:[#allocation4 + $0x170] sm:$0xff]
  %v251 = vld [vmem:[#allocation4 + $0x178] sm:$0xff]
  %v252 = vld [vmem:[#allocation4 + $0x180] sm:$0xff]
  %v253 = vld [vmem:[#allocation4 + $0x188] sm:$0xff]
  %v254 = vld [vmem:[#allocation4 + $0x190] sm:$0xff]
  %v255 = vld [vmem:[#allocation4 + $0x198] sm:$0xff]
  %v256 = vld [vmem:[#allocation4 + $0x1a0] sm:$0xff]
  %v257 = vld [vmem:[#allocation4 + $0x1a8] sm:$0xff]
  %v258 = vld [vmem:[#allocation4 + $0x1b0] sm:$0xff]
  %v259 = vld [vmem:[#allocation4 + $0x1b8] sm:$0xff]
  %v260 = vld [vmem:[#allocation4 + $0x1c0] sm:$0xff]
  %v261 = vld [vmem:[#allocation4 + $0x1c8] sm:$0xff]
  %v262 = vld [vmem:[#allocation4 + $0x1d0] sm:$0xff]
  %v263 = vld [vmem:[#allocation4 + $0x1d8] sm:$0xff]
  %v264 = vld [vmem:[#allocation4 + $0x1e0] sm:$0xff]
  %v265 = vld [vmem:[#allocation4 + $0x1e8] sm:$0xff]
  %v266 = vld [vmem:[#allocation4 + $0x1f0] sm:$0xff]
  %v267 = vld [vmem:[#allocation4 + $0x1f8] sm:$0xff]
  %268 = vmatprep.subr.mxu0 %v265
  %269 = vmatpush1.msra.mxu0 %v264
  %270 = vmatprep.subr.mxu0 %v261
  %271 = vmatpush1.msra.mxu0 %v260
  %272 = vmatprep.subr.mxu0 %v257
  %273 = vmatpush1.msra.mxu0 %v256
  %274 = vmatprep.subr.mxu0 %v253
  %275 = vmatpush1.msra.mxu0 %v252
  %276 = vmatprep.subr.mxu0 %v249
  %277 = vmatpush1.msra.mxu0 %v248
  %278 = vmatprep.subr.mxu0 %v245
  %279 = vmatpush1.msra.mxu0 %v244
  %280 = vmatprep.subr.mxu0 %v241
  %281 = vmatpush1.msra.mxu0 %v240
  %282 = vmatprep.subr.mxu0 %v237
  %283 = vmatpush1.msra.mxu0 %v236
  %284 = vmatprep.subr.mxu0 %v233
  %285 = vmatpush1.msra.mxu0 %v232
  %286 = vmatprep.subr.mxu0 %v229
  %287 = vmatpush1.msra.mxu0 %v228
  %288 = vmatprep.subr.mxu0 %v225
  %289 = vmatpush1.msra.mxu0 %v224
  %290 = vmatprep.subr.mxu0 %v221
  %291 = vmatpush1.msra.mxu0 %v220
  %292 = vmatprep.subr.mxu0 %v217
  %293 = vmatpush1.msra.mxu0 %v216
  %294 = vmatprep.subr.mxu0 %v213
  %295 = vmatpush1.msra.mxu0 %v212
  %296 = vmatprep.subr.mxu0 %v209
  %297 = vmatpush1.msra.mxu0 %v208
  %298 = vmatprep.subr.mxu0 %v205
  %299 = vmatpush1.msra.mxu0 %v204
  %300 = vmatprep.subr.mxu0 0.0
  %301 = vmatpush2.msra.mxu0 0.0
  %302 = vmatprep.subr.mxu0 0.0
  %303 = vmatpush2.msra.mxu0 0.0
  %304 = vmatprep.subr.mxu0 0.0
  %305 = vmatpush2.msra.mxu0 0.0
  %306 = vmatprep.subr.mxu0 0.0
  %307 = vmatpush2.msra.mxu0 0.0
  %308 = vmatprep.subr.mxu0 0.0
  %309 = vmatpush2.msra.mxu0 0.0
  %310 = vmatprep.subr.mxu0 0.0
  %311 = vmatpush2.msra.mxu0 0.0
  %312 = vmatprep.subr.mxu0 0.0
  %313 = vmatpush2.msra.mxu0 0.0
  %314 = vmatprep.subr.mxu0 0.0
  %315 = vmatpush2.msra.mxu0 0.0
  %316 = vmatprep.subr.mxu0 0.0
  %317 = vmatpush2.msra.mxu0 0.0
  %318 = vmatprep.subr.mxu0 0.0
  %319 = vmatpush2.msra.mxu0 0.0
  %320 = vmatprep.subr.mxu0 0.0
  %321 = vmatpush2.msra.mxu0 0.0
  %322 = vmatprep.subr.mxu0 0.0
  %323 = vmatpush2.msra.mxu0 0.0
  %324 = vmatprep.subr.mxu0 0.0
  %325 = vmatpush2.msra.mxu0 0.0
  %326 = vmatprep.subr.mxu0 0.0
  %327 = vmatpush2.msra.mxu0 0.0
  %328 = vmatprep.subr.mxu0 0.0
  %329 = vmatpush2.msra.mxu0 0.0
  %330 = vmatprep.subr.mxu0 0.0
  %331 = vmatpush2.msra.mxu0 0.0
  %332 = vmatprep.mubr.f32.mxu0 0.0
  %333 = vmatmul.mubr.f32.gmra.mxu0 %v203
  %v334 = vpop.f32.mrf.mxu0
  %v335 = vadd.f32 0.0, %v334
  %v336 = vpop.f32.mrf.mxu0
  %v337 = vadd.f32 0.0, %v336
  %338 = vdwg.mxu0
  %339 = vmatprep.subr.mxu0 %v267
  %340 = vmatpush1.msra.mxu0 %v266
  %341 = vmatprep.subr.mxu0 %v263
  %342 = vmatpush1.msra.mxu0 %v262
  %343 = vmatprep.subr.mxu0 %v259
  %344 = vmatpush1.msra.mxu0 %v258
  %345 = vmatprep.subr.mxu0 %v255
  %346 = vmatpush1.msra.mxu0 %v254
  %347 = vmatprep.subr.mxu0 %v251
  %348 = vmatpush1.msra.mxu0 %v250
  %349 = vmatprep.subr.mxu0 %v247
  %350 = vmatpush1.msra.mxu0 %v246
  %351 = vmatprep.subr.mxu0 %v243
  %352 = vmatpush1.msra.mxu0 %v242
  %353 = vmatprep.subr.mxu0 %v239
  %354 = vmatpush1.msra.mxu0 %v238
  %355 = vmatprep.subr.mxu0 %v235
  %356 = vmatpush1.msra.mxu0 %v234
  %357 = vmatprep.subr.mxu0 %v231
  %358 = vmatpush1.msra.mxu0 %v230
  %359 = vmatprep.subr.mxu0 %v227
  %360 = vmatpush1.msra.mxu0 %v226
  %361 = vmatprep.subr.mxu0 %v223
  %362 = vmatpush1.msra.mxu0 %v222
  %363 = vmatprep.subr.mxu0 %v219
  %364 = vmatpush1.msra.mxu0 %v218
  %365 = vmatprep.subr.mxu0 %v215
  %366 = vmatpush1.msra.mxu0 %v214
  %367 = vmatprep.subr.mxu0 %v211
  %368 = vmatpush1.msra.mxu0 %v210
  %369 = vmatprep.subr.mxu0 %v207
  %370 = vmatpush1.msra.mxu0 %v206
  %371 = vmatprep.subr.mxu0 0.0
  %372 = vmatpush2.msra.mxu0 0.0
  %373 = vmatprep.subr.mxu0 0.0
  %374 = vmatpush2.msra.mxu0 0.0
  %375 = vmatprep.subr.mxu0 0.0
  %376 = vmatpush2.msra.mxu0 0.0
  %377 = vmatprep.subr.mxu0 0.0
  %378 = vmatpush2.msra.mxu0 0.0
  %379 = vmatprep.subr.mxu0 0.0
  %380 = vmatpush2.msra.mxu0 0.0
  %381 = vmatprep.subr.mxu0 0.0
  %382 = vmatpush2.msra.mxu0 0.0
  %383 = vmatprep.subr.mxu0 0.0
  %384 = vmatpush2.msra.mxu0 0.0
  %385 = vmatprep.subr.mxu0 0.0
  %386 = vmatpush2.msra.mxu0 0.0
  %387 = vmatprep.subr.mxu0 0.0
  %388 = vmatpush2.msra.mxu0 0.0
  %389 = vmatprep.subr.mxu0 0.0
  %390 = vmatpush2.msra.mxu0 0.0
  %391 = vmatprep.subr.mxu0 0.0
  %392 = vmatpush2.msra.mxu0 0.0
  %393 = vmatprep.subr.mxu0 0.0
  %394 = vmatpush2.msra.mxu0 0.0
  %395 = vmatprep.subr.mxu0 0.0
  %396 = vmatpush2.msra.mxu0 0.0
  %397 = vmatprep.subr.mxu0 0.0
  %398 = vmatpush2.msra.mxu0 0.0
  %399 = vmatprep.subr.mxu0 0.0
  %400 = vmatpush2.msra.mxu0 0.0
  %401 = vmatprep.subr.mxu0 0.0
  %402 = vmatpush2.msra.mxu0 0.0
  %403 = vmatprep.mubr.f32.mxu0 0.0
  %404 = vmatmul.mubr.f32.gmra.mxu0 %v203
  %v405 = vpop.f32.mrf.mxu0
  %v406 = vadd.f32 0.0, %v405
  %v407 = vpop.f32.mrf.mxu0
  %v408 = vadd.f32 0.0, %v407
  %409 = vdwg.mxu0
  %v414 = vcombine.low %v335, %v337
  %v415 = vcombine.high %v335, %v337
  %v416 = vcombine.low %v406, %v408
  %v417 = vcombine.high %v406, %v408
  %v419 = vunpack.c.l.s4 1966171168
  %v420 = vunpack.c.0.s8 %v419
  %v421 = vlaneseq
  %v422 = vshrl.u32 %v421, 7
  %v423 = vsub.s32 %v420, %v422
  %v424 = vrot.slane %v414, %v423
  %v426 = vunpack.c.l.s4 1966171168
  %v427 = vunpack.c.0.s8 %v426
  %v428 = vlaneseq
  %v429 = vshrl.u32 %v428, 7
  %v430 = vsub.s32 %v427, %v429
  %v431 = vrot.slane %v415, %v430
  %v433 = vunpack.c.l.s4 1966171168
  %v434 = vunpack.c.0.s8 %v433
  %v435 = vlaneseq
  %v436 = vshrl.u32 %v435, 7
  %v437 = vsub.s32 %v434, %v436
  %v438 = vrot.slane %v416, %v437
  %v440 = vunpack.c.l.s4 1966171168
  %v441 = vunpack.c.0.s8 %v440
  %v442 = vlaneseq
  %v443 = vshrl.u32 %v442, 7
  %v444 = vsub.s32 %v441, %v443
  %v445 = vrot.slane %v417, %v444
  %v446 = vcombine.low %v424, %v438
  %v447 = vcombine.high %v424, %v438
  %v448 = vcombine.low %v431, %v445
  %v449 = vcombine.high %v431, %v445
  %v451 = vunpack.c.l.s4 1966171168
  %v452 = vunpack.c.0.s8 %v451
  %v453 = vlaneseq
  %v454 = vshrl.u32 %v453, 7
  %v455 = vsub.s32 %v452, %v454
  %v456 = vrot.slane %v446, %v455
  %v458 = vunpack.c.l.s4 1966171168
  %v459 = vunpack.c.0.s8 %v458
  %v460 = vlaneseq
  %v461 = vshrl.u32 %v460, 7
  %v462 = vsub.s32 %v459, %v461
  %v463 = vrot.slane %v448, %v462
  %v465 = vunpack.c.l.s4 1966171168
  %v466 = vunpack.c.0.s8 %v465
  %v467 = vlaneseq
  %v468 = vshrl.u32 %v467, 7
  %v469 = vsub.s32 %v466, %v468
  %v470 = vrot.slane %v447, %v469
  %v472 = vunpack.c.l.s4 1966171168
  %v473 = vunpack.c.0.s8 %v472
  %v474 = vlaneseq
  %v475 = vshrl.u32 %v474, 7
  %v476 = vsub.s32 %v473, %v475
  %v477 = vrot.slane %v449, %v476
  %v478 = vcombine.high %v456, %v456
  %v479 = vcombine.high %v463, %v463
  %v480 = vcombine.high %v470, %v470
  %v481 = vcombine.high %v477, %v477
  %v490 = vadd.f32 %v188, %v456
  %v491 = vadd.f32 %v190, %v470
  %v492 = vadd.f32 %v192, %v478
  %v493 = vadd.f32 %v194, %v480
  %v494 = vadd.f32 %v196, %v463
  %v495 = vadd.f32 %v198, %v477
  %v496 = vadd.f32 %v200, %v479
  %v497 = vadd.f32 %v202, %v481
  %v498 = vxor.u32 %v490, 2147483648
  %v499 = vxor.u32 %v491, 2147483648
  %v500 = vxor.u32 %v492, 2147483648
  %v501 = vxor.u32 %v493, 2147483648
  %v502 = vxor.u32 %v494, 2147483648
  %v503 = vxor.u32 %v495, 2147483648
  %v504 = vxor.u32 %v496, 2147483648
  %v505 = vxor.u32 %v497, 2147483648
  %v506 = vmul.f32 %v498, 1.442695
  %v507 = vpow.pop %v506
  %v508 = vmul.f32 %v499, 1.442695
  %v509 = vpow.pop %v508
  %v510 = vmul.f32 %v500, 1.442695
  %v511 = vpow.pop %v510
  %v512 = vmul.f32 %v501, 1.442695
  %v513 = vpow.pop %v512
  %v514 = vmul.f32 %v502, 1.442695
  %v515 = vpow.pop %v514
  %v516 = vmul.f32 %v503, 1.442695
  %v517 = vpow.pop %v516
  %v518 = vmul.f32 %v504, 1.442695
  %v519 = vpow.pop %v518
  %v520 = vmul.f32 %v505, 1.442695
  %v521 = vpow.pop %v520
  %v522 = vadd.f32 %v507, 1.0
  %v523 = vadd.f32 %v509, 1.0
  %v524 = vadd.f32 %v511, 1.0
  %v525 = vadd.f32 %v513, 1.0
  %v526 = vadd.f32 %v515, 1.0
  %v527 = vadd.f32 %v517, 1.0
  %v528 = vadd.f32 %v519, 1.0
  %v529 = vadd.f32 %v521, 1.0
  %v530 = vrcp.pop %v522
  %v531 = vmul.f32 1.0, %v530
  %v532 = vrcp.pop %v523
  %v533 = vmul.f32 1.0, %v532
  %v534 = vrcp.pop %v524
  %v535 = vmul.f32 1.0, %v534
  %v536 = vrcp.pop %v525
  %v537 = vmul.f32 1.0, %v536
  %v538 = vrcp.pop %v526
  %v539 = vmul.f32 1.0, %v538
  %v540 = vrcp.pop %v527
  %v541 = vmul.f32 1.0, %v540
  %v542 = vrcp.pop %v528
  %v543 = vmul.f32 1.0, %v542
  %v544 = vrcp.pop %v529
  %v545 = vmul.f32 1.0, %v544
  %v554 = vrot.slane %v490, 3
  %v555 = vrot.slane %v491, 3
  %v556 = vrot.slane %v492, 3
  %v557 = vrot.slane %v493, 3
  %v558 = vrot.slane %v494, 3
  %v559 = vrot.slane %v495, 3
  %v560 = vrot.slane %v496, 3
  %v561 = vrot.slane %v497, 3
  %v570 = vtanh.pop %v554
  %v571 = vtanh.pop %v555
  %v572 = vtanh.pop %v556
  %v573 = vtanh.pop %v557
  %v574 = vtanh.pop %v558
  %v575 = vtanh.pop %v559
  %v576 = vtanh.pop %v560
  %v577 = vtanh.pop %v561
  %v578 = vld [vmem:[#allocation3] sm:$0xff]
  %v587 = vrot.slane %v531, 1
  %v588 = vrot.slane %v533, 1
  %v589 = vrot.slane %v535, 1
  %v590 = vrot.slane %v537, 1
  %v591 = vrot.slane %v539, 1
  %v592 = vrot.slane %v541, 1
  %v593 = vrot.slane %v543, 1
  %v594 = vrot.slane %v545, 1
  %v604 = vcombine.high %v578, %v578
  %v606 = vunpack.c.l.s4 1966171168
  %v607 = vunpack.c.0.s8 %v606
  %v608 = vlaneseq
  %v609 = vshrl.u32 %v608, 7
  %v610 = vsub.s32 %v607, %v609
  %v611 = vrot.slane %v578, %v610
  %v613 = vunpack.c.l.s4 1966171168
  %v614 = vunpack.c.0.s8 %v613
  %v615 = vlaneseq
  %v616 = vshrl.u32 %v615, 7
  %v617 = vsub.s32 %v614, %v616
  %v618 = vrot.slane %v604, %v617
  %v619 = vcombine.high %v611, %v611
  %v620 = vcombine.high %v618, %v618
  %v622 = vunpack.c.l.s4 1966171168
  %v623 = vunpack.c.0.s8 %v622
  %v624 = vlaneseq
  %v625 = vshrl.u32 %v624, 7
  %v626 = vsub.s32 %v623, %v625
  %v627 = vrot.slane %v611, %v626
  %v629 = vunpack.c.l.s4 1966171168
  %v630 = vunpack.c.0.s8 %v629
  %v631 = vlaneseq
  %v632 = vshrl.u32 %v631, 7
  %v633 = vsub.s32 %v630, %v632
  %v634 = vrot.slane %v618, %v633
  %v636 = vunpack.c.l.s4 1966171168
  %v637 = vunpack.c.0.s8 %v636
  %v638 = vlaneseq
  %v639 = vshrl.u32 %v638, 7
  %v640 = vsub.s32 %v637, %v639
  %v641 = vrot.slane %v619, %v640
  %v643 = vunpack.c.l.s4 1966171168
  %v644 = vunpack.c.0.s8 %v643
  %v645 = vlaneseq
  %v646 = vshrl.u32 %v645, 7
  %v647 = vsub.s32 %v644, %v646
  %v648 = vrot.slane %v620, %v647
  %v649 = vcombine.high %v627, %v627
  %v650 = vcombine.high %v634, %v634
  %v651 = vcombine.high %v641, %v641
  %v652 = vcombine.high %v648, %v648
  %v661 = vmul.f32 %v587, %v627
  %v662 = vmul.f32 %v588, %v641
  %v663 = vmul.f32 %v589, %v649
  %v664 = vmul.f32 %v590, %v651
  %v665 = vmul.f32 %v591, %v634
  %v666 = vmul.f32 %v592, %v648
  %v667 = vmul.f32 %v593, %v650
  %v668 = vmul.f32 %v594, %v652
  %v669 = vmul.f32 %v531, %v570
  %v670 = vmul.f32 %v533, %v571
  %v671 = vmul.f32 %v535, %v572
  %v672 = vmul.f32 %v537, %v573
  %v673 = vmul.f32 %v539, %v574
  %v674 = vmul.f32 %v541, %v575
  %v675 = vmul.f32 %v543, %v576
  %v676 = vmul.f32 %v545, %v577
  %v677 = vadd.f32 %v661, %v669
  %v678 = vadd.f32 %v662, %v670
  %v679 = vadd.f32 %v663, %v671
  %v680 = vadd.f32 %v664, %v672
  %v681 = vadd.f32 %v665, %v673
  %v682 = vadd.f32 %v666, %v674
  %v683 = vadd.f32 %v667, %v675
  %v684 = vadd.f32 %v668, %v676
  %v685 = vtanh.pop %v677
  %v686 = vtanh.pop %v678
  %v687 = vtanh.pop %v679
  %v688 = vtanh.pop %v680
  %v689 = vtanh.pop %v681
  %v690 = vtanh.pop %v682
  %v691 = vtanh.pop %v683
  %v692 = vtanh.pop %v684
  %v693 = vrot.slane %v531, 2
  %v694 = vrot.slane %v533, 2
  %v695 = vrot.slane %v535, 2
  %v696 = vrot.slane %v537, 2
  %v697 = vrot.slane %v539, 2
  %v698 = vrot.slane %v541, 2
  %v699 = vrot.slane %v543, 2
  %v700 = vrot.slane %v545, 2
  %v709 = vmul.f32 %v693, %v685
  %v710 = vmul.f32 %v694, %v686
  %v711 = vmul.f32 %v695, %v687
  %v712 = vmul.f32 %v696, %v688
  %v713 = vmul.f32 %v697, %v689
  %v714 = vmul.f32 %v698, %v690
  %v715 = vmul.f32 %v699, %v691
  %v716 = vmul.f32 %v700, %v692
  %v725 = vcombine.low %v677, %v678
  %v726 = vcombine.low %v679, %v680
  %v727 = vcombine.low %v681, %v682
  %v728 = vcombine.low %v683, %v684
  %v730 = vunpack.c.l.s4 1966171168
  %v731 = vunpack.c.0.s8 %v730
  %v732 = vlaneseq
  %v733 = vshrl.u32 %v732, 7
  %v734 = vsub.s32 %v731, %v733
  %v735 = vrot.slane %v725, %v734
  %v737 = vunpack.c.l.s4 1966171168
  %v738 = vunpack.c.0.s8 %v737
  %v739 = vlaneseq
  %v740 = vshrl.u32 %v739, 7
  %v741 = vsub.s32 %v738, %v740
  %v742 = vrot.slane %v726, %v741
  %v744 = vunpack.c.l.s4 1966171168
  %v745 = vunpack.c.0.s8 %v744
  %v746 = vlaneseq
  %v747 = vshrl.u32 %v746, 7
  %v748 = vsub.s32 %v745, %v747
  %v749 = vrot.slane %v727, %v748
  %v751 = vunpack.c.l.s4 1966171168
  %v752 = vunpack.c.0.s8 %v751
  %v753 = vlaneseq
  %v754 = vshrl.u32 %v753, 7
  %v755 = vsub.s32 %v752, %v754
  %v756 = vrot.slane %v728, %v755
  %v757 = vcombine.low %v735, %v742
  %v758 = vcombine.low %v749, %v756
  %v760 = vunpack.c.l.s4 1966171168
  %v761 = vunpack.c.0.s8 %v760
  %v762 = vlaneseq
  %v763 = vshrl.u32 %v762, 7
  %v764 = vsub.s32 %v761, %v763
  %v765 = vrot.slane %v757, %v764
  %v767 = vunpack.c.l.s4 1966171168
  %v768 = vunpack.c.0.s8 %v767
  %v769 = vlaneseq
  %v770 = vshrl.u32 %v769, 7
  %v771 = vsub.s32 %v768, %v770
  %v772 = vrot.slane %v758, %v771
  %v773 = vcombine.low %v765, %v772
  %775 = vst [vmem:[#allocation3] sm:$0xff] %v773
  %v784 = vcombine.low %v709, %v710
  %v785 = vcombine.low %v711, %v712
  %v786 = vcombine.low %v713, %v714
  %v787 = vcombine.low %v715, %v716
  %v789 = vunpack.c.l.s4 1966171168
  %v790 = vunpack.c.0.s8 %v789
  %v791 = vlaneseq
  %v792 = vshrl.u32 %v791, 7
  %v793 = vsub.s32 %v790, %v792
  %v794 = vrot.slane %v784, %v793
  %v796 = vunpack.c.l.s4 1966171168
  %v797 = vunpack.c.0.s8 %v796
  %v798 = vlaneseq
  %v799 = vshrl.u32 %v798, 7
  %v800 = vsub.s32 %v797, %v799
  %v801 = vrot.slane %v785, %v800
  %v803 = vunpack.c.l.s4 1966171168
  %v804 = vunpack.c.0.s8 %v803
  %v805 = vlaneseq
  %v806 = vshrl.u32 %v805, 7
  %v807 = vsub.s32 %v804, %v806
  %v808 = vrot.slane %v786, %v807
  %v810 = vunpack.c.l.s4 1966171168
  %v811 = vunpack.c.0.s8 %v810
  %v812 = vlaneseq
  %v813 = vshrl.u32 %v812, 7
  %v814 = vsub.s32 %v811, %v813
  %v815 = vrot.slane %v787, %v814
  %v816 = vcombine.low %v794, %v801
  %v817 = vcombine.low %v808, %v815
  %v819 = vunpack.c.l.s4 1966171168
  %v820 = vunpack.c.0.s8 %v819
  %v821 = vlaneseq
  %v822 = vshrl.u32 %v821, 7
  %v823 = vsub.s32 %v820, %v822
  %v824 = vrot.slane %v816, %v823
  %v826 = vunpack.c.l.s4 1966171168
  %v827 = vunpack.c.0.s8 %v826
  %v828 = vlaneseq
  %v829 = vshrl.u32 %v828, 7
  %v830 = vsub.s32 %v827, %v829
  %v831 = vrot.slane %v817, %v830
  %v832 = vcombine.low %v824, %v831
  %834 = vst [vmem:[#allocation2] sm:$0xff] %v832
  %835 = vst [vmem:[%s2] sm:$0x1] %v709
  %836 = vst [vmem:[%s2 + $0x10] sm:$0x1] %v710
  %837 = vst [vmem:[%s2 + $0x20] sm:$0x1] %v711
  %838 = vst [vmem:[%s2 + $0x30] sm:$0x1] %v712
  %839 = vst [vmem:[%s2 + $0x40] sm:$0x1] %v713
  %840 = vst [vmem:[%s2 + $0x50] sm:$0x1] %v714
  %841 = vst [vmem:[%s2 + $0x60] sm:$0x1] %v715
  %842 = vst [vmem:[%s2 + $0x70] sm:$0x1] %v716
  %s843 = scalar_lea.vmem %s0, 1
  %v844 = vld [vmem:[%s843] ss:$8 sm:$0xf]
  %s845 = scalar_lea.vmem %s0, 65
  %v846 = vld [vmem:[%s845] ss:$8 sm:$0xf]
  %s847 = scalar_lea.vmem %s0, 129
  %v848 = vld [vmem:[%s847] ss:$8 sm:$0xf]
  %s849 = scalar_lea.vmem %s0, 193
  %v850 = vld [vmem:[%s849] ss:$8 sm:$0xf]
  %s851 = scalar_lea.vmem %s0, 257
  %v852 = vld [vmem:[%s851] ss:$8 sm:$0xf]
  %s853 = scalar_lea.vmem %s0, 321
  %v854 = vld [vmem:[%s853] ss:$8 sm:$0xf]
  %s855 = scalar_lea.vmem %s0, 385
  %v856 = vld [vmem:[%s855] ss:$8 sm:$0xf]
  %s857 = scalar_lea.vmem %s0, 449
  %v858 = vld [vmem:[%s857] ss:$8 sm:$0xf]
  %v859 = vld [vmem:[#allocation2] sm:$0xff]
  %v860 = vld [vmem:[#allocation4] sm:$0xff]
  %v861 = vld [vmem:[#allocation4 + $0x8] sm:$0xff]
  %v862 = vld [vmem:[#allocation4 + $0x10] sm:$0xff]
  %v863 = vld [vmem:[#allocation4 + $0x18] sm:$0xff]
  %v864 = vld [vmem:[#allocation4 + $0x20] sm:$0xff]
  %v865 = vld [vmem:[#allocation4 + $0x28] sm:$0xff]
  %v866 = vld [vmem:[#allocation4 + $0x30] sm:$0xff]
  %v867 = vld [vmem:[#allocation4 + $0x38] sm:$0xff]
  %v868 = vld [vmem:[#allocation4 + $0x40] sm:$0xff]
  %v869 = vld [vmem:[#allocation4 + $0x48] sm:$0xff]
  %v870 = vld [vmem:[#allocation4 + $0x50] sm:$0xff]
  %v871 = vld [vmem:[#allocation4 + $0x58] sm:$0xff]
  %v872 = vld [vmem:[#allocation4 + $0x60] sm:$0xff]
  %v873 = vld [vmem:[#allocation4 + $0x68] sm:$0xff]
  %v874 = vld [vmem:[#allocation4 + $0x70] sm:$0xff]
  %v875 = vld [vmem:[#allocation4 + $0x78] sm:$0xff]
  %v876 = vld [vmem:[#allocation4 + $0x80] sm:$0xff]
  %v877 = vld [vmem:[#allocation4 + $0x88] sm:$0xff]
  %v878 = vld [vmem:[#allocation4 + $0x90] sm:$0xff]
  %v879 = vld [vmem:[#allocation4 + $0x98] sm:$0xff]
  %v880 = vld [vmem:[#allocation4 + $0xa0] sm:$0xff]
  %v881 = vld [vmem:[#allocation4 + $0xa8] sm:$0xff]
  %v882 = vld [vmem:[#allocation4 + $0xb0] sm:$0xff]
  %v883 = vld [vmem:[#allocation4 + $0xb8] sm:$0xff]
  %v884 = vld [vmem:[#allocation4 + $0xc0] sm:$0xff]
  %v885 = vld [vmem:[#allocation4 + $0xc8] sm:$0xff]
  %v886 = vld [vmem:[#allocation4 + $0xd0] sm:$0xff]
  %v887 = vld [vmem:[#allocation4 + $0xd8] sm:$0xff]
  %v888 = vld [vmem:[#allocation4 + $0xe0] sm:$0xff]
  %v889 = vld [vmem:[#allocation4 + $0xe8] sm:$0xff]
  %v890 = vld [vmem:[#allocation4 + $0xf0] sm:$0xff]
  %v891 = vld [vmem:[#allocation4 + $0xf8] sm:$0xff]
  %v892 = vld [vmem:[#allocation4 + $0x100] sm:$0xff]
  %v893 = vld [vmem:[#allocation4 + $0x108] sm:$0xff]
  %v894 = vld [vmem:[#allocation4 + $0x110] sm:$0xff]
  %v895 = vld [vmem:[#allocation4 + $0x118] sm:$0xff]
  %v896 = vld [vmem:[#allocation4 + $0x120] sm:$0xff]
  %v897 = vld [vmem:[#allocation4 + $0x128] sm:$0xff]
  %v898 = vld [vmem:[#allocation4 + $0x130] sm:$0xff]
  %v899 = vld [vmem:[#allocation4 + $0x138] sm:$0xff]
  %v900 = vld [vmem:[#allocation4 + $0x140] sm:$0xff]
  %v901 = vld [vmem:[#allocation4 + $0x148] sm:$0xff]
  %v902 = vld [vmem:[#allocation4 + $0x150] sm:$0xff]
  %v903 = vld [vmem:[#allocation4 + $0x158] sm:$0xff]
  %v904 = vld [vmem:[#allocation4 + $0x160] sm:$0xff]
  %v905 = vld [vmem:[#allocation4 + $0x168] sm:$0xff]
  %v906 = vld [vmem:[#allocation4 + $0x170] sm:$0xff]
  %v907 = vld [vmem:[#allocation4 + $0x178] sm:$0xff]
  %v908 = vld [vmem:[#allocation4 + $0x180] sm:$0xff]
  %v909 = vld [vmem:[#allocation4 + $0x188] sm:$0xff]
  %v910 = vld [vmem:[#allocation4 + $0x190] sm:$0xff]
  %v911 = vld [vmem:[#allocation4 + $0x198] sm:$0xff]
  %v912 = vld [vmem:[#allocation4 + $0x1a0] sm:$0xff]
  %v913 = vld [vmem:[#allocation4 + $0x1a8] sm:$0xff]
  %v914 = vld [vmem:[#allocation4 + $0x1b0] sm:$0xff]
  %v915 = vld [vmem:[#allocation4 + $0x1b8] sm:$0xff]
  %v916 = vld [vmem:[#allocation4 + $0x1c0] sm:$0xff]
  %v917 = vld [vmem:[#allocation4 + $0x1c8] sm:$0xff]
  %v918 = vld [vmem:[#allocation4 + $0x1d0] sm:$0xff]
  %v919 = vld [vmem:[#allocation4 + $0x1d8] sm:$0xff]
  %v920 = vld [vmem:[#allocation4 + $0x1e0] sm:$0xff]
  %v921 = vld [vmem:[#allocation4 + $0x1e8] sm:$0xff]
  %v922 = vld [vmem:[#allocation4 + $0x1f0] sm:$0xff]
  %v923 = vld [vmem:[#allocation4 + $0x1f8] sm:$0xff]
  %924 = vmatprep.subr.mxu0 %v921
  %925 = vmatpush1.msra.mxu0 %v920
  %926 = vmatprep.subr.mxu0 %v917
  %927 = vmatpush1.msra.mxu0 %v916
  %928 = vmatprep.subr.mxu0 %v913
  %929 = vmatpush1.msra.mxu0 %v912
  %930 = vmatprep.subr.mxu0 %v909
  %931 = vmatpush1.msra.mxu0 %v908
  %932 = vmatprep.subr.mxu0 %v905
  %933 = vmatpush1.msra.mxu0 %v904
  %934 = vmatprep.subr.mxu0 %v901
  %935 = vmatpush1.msra.mxu0 %v900
  %936 = vmatprep.subr.mxu0 %v897
  %937 = vmatpush1.msra.mxu0 %v896
  %938 = vmatprep.subr.mxu0 %v893
  %939 = vmatpush1.msra.mxu0 %v892
  %940 = vmatprep.subr.mxu0 %v889
  %941 = vmatpush1.msra.mxu0 %v888
  %942 = vmatprep.subr.mxu0 %v885
  %943 = vmatpush1.msra.mxu0 %v884
  %944 = vmatprep.subr.mxu0 %v881
  %945 = vmatpush1.msra.mxu0 %v880
  %946 = vmatprep.subr.mxu0 %v877
  %947 = vmatpush1.msra.mxu0 %v876
  %948 = vmatprep.subr.mxu0 %v873
  %949 = vmatpush1.msra.mxu0 %v872
  %950 = vmatprep.subr.mxu0 %v869
  %951 = vmatpush1.msra.mxu0 %v868
  %952 = vmatprep.subr.mxu0 %v865
  %953 = vmatpush1.msra.mxu0 %v864
  %954 = vmatprep.subr.mxu0 %v861
  %955 = vmatpush1.msra.mxu0 %v860
  %956 = vmatprep.subr.mxu0 0.0
  %957 = vmatpush2.msra.mxu0 0.0
  %958 = vmatprep.subr.mxu0 0.0
  %959 = vmatpush2.msra.mxu0 0.0
  %960 = vmatprep.subr.mxu0 0.0
  %961 = vmatpush2.msra.mxu0 0.0
  %962 = vmatprep.subr.mxu0 0.0
  %963 = vmatpush2.msra.mxu0 0.0
  %964 = vmatprep.subr.mxu0 0.0
  %965 = vmatpush2.msra.mxu0 0.0
  %966 = vmatprep.subr.mxu0 0.0
  %967 = vmatpush2.msra.mxu0 0.0
  %968 = vmatprep.subr.mxu0 0.0
  %969 = vmatpush2.msra.mxu0 0.0
  %970 = vmatprep.subr.mxu0 0.0
  %971 = vmatpush2.msra.mxu0 0.0
  %972 = vmatprep.subr.mxu0 0.0
  %973 = vmatpush2.msra.mxu0 0.0
  %974 = vmatprep.subr.mxu0 0.0
  %975 = vmatpush2.msra.mxu0 0.0
  %976 = vmatprep.subr.mxu0 0.0
  %977 = vmatpush2.msra.mxu0 0.0
  %978 = vmatprep.subr.mxu0 0.0
  %979 = vmatpush2.msra.mxu0 0.0
  %980 = vmatprep.subr.mxu0 0.0
  %981 = vmatpush2.msra.mxu0 0.0
  %982 = vmatprep.subr.mxu0 0.0
  %983 = vmatpush2.msra.mxu0 0.0
  %984 = vmatprep.subr.mxu0 0.0
  %985 = vmatpush2.msra.mxu0 0.0
  %986 = vmatprep.subr.mxu0 0.0
  %987 = vmatpush2.msra.mxu0 0.0
  %988 = vmatprep.mubr.f32.mxu0 0.0
  %989 = vmatmul.mubr.f32.gmra.mxu0 %v859
  %v990 = vpop.f32.mrf.mxu0
  %v991 = vadd.f32 0.0, %v990
  %v992 = vpop.f32.mrf.mxu0
  %v993 = vadd.f32 0.0, %v992
  %994 = vdwg.mxu0
  %995 = vmatprep.subr.mxu0 %v923
  %996 = vmatpush1.msra.mxu0 %v922
  %997 = vmatprep.subr.mxu0 %v919
  %998 = vmatpush1.msra.mxu0 %v918
  %999 = vmatprep.subr.mxu0 %v915
  %1000 = vmatpush1.msra.mxu0 %v914
  %1001 = vmatprep.subr.mxu0 %v911
  %1002 = vmatpush1.msra.mxu0 %v910
  %1003 = vmatprep.subr.mxu0 %v907
  %1004 = vmatpush1.msra.mxu0 %v906
  %1005 = vmatprep.subr.mxu0 %v903
  %1006 = vmatpush1.msra.mxu0 %v902
  %1007 = vmatprep.subr.mxu0 %v899
  %1008 = vmatpush1.msra.mxu0 %v898
  %1009 = vmatprep.subr.mxu0 %v895
  %1010 = vmatpush1.msra.mxu0 %v894
  %1011 = vmatprep.subr.mxu0 %v891
  %1012 = vmatpush1.msra.mxu0 %v890
  %1013 = vmatprep.subr.mxu0 %v887
  %1014 = vmatpush1.msra.mxu0 %v886
  %1015 = vmatprep.subr.mxu0 %v883
  %1016 = vmatpush1.msra.mxu0 %v882
  %1017 = vmatprep.subr.mxu0 %v879
  %1018 = vmatpush1.msra.mxu0 %v878
  %1019 = vmatprep.subr.mxu0 %v875
  %1020 = vmatpush1.msra.mxu0 %v874
  %1021 = vmatprep.subr.mxu0 %v871
  %1022 = vmatpush1.msra.mxu0 %v870
  %1023 = vmatprep.subr.mxu0 %v867
  %1024 = vmatpush1.msra.mxu0 %v866
  %1025 = vmatprep.subr.mxu0 %v863
  %1026 = vmatpush1.msra.mxu0 %v862
  %1027 = vmatprep.subr.mxu0 0.0
  %1028 = vmatpush2.msra.mxu0 0.0
  %1029 = vmatprep.subr.mxu0 0.0
  %1030 = vmatpush2.msra.mxu0 0.0
  %1031 = vmatprep.subr.mxu0 0.0
  %1032 = vmatpush2.msra.mxu0 0.0
  %1033 = vmatprep.subr.mxu0 0.0
  %1034 = vmatpush2.msra.mxu0 0.0
  %1035 = vmatprep.subr.mxu0 0.0
  %1036 = vmatpush2.msra.mxu0 0.0
  %1037 = vmatprep.subr.mxu0 0.0
  %1038 = vmatpush2.msra.mxu0 0.0
  %1039 = vmatprep.subr.mxu0 0.0
  %1040 = vmatpush2.msra.mxu0 0.0
  %1041 = vmatprep.subr.mxu0 0.0
  %1042 = vmatpush2.msra.mxu0 0.0
  %1043 = vmatprep.subr.mxu0 0.0
  %1044 = vmatpush2.msra.mxu0 0.0
  %1045 = vmatprep.subr.mxu0 0.0
  %1046 = vmatpush2.msra.mxu0 0.0
  %1047 = vmatprep.subr.mxu0 0.0
  %1048 = vmatpush2.msra.mxu0 0.0
  %1049 = vmatprep.subr.mxu0 0.0
  %1050 = vmatpush2.msra.mxu0 0.0
  %1051 = vmatprep.subr.mxu0 0.0
  %1052 = vmatpush2.msra.mxu0 0.0
  %1053 = vmatprep.subr.mxu0 0.0
  %1054 = vmatpush2.msra.mxu0 0.0
  %1055 = vmatprep.subr.mxu0 0.0
  %1056 = vmatpush2.msra.mxu0 0.0
  %1057 = vmatprep.subr.mxu0 0.0
  %1058 = vmatpush2.msra.mxu0 0.0
  %1059 = vmatprep.mubr.f32.mxu0 0.0
  %1060 = vmatmul.mubr.f32.gmra.mxu0 %v859
  %v1061 = vpop.f32.mrf.mxu0
  %v1062 = vadd.f32 0.0, %v1061
  %v1063 = vpop.f32.mrf.mxu0
  %v1064 = vadd.f32 0.0, %v1063
  %1065 = vdwg.mxu0
  %v1070 = vcombine.low %v991, %v993
  %v1071 = vcombine.high %v991, %v993
  %v1072 = vcombine.low %v1062, %v1064
  %v1073 = vcombine.high %v1062, %v1064
  %v1075 = vunpack.c.l.s4 1966171168
  %v1076 = vunpack.c.0.s8 %v1075
  %v1077 = vlaneseq
  %v1078 = vshrl.u32 %v1077, 7
  %v1079 = vsub.s32 %v1076, %v1078
  %v1080 = vrot.slane %v1070, %v1079
  %v1082 = vunpack.c.l.s4 1966171168
  %v1083 = vunpack.c.0.s8 %v1082
  %v1084 = vlaneseq
  %v1085 = vshrl.u32 %v1084, 7
  %v1086 = vsub.s32 %v1083, %v1085
  %v1087 = vrot.slane %v1071, %v1086
  %v1089 = vunpack.c.l.s4 1966171168
  %v1090 = vunpack.c.0.s8 %v1089
  %v1091 = vlaneseq
  %v1092 = vshrl.u32 %v1091, 7
  %v1093 = vsub.s32 %v1090, %v1092
  %v1094 = vrot.slane %v1072, %v1093
  %v1096 = vunpack.c.l.s4 1966171168
  %v1097 = vunpack.c.0.s8 %v1096
  %v1098 = vlaneseq
  %v1099 = vshrl.u32 %v1098, 7
  %v1100 = vsub.s32 %v1097, %v1099
  %v1101 = vrot.slane %v1073, %v1100
  %v1102 = vcombine.low %v1080, %v1094
  %v1103 = vcombine.high %v1080, %v1094
  %v1104 = vcombine.low %v1087, %v1101
  %v1105 = vcombine.high %v1087, %v1101
  %v1107 = vunpack.c.l.s4 1966171168
  %v1108 = vunpack.c.0.s8 %v1107
  %v1109 = vlaneseq
  %v1110 = vshrl.u32 %v1109, 7
  %v1111 = vsub.s32 %v1108, %v1110
  %v1112 = vrot.slane %v1102, %v1111
  %v1114 = vunpack.c.l.s4 1966171168
  %v1115 = vunpack.c.0.s8 %v1114
  %v1116 = vlaneseq
  %v1117 = vshrl.u32 %v1116, 7
  %v1118 = vsub.s32 %v1115, %v1117
  %v1119 = vrot.slane %v1104, %v1118
  %v1121 = vunpack.c.l.s4 1966171168
  %v1122 = vunpack.c.0.s8 %v1121
  %v1123 = vlaneseq
  %v1124 = vshrl.u32 %v1123, 7
  %v1125 = vsub.s32 %v1122, %v1124
  %v1126 = vrot.slane %v1103, %v1125
  %v1128 = vunpack.c.l.s4 1966171168
  %v1129 = vunpack.c.0.s8 %v1128
  %v1130 = vlaneseq
  %v1131 = vshrl.u32 %v1130, 7
  %v1132 = vsub.s32 %v1129, %v1131
  %v1133 = vrot.slane %v1105, %v1132
  %v1134 = vcombine.high %v1112, %v1112
  %v1135 = vcombine.high %v1119, %v1119
  %v1136 = vcombine.high %v1126, %v1126
  %v1137 = vcombine.high %v1133, %v1133
  %v1146 = vadd.f32 %v844, %v1112
  %v1147 = vadd.f32 %v846, %v1126
  %v1148 = vadd.f32 %v848, %v1134
  %v1149 = vadd.f32 %v850, %v1136
  %v1150 = vadd.f32 %v852, %v1119
  %v1151 = vadd.f32 %v854, %v1133
  %v1152 = vadd.f32 %v856, %v1135
  %v1153 = vadd.f32 %v858, %v1137
  %v1154 = vxor.u32 %v1146, 2147483648
  %v1155 = vxor.u32 %v1147, 2147483648
  %v1156 = vxor.u32 %v1148, 2147483648
  %v1157 = vxor.u32 %v1149, 2147483648
  %v1158 = vxor.u32 %v1150, 2147483648
  %v1159 = vxor.u32 %v1151, 2147483648
  %v1160 = vxor.u32 %v1152, 2147483648
  %v1161 = vxor.u32 %v1153, 2147483648
  %v1162 = vmul.f32 %v1154, 1.442695
  %v1163 = vpow.pop %v1162
  %v1164 = vmul.f32 %v1155, 1.442695
  %v1165 = vpow.pop %v1164
  %v1166 = vmul.f32 %v1156, 1.442695
  %v1167 = vpow.pop %v1166
  %v1168 = vmul.f32 %v1157, 1.442695
  %v1169 = vpow.pop %v1168
  %v1170 = vmul.f32 %v1158, 1.442695
  %v1171 = vpow.pop %v1170
  %v1172 = vmul.f32 %v1159, 1.442695
  %v1173 = vpow.pop %v1172
  %v1174 = vmul.f32 %v1160, 1.442695
  %v1175 = vpow.pop %v1174
  %v1176 = vmul.f32 %v1161, 1.442695
  %v1177 = vpow.pop %v1176
  %v1178 = vadd.f32 %v1163, 1.0
  %v1179 = vadd.f32 %v1165, 1.0
  %v1180 = vadd.f32 %v1167, 1.0
  %v1181 = vadd.f32 %v1169, 1.0
  %v1182 = vadd.f32 %v1171, 1.0
  %v1183 = vadd.f32 %v1173, 1.0
  %v1184 = vadd.f32 %v1175, 1.0
  %v1185 = vadd.f32 %v1177, 1.0
  %v1186 = vrcp.pop %v1178
  %v1187 = vmul.f32 1.0, %v1186
  %v1188 = vrcp.pop %v1179
  %v1189 = vmul.f32 1.0, %v1188
  %v1190 = vrcp.pop %v1180
  %v1191 = vmul.f32 1.0, %v1190
  %v1192 = vrcp.pop %v1181
  %v1193 = vmul.f32 1.0, %v1192
  %v1194 = vrcp.pop %v1182
  %v1195 = vmul.f32 1.0, %v1194
  %v1196 = vrcp.pop %v1183
  %v1197 = vmul.f32 1.0, %v1196
  %v1198 = vrcp.pop %v1184
  %v1199 = vmul.f32 1.0, %v1198
  %v1200 = vrcp.pop %v1185
  %v1201 = vmul.f32 1.0, %v1200
  %v1210 = vrot.slane %v1146, 3
  %v1211 = vrot.slane %v1147, 3
  %v1212 = vrot.slane %v1148, 3
  %v1213 = vrot.slane %v1149, 3
  %v1214 = vrot.slane %v1150, 3
  %v1215 = vrot.slane %v1151, 3
  %v1216 = vrot.slane %v1152, 3
  %v1217 = vrot.slane %v1153, 3
  %v1226 = vtanh.pop %v1210
  %v1227 = vtanh.pop %v1211
  %v1228 = vtanh.pop %v1212
  %v1229 = vtanh.pop %v1213
  %v1230 = vtanh.pop %v1214
  %v1231 = vtanh.pop %v1215
  %v1232 = vtanh.pop %v1216
  %v1233 = vtanh.pop %v1217
  %v1234 = vld [vmem:[#allocation3] sm:$0xff]
  %v1243 = vrot.slane %v1187, 1
  %v1244 = vrot.slane %v1189, 1
  %v1245 = vrot.slane %v1191, 1
  %v1246 = vrot.slane %v1193, 1
  %v1247 = vrot.slane %v1195, 1
  %v1248 = vrot.slane %v1197, 1
  %v1249 = vrot.slane %v1199, 1
  %v1250 = vrot.slane %v1201, 1
  %v1260 = vcombine.high %v1234, %v1234
  %v1262 = vunpack.c.l.s4 1966171168
  %v1263 = vunpack.c.0.s8 %v1262
  %v1264 = vlaneseq
  %v1265 = vshrl.u32 %v1264, 7
  %v1266 = vsub.s32 %v1263, %v1265
  %v1267 = vrot.slane %v1234, %v1266
  %v1269 = vunpack.c.l.s4 1966171168
  %v1270 = vunpack.c.0.s8 %v1269
  %v1271 = vlaneseq
  %v1272 = vshrl.u32 %v1271, 7
  %v1273 = vsub.s32 %v1270, %v1272
  %v1274 = vrot.slane %v1260, %v1273
  %v1275 = vcombine.high %v1267, %v1267
  %v1276 = vcombine.high %v1274, %v1274
  %v1278 = vunpack.c.l.s4 1966171168
  %v1279 = vunpack.c.0.s8 %v1278
  %v1280 = vlaneseq
  %v1281 = vshrl.u32 %v1280, 7
  %v1282 = vsub.s32 %v1279, %v1281
  %v1283 = vrot.slane %v1267, %v1282
  %v1285 = vunpack.c.l.s4 1966171168
  %v1286 = vunpack.c.0.s8 %v1285
  %v1287 = vlaneseq
  %v1288 = vshrl.u32 %v1287, 7
  %v1289 = vsub.s32 %v1286, %v1288
  %v1290 = vrot.slane %v1274, %v1289
  %v1292 = vunpack.c.l.s4 1966171168
  %v1293 = vunpack.c.0.s8 %v1292
  %v1294 = vlaneseq
  %v1295 = vshrl.u32 %v1294, 7
  %v1296 = vsub.s32 %v1293, %v1295
  %v1297 = vrot.slane %v1275, %v1296
  %v1299 = vunpack.c.l.s4 1966171168
  %v1300 = vunpack.c.0.s8 %v1299
  %v1301 = vlaneseq
  %v1302 = vshrl.u32 %v1301, 7
  %v1303 = vsub.s32 %v1300, %v1302
  %v1304 = vrot.slane %v1276, %v1303
  %v1305 = vcombine.high %v1283, %v1283
  %v1306 = vcombine.high %v1290, %v1290
  %v1307 = vcombine.high %v1297, %v1297
  %v1308 = vcombine.high %v1304, %v1304
  %v1317 = vmul.f32 %v1243, %v1283
  %v1318 = vmul.f32 %v1244, %v1297
  %v1319 = vmul.f32 %v1245, %v1305
  %v1320 = vmul.f32 %v1246, %v1307
  %v1321 = vmul.f32 %v1247, %v1290
  %v1322 = vmul.f32 %v1248, %v1304
  %v1323 = vmul.f32 %v1249, %v1306
  %v1324 = vmul.f32 %v1250, %v1308
  %v1325 = vmul.f32 %v1187, %v1226
  %v1326 = vmul.f32 %v1189, %v1227
  %v1327 = vmul.f32 %v1191, %v1228
  %v1328 = vmul.f32 %v1193, %v1229
  %v1329 = vmul.f32 %v1195, %v1230
  %v1330 = vmul.f32 %v1197, %v1231
  %v1331 = vmul.f32 %v1199, %v1232
  %v1332 = vmul.f32 %v1201, %v1233
  %v1333 = vadd.f32 %v1317, %v1325
  %v1334 = vadd.f32 %v1318, %v1326
  %v1335 = vadd.f32 %v1319, %v1327
  %v1336 = vadd.f32 %v1320, %v1328
  %v1337 = vadd.f32 %v1321, %v1329
  %v1338 = vadd.f32 %v1322, %v1330
  %v1339 = vadd.f32 %v1323, %v1331
  %v1340 = vadd.f32 %v1324, %v1332
  %v1341 = vtanh.pop %v1333
  %v1342 = vtanh.pop %v1334
  %v1343 = vtanh.pop %v1335
  %v1344 = vtanh.pop %v1336
  %v1345 = vtanh.pop %v1337
  %v1346 = vtanh.pop %v1338
  %v1347 = vtanh.pop %v1339
  %v1348 = vtanh.pop %v1340
  %v1349 = vrot.slane %v1187, 2
  %v1350 = vrot.slane %v1189, 2
  %v1351 = vrot.slane %v1191, 2
  %v1352 = vrot.slane %v1193, 2
  %v1353 = vrot.slane %v1195, 2
  %v1354 = vrot.slane %v1197, 2
  %v1355 = vrot.slane %v1199, 2
  %v1356 = vrot.slane %v1201, 2
  %v1365 = vmul.f32 %v1349, %v1341
  %v1366 = vmul.f32 %v1350, %v1342
  %v1367 = vmul.f32 %v1351, %v1343
  %v1368 = vmul.f32 %v1352, %v1344
  %v1369 = vmul.f32 %v1353, %v1345
  %v1370 = vmul.f32 %v1354, %v1346
  %v1371 = vmul.f32 %v1355, %v1347
  %v1372 = vmul.f32 %v1356, %v1348
  %v1381 = vcombine.low %v1333, %v1334
  %v1382 = vcombine.low %v1335, %v1336
  %v1383 = vcombine.low %v1337, %v1338
  %v1384 = vcombine.low %v1339, %v1340
  %v1386 = vunpack.c.l.s4 1966171168
  %v1387 = vunpack.c.0.s8 %v1386
  %v1388 = vlaneseq
  %v1389 = vshrl.u32 %v1388, 7
  %v1390 = vsub.s32 %v1387, %v1389
  %v1391 = vrot.slane %v1381, %v1390
  %v1393 = vunpack.c.l.s4 1966171168
  %v1394 = vunpack.c.0.s8 %v1393
  %v1395 = vlaneseq
  %v1396 = vshrl.u32 %v1395, 7
  %v1397 = vsub.s32 %v1394, %v1396
  %v1398 = vrot.slane %v1382, %v1397
  %v1400 = vunpack.c.l.s4 1966171168
  %v1401 = vunpack.c.0.s8 %v1400
  %v1402 = vlaneseq
  %v1403 = vshrl.u32 %v1402, 7
  %v1404 = vsub.s32 %v1401, %v1403
  %v1405 = vrot.slane %v1383, %v1404
  %v1407 = vunpack.c.l.s4 1966171168
  %v1408 = vunpack.c.0.s8 %v1407
  %v1409 = vlaneseq
  %v1410 = vshrl.u32 %v1409, 7
  %v1411 = vsub.s32 %v1408, %v1410
  %v1412 = vrot.slane %v1384, %v1411
  %v1413 = vcombine.low %v1391, %v1398
  %v1414 = vcombine.low %v1405, %v1412
  %v1416 = vunpack.c.l.s4 1966171168
  %v1417 = vunpack.c.0.s8 %v1416
  %v1418 = vlaneseq
  %v1419 = vshrl.u32 %v1418, 7
  %v1420 = vsub.s32 %v1417, %v1419
  %v1421 = vrot.slane %v1413, %v1420
  %v1423 = vunpack.c.l.s4 1966171168
  %v1424 = vunpack.c.0.s8 %v1423
  %v1425 = vlaneseq
  %v1426 = vshrl.u32 %v1425, 7
  %v1427 = vsub.s32 %v1424, %v1426
  %v1428 = vrot.slane %v1414, %v1427
  %v1429 = vcombine.low %v1421, %v1428
  %1431 = vst [vmem:[#allocation3] sm:$0xff] %v1429
  %v1440 = vcombine.low %v1365, %v1366
  %v1441 = vcombine.low %v1367, %v1368
  %v1442 = vcombine.low %v1369, %v1370
  %v1443 = vcombine.low %v1371, %v1372
  %v1445 = vunpack.c.l.s4 1966171168
  %v1446 = vunpack.c.0.s8 %v1445
  %v1447 = vlaneseq
  %v1448 = vshrl.u32 %v1447, 7
  %v1449 = vsub.s32 %v1446, %v1448
  %v1450 = vrot.slane %v1440, %v1449
  %v1452 = vunpack.c.l.s4 1966171168
  %v1453 = vunpack.c.0.s8 %v1452
  %v1454 = vlaneseq
  %v1455 = vshrl.u32 %v1454, 7
  %v1456 = vsub.s32 %v1453, %v1455
  %v1457 = vrot.slane %v1441, %v1456
  %v1459 = vunpack.c.l.s4 1966171168
  %v1460 = vunpack.c.0.s8 %v1459
  %v1461 = vlaneseq
  %v1462 = vshrl.u32 %v1461, 7
  %v1463 = vsub.s32 %v1460, %v1462
  %v1464 = vrot.slane %v1442, %v1463
  %v1466 = vunpack.c.l.s4 1966171168
  %v1467 = vunpack.c.0.s8 %v1466
  %v1468 = vlaneseq
  %v1469 = vshrl.u32 %v1468, 7
  %v1470 = vsub.s32 %v1467, %v1469
  %v1471 = vrot.slane %v1443, %v1470
  %v1472 = vcombine.low %v1450, %v1457
  %v1473 = vcombine.low %v1464, %v1471
  %v1475 = vunpack.c.l.s4 1966171168
  %v1476 = vunpack.c.0.s8 %v1475
  %v1477 = vlaneseq
  %v1478 = vshrl.u32 %v1477, 7
  %v1479 = vsub.s32 %v1476, %v1478
  %v1480 = vrot.slane %v1472, %v1479
  %v1482 = vunpack.c.l.s4 1966171168
  %v1483 = vunpack.c.0.s8 %v1482
  %v1484 = vlaneseq
  %v1485 = vshrl.u32 %v1484, 7
  %v1486 = vsub.s32 %v1483, %v1485
  %v1487 = vrot.slane %v1473, %v1486
  %v1488 = vcombine.low %v1480, %v1487
  %1490 = vst [vmem:[#allocation2] sm:$0xff] %v1488
  %1491 = vst [vmem:[%s2 + $0x1] sm:$0x1] %v1365
  %1492 = vst [vmem:[%s2 + $0x11] sm:$0x1] %v1366
  %1493 = vst [vmem:[%s2 + $0x21] sm:$0x1] %v1367
  %1494 = vst [vmem:[%s2 + $0x31] sm:$0x1] %v1368
  %1495 = vst [vmem:[%s2 + $0x41] sm:$0x1] %v1369
  %1496 = vst [vmem:[%s2 + $0x51] sm:$0x1] %v1370
  %1497 = vst [vmem:[%s2 + $0x61] sm:$0x1] %v1371
  %1498 = vst [vmem:[%s2 + $0x71] sm:$0x1] %v1372
  %s1499 = scalar_lea.vmem %s0, 2
  %v1500 = vld [vmem:[%s1499] ss:$8 sm:$0xf]
  %s1501 = scalar_lea.vmem %s0, 66
  %v1502 = vld [vmem:[%s1501] ss:$8 sm:$0xf]
  %s1503 = scalar_lea.vmem %s0, 130
  %v1504 = vld [vmem:[%s1503] ss:$8 sm:$0xf]
  %s1505 = scalar_lea.vmem %s0, 194
  %v1506 = vld [vmem:[%s1505] ss:$8 sm:$0xf]
  %s1507 = scalar_lea.vmem %s0, 258
  %v1508 = vld [vmem:[%s1507] ss:$8 sm:$0xf]
  %s1509 = scalar_lea.vmem %s0, 322
  %v1510 = vld [vmem:[%s1509] ss:$8 sm:$0xf]
  %s1511 = scalar_lea.vmem %s0, 386
  %v1512 = vld [vmem:[%s1511] ss:$8 sm:$0xf]
  %s1513 = scalar_lea.vmem %s0, 450
  %v1514 = vld [vmem:[%s1513] ss:$8 sm:$0xf]
  %v1515 = vld [vmem:[#allocation2] sm:$0xff]
  %v1516 = vld [vmem:[#allocation4] sm:$0xff]
  %v1517 = vld [vmem:[#allocation4 + $0x8] sm:$0xff]
  %v1518 = vld [vmem:[#allocation4 + $0x10] sm:$0xff]
  %v1519 = vld [vmem:[#allocation4 + $0x18] sm:$0xff]
  %v1520 = vld [vmem:[#allocation4 + $0x20] sm:$0xff]
  %v1521 = vld [vmem:[#allocation4 + $0x28] sm:$0xff]
  %v1522 = vld [vmem:[#allocation4 + $0x30] sm:$0xff]
  %v1523 = vld [vmem:[#allocation4 + $0x38] sm:$0xff]
  %v1524 = vld [vmem:[#allocation4 + $0x40] sm:$0xff]
  %v1525 = vld [vmem:[#allocation4 + $0x48] sm:$0xff]
  %v1526 = vld [vmem:[#allocation4 + $0x50] sm:$0xff]
  %v1527 = vld [vmem:[#allocation4 + $0x58] sm:$0xff]
  %v1528 = vld [vmem:[#allocation4 + $0x60] sm:$0xff]
  %v1529 = vld [vmem:[#allocation4 + $0x68] sm:$0xff]
  %v1530 = vld [vmem:[#allocation4 + $0x70] sm:$0xff]
  %v1531 = vld [vmem:[#allocation4 + $0x78] sm:$0xff]
  %v1532 = vld [vmem:[#allocation4 + $0x80] sm:$0xff]
  %v1533 = vld [vmem:[#allocation4 + $0x88] sm:$0xff]
  %v1534 = vld [vmem:[#allocation4 + $0x90] sm:$0xff]
  %v1535 = vld [vmem:[#allocation4 + $0x98] sm:$0xff]
  %v1536 = vld [vmem:[#allocation4 + $0xa0] sm:$0xff]
  %v1537 = vld [vmem:[#allocation4 + $0xa8] sm:$0xff]
  %v1538 = vld [vmem:[#allocation4 + $0xb0] sm:$0xff]
  %v1539 = vld [vmem:[#allocation4 + $0xb8] sm:$0xff]
  %v1540 = vld [vmem:[#allocation4 + $0xc0] sm:$0xff]
  %v1541 = vld [vmem:[#allocation4 + $0xc8] sm:$0xff]
  %v1542 = vld [vmem:[#allocation4 + $0xd0] sm:$0xff]
  %v1543 = vld [vmem:[#allocation4 + $0xd8] sm:$0xff]
  %v1544 = vld [vmem:[#allocation4 + $0xe0] sm:$0xff]
  %v1545 = vld [vmem:[#allocation4 + $0xe8] sm:$0xff]
  %v1546 = vld [vmem:[#allocation4 + $0xf0] sm:$0xff]
  %v1547 = vld [vmem:[#allocation4 + $0xf8] sm:$0xff]
  %v1548 = vld [vmem:[#allocation4 + $0x100] sm:$0xff]
  %v1549 = vld [vmem:[#allocation4 + $0x108] sm:$0xff]
  %v1550 = vld [vmem:[#allocation4 + $0x110] sm:$0xff]
  %v1551 = vld [vmem:[#allocation4 + $0x118] sm:$0xff]
  %v1552 = vld [vmem:[#allocation4 + $0x120] sm:$0xff]
  %v1553 = vld [vmem:[#allocation4 + $0x128] sm:$0xff]
  %v1554 = vld [vmem:[#allocation4 + $0x130] sm:$0xff]
  %v1555 = vld [vmem:[#allocation4 + $0x138] sm:$0xff]
  %v1556 = vld [vmem:[#allocation4 + $0x140] sm:$0xff]
  %v1557 = vld [vmem:[#allocation4 + $0x148] sm:$0xff]
  %v1558 = vld [vmem:[#allocation4 + $0x150] sm:$0xff]
  %v1559 = vld [vmem:[#allocation4 + $0x158] sm:$0xff]
  %v1560 = vld [vmem:[#allocation4 + $0x160] sm:$0xff]
  %v1561 = vld [vmem:[#allocation4 + $0x168] sm:$0xff]
  %v1562 = vld [vmem:[#allocation4 + $0x170] sm:$0xff]
  %v1563 = vld [vmem:[#allocation4 + $0x178] sm:$0xff]
  %v1564 = vld [vmem:[#allocation4 + $0x180] sm:$0xff]
  %v1565 = vld [vmem:[#allocation4 + $0x188] sm:$0xff]
  %v1566 = vld [vmem:[#allocation4 + $0x190] sm:$0xff]
  %v1567 = vld [vmem:[#allocation4 + $0x198] sm:$0xff]
  %v1568 = vld [vmem:[#allocation4 + $0x1a0] sm:$0xff]
  %v1569 = vld [vmem:[#allocation4 + $0x1a8] sm:$0xff]
  %v1570 = vld [vmem:[#allocation4 + $0x1b0] sm:$0xff]
  %v1571 = vld [vmem:[#allocation4 + $0x1b8] sm:$0xff]
  %v1572 = vld [vmem:[#allocation4 + $0x1c0] sm:$0xff]
  %v1573 = vld [vmem:[#allocation4 + $0x1c8] sm:$0xff]
  %v1574 = vld [vmem:[#allocation4 + $0x1d0] sm:$0xff]
  %v1575 = vld [vmem:[#allocation4 + $0x1d8] sm:$0xff]
  %v1576 = vld [vmem:[#allocation4 + $0x1e0] sm:$0xff]
  %v1577 = vld [vmem:[#allocation4 + $0x1e8] sm:$0xff]
  %v1578 = vld [vmem:[#allocation4 + $0x1f0] sm:$0xff]
  %v1579 = vld [vmem:[#allocation4 + $0x1f8] sm:$0xff]
  %1580 = vmatprep.subr.mxu0 %v1577
  %1581 = vmatpush1.msra.mxu0 %v1576
  %1582 = vmatprep.subr.mxu0 %v1573
  %1583 = vmatpush1.msra.mxu0 %v1572
  %1584 = vmatprep.subr.mxu0 %v1569
  %1585 = vmatpush1.msra.mxu0 %v1568
  %1586 = vmatprep.subr.mxu0 %v1565
  %1587 = vmatpush1.msra.mxu0 %v1564
  %1588 = vmatprep.subr.mxu0 %v1561
  %1589 = vmatpush1.msra.mxu0 %v1560
  %1590 = vmatprep.subr.mxu0 %v1557
  %1591 = vmatpush1.msra.mxu0 %v1556
  %1592 = vmatprep.subr.mxu0 %v1553
  %1593 = vmatpush1.msra.mxu0 %v1552
  %1594 = vmatprep.subr.mxu0 %v1549
  %1595 = vmatpush1.msra.mxu0 %v1548
  %1596 = vmatprep.subr.mxu0 %v1545
  %1597 = vmatpush1.msra.mxu0 %v1544
  %1598 = vmatprep.subr.mxu0 %v1541
  %1599 = vmatpush1.msra.mxu0 %v1540
  %1600 = vmatprep.subr.mxu0 %v1537
  %1601 = vmatpush1.msra.mxu0 %v1536
  %1602 = vmatprep.subr.mxu0 %v1533
  %1603 = vmatpush1.msra.mxu0 %v1532
  %1604 = vmatprep.subr.mxu0 %v1529
  %1605 = vmatpush1.msra.mxu0 %v1528
  %1606 = vmatprep.subr.mxu0 %v1525
  %1607 = vmatpush1.msra.mxu0 %v1524
  %1608 = vmatprep.subr.mxu0 %v1521
  %1609 = vmatpush1.msra.mxu0 %v1520
  %1610 = vmatprep.subr.mxu0 %v1517
  %1611 = vmatpush1.msra.mxu0 %v1516
  %1612 = vmatprep.subr.mxu0 0.0
  %1613 = vmatpush2.msra.mxu0 0.0
  %1614 = vmatprep.subr.mxu0 0.0
  %1615 = vmatpush2.msra.mxu0 0.0
  %1616 = vmatprep.subr.mxu0 0.0
  %1617 = vmatpush2.msra.mxu0 0.0
  %1618 = vmatprep.subr.mxu0 0.0
  %1619 = vmatpush2.msra.mxu0 0.0
  %1620 = vmatprep.subr.mxu0 0.0
  %1621 = vmatpush2.msra.mxu0 0.0
  %1622 = vmatprep.subr.mxu0 0.0
  %1623 = vmatpush2.msra.mxu0 0.0
  %1624 = vmatprep.subr.mxu0 0.0
  %1625 = vmatpush2.msra.mxu0 0.0
  %1626 = vmatprep.subr.mxu0 0.0
  %1627 = vmatpush2.msra.mxu0 0.0
  %1628 = vmatprep.subr.mxu0 0.0
  %1629 = vmatpush2.msra.mxu0 0.0
  %1630 = vmatprep.subr.mxu0 0.0
  %1631 = vmatpush2.msra.mxu0 0.0
  %1632 = vmatprep.subr.mxu0 0.0
  %1633 = vmatpush2.msra.mxu0 0.0
  %1634 = vmatprep.subr.mxu0 0.0
  %1635 = vmatpush2.msra.mxu0 0.0
  %1636 = vmatprep.subr.mxu0 0.0
  %1637 = vmatpush2.msra.mxu0 0.0
  %1638 = vmatprep.subr.mxu0 0.0
  %1639 = vmatpush2.msra.mxu0 0.0
  %1640 = vmatprep.subr.mxu0 0.0
  %1641 = vmatpush2.msra.mxu0 0.0
  %1642 = vmatprep.subr.mxu0 0.0
  %1643 = vmatpush2.msra.mxu0 0.0
  %1644 = vmatprep.mubr.f32.mxu0 0.0
  %1645 = vmatmul.mubr.f32.gmra.mxu0 %v1515
  %v1646 = vpop.f32.mrf.mxu0
  %v1647 = vadd.f32 0.0, %v1646
  %v1648 = vpop.f32.mrf.mxu0
  %v1649 = vadd.f32 0.0, %v1648
  %1650 = vdwg.mxu0
  %1651 = vmatprep.subr.mxu0 %v1579
  %1652 = vmatpush1.msra.mxu0 %v1578
  %1653 = vmatprep.subr.mxu0 %v1575
  %1654 = vmatpush1.msra.mxu0 %v1574
  %1655 = vmatprep.subr.mxu0 %v1571
  %1656 = vmatpush1.msra.mxu0 %v1570
  %1657 = vmatprep.subr.mxu0 %v1567
  %1658 = vmatpush1.msra.mxu0 %v1566
  %1659 = vmatprep.subr.mxu0 %v1563
  %1660 = vmatpush1.msra.mxu0 %v1562
  %1661 = vmatprep.subr.mxu0 %v1559
  %1662 = vmatpush1.msra.mxu0 %v1558
  %1663 = vmatprep.subr.mxu0 %v1555
  %1664 = vmatpush1.msra.mxu0 %v1554
  %1665 = vmatprep.subr.mxu0 %v1551
  %1666 = vmatpush1.msra.mxu0 %v1550
  %1667 = vmatprep.subr.mxu0 %v1547
  %1668 = vmatpush1.msra.mxu0 %v1546
  %1669 = vmatprep.subr.mxu0 %v1543
  %1670 = vmatpush1.msra.mxu0 %v1542
  %1671 = vmatprep.subr.mxu0 %v1539
  %1672 = vmatpush1.msra.mxu0 %v1538
  %1673 = vmatprep.subr.mxu0 %v1535
  %1674 = vmatpush1.msra.mxu0 %v1534
  %1675 = vmatprep.subr.mxu0 %v1531
  %1676 = vmatpush1.msra.mxu0 %v1530
  %1677 = vmatprep.subr.mxu0 %v1527
  %1678 = vmatpush1.msra.mxu0 %v1526
  %1679 = vmatprep.subr.mxu0 %v1523
  %1680 = vmatpush1.msra.mxu0 %v1522
  %1681 = vmatprep.subr.mxu0 %v1519
  %1682 = vmatpush1.msra.mxu0 %v1518
  %1683 = vmatprep.subr.mxu0 0.0
  %1684 = vmatpush2.msra.mxu0 0.0
  %1685 = vmatprep.subr.mxu0 0.0
  %1686 = vmatpush2.msra.mxu0 0.0
  %1687 = vmatprep.subr.mxu0 0.0
  %1688 = vmatpush2.msra.mxu0 0.0
  %1689 = vmatprep.subr.mxu0 0.0
  %1690 = vmatpush2.msra.mxu0 0.0
  %1691 = vmatprep.subr.mxu0 0.0
  %1692 = vmatpush2.msra.mxu0 0.0
  %1693 = vmatprep.subr.mxu0 0.0
  %1694 = vmatpush2.msra.mxu0 0.0
  %1695 = vmatprep.subr.mxu0 0.0
  %1696 = vmatpush2.msra.mxu0 0.0
  %1697 = vmatprep.subr.mxu0 0.0
  %1698 = vmatpush2.msra.mxu0 0.0
  %1699 = vmatprep.subr.mxu0 0.0
  %1700 = vmatpush2.msra.mxu0 0.0
  %1701 = vmatprep.subr.mxu0 0.0
  %1702 = vmatpush2.msra.mxu0 0.0
  %1703 = vmatprep.subr.mxu0 0.0
  %1704 = vmatpush2.msra.mxu0 0.0
  %1705 = vmatprep.subr.mxu0 0.0
  %1706 = vmatpush2.msra.mxu0 0.0
  %1707 = vmatprep.subr.mxu0 0.0
  %1708 = vmatpush2.msra.mxu0 0.0
  %1709 = vmatprep.subr.mxu0 0.0
  %1710 = vmatpush2.msra.mxu0 0.0
  %1711 = vmatprep.subr.mxu0 0.0
  %1712 = vmatpush2.msra.mxu0 0.0
  %1713 = vmatprep.subr.mxu0 0.0
  %1714 = vmatpush2.msra.mxu0 0.0
  %1715 = vmatprep.mubr.f32.mxu0 0.0
  %1716 = vmatmul.mubr.f32.gmra.mxu0 %v1515
  %v1717 = vpop.f32.mrf.mxu0
  %v1718 = vadd.f32 0.0, %v1717
  %v1719 = vpop.f32.mrf.mxu0
  %v1720 = vadd.f32 0.0, %v1719
  %1721 = vdwg.mxu0
  %v1726 = vcombine.low %v1647, %v1649
  %v1727 = vcombine.high %v1647, %v1649
  %v1728 = vcombine.low %v1718, %v1720
  %v1729 = vcombine.high %v1718, %v1720
  %v1731 = vunpack.c.l.s4 1966171168
  %v1732 = vunpack.c.0.s8 %v1731
  %v1733 = vlaneseq
  %v1734 = vshrl.u32 %v1733, 7
  %v1735 = vsub.s32 %v1732, %v1734
  %v1736 = vrot.slane %v1726, %v1735
  %v1738 = vunpack.c.l.s4 1966171168
  %v1739 = vunpack.c.0.s8 %v1738
  %v1740 = vlaneseq
  %v1741 = vshrl.u32 %v1740, 7
  %v1742 = vsub.s32 %v1739, %v1741
  %v1743 = vrot.slane %v1727, %v1742
  %v1745 = vunpack.c.l.s4 1966171168
  %v1746 = vunpack.c.0.s8 %v1745
  %v1747 = vlaneseq
  %v1748 = vshrl.u32 %v1747, 7
  %v1749 = vsub.s32 %v1746, %v1748
  %v1750 = vrot.slane %v1728, %v1749
  %v1752 = vunpack.c.l.s4 1966171168
  %v1753 = vunpack.c.0.s8 %v1752
  %v1754 = vlaneseq
  %v1755 = vshrl.u32 %v1754, 7
  %v1756 = vsub.s32 %v1753, %v1755
  %v1757 = vrot.slane %v1729, %v1756
  %v1758 = vcombine.low %v1736, %v1750
  %v1759 = vcombine.high %v1736, %v1750
  %v1760 = vcombine.low %v1743, %v1757
  %v1761 = vcombine.high %v1743, %v1757
  %v1763 = vunpack.c.l.s4 1966171168
  %v1764 = vunpack.c.0.s8 %v1763
  %v1765 = vlaneseq
  %v1766 = vshrl.u32 %v1765, 7
  %v1767 = vsub.s32 %v1764, %v1766
  %v1768 = vrot.slane %v1758, %v1767
  %v1770 = vunpack.c.l.s4 1966171168
  %v1771 = vunpack.c.0.s8 %v1770
  %v1772 = vlaneseq
  %v1773 = vshrl.u32 %v1772, 7
  %v1774 = vsub.s32 %v1771, %v1773
  %v1775 = vrot.slane %v1760, %v1774
  %v1777 = vunpack.c.l.s4 1966171168
  %v1778 = vunpack.c.0.s8 %v1777
  %v1779 = vlaneseq
  %v1780 = vshrl.u32 %v1779, 7
  %v1781 = vsub.s32 %v1778, %v1780
  %v1782 = vrot.slane %v1759, %v1781
  %v1784 = vunpack.c.l.s4 1966171168
  %v1785 = vunpack.c.0.s8 %v1784
  %v1786 = vlaneseq
  %v1787 = vshrl.u32 %v1786, 7
  %v1788 = vsub.s32 %v1785, %v1787
  %v1789 = vrot.slane %v1761, %v1788
  %v1790 = vcombine.high %v1768, %v1768
  %v1791 = vcombine.high %v1775, %v1775
  %v1792 = vcombine.high %v1782, %v1782
  %v1793 = vcombine.high %v1789, %v1789
  %v1802 = vadd.f32 %v1500, %v1768
  %v1803 = vadd.f32 %v1502, %v1782
  %v1804 = vadd.f32 %v1504, %v1790
  %v1805 = vadd.f32 %v1506, %v1792
  %v1806 = vadd.f32 %v1508, %v1775
  %v1807 = vadd.f32 %v1510, %v1789
  %v1808 = vadd.f32 %v1512, %v1791
  %v1809 = vadd.f32 %v1514, %v1793
  %v1810 = vxor.u32 %v1802, 2147483648
  %v1811 = vxor.u32 %v1803, 2147483648
  %v1812 = vxor.u32 %v1804, 2147483648
  %v1813 = vxor.u32 %v1805, 2147483648
  %v1814 = vxor.u32 %v1806, 2147483648
  %v1815 = vxor.u32 %v1807, 2147483648
  %v1816 = vxor.u32 %v1808, 2147483648
  %v1817 = vxor.u32 %v1809, 2147483648
  %v1818 = vmul.f32 %v1810, 1.442695
  %v1819 = vpow.pop %v1818
  %v1820 = vmul.f32 %v1811, 1.442695
  %v1821 = vpow.pop %v1820
  %v1822 = vmul.f32 %v1812, 1.442695
  %v1823 = vpow.pop %v1822
  %v1824 = vmul.f32 %v1813, 1.442695
  %v1825 = vpow.pop %v1824
  %v1826 = vmul.f32 %v1814, 1.442695
  %v1827 = vpow.pop %v1826
  %v1828 = vmul.f32 %v1815, 1.442695
  %v1829 = vpow.pop %v1828
  %v1830 = vmul.f32 %v1816, 1.442695
  %v1831 = vpow.pop %v1830
  %v1832 = vmul.f32 %v1817, 1.442695
  %v1833 = vpow.pop %v1832
  %v1834 = vadd.f32 %v1819, 1.0
  %v1835 = vadd.f32 %v1821, 1.0
  %v1836 = vadd.f32 %v1823, 1.0
  %v1837 = vadd.f32 %v1825, 1.0
  %v1838 = vadd.f32 %v1827, 1.0
  %v1839 = vadd.f32 %v1829, 1.0
  %v1840 = vadd.f32 %v1831, 1.0
  %v1841 = vadd.f32 %v1833, 1.0
  %v1842 = vrcp.pop %v1834
  %v1843 = vmul.f32 1.0, %v1842
  %v1844 = vrcp.pop %v1835
  %v1845 = vmul.f32 1.0, %v1844
  %v1846 = vrcp.pop %v1836
  %v1847 = vmul.f32 1.0, %v1846
  %v1848 = vrcp.pop %v1837
  %v1849 = vmul.f32 1.0, %v1848
  %v1850 = vrcp.pop %v1838
  %v1851 = vmul.f32 1.0, %v1850
  %v1852 = vrcp.pop %v1839
  %v1853 = vmul.f32 1.0, %v1852
  %v1854 = vrcp.pop %v1840
  %v1855 = vmul.f32 1.0, %v1854
  %v1856 = vrcp.pop %v1841
  %v1857 = vmul.f32 1.0, %v1856
  %v1866 = vrot.slane %v1802, 3
  %v1867 = vrot.slane %v1803, 3
  %v1868 = vrot.slane %v1804, 3
  %v1869 = vrot.slane %v1805, 3
  %v1870 = vrot.slane %v1806, 3
  %v1871 = vrot.slane %v1807, 3
  %v1872 = vrot.slane %v1808, 3
  %v1873 = vrot.slane %v1809, 3
  %v1882 = vtanh.pop %v1866
  %v1883 = vtanh.pop %v1867
  %v1884 = vtanh.pop %v1868
  %v1885 = vtanh.pop %v1869
  %v1886 = vtanh.pop %v1870
  %v1887 = vtanh.pop %v1871
  %v1888 = vtanh.pop %v1872
  %v1889 = vtanh.pop %v1873
  %v1890 = vld [vmem:[#allocation3] sm:$0xff]
  %v1899 = vrot.slane %v1843, 1
  %v1900 = vrot.slane %v1845, 1
  %v1901 = vrot.slane %v1847, 1
  %v1902 = vrot.slane %v1849, 1
  %v1903 = vrot.slane %v1851, 1
  %v1904 = vrot.slane %v1853, 1
  %v1905 = vrot.slane %v1855, 1
  %v1906 = vrot.slane %v1857, 1
  %v1916 = vcombine.high %v1890, %v1890
  %v1918 = vunpack.c.l.s4 1966171168
  %v1919 = vunpack.c.0.s8 %v1918
  %v1920 = vlaneseq
  %v1921 = vshrl.u32 %v1920, 7
  %v1922 = vsub.s32 %v1919, %v1921
  %v1923 = vrot.slane %v1890, %v1922
  %v1925 = vunpack.c.l.s4 1966171168
  %v1926 = vunpack.c.0.s8 %v1925
  %v1927 = vlaneseq
  %v1928 = vshrl.u32 %v1927, 7
  %v1929 = vsub.s32 %v1926, %v1928
  %v1930 = vrot.slane %v1916, %v1929
  %v1931 = vcombine.high %v1923, %v1923
  %v1932 = vcombine.high %v1930, %v1930
  %v1934 = vunpack.c.l.s4 1966171168
  %v1935 = vunpack.c.0.s8 %v1934
  %v1936 = vlaneseq
  %v1937 = vshrl.u32 %v1936, 7
  %v1938 = vsub.s32 %v1935, %v1937
  %v1939 = vrot.slane %v1923, %v1938
  %v1941 = vunpack.c.l.s4 1966171168
  %v1942 = vunpack.c.0.s8 %v1941
  %v1943 = vlaneseq
  %v1944 = vshrl.u32 %v1943, 7
  %v1945 = vsub.s32 %v1942, %v1944
  %v1946 = vrot.slane %v1930, %v1945
  %v1948 = vunpack.c.l.s4 1966171168
  %v1949 = vunpack.c.0.s8 %v1948
  %v1950 = vlaneseq
  %v1951 = vshrl.u32 %v1950, 7
  %v1952 = vsub.s32 %v1949, %v1951
  %v1953 = vrot.slane %v1931, %v1952
  %v1955 = vunpack.c.l.s4 1966171168
  %v1956 = vunpack.c.0.s8 %v1955
  %v1957 = vlaneseq
  %v1958 = vshrl.u32 %v1957, 7
  %v1959 = vsub.s32 %v1956, %v1958
  %v1960 = vrot.slane %v1932, %v1959
  %v1961 = vcombine.high %v1939, %v1939
  %v1962 = vcombine.high %v1946, %v1946
  %v1963 = vcombine.high %v1953, %v1953
  %v1964 = vcombine.high %v1960, %v1960
  %v1973 = vmul.f32 %v1899, %v1939
  %v1974 = vmul.f32 %v1900, %v1953
  %v1975 = vmul.f32 %v1901, %v1961
  %v1976 = vmul.f32 %v1902, %v1963
  %v1977 = vmul.f32 %v1903, %v1946
  %v1978 = vmul.f32 %v1904, %v1960
  %v1979 = vmul.f32 %v1905, %v1962
  %v1980 = vmul.f32 %v1906, %v1964
  %v1981 = vmul.f32 %v1843, %v1882
  %v1982 = vmul.f32 %v1845, %v1883
  %v1983 = vmul.f32 %v1847, %v1884
  %v1984 = vmul.f32 %v1849, %v1885
  %v1985 = vmul.f32 %v1851, %v1886
  %v1986 = vmul.f32 %v1853, %v1887
  %v1987 = vmul.f32 %v1855, %v1888
  %v1988 = vmul.f32 %v1857, %v1889
  %v1989 = vadd.f32 %v1973, %v1981
  %v1990 = vadd.f32 %v1974, %v1982
  %v1991 = vadd.f32 %v1975, %v1983
  %v1992 = vadd.f32 %v1976, %v1984
  %v1993 = vadd.f32 %v1977, %v1985
  %v1994 = vadd.f32 %v1978, %v1986
  %v1995 = vadd.f32 %v1979, %v1987
  %v1996 = vadd.f32 %v1980, %v1988
  %v1997 = vtanh.pop %v1989
  %v1998 = vtanh.pop %v1990
  %v1999 = vtanh.pop %v1991
  %v2000 = vtanh.pop %v1992
  %v2001 = vtanh.pop %v1993
  %v2002 = vtanh.pop %v1994
  %v2003 = vtanh.pop %v1995
  %v2004 = vtanh.pop %v1996
  %v2005 = vrot.slane %v1843, 2
  %v2006 = vrot.slane %v1845, 2
  %v2007 = vrot.slane %v1847, 2
  %v2008 = vrot.slane %v1849, 2
  %v2009 = vrot.slane %v1851, 2
  %v2010 = vrot.slane %v1853, 2
  %v2011 = vrot.slane %v1855, 2
  %v2012 = vrot.slane %v1857, 2
  %v2021 = vmul.f32 %v2005, %v1997
  %v2022 = vmul.f32 %v2006, %v1998
  %v2023 = vmul.f32 %v2007, %v1999
  %v2024 = vmul.f32 %v2008, %v2000
  %v2025 = vmul.f32 %v2009, %v2001
  %v2026 = vmul.f32 %v2010, %v2002
  %v2027 = vmul.f32 %v2011, %v2003
  %v2028 = vmul.f32 %v2012, %v2004
  %v2037 = vcombine.low %v1989, %v1990
  %v2038 = vcombine.low %v1991, %v1992
  %v2039 = vcombine.low %v1993, %v1994
  %v2040 = vcombine.low %v1995, %v1996
  %v2042 = vunpack.c.l.s4 1966171168
  %v2043 = vunpack.c.0.s8 %v2042
  %v2044 = vlaneseq
  %v2045 = vshrl.u32 %v2044, 7
  %v2046 = vsub.s32 %v2043, %v2045
  %v2047 = vrot.slane %v2037, %v2046
  %v2049 = vunpack.c.l.s4 1966171168
  %v2050 = vunpack.c.0.s8 %v2049
  %v2051 = vlaneseq
  %v2052 = vshrl.u32 %v2051, 7
  %v2053 = vsub.s32 %v2050, %v2052
  %v2054 = vrot.slane %v2038, %v2053
  %v2056 = vunpack.c.l.s4 1966171168
  %v2057 = vunpack.c.0.s8 %v2056
  %v2058 = vlaneseq
  %v2059 = vshrl.u32 %v2058, 7
  %v2060 = vsub.s32 %v2057, %v2059
  %v2061 = vrot.slane %v2039, %v2060
  %v2063 = vunpack.c.l.s4 1966171168
  %v2064 = vunpack.c.0.s8 %v2063
  %v2065 = vlaneseq
  %v2066 = vshrl.u32 %v2065, 7
  %v2067 = vsub.s32 %v2064, %v2066
  %v2068 = vrot.slane %v2040, %v2067
  %v2069 = vcombine.low %v2047, %v2054
  %v2070 = vcombine.low %v2061, %v2068
  %v2072 = vunpack.c.l.s4 1966171168
  %v2073 = vunpack.c.0.s8 %v2072
  %v2074 = vlaneseq
  %v2075 = vshrl.u32 %v2074, 7
  %v2076 = vsub.s32 %v2073, %v2075
  %v2077 = vrot.slane %v2069, %v2076
  %v2079 = vunpack.c.l.s4 1966171168
  %v2080 = vunpack.c.0.s8 %v2079
  %v2081 = vlaneseq
  %v2082 = vshrl.u32 %v2081, 7
  %v2083 = vsub.s32 %v2080, %v2082
  %v2084 = vrot.slane %v2070, %v2083
  %v2085 = vcombine.low %v2077, %v2084
  %2087 = vst [vmem:[#allocation3] sm:$0xff] %v2085
  %v2096 = vcombine.low %v2021, %v2022
  %v2097 = vcombine.low %v2023, %v2024
  %v2098 = vcombine.low %v2025, %v2026
  %v2099 = vcombine.low %v2027, %v2028
  %v2101 = vunpack.c.l.s4 1966171168
  %v2102 = vunpack.c.0.s8 %v2101
  %v2103 = vlaneseq
  %v2104 = vshrl.u32 %v2103, 7
  %v2105 = vsub.s32 %v2102, %v2104
  %v2106 = vrot.slane %v2096, %v2105
  %v2108 = vunpack.c.l.s4 1966171168
  %v2109 = vunpack.c.0.s8 %v2108
  %v2110 = vlaneseq
  %v2111 = vshrl.u32 %v2110, 7
  %v2112 = vsub.s32 %v2109, %v2111
  %v2113 = vrot.slane %v2097, %v2112
  %v2115 = vunpack.c.l.s4 1966171168
  %v2116 = vunpack.c.0.s8 %v2115
  %v2117 = vlaneseq
  %v2118 = vshrl.u32 %v2117, 7
  %v2119 = vsub.s32 %v2116, %v2118
  %v2120 = vrot.slane %v2098, %v2119
  %v2122 = vunpack.c.l.s4 1966171168
  %v2123 = vunpack.c.0.s8 %v2122
  %v2124 = vlaneseq
  %v2125 = vshrl.u32 %v2124, 7
  %v2126 = vsub.s32 %v2123, %v2125
  %v2127 = vrot.slane %v2099, %v2126
  %v2128 = vcombine.low %v2106, %v2113
  %v2129 = vcombine.low %v2120, %v2127
  %v2131 = vunpack.c.l.s4 1966171168
  %v2132 = vunpack.c.0.s8 %v2131
  %v2133 = vlaneseq
  %v2134 = vshrl.u32 %v2133, 7
  %v2135 = vsub.s32 %v2132, %v2134
  %v2136 = vrot.slane %v2128, %v2135
  %v2138 = vunpack.c.l.s4 1966171168
  %v2139 = vunpack.c.0.s8 %v2138
  %v2140 = vlaneseq
  %v2141 = vshrl.u32 %v2140, 7
  %v2142 = vsub.s32 %v2139, %v2141
  %v2143 = vrot.slane %v2129, %v2142
  %v2144 = vcombine.low %v2136, %v2143
  %2146 = vst [vmem:[#allocation2] sm:$0xff] %v2144
  %2147 = vst [vmem:[%s2 + $0x2] sm:$0x1] %v2021
  %2148 = vst [vmem:[%s2 + $0x12] sm:$0x1] %v2022
  %2149 = vst [vmem:[%s2 + $0x22] sm:$0x1] %v2023
  %2150 = vst [vmem:[%s2 + $0x32] sm:$0x1] %v2024
  %2151 = vst [vmem:[%s2 + $0x42] sm:$0x1] %v2025
  %2152 = vst [vmem:[%s2 + $0x52] sm:$0x1] %v2026
  %2153 = vst [vmem:[%s2 + $0x62] sm:$0x1] %v2027
  %2154 = vst [vmem:[%s2 + $0x72] sm:$0x1] %v2028
  %s2155 = scalar_lea.vmem %s0, 3
  %v2156 = vld [vmem:[%s2155] ss:$8 sm:$0xf]
  %s2157 = scalar_lea.vmem %s0, 67
  %v2158 = vld [vmem:[%s2157] ss:$8 sm:$0xf]
  %s2159 = scalar_lea.vmem %s0, 131
  %v2160 = vld [vmem:[%s2159] ss:$8 sm:$0xf]
  %s2161 = scalar_lea.vmem %s0, 195
  %v2162 = vld [vmem:[%s2161] ss:$8 sm:$0xf]
  %s2163 = scalar_lea.vmem %s0, 259
  %v2164 = vld [vmem:[%s2163] ss:$8 sm:$0xf]
  %s2165 = scalar_lea.vmem %s0, 323
  %v2166 = vld [vmem:[%s2165] ss:$8 sm:$0xf]
  %s2167 = scalar_lea.vmem %s0, 387
  %v2168 = vld [vmem:[%s2167] ss:$8 sm:$0xf]
  %s2169 = scalar_lea.vmem %s0, 451
  %v2170 = vld [vmem:[%s2169] ss:$8 sm:$0xf]
  %v2171 = vld [vmem:[#allocation2] sm:$0xff]
  %v2172 = vld [vmem:[#allocation4] sm:$0xff]
  %v2173 = vld [vmem:[#allocation4 + $0x8] sm:$0xff]
  %v2174 = vld [vmem:[#allocation4 + $0x10] sm:$0xff]
  %v2175 = vld [vmem:[#allocation4 + $0x18] sm:$0xff]
  %v2176 = vld [vmem:[#allocation4 + $0x20] sm:$0xff]
  %v2177 = vld [vmem:[#allocation4 + $0x28] sm:$0xff]
  %v2178 = vld [vmem:[#allocation4 + $0x30] sm:$0xff]
  %v2179 = vld [vmem:[#allocation4 + $0x38] sm:$0xff]
  %v2180 = vld [vmem:[#allocation4 + $0x40] sm:$0xff]
  %v2181 = vld [vmem:[#allocation4 + $0x48] sm:$0xff]
  %v2182 = vld [vmem:[#allocation4 + $0x50] sm:$0xff]
  %v2183 = vld [vmem:[#allocation4 + $0x58] sm:$0xff]
  %v2184 = vld [vmem:[#allocation4 + $0x60] sm:$0xff]
  %v2185 = vld [vmem:[#allocation4 + $0x68] sm:$0xff]
  %v2186 = vld [vmem:[#allocation4 + $0x70] sm:$0xff]
  %v2187 = vld [vmem:[#allocation4 + $0x78] sm:$0xff]
  %v2188 = vld [vmem:[#allocation4 + $0x80] sm:$0xff]
  %v2189 = vld [vmem:[#allocation4 + $0x88] sm:$0xff]
  %v2190 = vld [vmem:[#allocation4 + $0x90] sm:$0xff]
  %v2191 = vld [vmem:[#allocation4 + $0x98] sm:$0xff]
  %v2192 = vld [vmem:[#allocation4 + $0xa0] sm:$0xff]
  %v2193 = vld [vmem:[#allocation4 + $0xa8] sm:$0xff]
  %v2194 = vld [vmem:[#allocation4 + $0xb0] sm:$0xff]
  %v2195 = vld [vmem:[#allocation4 + $0xb8] sm:$0xff]
  %v2196 = vld [vmem:[#allocation4 + $0xc0] sm:$0xff]
  %v2197 = vld [vmem:[#allocation4 + $0xc8] sm:$0xff]
  %v2198 = vld [vmem:[#allocation4 + $0xd0] sm:$0xff]
  %v2199 = vld [vmem:[#allocation4 + $0xd8] sm:$0xff]
  %v2200 = vld [vmem:[#allocation4 + $0xe0] sm:$0xff]
  %v2201 = vld [vmem:[#allocation4 + $0xe8] sm:$0xff]
  %v2202 = vld [vmem:[#allocation4 + $0xf0] sm:$0xff]
  %v2203 = vld [vmem:[#allocation4 + $0xf8] sm:$0xff]
  %v2204 = vld [vmem:[#allocation4 + $0x100] sm:$0xff]
  %v2205 = vld [vmem:[#allocation4 + $0x108] sm:$0xff]
  %v2206 = vld [vmem:[#allocation4 + $0x110] sm:$0xff]
  %v2207 = vld [vmem:[#allocation4 + $0x118] sm:$0xff]
  %v2208 = vld [vmem:[#allocation4 + $0x120] sm:$0xff]
  %v2209 = vld [vmem:[#allocation4 + $0x128] sm:$0xff]
  %v2210 = vld [vmem:[#allocation4 + $0x130] sm:$0xff]
  %v2211 = vld [vmem:[#allocation4 + $0x138] sm:$0xff]
  %v2212 = vld [vmem:[#allocation4 + $0x140] sm:$0xff]
  %v2213 = vld [vmem:[#allocation4 + $0x148] sm:$0xff]
  %v2214 = vld [vmem:[#allocation4 + $0x150] sm:$0xff]
  %v2215 = vld [vmem:[#allocation4 + $0x158] sm:$0xff]
  %v2216 = vld [vmem:[#allocation4 + $0x160] sm:$0xff]
  %v2217 = vld [vmem:[#allocation4 + $0x168] sm:$0xff]
  %v2218 = vld [vmem:[#allocation4 + $0x170] sm:$0xff]
  %v2219 = vld [vmem:[#allocation4 + $0x178] sm:$0xff]
  %v2220 = vld [vmem:[#allocation4 + $0x180] sm:$0xff]
  %v2221 = vld [vmem:[#allocation4 + $0x188] sm:$0xff]
  %v2222 = vld [vmem:[#allocation4 + $0x190] sm:$0xff]
  %v2223 = vld [vmem:[#allocation4 + $0x198] sm:$0xff]
  %v2224 = vld [vmem:[#allocation4 + $0x1a0] sm:$0xff]
  %v2225 = vld [vmem:[#allocation4 + $0x1a8] sm:$0xff]
  %v2226 = vld [vmem:[#allocation4 + $0x1b0] sm:$0xff]
  %v2227 = vld [vmem:[#allocation4 + $0x1b8] sm:$0xff]
  %v2228 = vld [vmem:[#allocation4 + $0x1c0] sm:$0xff]
  %v2229 = vld [vmem:[#allocation4 + $0x1c8] sm:$0xff]
  %v2230 = vld [vmem:[#allocation4 + $0x1d0] sm:$0xff]
  %v2231 = vld [vmem:[#allocation4 + $0x1d8] sm:$0xff]
  %v2232 = vld [vmem:[#allocation4 + $0x1e0] sm:$0xff]
  %v2233 = vld [vmem:[#allocation4 + $0x1e8] sm:$0xff]
  %v2234 = vld [vmem:[#allocation4 + $0x1f0] sm:$0xff]
  %v2235 = vld [vmem:[#allocation4 + $0x1f8] sm:$0xff]
  %2236 = vmatprep.subr.mxu0 %v2233
  %2237 = vmatpush1.msra.mxu0 %v2232
  %2238 = vmatprep.subr.mxu0 %v2229
  %2239 = vmatpush1.msra.mxu0 %v2228
  %2240 = vmatprep.subr.mxu0 %v2225
  %2241 = vmatpush1.msra.mxu0 %v2224
  %2242 = vmatprep.subr.mxu0 %v2221
  %2243 = vmatpush1.msra.mxu0 %v2220
  %2244 = vmatprep.subr.mxu0 %v2217
  %2245 = vmatpush1.msra.mxu0 %v2216
  %2246 = vmatprep.subr.mxu0 %v2213
  %2247 = vmatpush1.msra.mxu0 %v2212
  %2248 = vmatprep.subr.mxu0 %v2209
  %2249 = vmatpush1.msra.mxu0 %v2208
  %2250 = vmatprep.subr.mxu0 %v2205
  %2251 = vmatpush1.msra.mxu0 %v2204
  %2252 = vmatprep.subr.mxu0 %v2201
  %2253 = vmatpush1.msra.mxu0 %v2200
  %2254 = vmatprep.subr.mxu0 %v2197
  %2255 = vmatpush1.msra.mxu0 %v2196
  %2256 = vmatprep.subr.mxu0 %v2193
  %2257 = vmatpush1.msra.mxu0 %v2192
  %2258 = vmatprep.subr.mxu0 %v2189
  %2259 = vmatpush1.msra.mxu0 %v2188
  %2260 = vmatprep.subr.mxu0 %v2185
  %2261 = vmatpush1.msra.mxu0 %v2184
  %2262 = vmatprep.subr.mxu0 %v2181
  %2263 = vmatpush1.msra.mxu0 %v2180
  %2264 = vmatprep.subr.mxu0 %v2177
  %2265 = vmatpush1.msra.mxu0 %v2176
  %2266 = vmatprep.subr.mxu0 %v2173
  %2267 = vmatpush1.msra.mxu0 %v2172
  %2268 = vmatprep.subr.mxu0 0.0
  %2269 = vmatpush2.msra.mxu0 0.0
  %2270 = vmatprep.subr.mxu0 0.0
  %2271 = vmatpush2.msra.mxu0 0.0
  %2272 = vmatprep.subr.mxu0 0.0
  %2273 = vmatpush2.msra.mxu0 0.0
  %2274 = vmatprep.subr.mxu0 0.0
  %2275 = vmatpush2.msra.mxu0 0.0
  %2276 = vmatprep.subr.mxu0 0.0
  %2277 = vmatpush2.msra.mxu0 0.0
  %2278 = vmatprep.subr.mxu0 0.0
  %2279 = vmatpush2.msra.mxu0 0.0
  %2280 = vmatprep.subr.mxu0 0.0
  %2281 = vmatpush2.msra.mxu0 0.0
  %2282 = vmatprep.subr.mxu0 0.0
  %2283 = vmatpush2.msra.mxu0 0.0
  %2284 = vmatprep.subr.mxu0 0.0
  %2285 = vmatpush2.msra.mxu0 0.0
  %2286 = vmatprep.subr.mxu0 0.0
  %2287 = vmatpush2.msra.mxu0 0.0
  %2288 = vmatprep.subr.mxu0 0.0
  %2289 = vmatpush2.msra.mxu0 0.0
  %2290 = vmatprep.subr.mxu0 0.0
  %2291 = vmatpush2.msra.mxu0 0.0
  %2292 = vmatprep.subr.mxu0 0.0
  %2293 = vmatpush2.msra.mxu0 0.0
  %2294 = vmatprep.subr.mxu0 0.0
  %2295 = vmatpush2.msra.mxu0 0.0
  %2296 = vmatprep.subr.mxu0 0.0
  %2297 = vmatpush2.msra.mxu0 0.0
  %2298 = vmatprep.subr.mxu0 0.0
  %2299 = vmatpush2.msra.mxu0 0.0
  %2300 = vmatprep.mubr.f32.mxu0 0.0
  %2301 = vmatmul.mubr.f32.gmra.mxu0 %v2171
  %v2302 = vpop.f32.mrf.mxu0
  %v2303 = vadd.f32 0.0, %v2302
  %v2304 = vpop.f32.mrf.mxu0
  %v2305 = vadd.f32 0.0, %v2304
  %2306 = vdwg.mxu0
  %2307 = vmatprep.subr.mxu0 %v2235
  %2308 = vmatpush1.msra.mxu0 %v2234
  %2309 = vmatprep.subr.mxu0 %v2231
  %2310 = vmatpush1.msra.mxu0 %v2230
  %2311 = vmatprep.subr.mxu0 %v2227
  %2312 = vmatpush1.msra.mxu0 %v2226
  %2313 = vmatprep.subr.mxu0 %v2223
  %2314 = vmatpush1.msra.mxu0 %v2222
  %2315 = vmatprep.subr.mxu0 %v2219
  %2316 = vmatpush1.msra.mxu0 %v2218
  %2317 = vmatprep.subr.mxu0 %v2215
  %2318 = vmatpush1.msra.mxu0 %v2214
  %2319 = vmatprep.subr.mxu0 %v2211
  %2320 = vmatpush1.msra.mxu0 %v2210
  %2321 = vmatprep.subr.mxu0 %v2207
  %2322 = vmatpush1.msra.mxu0 %v2206
  %2323 = vmatprep.subr.mxu0 %v2203
  %2324 = vmatpush1.msra.mxu0 %v2202
  %2325 = vmatprep.subr.mxu0 %v2199
  %2326 = vmatpush1.msra.mxu0 %v2198
  %2327 = vmatprep.subr.mxu0 %v2195
  %2328 = vmatpush1.msra.mxu0 %v2194
  %2329 = vmatprep.subr.mxu0 %v2191
  %2330 = vmatpush1.msra.mxu0 %v2190
  %2331 = vmatprep.subr.mxu0 %v2187
  %2332 = vmatpush1.msra.mxu0 %v2186
  %2333 = vmatprep.subr.mxu0 %v2183
  %2334 = vmatpush1.msra.mxu0 %v2182
  %2335 = vmatprep.subr.mxu0 %v2179
  %2336 = vmatpush1.msra.mxu0 %v2178
  %2337 = vmatprep.subr.mxu0 %v2175
  %2338 = vmatpush1.msra.mxu0 %v2174
  %2339 = vmatprep.subr.mxu0 0.0
  %2340 = vmatpush2.msra.mxu0 0.0
  %2341 = vmatprep.subr.mxu0 0.0
  %2342 = vmatpush2.msra.mxu0 0.0
  %2343 = vmatprep.subr.mxu0 0.0
  %2344 = vmatpush2.msra.mxu0 0.0
  %2345 = vmatprep.subr.mxu0 0.0
  %2346 = vmatpush2.msra.mxu0 0.0
  %2347 = vmatprep.subr.mxu0 0.0
  %2348 = vmatpush2.msra.mxu0 0.0
  %2349 = vmatprep.subr.mxu0 0.0
  %2350 = vmatpush2.msra.mxu0 0.0
  %2351 = vmatprep.subr.mxu0 0.0
  %2352 = vmatpush2.msra.mxu0 0.0
  %2353 = vmatprep.subr.mxu0 0.0
  %2354 = vmatpush2.msra.mxu0 0.0
  %2355 = vmatprep.subr.mxu0 0.0
  %2356 = vmatpush2.msra.mxu0 0.0
  %2357 = vmatprep.subr.mxu0 0.0
  %2358 = vmatpush2.msra.mxu0 0.0
  %2359 = vmatprep.subr.mxu0 0.0
  %2360 = vmatpush2.msra.mxu0 0.0
  %2361 = vmatprep.subr.mxu0 0.0
  %2362 = vmatpush2.msra.mxu0 0.0
  %2363 = vmatprep.subr.mxu0 0.0
  %2364 = vmatpush2.msra.mxu0 0.0
  %2365 = vmatprep.subr.mxu0 0.0
  %2366 = vmatpush2.msra.mxu0 0.0
  %2367 = vmatprep.subr.mxu0 0.0
  %2368 = vmatpush2.msra.mxu0 0.0
  %2369 = vmatprep.subr.mxu0 0.0
  %2370 = vmatpush2.msra.mxu0 0.0
  %2371 = vmatprep.mubr.f32.mxu0 0.0
  %2372 = vmatmul.mubr.f32.gmra.mxu0 %v2171
  %v2373 = vpop.f32.mrf.mxu0
  %v2374 = vadd.f32 0.0, %v2373
  %v2375 = vpop.f32.mrf.mxu0
  %v2376 = vadd.f32 0.0, %v2375
  %2377 = vdwg.mxu0
  %v2382 = vcombine.low %v2303, %v2305
  %v2383 = vcombine.high %v2303, %v2305
  %v2384 = vcombine.low %v2374, %v2376
  %v2385 = vcombine.high %v2374, %v2376
  %v2387 = vunpack.c.l.s4 1966171168
  %v2388 = vunpack.c.0.s8 %v2387
  %v2389 = vlaneseq
  %v2390 = vshrl.u32 %v2389, 7
  %v2391 = vsub.s32 %v2388, %v2390
  %v2392 = vrot.slane %v2382, %v2391
  %v2394 = vunpack.c.l.s4 1966171168
  %v2395 = vunpack.c.0.s8 %v2394
  %v2396 = vlaneseq
  %v2397 = vshrl.u32 %v2396, 7
  %v2398 = vsub.s32 %v2395, %v2397
  %v2399 = vrot.slane %v2383, %v2398
  %v2401 = vunpack.c.l.s4 1966171168
  %v2402 = vunpack.c.0.s8 %v2401
  %v2403 = vlaneseq
  %v2404 = vshrl.u32 %v2403, 7
  %v2405 = vsub.s32 %v2402, %v2404
  %v2406 = vrot.slane %v2384, %v2405
  %v2408 = vunpack.c.l.s4 1966171168
  %v2409 = vunpack.c.0.s8 %v2408
  %v2410 = vlaneseq
  %v2411 = vshrl.u32 %v2410, 7
  %v2412 = vsub.s32 %v2409, %v2411
  %v2413 = vrot.slane %v2385, %v2412
  %v2414 = vcombine.low %v2392, %v2406
  %v2415 = vcombine.high %v2392, %v2406
  %v2416 = vcombine.low %v2399, %v2413
  %v2417 = vcombine.high %v2399, %v2413
  %v2419 = vunpack.c.l.s4 1966171168
  %v2420 = vunpack.c.0.s8 %v2419
  %v2421 = vlaneseq
  %v2422 = vshrl.u32 %v2421, 7
  %v2423 = vsub.s32 %v2420, %v2422
  %v2424 = vrot.slane %v2414, %v2423
  %v2426 = vunpack.c.l.s4 1966171168
  %v2427 = vunpack.c.0.s8 %v2426
  %v2428 = vlaneseq
  %v2429 = vshrl.u32 %v2428, 7
  %v2430 = vsub.s32 %v2427, %v2429
  %v2431 = vrot.slane %v2416, %v2430
  %v2433 = vunpack.c.l.s4 1966171168
  %v2434 = vunpack.c.0.s8 %v2433
  %v2435 = vlaneseq
  %v2436 = vshrl.u32 %v2435, 7
  %v2437 = vsub.s32 %v2434, %v2436
  %v2438 = vrot.slane %v2415, %v2437
  %v2440 = vunpack.c.l.s4 1966171168
  %v2441 = vunpack.c.0.s8 %v2440
  %v2442 = vlaneseq
  %v2443 = vshrl.u32 %v2442, 7
  %v2444 = vsub.s32 %v2441, %v2443
  %v2445 = vrot.slane %v2417, %v2444
  %v2446 = vcombine.high %v2424, %v2424
  %v2447 = vcombine.high %v2431, %v2431
  %v2448 = vcombine.high %v2438, %v2438
  %v2449 = vcombine.high %v2445, %v2445
  %v2458 = vadd.f32 %v2156, %v2424
  %v2459 = vadd.f32 %v2158, %v2438
  %v2460 = vadd.f32 %v2160, %v2446
  %v2461 = vadd.f32 %v2162, %v2448
  %v2462 = vadd.f32 %v2164, %v2431
  %v2463 = vadd.f32 %v2166, %v2445
  %v2464 = vadd.f32 %v2168, %v2447
  %v2465 = vadd.f32 %v2170, %v2449
  %v2466 = vxor.u32 %v2458, 2147483648
  %v2467 = vxor.u32 %v2459, 2147483648
  %v2468 = vxor.u32 %v2460, 2147483648
  %v2469 = vxor.u32 %v2461, 2147483648
  %v2470 = vxor.u32 %v2462, 2147483648
  %v2471 = vxor.u32 %v2463, 2147483648
  %v2472 = vxor.u32 %v2464, 2147483648
  %v2473 = vxor.u32 %v2465, 2147483648
  %v2474 = vmul.f32 %v2466, 1.442695
  %v2475 = vpow.pop %v2474
  %v2476 = vmul.f32 %v2467, 1.442695
  %v2477 = vpow.pop %v2476
  %v2478 = vmul.f32 %v2468, 1.442695
  %v2479 = vpow.pop %v2478
  %v2480 = vmul.f32 %v2469, 1.442695
  %v2481 = vpow.pop %v2480
  %v2482 = vmul.f32 %v2470, 1.442695
  %v2483 = vpow.pop %v2482
  %v2484 = vmul.f32 %v2471, 1.442695
  %v2485 = vpow.pop %v2484
  %v2486 = vmul.f32 %v2472, 1.442695
  %v2487 = vpow.pop %v2486
  %v2488 = vmul.f32 %v2473, 1.442695
  %v2489 = vpow.pop %v2488
  %v2490 = vadd.f32 %v2475, 1.0
  %v2491 = vadd.f32 %v2477, 1.0
  %v2492 = vadd.f32 %v2479, 1.0
  %v2493 = vadd.f32 %v2481, 1.0
  %v2494 = vadd.f32 %v2483, 1.0
  %v2495 = vadd.f32 %v2485, 1.0
  %v2496 = vadd.f32 %v2487, 1.0
  %v2497 = vadd.f32 %v2489, 1.0
  %v2498 = vrcp.pop %v2490
  %v2499 = vmul.f32 1.0, %v2498
  %v2500 = vrcp.pop %v2491
  %v2501 = vmul.f32 1.0, %v2500
  %v2502 = vrcp.pop %v2492
  %v2503 = vmul.f32 1.0, %v2502
  %v2504 = vrcp.pop %v2493
  %v2505 = vmul.f32 1.0, %v2504
  %v2506 = vrcp.pop %v2494
  %v2507 = vmul.f32 1.0, %v2506
  %v2508 = vrcp.pop %v2495
  %v2509 = vmul.f32 1.0, %v2508
  %v2510 = vrcp.pop %v2496
  %v2511 = vmul.f32 1.0, %v2510
  %v2512 = vrcp.pop %v2497
  %v2513 = vmul.f32 1.0, %v2512
  %v2522 = vrot.slane %v2458, 3
  %v2523 = vrot.slane %v2459, 3
  %v2524 = vrot.slane %v2460, 3
  %v2525 = vrot.slane %v2461, 3
  %v2526 = vrot.slane %v2462, 3
  %v2527 = vrot.slane %v2463, 3
  %v2528 = vrot.slane %v2464, 3
  %v2529 = vrot.slane %v2465, 3
  %v2538 = vtanh.pop %v2522
  %v2539 = vtanh.pop %v2523
  %v2540 = vtanh.pop %v2524
  %v2541 = vtanh.pop %v2525
  %v2542 = vtanh.pop %v2526
  %v2543 = vtanh.pop %v2527
  %v2544 = vtanh.pop %v2528
  %v2545 = vtanh.pop %v2529
  %v2546 = vld [vmem:[#allocation3] sm:$0xff]
  %v2555 = vrot.slane %v2499, 1
  %v2556 = vrot.slane %v2501, 1
  %v2557 = vrot.slane %v2503, 1
  %v2558 = vrot.slane %v2505, 1
  %v2559 = vrot.slane %v2507, 1
  %v2560 = vrot.slane %v2509, 1
  %v2561 = vrot.slane %v2511, 1
  %v2562 = vrot.slane %v2513, 1
  %v2572 = vcombine.high %v2546, %v2546
  %v2574 = vunpack.c.l.s4 1966171168
  %v2575 = vunpack.c.0.s8 %v2574
  %v2576 = vlaneseq
  %v2577 = vshrl.u32 %v2576, 7
  %v2578 = vsub.s32 %v2575, %v2577
  %v2579 = vrot.slane %v2546, %v2578
  %v2581 = vunpack.c.l.s4 1966171168
  %v2582 = vunpack.c.0.s8 %v2581
  %v2583 = vlaneseq
  %v2584 = vshrl.u32 %v2583, 7
  %v2585 = vsub.s32 %v2582, %v2584
  %v2586 = vrot.slane %v2572, %v2585
  %v2587 = vcombine.high %v2579, %v2579
  %v2588 = vcombine.high %v2586, %v2586
  %v2590 = vunpack.c.l.s4 1966171168
  %v2591 = vunpack.c.0.s8 %v2590
  %v2592 = vlaneseq
  %v2593 = vshrl.u32 %v2592, 7
  %v2594 = vsub.s32 %v2591, %v2593
  %v2595 = vrot.slane %v2579, %v2594
  %v2597 = vunpack.c.l.s4 1966171168
  %v2598 = vunpack.c.0.s8 %v2597
  %v2599 = vlaneseq
  %v2600 = vshrl.u32 %v2599, 7
  %v2601 = vsub.s32 %v2598, %v2600
  %v2602 = vrot.slane %v2586, %v2601
  %v2604 = vunpack.c.l.s4 1966171168
  %v2605 = vunpack.c.0.s8 %v2604
  %v2606 = vlaneseq
  %v2607 = vshrl.u32 %v2606, 7
  %v2608 = vsub.s32 %v2605, %v2607
  %v2609 = vrot.slane %v2587, %v2608
  %v2611 = vunpack.c.l.s4 1966171168
  %v2612 = vunpack.c.0.s8 %v2611
  %v2613 = vlaneseq
  %v2614 = vshrl.u32 %v2613, 7
  %v2615 = vsub.s32 %v2612, %v2614
  %v2616 = vrot.slane %v2588, %v2615
  %v2617 = vcombine.high %v2595, %v2595
  %v2618 = vcombine.high %v2602, %v2602
  %v2619 = vcombine.high %v2609, %v2609
  %v2620 = vcombine.high %v2616, %v2616
  %v2629 = vmul.f32 %v2555, %v2595
  %v2630 = vmul.f32 %v2556, %v2609
  %v2631 = vmul.f32 %v2557, %v2617
  %v2632 = vmul.f32 %v2558, %v2619
  %v2633 = vmul.f32 %v2559, %v2602
  %v2634 = vmul.f32 %v2560, %v2616
  %v2635 = vmul.f32 %v2561, %v2618
  %v2636 = vmul.f32 %v2562, %v2620
  %v2637 = vmul.f32 %v2499, %v2538
  %v2638 = vmul.f32 %v2501, %v2539
  %v2639 = vmul.f32 %v2503, %v2540
  %v2640 = vmul.f32 %v2505, %v2541
  %v2641 = vmul.f32 %v2507, %v2542
  %v2642 = vmul.f32 %v2509, %v2543
  %v2643 = vmul.f32 %v2511, %v2544
  %v2644 = vmul.f32 %v2513, %v2545
  %v2645 = vadd.f32 %v2629, %v2637
  %v2646 = vadd.f32 %v2630, %v2638
  %v2647 = vadd.f32 %v2631, %v2639
  %v2648 = vadd.f32 %v2632, %v2640
  %v2649 = vadd.f32 %v2633, %v2641
  %v2650 = vadd.f32 %v2634, %v2642
  %v2651 = vadd.f32 %v2635, %v2643
  %v2652 = vadd.f32 %v2636, %v2644
  %v2653 = vtanh.pop %v2645
  %v2654 = vtanh.pop %v2646
  %v2655 = vtanh.pop %v2647
  %v2656 = vtanh.pop %v2648
  %v2657 = vtanh.pop %v2649
  %v2658 = vtanh.pop %v2650
  %v2659 = vtanh.pop %v2651
  %v2660 = vtanh.pop %v2652
  %v2661 = vrot.slane %v2499, 2
  %v2662 = vrot.slane %v2501, 2
  %v2663 = vrot.slane %v2503, 2
  %v2664 = vrot.slane %v2505, 2
  %v2665 = vrot.slane %v2507, 2
  %v2666 = vrot.slane %v2509, 2
  %v2667 = vrot.slane %v2511, 2
  %v2668 = vrot.slane %v2513, 2
  %v2677 = vmul.f32 %v2661, %v2653
  %v2678 = vmul.f32 %v2662, %v2654
  %v2679 = vmul.f32 %v2663, %v2655
  %v2680 = vmul.f32 %v2664, %v2656
  %v2681 = vmul.f32 %v2665, %v2657
  %v2682 = vmul.f32 %v2666, %v2658
  %v2683 = vmul.f32 %v2667, %v2659
  %v2684 = vmul.f32 %v2668, %v2660
  %v2693 = vcombine.low %v2645, %v2646
  %v2694 = vcombine.low %v2647, %v2648
  %v2695 = vcombine.low %v2649, %v2650
  %v2696 = vcombine.low %v2651, %v2652
  %v2698 = vunpack.c.l.s4 1966171168
  %v2699 = vunpack.c.0.s8 %v2698
  %v2700 = vlaneseq
  %v2701 = vshrl.u32 %v2700, 7
  %v2702 = vsub.s32 %v2699, %v2701
  %v2703 = vrot.slane %v2693, %v2702
  %v2705 = vunpack.c.l.s4 1966171168
  %v2706 = vunpack.c.0.s8 %v2705
  %v2707 = vlaneseq
  %v2708 = vshrl.u32 %v2707, 7
  %v2709 = vsub.s32 %v2706, %v2708
  %v2710 = vrot.slane %v2694, %v2709
  %v2712 = vunpack.c.l.s4 1966171168
  %v2713 = vunpack.c.0.s8 %v2712
  %v2714 = vlaneseq
  %v2715 = vshrl.u32 %v2714, 7
  %v2716 = vsub.s32 %v2713, %v2715
  %v2717 = vrot.slane %v2695, %v2716
  %v2719 = vunpack.c.l.s4 1966171168
  %v2720 = vunpack.c.0.s8 %v2719
  %v2721 = vlaneseq
  %v2722 = vshrl.u32 %v2721, 7
  %v2723 = vsub.s32 %v2720, %v2722
  %v2724 = vrot.slane %v2696, %v2723
  %v2725 = vcombine.low %v2703, %v2710
  %v2726 = vcombine.low %v2717, %v2724
  %v2728 = vunpack.c.l.s4 1966171168
  %v2729 = vunpack.c.0.s8 %v2728
  %v2730 = vlaneseq
  %v2731 = vshrl.u32 %v2730, 7
  %v2732 = vsub.s32 %v2729, %v2731
  %v2733 = vrot.slane %v2725, %v2732
  %v2735 = vunpack.c.l.s4 1966171168
  %v2736 = vunpack.c.0.s8 %v2735
  %v2737 = vlaneseq
  %v2738 = vshrl.u32 %v2737, 7
  %v2739 = vsub.s32 %v2736, %v2738
  %v2740 = vrot.slane %v2726, %v2739
  %v2741 = vcombine.low %v2733, %v2740
  %2743 = vst [vmem:[#allocation3] sm:$0xff] %v2741
  %v2752 = vcombine.low %v2677, %v2678
  %v2753 = vcombine.low %v2679, %v2680
  %v2754 = vcombine.low %v2681, %v2682
  %v2755 = vcombine.low %v2683, %v2684
  %v2757 = vunpack.c.l.s4 1966171168
  %v2758 = vunpack.c.0.s8 %v2757
  %v2759 = vlaneseq
  %v2760 = vshrl.u32 %v2759, 7
  %v2761 = vsub.s32 %v2758, %v2760
  %v2762 = vrot.slane %v2752, %v2761
  %v2764 = vunpack.c.l.s4 1966171168
  %v2765 = vunpack.c.0.s8 %v2764
  %v2766 = vlaneseq
  %v2767 = vshrl.u32 %v2766, 7
  %v2768 = vsub.s32 %v2765, %v2767
  %v2769 = vrot.slane %v2753, %v2768
  %v2771 = vunpack.c.l.s4 1966171168
  %v2772 = vunpack.c.0.s8 %v2771
  %v2773 = vlaneseq
  %v2774 = vshrl.u32 %v2773, 7
  %v2775 = vsub.s32 %v2772, %v2774
  %v2776 = vrot.slane %v2754, %v2775
  %v2778 = vunpack.c.l.s4 1966171168
  %v2779 = vunpack.c.0.s8 %v2778
  %v2780 = vlaneseq
  %v2781 = vshrl.u32 %v2780, 7
  %v2782 = vsub.s32 %v2779, %v2781
  %v2783 = vrot.slane %v2755, %v2782
  %v2784 = vcombine.low %v2762, %v2769
  %v2785 = vcombine.low %v2776, %v2783
  %v2787 = vunpack.c.l.s4 1966171168
  %v2788 = vunpack.c.0.s8 %v2787
  %v2789 = vlaneseq
  %v2790 = vshrl.u32 %v2789, 7
  %v2791 = vsub.s32 %v2788, %v2790
  %v2792 = vrot.slane %v2784, %v2791
  %v2794 = vunpack.c.l.s4 1966171168
  %v2795 = vunpack.c.0.s8 %v2794
  %v2796 = vlaneseq
  %v2797 = vshrl.u32 %v2796, 7
  %v2798 = vsub.s32 %v2795, %v2797
  %v2799 = vrot.slane %v2785, %v2798
  %v2800 = vcombine.low %v2792, %v2799
  %2802 = vst [vmem:[#allocation2] sm:$0xff] %v2800
  %2803 = vst [vmem:[%s2 + $0x3] sm:$0x1] %v2677
  %2804 = vst [vmem:[%s2 + $0x13] sm:$0x1] %v2678
  %2805 = vst [vmem:[%s2 + $0x23] sm:$0x1] %v2679
  %2806 = vst [vmem:[%s2 + $0x33] sm:$0x1] %v2680
  %2807 = vst [vmem:[%s2 + $0x43] sm:$0x1] %v2681
  %2808 = vst [vmem:[%s2 + $0x53] sm:$0x1] %v2682
  %2809 = vst [vmem:[%s2 + $0x63] sm:$0x1] %v2683
  %2810 = vst [vmem:[%s2 + $0x73] sm:$0x1] %v2684
  %s2811 = scalar_lea.vmem %s0, 4
  %v2812 = vld [vmem:[%s2811] ss:$8 sm:$0xf]
  %s2813 = scalar_lea.vmem %s0, 68
  %v2814 = vld [vmem:[%s2813] ss:$8 sm:$0xf]
  %s2815 = scalar_lea.vmem %s0, 132
  %v2816 = vld [vmem:[%s2815] ss:$8 sm:$0xf]
  %s2817 = scalar_lea.vmem %s0, 196
  %v2818 = vld [vmem:[%s2817] ss:$8 sm:$0xf]
  %s2819 = scalar_lea.vmem %s0, 260
  %v2820 = vld [vmem:[%s2819] ss:$8 sm:$0xf]
  %s2821 = scalar_lea.vmem %s0, 324
  %v2822 = vld [vmem:[%s2821] ss:$8 sm:$0xf]
  %s2823 = scalar_lea.vmem %s0, 388
  %v2824 = vld [vmem:[%s2823] ss:$8 sm:$0xf]
  %s2825 = scalar_lea.vmem %s0, 452
  %v2826 = vld [vmem:[%s2825] ss:$8 sm:$0xf]
  %v2827 = vld [vmem:[#allocation2] sm:$0xff]
  %v2828 = vld [vmem:[#allocation4] sm:$0xff]
  %v2829 = vld [vmem:[#allocation4 + $0x8] sm:$0xff]
  %v2830 = vld [vmem:[#allocation4 + $0x10] sm:$0xff]
  %v2831 = vld [vmem:[#allocation4 + $0x18] sm:$0xff]
  %v2832 = vld [vmem:[#allocation4 + $0x20] sm:$0xff]
  %v2833 = vld [vmem:[#allocation4 + $0x28] sm:$0xff]
  %v2834 = vld [vmem:[#allocation4 + $0x30] sm:$0xff]
  %v2835 = vld [vmem:[#allocation4 + $0x38] sm:$0xff]
  %v2836 = vld [vmem:[#allocation4 + $0x40] sm:$0xff]
  %v2837 = vld [vmem:[#allocation4 + $0x48] sm:$0xff]
  %v2838 = vld [vmem:[#allocation4 + $0x50] sm:$0xff]
  %v2839 = vld [vmem:[#allocation4 + $0x58] sm:$0xff]
  %v2840 = vld [vmem:[#allocation4 + $0x60] sm:$0xff]
  %v2841 = vld [vmem:[#allocation4 + $0x68] sm:$0xff]
  %v2842 = vld [vmem:[#allocation4 + $0x70] sm:$0xff]
  %v2843 = vld [vmem:[#allocation4 + $0x78] sm:$0xff]
  %v2844 = vld [vmem:[#allocation4 + $0x80] sm:$0xff]
  %v2845 = vld [vmem:[#allocation4 + $0x88] sm:$0xff]
  %v2846 = vld [vmem:[#allocation4 + $0x90] sm:$0xff]
  %v2847 = vld [vmem:[#allocation4 + $0x98] sm:$0xff]
  %v2848 = vld [vmem:[#allocation4 + $0xa0] sm:$0xff]
  %v2849 = vld [vmem:[#allocation4 + $0xa8] sm:$0xff]
  %v2850 = vld [vmem:[#allocation4 + $0xb0] sm:$0xff]
  %v2851 = vld [vmem:[#allocation4 + $0xb8] sm:$0xff]
  %v2852 = vld [vmem:[#allocation4 + $0xc0] sm:$0xff]
  %v2853 = vld [vmem:[#allocation4 + $0xc8] sm:$0xff]
  %v2854 = vld [vmem:[#allocation4 + $0xd0] sm:$0xff]
  %v2855 = vld [vmem:[#allocation4 + $0xd8] sm:$0xff]
  %v2856 = vld [vmem:[#allocation4 + $0xe0] sm:$0xff]
  %v2857 = vld [vmem:[#allocation4 + $0xe8] sm:$0xff]
  %v2858 = vld [vmem:[#allocation4 + $0xf0] sm:$0xff]
  %v2859 = vld [vmem:[#allocation4 + $0xf8] sm:$0xff]
  %v2860 = vld [vmem:[#allocation4 + $0x100] sm:$0xff]
  %v2861 = vld [vmem:[#allocation4 + $0x108] sm:$0xff]
  %v2862 = vld [vmem:[#allocation4 + $0x110] sm:$0xff]
  %v2863 = vld [vmem:[#allocation4 + $0x118] sm:$0xff]
  %v2864 = vld [vmem:[#allocation4 + $0x120] sm:$0xff]
  %v2865 = vld [vmem:[#allocation4 + $0x128] sm:$0xff]
  %v2866 = vld [vmem:[#allocation4 + $0x130] sm:$0xff]
  %v2867 = vld [vmem:[#allocation4 + $0x138] sm:$0xff]
  %v2868 = vld [vmem:[#allocation4 + $0x140] sm:$0xff]
  %v2869 = vld [vmem:[#allocation4 + $0x148] sm:$0xff]
  %v2870 = vld [vmem:[#allocation4 + $0x150] sm:$0xff]
  %v2871 = vld [vmem:[#allocation4 + $0x158] sm:$0xff]
  %v2872 = vld [vmem:[#allocation4 + $0x160] sm:$0xff]
  %v2873 = vld [vmem:[#allocation4 + $0x168] sm:$0xff]
  %v2874 = vld [vmem:[#allocation4 + $0x170] sm:$0xff]
  %v2875 = vld [vmem:[#allocation4 + $0x178] sm:$0xff]
  %v2876 = vld [vmem:[#allocation4 + $0x180] sm:$0xff]
  %v2877 = vld [vmem:[#allocation4 + $0x188] sm:$0xff]
  %v2878 = vld [vmem:[#allocation4 + $0x190] sm:$0xff]
  %v2879 = vld [vmem:[#allocation4 + $0x198] sm:$0xff]
  %v2880 = vld [vmem:[#allocation4 + $0x1a0] sm:$0xff]
  %v2881 = vld [vmem:[#allocation4 + $0x1a8] sm:$0xff]
  %v2882 = vld [vmem:[#allocation4 + $0x1b0] sm:$0xff]
  %v2883 = vld [vmem:[#allocation4 + $0x1b8] sm:$0xff]
  %v2884 = vld [vmem:[#allocation4 + $0x1c0] sm:$0xff]
  %v2885 = vld [vmem:[#allocation4 + $0x1c8] sm:$0xff]
  %v2886 = vld [vmem:[#allocation4 + $0x1d0] sm:$0xff]
  %v2887 = vld [vmem:[#allocation4 + $0x1d8] sm:$0xff]
  %v2888 = vld [vmem:[#allocation4 + $0x1e0] sm:$0xff]
  %v2889 = vld [vmem:[#allocation4 + $0x1e8] sm:$0xff]
  %v2890 = vld [vmem:[#allocation4 + $0x1f0] sm:$0xff]
  %v2891 = vld [vmem:[#allocation4 + $0x1f8] sm:$0xff]
  %2892 = vmatprep.subr.mxu0 %v2889
  %2893 = vmatpush1.msra.mxu0 %v2888
  %2894 = vmatprep.subr.mxu0 %v2885
  %2895 = vmatpush1.msra.mxu0 %v2884
  %2896 = vmatprep.subr.mxu0 %v2881
  %2897 = vmatpush1.msra.mxu0 %v2880
  %2898 = vmatprep.subr.mxu0 %v2877
  %2899 = vmatpush1.msra.mxu0 %v2876
  %2900 = vmatprep.subr.mxu0 %v2873
  %2901 = vmatpush1.msra.mxu0 %v2872
  %2902 = vmatprep.subr.mxu0 %v2869
  %2903 = vmatpush1.msra.mxu0 %v2868
  %2904 = vmatprep.subr.mxu0 %v2865
  %2905 = vmatpush1.msra.mxu0 %v2864
  %2906 = vmatprep.subr.mxu0 %v2861
  %2907 = vmatpush1.msra.mxu0 %v2860
  %2908 = vmatprep.subr.mxu0 %v2857
  %2909 = vmatpush1.msra.mxu0 %v2856
  %2910 = vmatprep.subr.mxu0 %v2853
  %2911 = vmatpush1.msra.mxu0 %v2852
  %2912 = vmatprep.subr.mxu0 %v2849
  %2913 = vmatpush1.msra.mxu0 %v2848
  %2914 = vmatprep.subr.mxu0 %v2845
  %2915 = vmatpush1.msra.mxu0 %v2844
  %2916 = vmatprep.subr.mxu0 %v2841
  %2917 = vmatpush1.msra.mxu0 %v2840
  %2918 = vmatprep.subr.mxu0 %v2837
  %2919 = vmatpush1.msra.mxu0 %v2836
  %2920 = vmatprep.subr.mxu0 %v2833
  %2921 = vmatpush1.msra.mxu0 %v2832
  %2922 = vmatprep.subr.mxu0 %v2829
  %2923 = vmatpush1.msra.mxu0 %v2828
  %2924 = vmatprep.subr.mxu0 0.0
  %2925 = vmatpush2.msra.mxu0 0.0
  %2926 = vmatprep.subr.mxu0 0.0
  %2927 = vmatpush2.msra.mxu0 0.0
  %2928 = vmatprep.subr.mxu0 0.0
  %2929 = vmatpush2.msra.mxu0 0.0
  %2930 = vmatprep.subr.mxu0 0.0
  %2931 = vmatpush2.msra.mxu0 0.0
  %2932 = vmatprep.subr.mxu0 0.0
  %2933 = vmatpush2.msra.mxu0 0.0
  %2934 = vmatprep.subr.mxu0 0.0
  %2935 = vmatpush2.msra.mxu0 0.0
  %2936 = vmatprep.subr.mxu0 0.0
  %2937 = vmatpush2.msra.mxu0 0.0
  %2938 = vmatprep.subr.mxu0 0.0
  %2939 = vmatpush2.msra.mxu0 0.0
  %2940 = vmatprep.subr.mxu0 0.0
  %2941 = vmatpush2.msra.mxu0 0.0
  %2942 = vmatprep.subr.mxu0 0.0
  %2943 = vmatpush2.msra.mxu0 0.0
  %2944 = vmatprep.subr.mxu0 0.0
  %2945 = vmatpush2.msra.mxu0 0.0
  %2946 = vmatprep.subr.mxu0 0.0
  %2947 = vmatpush2.msra.mxu0 0.0
  %2948 = vmatprep.subr.mxu0 0.0
  %2949 = vmatpush2.msra.mxu0 0.0
  %2950 = vmatprep.subr.mxu0 0.0
  %2951 = vmatpush2.msra.mxu0 0.0
  %2952 = vmatprep.subr.mxu0 0.0
  %2953 = vmatpush2.msra.mxu0 0.0
  %2954 = vmatprep.subr.mxu0 0.0
  %2955 = vmatpush2.msra.mxu0 0.0
  %2956 = vmatprep.mubr.f32.mxu0 0.0
  %2957 = vmatmul.mubr.f32.gmra.mxu0 %v2827
  %v2958 = vpop.f32.mrf.mxu0
  %v2959 = vadd.f32 0.0, %v2958
  %v2960 = vpop.f32.mrf.mxu0
  %v2961 = vadd.f32 0.0, %v2960
  %2962 = vdwg.mxu0
  %2963 = vmatprep.subr.mxu0 %v2891
  %2964 = vmatpush1.msra.mxu0 %v2890
  %2965 = vmatprep.subr.mxu0 %v2887
  %2966 = vmatpush1.msra.mxu0 %v2886
  %2967 = vmatprep.subr.mxu0 %v2883
  %2968 = vmatpush1.msra.mxu0 %v2882
  %2969 = vmatprep.subr.mxu0 %v2879
  %2970 = vmatpush1.msra.mxu0 %v2878
  %2971 = vmatprep.subr.mxu0 %v2875
  %2972 = vmatpush1.msra.mxu0 %v2874
  %2973 = vmatprep.subr.mxu0 %v2871
  %2974 = vmatpush1.msra.mxu0 %v2870
  %2975 = vmatprep.subr.mxu0 %v2867
  %2976 = vmatpush1.msra.mxu0 %v2866
  %2977 = vmatprep.subr.mxu0 %v2863
  %2978 = vmatpush1.msra.mxu0 %v2862
  %2979 = vmatprep.subr.mxu0 %v2859
  %2980 = vmatpush1.msra.mxu0 %v2858
  %2981 = vmatprep.subr.mxu0 %v2855
  %2982 = vmatpush1.msra.mxu0 %v2854
  %2983 = vmatprep.subr.mxu0 %v2851
  %2984 = vmatpush1.msra.mxu0 %v2850
  %2985 = vmatprep.subr.mxu0 %v2847
  %2986 = vmatpush1.msra.mxu0 %v2846
  %2987 = vmatprep.subr.mxu0 %v2843
  %2988 = vmatpush1.msra.mxu0 %v2842
  %2989 = vmatprep.subr.mxu0 %v2839
  %2990 = vmatpush1.msra.mxu0 %v2838
  %2991 = vmatprep.subr.mxu0 %v2835
  %2992 = vmatpush1.msra.mxu0 %v2834
  %2993 = vmatprep.subr.mxu0 %v2831
  %2994 = vmatpush1.msra.mxu0 %v2830
  %2995 = vmatprep.subr.mxu0 0.0
  %2996 = vmatpush2.msra.mxu0 0.0
  %2997 = vmatprep.subr.mxu0 0.0
  %2998 = vmatpush2.msra.mxu0 0.0
  %2999 = vmatprep.subr.mxu0 0.0
  %3000 = vmatpush2.msra.mxu0 0.0
  %3001 = vmatprep.subr.mxu0 0.0
  %3002 = vmatpush2.msra.mxu0 0.0
  %3003 = vmatprep.subr.mxu0 0.0
  %3004 = vmatpush2.msra.mxu0 0.0
  %3005 = vmatprep.subr.mxu0 0.0
  %3006 = vmatpush2.msra.mxu0 0.0
  %3007 = vmatprep.subr.mxu0 0.0
  %3008 = vmatpush2.msra.mxu0 0.0
  %3009 = vmatprep.subr.mxu0 0.0
  %3010 = vmatpush2.msra.mxu0 0.0
  %3011 = vmatprep.subr.mxu0 0.0
  %3012 = vmatpush2.msra.mxu0 0.0
  %3013 = vmatprep.subr.mxu0 0.0
  %3014 = vmatpush2.msra.mxu0 0.0
  %3015 = vmatprep.subr.mxu0 0.0
  %3016 = vmatpush2.msra.mxu0 0.0
  %3017 = vmatprep.subr.mxu0 0.0
  %3018 = vmatpush2.msra.mxu0 0.0
  %3019 = vmatprep.subr.mxu0 0.0
  %3020 = vmatpush2.msra.mxu0 0.0
  %3021 = vmatprep.subr.mxu0 0.0
  %3022 = vmatpush2.msra.mxu0 0.0
  %3023 = vmatprep.subr.mxu0 0.0
  %3024 = vmatpush2.msra.mxu0 0.0
  %3025 = vmatprep.subr.mxu0 0.0
  %3026 = vmatpush2.msra.mxu0 0.0
  %3027 = vmatprep.mubr.f32.mxu0 0.0
  %3028 = vmatmul.mubr.f32.gmra.mxu0 %v2827
  %v3029 = vpop.f32.mrf.mxu0
  %v3030 = vadd.f32 0.0, %v3029
  %v3031 = vpop.f32.mrf.mxu0
  %v3032 = vadd.f32 0.0, %v3031
  %3033 = vdwg.mxu0
  %v3038 = vcombine.low %v2959, %v2961
  %v3039 = vcombine.high %v2959, %v2961
  %v3040 = vcombine.low %v3030, %v3032
  %v3041 = vcombine.high %v3030, %v3032
  %v3043 = vunpack.c.l.s4 1966171168
  %v3044 = vunpack.c.0.s8 %v3043
  %v3045 = vlaneseq
  %v3046 = vshrl.u32 %v3045, 7
  %v3047 = vsub.s32 %v3044, %v3046
  %v3048 = vrot.slane %v3038, %v3047
  %v3050 = vunpack.c.l.s4 1966171168
  %v3051 = vunpack.c.0.s8 %v3050
  %v3052 = vlaneseq
  %v3053 = vshrl.u32 %v3052, 7
  %v3054 = vsub.s32 %v3051, %v3053
  %v3055 = vrot.slane %v3039, %v3054
  %v3057 = vunpack.c.l.s4 1966171168
  %v3058 = vunpack.c.0.s8 %v3057
  %v3059 = vlaneseq
  %v3060 = vshrl.u32 %v3059, 7
  %v3061 = vsub.s32 %v3058, %v3060
  %v3062 = vrot.slane %v3040, %v3061
  %v3064 = vunpack.c.l.s4 1966171168
  %v3065 = vunpack.c.0.s8 %v3064
  %v3066 = vlaneseq
  %v3067 = vshrl.u32 %v3066, 7
  %v3068 = vsub.s32 %v3065, %v3067
  %v3069 = vrot.slane %v3041, %v3068
  %v3070 = vcombine.low %v3048, %v3062
  %v3071 = vcombine.high %v3048, %v3062
  %v3072 = vcombine.low %v3055, %v3069
  %v3073 = vcombine.high %v3055, %v3069
  %v3075 = vunpack.c.l.s4 1966171168
  %v3076 = vunpack.c.0.s8 %v3075
  %v3077 = vlaneseq
  %v3078 = vshrl.u32 %v3077, 7
  %v3079 = vsub.s32 %v3076, %v3078
  %v3080 = vrot.slane %v3070, %v3079
  %v3082 = vunpack.c.l.s4 1966171168
  %v3083 = vunpack.c.0.s8 %v3082
  %v3084 = vlaneseq
  %v3085 = vshrl.u32 %v3084, 7
  %v3086 = vsub.s32 %v3083, %v3085
  %v3087 = vrot.slane %v3072, %v3086
  %v3089 = vunpack.c.l.s4 1966171168
  %v3090 = vunpack.c.0.s8 %v3089
  %v3091 = vlaneseq
  %v3092 = vshrl.u32 %v3091, 7
  %v3093 = vsub.s32 %v3090, %v3092
  %v3094 = vrot.slane %v3071, %v3093
  %v3096 = vunpack.c.l.s4 1966171168
  %v3097 = vunpack.c.0.s8 %v3096
  %v3098 = vlaneseq
  %v3099 = vshrl.u32 %v3098, 7
  %v3100 = vsub.s32 %v3097, %v3099
  %v3101 = vrot.slane %v3073, %v3100
  %v3102 = vcombine.high %v3080, %v3080
  %v3103 = vcombine.high %v3087, %v3087
  %v3104 = vcombine.high %v3094, %v3094
  %v3105 = vcombine.high %v3101, %v3101
  %v3114 = vadd.f32 %v2812, %v3080
  %v3115 = vadd.f32 %v2814, %v3094
  %v3116 = vadd.f32 %v2816, %v3102
  %v3117 = vadd.f32 %v2818, %v3104
  %v3118 = vadd.f32 %v2820, %v3087
  %v3119 = vadd.f32 %v2822, %v3101
  %v3120 = vadd.f32 %v2824, %v3103
  %v3121 = vadd.f32 %v2826, %v3105
  %v3122 = vxor.u32 %v3114, 2147483648
  %v3123 = vxor.u32 %v3115, 2147483648
  %v3124 = vxor.u32 %v3116, 2147483648
  %v3125 = vxor.u32 %v3117, 2147483648
  %v3126 = vxor.u32 %v3118, 2147483648
  %v3127 = vxor.u32 %v3119, 2147483648
  %v3128 = vxor.u32 %v3120, 2147483648
  %v3129 = vxor.u32 %v3121, 2147483648
  %v3130 = vmul.f32 %v3122, 1.442695
  %v3131 = vpow.pop %v3130
  %v3132 = vmul.f32 %v3123, 1.442695
  %v3133 = vpow.pop %v3132
  %v3134 = vmul.f32 %v3124, 1.442695
  %v3135 = vpow.pop %v3134
  %v3136 = vmul.f32 %v3125, 1.442695
  %v3137 = vpow.pop %v3136
  %v3138 = vmul.f32 %v3126, 1.442695
  %v3139 = vpow.pop %v3138
  %v3140 = vmul.f32 %v3127, 1.442695
  %v3141 = vpow.pop %v3140
  %v3142 = vmul.f32 %v3128, 1.442695
  %v3143 = vpow.pop %v3142
  %v3144 = vmul.f32 %v3129, 1.442695
  %v3145 = vpow.pop %v3144
  %v3146 = vadd.f32 %v3131, 1.0
  %v3147 = vadd.f32 %v3133, 1.0
  %v3148 = vadd.f32 %v3135, 1.0
  %v3149 = vadd.f32 %v3137, 1.0
  %v3150 = vadd.f32 %v3139, 1.0
  %v3151 = vadd.f32 %v3141, 1.0
  %v3152 = vadd.f32 %v3143, 1.0
  %v3153 = vadd.f32 %v3145, 1.0
  %v3154 = vrcp.pop %v3146
  %v3155 = vmul.f32 1.0, %v3154
  %v3156 = vrcp.pop %v3147
  %v3157 = vmul.f32 1.0, %v3156
  %v3158 = vrcp.pop %v3148
  %v3159 = vmul.f32 1.0, %v3158
  %v3160 = vrcp.pop %v3149
  %v3161 = vmul.f32 1.0, %v3160
  %v3162 = vrcp.pop %v3150
  %v3163 = vmul.f32 1.0, %v3162
  %v3164 = vrcp.pop %v3151
  %v3165 = vmul.f32 1.0, %v3164
  %v3166 = vrcp.pop %v3152
  %v3167 = vmul.f32 1.0, %v3166
  %v3168 = vrcp.pop %v3153
  %v3169 = vmul.f32 1.0, %v3168
  %v3178 = vrot.slane %v3114, 3
  %v3179 = vrot.slane %v3115, 3
  %v3180 = vrot.slane %v3116, 3
  %v3181 = vrot.slane %v3117, 3
  %v3182 = vrot.slane %v3118, 3
  %v3183 = vrot.slane %v3119, 3
  %v3184 = vrot.slane %v3120, 3
  %v3185 = vrot.slane %v3121, 3
  %v3194 = vtanh.pop %v3178
  %v3195 = vtanh.pop %v3179
  %v3196 = vtanh.pop %v3180
  %v3197 = vtanh.pop %v3181
  %v3198 = vtanh.pop %v3182
  %v3199 = vtanh.pop %v3183
  %v3200 = vtanh.pop %v3184
  %v3201 = vtanh.pop %v3185
  %v3202 = vld [vmem:[#allocation3] sm:$0xff]
  %v3211 = vrot.slane %v3155, 1
  %v3212 = vrot.slane %v3157, 1
  %v3213 = vrot.slane %v3159, 1
  %v3214 = vrot.slane %v3161, 1
  %v3215 = vrot.slane %v3163, 1
  %v3216 = vrot.slane %v3165, 1
  %v3217 = vrot.slane %v3167, 1
  %v3218 = vrot.slane %v3169, 1
  %v3228 = vcombine.high %v3202, %v3202
  %v3230 = vunpack.c.l.s4 1966171168
  %v3231 = vunpack.c.0.s8 %v3230
  %v3232 = vlaneseq
  %v3233 = vshrl.u32 %v3232, 7
  %v3234 = vsub.s32 %v3231, %v3233
  %v3235 = vrot.slane %v3202, %v3234
  %v3237 = vunpack.c.l.s4 1966171168
  %v3238 = vunpack.c.0.s8 %v3237
  %v3239 = vlaneseq
  %v3240 = vshrl.u32 %v3239, 7
  %v3241 = vsub.s32 %v3238, %v3240
  %v3242 = vrot.slane %v3228, %v3241
  %v3243 = vcombine.high %v3235, %v3235
  %v3244 = vcombine.high %v3242, %v3242
  %v3246 = vunpack.c.l.s4 1966171168
  %v3247 = vunpack.c.0.s8 %v3246
  %v3248 = vlaneseq
  %v3249 = vshrl.u32 %v3248, 7
  %v3250 = vsub.s32 %v3247, %v3249
  %v3251 = vrot.slane %v3235, %v3250
  %v3253 = vunpack.c.l.s4 1966171168
  %v3254 = vunpack.c.0.s8 %v3253
  %v3255 = vlaneseq
  %v3256 = vshrl.u32 %v3255, 7
  %v3257 = vsub.s32 %v3254, %v3256
  %v3258 = vrot.slane %v3242, %v3257
  %v3260 = vunpack.c.l.s4 1966171168
  %v3261 = vunpack.c.0.s8 %v3260
  %v3262 = vlaneseq
  %v3263 = vshrl.u32 %v3262, 7
  %v3264 = vsub.s32 %v3261, %v3263
  %v3265 = vrot.slane %v3243, %v3264
  %v3267 = vunpack.c.l.s4 1966171168
  %v3268 = vunpack.c.0.s8 %v3267
  %v3269 = vlaneseq
  %v3270 = vshrl.u32 %v3269, 7
  %v3271 = vsub.s32 %v3268, %v3270
  %v3272 = vrot.slane %v3244, %v3271
  %v3273 = vcombine.high %v3251, %v3251
  %v3274 = vcombine.high %v3258, %v3258
  %v3275 = vcombine.high %v3265, %v3265
  %v3276 = vcombine.high %v3272, %v3272
  %v3285 = vmul.f32 %v3211, %v3251
  %v3286 = vmul.f32 %v3212, %v3265
  %v3287 = vmul.f32 %v3213, %v3273
  %v3288 = vmul.f32 %v3214, %v3275
  %v3289 = vmul.f32 %v3215, %v3258
  %v3290 = vmul.f32 %v3216, %v3272
  %v3291 = vmul.f32 %v3217, %v3274
  %v3292 = vmul.f32 %v3218, %v3276
  %v3293 = vmul.f32 %v3155, %v3194
  %v3294 = vmul.f32 %v3157, %v3195
  %v3295 = vmul.f32 %v3159, %v3196
  %v3296 = vmul.f32 %v3161, %v3197
  %v3297 = vmul.f32 %v3163, %v3198
  %v3298 = vmul.f32 %v3165, %v3199
  %v3299 = vmul.f32 %v3167, %v3200
  %v3300 = vmul.f32 %v3169, %v3201
  %v3301 = vadd.f32 %v3285, %v3293
  %v3302 = vadd.f32 %v3286, %v3294
  %v3303 = vadd.f32 %v3287, %v3295
  %v3304 = vadd.f32 %v3288, %v3296
  %v3305 = vadd.f32 %v3289, %v3297
  %v3306 = vadd.f32 %v3290, %v3298
  %v3307 = vadd.f32 %v3291, %v3299
  %v3308 = vadd.f32 %v3292, %v3300
  %v3309 = vtanh.pop %v3301
  %v3310 = vtanh.pop %v3302
  %v3311 = vtanh.pop %v3303
  %v3312 = vtanh.pop %v3304
  %v3313 = vtanh.pop %v3305
  %v3314 = vtanh.pop %v3306
  %v3315 = vtanh.pop %v3307
  %v3316 = vtanh.pop %v3308
  %v3317 = vrot.slane %v3155, 2
  %v3318 = vrot.slane %v3157, 2
  %v3319 = vrot.slane %v3159, 2
  %v3320 = vrot.slane %v3161, 2
  %v3321 = vrot.slane %v3163, 2
  %v3322 = vrot.slane %v3165, 2
  %v3323 = vrot.slane %v3167, 2
  %v3324 = vrot.slane %v3169, 2
  %v3333 = vmul.f32 %v3317, %v3309
  %v3334 = vmul.f32 %v3318, %v3310
  %v3335 = vmul.f32 %v3319, %v3311
  %v3336 = vmul.f32 %v3320, %v3312
  %v3337 = vmul.f32 %v3321, %v3313
  %v3338 = vmul.f32 %v3322, %v3314
  %v3339 = vmul.f32 %v3323, %v3315
  %v3340 = vmul.f32 %v3324, %v3316
  %v3349 = vcombine.low %v3301, %v3302
  %v3350 = vcombine.low %v3303, %v3304
  %v3351 = vcombine.low %v3305, %v3306
  %v3352 = vcombine.low %v3307, %v3308
  %v3354 = vunpack.c.l.s4 1966171168
  %v3355 = vunpack.c.0.s8 %v3354
  %v3356 = vlaneseq
  %v3357 = vshrl.u32 %v3356, 7
  %v3358 = vsub.s32 %v3355, %v3357
  %v3359 = vrot.slane %v3349, %v3358
  %v3361 = vunpack.c.l.s4 1966171168
  %v3362 = vunpack.c.0.s8 %v3361
  %v3363 = vlaneseq
  %v3364 = vshrl.u32 %v3363, 7
  %v3365 = vsub.s32 %v3362, %v3364
  %v3366 = vrot.slane %v3350, %v3365
  %v3368 = vunpack.c.l.s4 1966171168
  %v3369 = vunpack.c.0.s8 %v3368
  %v3370 = vlaneseq
  %v3371 = vshrl.u32 %v3370, 7
  %v3372 = vsub.s32 %v3369, %v3371
  %v3373 = vrot.slane %v3351, %v3372
  %v3375 = vunpack.c.l.s4 1966171168
  %v3376 = vunpack.c.0.s8 %v3375
  %v3377 = vlaneseq
  %v3378 = vshrl.u32 %v3377, 7
  %v3379 = vsub.s32 %v3376, %v3378
  %v3380 = vrot.slane %v3352, %v3379
  %v3381 = vcombine.low %v3359, %v3366
  %v3382 = vcombine.low %v3373, %v3380
  %v3384 = vunpack.c.l.s4 1966171168
  %v3385 = vunpack.c.0.s8 %v3384
  %v3386 = vlaneseq
  %v3387 = vshrl.u32 %v3386, 7
  %v3388 = vsub.s32 %v3385, %v3387
  %v3389 = vrot.slane %v3381, %v3388
  %v3391 = vunpack.c.l.s4 1966171168
  %v3392 = vunpack.c.0.s8 %v3391
  %v3393 = vlaneseq
  %v3394 = vshrl.u32 %v3393, 7
  %v3395 = vsub.s32 %v3392, %v3394
  %v3396 = vrot.slane %v3382, %v3395
  %v3397 = vcombine.low %v3389, %v3396
  %3399 = vst [vmem:[#allocation3] sm:$0xff] %v3397
  %v3408 = vcombine.low %v3333, %v3334
  %v3409 = vcombine.low %v3335, %v3336
  %v3410 = vcombine.low %v3337, %v3338
  %v3411 = vcombine.low %v3339, %v3340
  %v3413 = vunpack.c.l.s4 1966171168
  %v3414 = vunpack.c.0.s8 %v3413
  %v3415 = vlaneseq
  %v3416 = vshrl.u32 %v3415, 7
  %v3417 = vsub.s32 %v3414, %v3416
  %v3418 = vrot.slane %v3408, %v3417
  %v3420 = vunpack.c.l.s4 1966171168
  %v3421 = vunpack.c.0.s8 %v3420
  %v3422 = vlaneseq
  %v3423 = vshrl.u32 %v3422, 7
  %v3424 = vsub.s32 %v3421, %v3423
  %v3425 = vrot.slane %v3409, %v3424
  %v3427 = vunpack.c.l.s4 1966171168
  %v3428 = vunpack.c.0.s8 %v3427
  %v3429 = vlaneseq
  %v3430 = vshrl.u32 %v3429, 7
  %v3431 = vsub.s32 %v3428, %v3430
  %v3432 = vrot.slane %v3410, %v3431
  %v3434 = vunpack.c.l.s4 1966171168
  %v3435 = vunpack.c.0.s8 %v3434
  %v3436 = vlaneseq
  %v3437 = vshrl.u32 %v3436, 7
  %v3438 = vsub.s32 %v3435, %v3437
  %v3439 = vrot.slane %v3411, %v3438
  %v3440 = vcombine.low %v3418, %v3425
  %v3441 = vcombine.low %v3432, %v3439
  %v3443 = vunpack.c.l.s4 1966171168
  %v3444 = vunpack.c.0.s8 %v3443
  %v3445 = vlaneseq
  %v3446 = vshrl.u32 %v3445, 7
  %v3447 = vsub.s32 %v3444, %v3446
  %v3448 = vrot.slane %v3440, %v3447
  %v3450 = vunpack.c.l.s4 1966171168
  %v3451 = vunpack.c.0.s8 %v3450
  %v3452 = vlaneseq
  %v3453 = vshrl.u32 %v3452, 7
  %v3454 = vsub.s32 %v3451, %v3453
  %v3455 = vrot.slane %v3441, %v3454
  %v3456 = vcombine.low %v3448, %v3455
  %3458 = vst [vmem:[#allocation2] sm:$0xff] %v3456
  %3459 = vst [vmem:[%s2 + $0x4] sm:$0x1] %v3333
  %3460 = vst [vmem:[%s2 + $0x14] sm:$0x1] %v3334
  %3461 = vst [vmem:[%s2 + $0x24] sm:$0x1] %v3335
  %3462 = vst [vmem:[%s2 + $0x34] sm:$0x1] %v3336
  %3463 = vst [vmem:[%s2 + $0x44] sm:$0x1] %v3337
  %3464 = vst [vmem:[%s2 + $0x54] sm:$0x1] %v3338
  %3465 = vst [vmem:[%s2 + $0x64] sm:$0x1] %v3339
  %3466 = vst [vmem:[%s2 + $0x74] sm:$0x1] %v3340
  %s3467 = scalar_lea.vmem %s0, 5
  %v3468 = vld [vmem:[%s3467] ss:$8 sm:$0xf]
  %s3469 = scalar_lea.vmem %s0, 69
  %v3470 = vld [vmem:[%s3469] ss:$8 sm:$0xf]
  %s3471 = scalar_lea.vmem %s0, 133
  %v3472 = vld [vmem:[%s3471] ss:$8 sm:$0xf]
  %s3473 = scalar_lea.vmem %s0, 197
  %v3474 = vld [vmem:[%s3473] ss:$8 sm:$0xf]
  %s3475 = scalar_lea.vmem %s0, 261
  %v3476 = vld [vmem:[%s3475] ss:$8 sm:$0xf]
  %s3477 = scalar_lea.vmem %s0, 325
  %v3478 = vld [vmem:[%s3477] ss:$8 sm:$0xf]
  %s3479 = scalar_lea.vmem %s0, 389
  %v3480 = vld [vmem:[%s3479] ss:$8 sm:$0xf]
  %s3481 = scalar_lea.vmem %s0, 453
  %v3482 = vld [vmem:[%s3481] ss:$8 sm:$0xf]
  %v3483 = vld [vmem:[#allocation2] sm:$0xff]
  %v3484 = vld [vmem:[#allocation4] sm:$0xff]
  %v3485 = vld [vmem:[#allocation4 + $0x8] sm:$0xff]
  %v3486 = vld [vmem:[#allocation4 + $0x10] sm:$0xff]
  %v3487 = vld [vmem:[#allocation4 + $0x18] sm:$0xff]
  %v3488 = vld [vmem:[#allocation4 + $0x20] sm:$0xff]
  %v3489 = vld [vmem:[#allocation4 + $0x28] sm:$0xff]
  %v3490 = vld [vmem:[#allocation4 + $0x30] sm:$0xff]
  %v3491 = vld [vmem:[#allocation4 + $0x38] sm:$0xff]
  %v3492 = vld [vmem:[#allocation4 + $0x40] sm:$0xff]
  %v3493 = vld [vmem:[#allocation4 + $0x48] sm:$0xff]
  %v3494 = vld [vmem:[#allocation4 + $0x50] sm:$0xff]
  %v3495 = vld [vmem:[#allocation4 + $0x58] sm:$0xff]
  %v3496 = vld [vmem:[#allocation4 + $0x60] sm:$0xff]
  %v3497 = vld [vmem:[#allocation4 + $0x68] sm:$0xff]
  %v3498 = vld [vmem:[#allocation4 + $0x70] sm:$0xff]
  %v3499 = vld [vmem:[#allocation4 + $0x78] sm:$0xff]
  %v3500 = vld [vmem:[#allocation4 + $0x80] sm:$0xff]
  %v3501 = vld [vmem:[#allocation4 + $0x88] sm:$0xff]
  %v3502 = vld [vmem:[#allocation4 + $0x90] sm:$0xff]
  %v3503 = vld [vmem:[#allocation4 + $0x98] sm:$0xff]
  %v3504 = vld [vmem:[#allocation4 + $0xa0] sm:$0xff]
  %v3505 = vld [vmem:[#allocation4 + $0xa8] sm:$0xff]
  %v3506 = vld [vmem:[#allocation4 + $0xb0] sm:$0xff]
  %v3507 = vld [vmem:[#allocation4 + $0xb8] sm:$0xff]
  %v3508 = vld [vmem:[#allocation4 + $0xc0] sm:$0xff]
  %v3509 = vld [vmem:[#allocation4 + $0xc8] sm:$0xff]
  %v3510 = vld [vmem:[#allocation4 + $0xd0] sm:$0xff]
  %v3511 = vld [vmem:[#allocation4 + $0xd8] sm:$0xff]
  %v3512 = vld [vmem:[#allocation4 + $0xe0] sm:$0xff]
  %v3513 = vld [vmem:[#allocation4 + $0xe8] sm:$0xff]
  %v3514 = vld [vmem:[#allocation4 + $0xf0] sm:$0xff]
  %v3515 = vld [vmem:[#allocation4 + $0xf8] sm:$0xff]
  %v3516 = vld [vmem:[#allocation4 + $0x100] sm:$0xff]
  %v3517 = vld [vmem:[#allocation4 + $0x108] sm:$0xff]
  %v3518 = vld [vmem:[#allocation4 + $0x110] sm:$0xff]
  %v3519 = vld [vmem:[#allocation4 + $0x118] sm:$0xff]
  %v3520 = vld [vmem:[#allocation4 + $0x120] sm:$0xff]
  %v3521 = vld [vmem:[#allocation4 + $0x128] sm:$0xff]
  %v3522 = vld [vmem:[#allocation4 + $0x130] sm:$0xff]
  %v3523 = vld [vmem:[#allocation4 + $0x138] sm:$0xff]
  %v3524 = vld [vmem:[#allocation4 + $0x140] sm:$0xff]
  %v3525 = vld [vmem:[#allocation4 + $0x148] sm:$0xff]
  %v3526 = vld [vmem:[#allocation4 + $0x150] sm:$0xff]
  %v3527 = vld [vmem:[#allocation4 + $0x158] sm:$0xff]
  %v3528 = vld [vmem:[#allocation4 + $0x160] sm:$0xff]
  %v3529 = vld [vmem:[#allocation4 + $0x168] sm:$0xff]
  %v3530 = vld [vmem:[#allocation4 + $0x170] sm:$0xff]
  %v3531 = vld [vmem:[#allocation4 + $0x178] sm:$0xff]
  %v3532 = vld [vmem:[#allocation4 + $0x180] sm:$0xff]
  %v3533 = vld [vmem:[#allocation4 + $0x188] sm:$0xff]
  %v3534 = vld [vmem:[#allocation4 + $0x190] sm:$0xff]
  %v3535 = vld [vmem:[#allocation4 + $0x198] sm:$0xff]
  %v3536 = vld [vmem:[#allocation4 + $0x1a0] sm:$0xff]
  %v3537 = vld [vmem:[#allocation4 + $0x1a8] sm:$0xff]
  %v3538 = vld [vmem:[#allocation4 + $0x1b0] sm:$0xff]
  %v3539 = vld [vmem:[#allocation4 + $0x1b8] sm:$0xff]
  %v3540 = vld [vmem:[#allocation4 + $0x1c0] sm:$0xff]
  %v3541 = vld [vmem:[#allocation4 + $0x1c8] sm:$0xff]
  %v3542 = vld [vmem:[#allocation4 + $0x1d0] sm:$0xff]
  %v3543 = vld [vmem:[#allocation4 + $0x1d8] sm:$0xff]
  %v3544 = vld [vmem:[#allocation4 + $0x1e0] sm:$0xff]
  %v3545 = vld [vmem:[#allocation4 + $0x1e8] sm:$0xff]
  %v3546 = vld [vmem:[#allocation4 + $0x1f0] sm:$0xff]
  %v3547 = vld [vmem:[#allocation4 + $0x1f8] sm:$0xff]
  %3548 = vmatprep.subr.mxu0 %v3545
  %3549 = vmatpush1.msra.mxu0 %v3544
  %3550 = vmatprep.subr.mxu0 %v3541
  %3551 = vmatpush1.msra.mxu0 %v3540
  %3552 = vmatprep.subr.mxu0 %v3537
  %3553 = vmatpush1.msra.mxu0 %v3536
  %3554 = vmatprep.subr.mxu0 %v3533
  %3555 = vmatpush1.msra.mxu0 %v3532
  %3556 = vmatprep.subr.mxu0 %v3529
  %3557 = vmatpush1.msra.mxu0 %v3528
  %3558 = vmatprep.subr.mxu0 %v3525
  %3559 = vmatpush1.msra.mxu0 %v3524
  %3560 = vmatprep.subr.mxu0 %v3521
  %3561 = vmatpush1.msra.mxu0 %v3520
  %3562 = vmatprep.subr.mxu0 %v3517
  %3563 = vmatpush1.msra.mxu0 %v3516
  %3564 = vmatprep.subr.mxu0 %v3513
  %3565 = vmatpush1.msra.mxu0 %v3512
  %3566 = vmatprep.subr.mxu0 %v3509
  %3567 = vmatpush1.msra.mxu0 %v3508
  %3568 = vmatprep.subr.mxu0 %v3505
  %3569 = vmatpush1.msra.mxu0 %v3504
  %3570 = vmatprep.subr.mxu0 %v3501
  %3571 = vmatpush1.msra.mxu0 %v3500
  %3572 = vmatprep.subr.mxu0 %v3497
  %3573 = vmatpush1.msra.mxu0 %v3496
  %3574 = vmatprep.subr.mxu0 %v3493
  %3575 = vmatpush1.msra.mxu0 %v3492
  %3576 = vmatprep.subr.mxu0 %v3489
  %3577 = vmatpush1.msra.mxu0 %v3488
  %3578 = vmatprep.subr.mxu0 %v3485
  %3579 = vmatpush1.msra.mxu0 %v3484
  %3580 = vmatprep.subr.mxu0 0.0
  %3581 = vmatpush2.msra.mxu0 0.0
  %3582 = vmatprep.subr.mxu0 0.0
  %3583 = vmatpush2.msra.mxu0 0.0
  %3584 = vmatprep.subr.mxu0 0.0
  %3585 = vmatpush2.msra.mxu0 0.0
  %3586 = vmatprep.subr.mxu0 0.0
  %3587 = vmatpush2.msra.mxu0 0.0
  %3588 = vmatprep.subr.mxu0 0.0
  %3589 = vmatpush2.msra.mxu0 0.0
  %3590 = vmatprep.subr.mxu0 0.0
  %3591 = vmatpush2.msra.mxu0 0.0
  %3592 = vmatprep.subr.mxu0 0.0
  %3593 = vmatpush2.msra.mxu0 0.0
  %3594 = vmatprep.subr.mxu0 0.0
  %3595 = vmatpush2.msra.mxu0 0.0
  %3596 = vmatprep.subr.mxu0 0.0
  %3597 = vmatpush2.msra.mxu0 0.0
  %3598 = vmatprep.subr.mxu0 0.0
  %3599 = vmatpush2.msra.mxu0 0.0
  %3600 = vmatprep.subr.mxu0 0.0
  %3601 = vmatpush2.msra.mxu0 0.0
  %3602 = vmatprep.subr.mxu0 0.0
  %3603 = vmatpush2.msra.mxu0 0.0
  %3604 = vmatprep.subr.mxu0 0.0
  %3605 = vmatpush2.msra.mxu0 0.0
  %3606 = vmatprep.subr.mxu0 0.0
  %3607 = vmatpush2.msra.mxu0 0.0
  %3608 = vmatprep.subr.mxu0 0.0
  %3609 = vmatpush2.msra.mxu0 0.0
  %3610 = vmatprep.subr.mxu0 0.0
  %3611 = vmatpush2.msra.mxu0 0.0
  %3612 = vmatprep.mubr.f32.mxu0 0.0
  %3613 = vmatmul.mubr.f32.gmra.mxu0 %v3483
  %v3614 = vpop.f32.mrf.mxu0
  %v3615 = vadd.f32 0.0, %v3614
  %v3616 = vpop.f32.mrf.mxu0
  %v3617 = vadd.f32 0.0, %v3616
  %3618 = vdwg.mxu0
  %3619 = vmatprep.subr.mxu0 %v3547
  %3620 = vmatpush1.msra.mxu0 %v3546
  %3621 = vmatprep.subr.mxu0 %v3543
  %3622 = vmatpush1.msra.mxu0 %v3542
  %3623 = vmatprep.subr.mxu0 %v3539
  %3624 = vmatpush1.msra.mxu0 %v3538
  %3625 = vmatprep.subr.mxu0 %v3535
  %3626 = vmatpush1.msra.mxu0 %v3534
  %3627 = vmatprep.subr.mxu0 %v3531
  %3628 = vmatpush1.msra.mxu0 %v3530
  %3629 = vmatprep.subr.mxu0 %v3527
  %3630 = vmatpush1.msra.mxu0 %v3526
  %3631 = vmatprep.subr.mxu0 %v3523
  %3632 = vmatpush1.msra.mxu0 %v3522
  %3633 = vmatprep.subr.mxu0 %v3519
  %3634 = vmatpush1.msra.mxu0 %v3518
  %3635 = vmatprep.subr.mxu0 %v3515
  %3636 = vmatpush1.msra.mxu0 %v3514
  %3637 = vmatprep.subr.mxu0 %v3511
  %3638 = vmatpush1.msra.mxu0 %v3510
  %3639 = vmatprep.subr.mxu0 %v3507
  %3640 = vmatpush1.msra.mxu0 %v3506
  %3641 = vmatprep.subr.mxu0 %v3503
  %3642 = vmatpush1.msra.mxu0 %v3502
  %3643 = vmatprep.subr.mxu0 %v3499
  %3644 = vmatpush1.msra.mxu0 %v3498
  %3645 = vmatprep.subr.mxu0 %v3495
  %3646 = vmatpush1.msra.mxu0 %v3494
  %3647 = vmatprep.subr.mxu0 %v3491
  %3648 = vmatpush1.msra.mxu0 %v3490
  %3649 = vmatprep.subr.mxu0 %v3487
  %3650 = vmatpush1.msra.mxu0 %v3486
  %3651 = vmatprep.subr.mxu0 0.0
  %3652 = vmatpush2.msra.mxu0 0.0
  %3653 = vmatprep.subr.mxu0 0.0
  %3654 = vmatpush2.msra.mxu0 0.0
  %3655 = vmatprep.subr.mxu0 0.0
  %3656 = vmatpush2.msra.mxu0 0.0
  %3657 = vmatprep.subr.mxu0 0.0
  %3658 = vmatpush2.msra.mxu0 0.0
  %3659 = vmatprep.subr.mxu0 0.0
  %3660 = vmatpush2.msra.mxu0 0.0
  %3661 = vmatprep.subr.mxu0 0.0
  %3662 = vmatpush2.msra.mxu0 0.0
  %3663 = vmatprep.subr.mxu0 0.0
  %3664 = vmatpush2.msra.mxu0 0.0
  %3665 = vmatprep.subr.mxu0 0.0
  %3666 = vmatpush2.msra.mxu0 0.0
  %3667 = vmatprep.subr.mxu0 0.0
  %3668 = vmatpush2.msra.mxu0 0.0
  %3669 = vmatprep.subr.mxu0 0.0
  %3670 = vmatpush2.msra.mxu0 0.0
  %3671 = vmatprep.subr.mxu0 0.0
  %3672 = vmatpush2.msra.mxu0 0.0
  %3673 = vmatprep.subr.mxu0 0.0
  %3674 = vmatpush2.msra.mxu0 0.0
  %3675 = vmatprep.subr.mxu0 0.0
  %3676 = vmatpush2.msra.mxu0 0.0
  %3677 = vmatprep.subr.mxu0 0.0
  %3678 = vmatpush2.msra.mxu0 0.0
  %3679 = vmatprep.subr.mxu0 0.0
  %3680 = vmatpush2.msra.mxu0 0.0
  %3681 = vmatprep.subr.mxu0 0.0
  %3682 = vmatpush2.msra.mxu0 0.0
  %3683 = vmatprep.mubr.f32.mxu0 0.0
  %3684 = vmatmul.mubr.f32.gmra.mxu0 %v3483
  %v3685 = vpop.f32.mrf.mxu0
  %v3686 = vadd.f32 0.0, %v3685
  %v3687 = vpop.f32.mrf.mxu0
  %v3688 = vadd.f32 0.0, %v3687
  %3689 = vdwg.mxu0
  %v3694 = vcombine.low %v3615, %v3617
  %v3695 = vcombine.high %v3615, %v3617
  %v3696 = vcombine.low %v3686, %v3688
  %v3697 = vcombine.high %v3686, %v3688
  %v3699 = vunpack.c.l.s4 1966171168
  %v3700 = vunpack.c.0.s8 %v3699
  %v3701 = vlaneseq
  %v3702 = vshrl.u32 %v3701, 7
  %v3703 = vsub.s32 %v3700, %v3702
  %v3704 = vrot.slane %v3694, %v3703
  %v3706 = vunpack.c.l.s4 1966171168
  %v3707 = vunpack.c.0.s8 %v3706
  %v3708 = vlaneseq
  %v3709 = vshrl.u32 %v3708, 7
  %v3710 = vsub.s32 %v3707, %v3709
  %v3711 = vrot.slane %v3695, %v3710
  %v3713 = vunpack.c.l.s4 1966171168
  %v3714 = vunpack.c.0.s8 %v3713
  %v3715 = vlaneseq
  %v3716 = vshrl.u32 %v3715, 7
  %v3717 = vsub.s32 %v3714, %v3716
  %v3718 = vrot.slane %v3696, %v3717
  %v3720 = vunpack.c.l.s4 1966171168
  %v3721 = vunpack.c.0.s8 %v3720
  %v3722 = vlaneseq
  %v3723 = vshrl.u32 %v3722, 7
  %v3724 = vsub.s32 %v3721, %v3723
  %v3725 = vrot.slane %v3697, %v3724
  %v3726 = vcombine.low %v3704, %v3718
  %v3727 = vcombine.high %v3704, %v3718
  %v3728 = vcombine.low %v3711, %v3725
  %v3729 = vcombine.high %v3711, %v3725
  %v3731 = vunpack.c.l.s4 1966171168
  %v3732 = vunpack.c.0.s8 %v3731
  %v3733 = vlaneseq
  %v3734 = vshrl.u32 %v3733, 7
  %v3735 = vsub.s32 %v3732, %v3734
  %v3736 = vrot.slane %v3726, %v3735
  %v3738 = vunpack.c.l.s4 1966171168
  %v3739 = vunpack.c.0.s8 %v3738
  %v3740 = vlaneseq
  %v3741 = vshrl.u32 %v3740, 7
  %v3742 = vsub.s32 %v3739, %v3741
  %v3743 = vrot.slane %v3728, %v3742
  %v3745 = vunpack.c.l.s4 1966171168
  %v3746 = vunpack.c.0.s8 %v3745
  %v3747 = vlaneseq
  %v3748 = vshrl.u32 %v3747, 7
  %v3749 = vsub.s32 %v3746, %v3748
  %v3750 = vrot.slane %v3727, %v3749
  %v3752 = vunpack.c.l.s4 1966171168
  %v3753 = vunpack.c.0.s8 %v3752
  %v3754 = vlaneseq
  %v3755 = vshrl.u32 %v3754, 7
  %v3756 = vsub.s32 %v3753, %v3755
  %v3757 = vrot.slane %v3729, %v3756
  %v3758 = vcombine.high %v3736, %v3736
  %v3759 = vcombine.high %v3743, %v3743
  %v3760 = vcombine.high %v3750, %v3750
  %v3761 = vcombine.high %v3757, %v3757
  %v3770 = vadd.f32 %v3468, %v3736
  %v3771 = vadd.f32 %v3470, %v3750
  %v3772 = vadd.f32 %v3472, %v3758
  %v3773 = vadd.f32 %v3474, %v3760
  %v3774 = vadd.f32 %v3476, %v3743
  %v3775 = vadd.f32 %v3478, %v3757
  %v3776 = vadd.f32 %v3480, %v3759
  %v3777 = vadd.f32 %v3482, %v3761
  %v3778 = vxor.u32 %v3770, 2147483648
  %v3779 = vxor.u32 %v3771, 2147483648
  %v3780 = vxor.u32 %v3772, 2147483648
  %v3781 = vxor.u32 %v3773, 2147483648
  %v3782 = vxor.u32 %v3774, 2147483648
  %v3783 = vxor.u32 %v3775, 2147483648
  %v3784 = vxor.u32 %v3776, 2147483648
  %v3785 = vxor.u32 %v3777, 2147483648
  %v3786 = vmul.f32 %v3778, 1.442695
  %v3787 = vpow.pop %v3786
  %v3788 = vmul.f32 %v3779, 1.442695
  %v3789 = vpow.pop %v3788
  %v3790 = vmul.f32 %v3780, 1.442695
  %v3791 = vpow.pop %v3790
  %v3792 = vmul.f32 %v3781, 1.442695
  %v3793 = vpow.pop %v3792
  %v3794 = vmul.f32 %v3782, 1.442695
  %v3795 = vpow.pop %v3794
  %v3796 = vmul.f32 %v3783, 1.442695
  %v3797 = vpow.pop %v3796
  %v3798 = vmul.f32 %v3784, 1.442695
  %v3799 = vpow.pop %v3798
  %v3800 = vmul.f32 %v3785, 1.442695
  %v3801 = vpow.pop %v3800
  %v3802 = vadd.f32 %v3787, 1.0
  %v3803 = vadd.f32 %v3789, 1.0
  %v3804 = vadd.f32 %v3791, 1.0
  %v3805 = vadd.f32 %v3793, 1.0
  %v3806 = vadd.f32 %v3795, 1.0
  %v3807 = vadd.f32 %v3797, 1.0
  %v3808 = vadd.f32 %v3799, 1.0
  %v3809 = vadd.f32 %v3801, 1.0
  %v3810 = vrcp.pop %v3802
  %v3811 = vmul.f32 1.0, %v3810
  %v3812 = vrcp.pop %v3803
  %v3813 = vmul.f32 1.0, %v3812
  %v3814 = vrcp.pop %v3804
  %v3815 = vmul.f32 1.0, %v3814
  %v3816 = vrcp.pop %v3805
  %v3817 = vmul.f32 1.0, %v3816
  %v3818 = vrcp.pop %v3806
  %v3819 = vmul.f32 1.0, %v3818
  %v3820 = vrcp.pop %v3807
  %v3821 = vmul.f32 1.0, %v3820
  %v3822 = vrcp.pop %v3808
  %v3823 = vmul.f32 1.0, %v3822
  %v3824 = vrcp.pop %v3809
  %v3825 = vmul.f32 1.0, %v3824
  %v3834 = vrot.slane %v3770, 3
  %v3835 = vrot.slane %v3771, 3
  %v3836 = vrot.slane %v3772, 3
  %v3837 = vrot.slane %v3773, 3
  %v3838 = vrot.slane %v3774, 3
  %v3839 = vrot.slane %v3775, 3
  %v3840 = vrot.slane %v3776, 3
  %v3841 = vrot.slane %v3777, 3
  %v3850 = vtanh.pop %v3834
  %v3851 = vtanh.pop %v3835
  %v3852 = vtanh.pop %v3836
  %v3853 = vtanh.pop %v3837
  %v3854 = vtanh.pop %v3838
  %v3855 = vtanh.pop %v3839
  %v3856 = vtanh.pop %v3840
  %v3857 = vtanh.pop %v3841
  %v3858 = vld [vmem:[#allocation3] sm:$0xff]
  %v3867 = vrot.slane %v3811, 1
  %v3868 = vrot.slane %v3813, 1
  %v3869 = vrot.slane %v3815, 1
  %v3870 = vrot.slane %v3817, 1
  %v3871 = vrot.slane %v3819, 1
  %v3872 = vrot.slane %v3821, 1
  %v3873 = vrot.slane %v3823, 1
  %v3874 = vrot.slane %v3825, 1
  %v3884 = vcombine.high %v3858, %v3858
  %v3886 = vunpack.c.l.s4 1966171168
  %v3887 = vunpack.c.0.s8 %v3886
  %v3888 = vlaneseq
  %v3889 = vshrl.u32 %v3888, 7
  %v3890 = vsub.s32 %v3887, %v3889
  %v3891 = vrot.slane %v3858, %v3890
  %v3893 = vunpack.c.l.s4 1966171168
  %v3894 = vunpack.c.0.s8 %v3893
  %v3895 = vlaneseq
  %v3896 = vshrl.u32 %v3895, 7
  %v3897 = vsub.s32 %v3894, %v3896
  %v3898 = vrot.slane %v3884, %v3897
  %v3899 = vcombine.high %v3891, %v3891
  %v3900 = vcombine.high %v3898, %v3898
  %v3902 = vunpack.c.l.s4 1966171168
  %v3903 = vunpack.c.0.s8 %v3902
  %v3904 = vlaneseq
  %v3905 = vshrl.u32 %v3904, 7
  %v3906 = vsub.s32 %v3903, %v3905
  %v3907 = vrot.slane %v3891, %v3906
  %v3909 = vunpack.c.l.s4 1966171168
  %v3910 = vunpack.c.0.s8 %v3909
  %v3911 = vlaneseq
  %v3912 = vshrl.u32 %v3911, 7
  %v3913 = vsub.s32 %v3910, %v3912
  %v3914 = vrot.slane %v3898, %v3913
  %v3916 = vunpack.c.l.s4 1966171168
  %v3917 = vunpack.c.0.s8 %v3916
  %v3918 = vlaneseq
  %v3919 = vshrl.u32 %v3918, 7
  %v3920 = vsub.s32 %v3917, %v3919
  %v3921 = vrot.slane %v3899, %v3920
  %v3923 = vunpack.c.l.s4 1966171168
  %v3924 = vunpack.c.0.s8 %v3923
  %v3925 = vlaneseq
  %v3926 = vshrl.u32 %v3925, 7
  %v3927 = vsub.s32 %v3924, %v3926
  %v3928 = vrot.slane %v3900, %v3927
  %v3929 = vcombine.high %v3907, %v3907
  %v3930 = vcombine.high %v3914, %v3914
  %v3931 = vcombine.high %v3921, %v3921
  %v3932 = vcombine.high %v3928, %v3928
  %v3941 = vmul.f32 %v3867, %v3907
  %v3942 = vmul.f32 %v3868, %v3921
  %v3943 = vmul.f32 %v3869, %v3929
  %v3944 = vmul.f32 %v3870, %v3931
  %v3945 = vmul.f32 %v3871, %v3914
  %v3946 = vmul.f32 %v3872, %v3928
  %v3947 = vmul.f32 %v3873, %v3930
  %v3948 = vmul.f32 %v3874, %v3932
  %v3949 = vmul.f32 %v3811, %v3850
  %v3950 = vmul.f32 %v3813, %v3851
  %v3951 = vmul.f32 %v3815, %v3852
  %v3952 = vmul.f32 %v3817, %v3853
  %v3953 = vmul.f32 %v3819, %v3854
  %v3954 = vmul.f32 %v3821, %v3855
  %v3955 = vmul.f32 %v3823, %v3856
  %v3956 = vmul.f32 %v3825, %v3857
  %v3957 = vadd.f32 %v3941, %v3949
  %v3958 = vadd.f32 %v3942, %v3950
  %v3959 = vadd.f32 %v3943, %v3951
  %v3960 = vadd.f32 %v3944, %v3952
  %v3961 = vadd.f32 %v3945, %v3953
  %v3962 = vadd.f32 %v3946, %v3954
  %v3963 = vadd.f32 %v3947, %v3955
  %v3964 = vadd.f32 %v3948, %v3956
  %v3965 = vtanh.pop %v3957
  %v3966 = vtanh.pop %v3958
  %v3967 = vtanh.pop %v3959
  %v3968 = vtanh.pop %v3960
  %v3969 = vtanh.pop %v3961
  %v3970 = vtanh.pop %v3962
  %v3971 = vtanh.pop %v3963
  %v3972 = vtanh.pop %v3964
  %v3973 = vrot.slane %v3811, 2
  %v3974 = vrot.slane %v3813, 2
  %v3975 = vrot.slane %v3815, 2
  %v3976 = vrot.slane %v3817, 2
  %v3977 = vrot.slane %v3819, 2
  %v3978 = vrot.slane %v3821, 2
  %v3979 = vrot.slane %v3823, 2
  %v3980 = vrot.slane %v3825, 2
  %v3989 = vmul.f32 %v3973, %v3965
  %v3990 = vmul.f32 %v3974, %v3966
  %v3991 = vmul.f32 %v3975, %v3967
  %v3992 = vmul.f32 %v3976, %v3968
  %v3993 = vmul.f32 %v3977, %v3969
  %v3994 = vmul.f32 %v3978, %v3970
  %v3995 = vmul.f32 %v3979, %v3971
  %v3996 = vmul.f32 %v3980, %v3972
  %v4005 = vcombine.low %v3957, %v3958
  %v4006 = vcombine.low %v3959, %v3960
  %v4007 = vcombine.low %v3961, %v3962
  %v4008 = vcombine.low %v3963, %v3964
  %v4010 = vunpack.c.l.s4 1966171168
  %v4011 = vunpack.c.0.s8 %v4010
  %v4012 = vlaneseq
  %v4013 = vshrl.u32 %v4012, 7
  %v4014 = vsub.s32 %v4011, %v4013
  %v4015 = vrot.slane %v4005, %v4014
  %v4017 = vunpack.c.l.s4 1966171168
  %v4018 = vunpack.c.0.s8 %v4017
  %v4019 = vlaneseq
  %v4020 = vshrl.u32 %v4019, 7
  %v4021 = vsub.s32 %v4018, %v4020
  %v4022 = vrot.slane %v4006, %v4021
  %v4024 = vunpack.c.l.s4 1966171168
  %v4025 = vunpack.c.0.s8 %v4024
  %v4026 = vlaneseq
  %v4027 = vshrl.u32 %v4026, 7
  %v4028 = vsub.s32 %v4025, %v4027
  %v4029 = vrot.slane %v4007, %v4028
  %v4031 = vunpack.c.l.s4 1966171168
  %v4032 = vunpack.c.0.s8 %v4031
  %v4033 = vlaneseq
  %v4034 = vshrl.u32 %v4033, 7
  %v4035 = vsub.s32 %v4032, %v4034
  %v4036 = vrot.slane %v4008, %v4035
  %v4037 = vcombine.low %v4015, %v4022
  %v4038 = vcombine.low %v4029, %v4036
  %v4040 = vunpack.c.l.s4 1966171168
  %v4041 = vunpack.c.0.s8 %v4040
  %v4042 = vlaneseq
  %v4043 = vshrl.u32 %v4042, 7
  %v4044 = vsub.s32 %v4041, %v4043
  %v4045 = vrot.slane %v4037, %v4044
  %v4047 = vunpack.c.l.s4 1966171168
  %v4048 = vunpack.c.0.s8 %v4047
  %v4049 = vlaneseq
  %v4050 = vshrl.u32 %v4049, 7
  %v4051 = vsub.s32 %v4048, %v4050
  %v4052 = vrot.slane %v4038, %v4051
  %v4053 = vcombine.low %v4045, %v4052
  %4055 = vst [vmem:[#allocation3] sm:$0xff] %v4053
  %v4064 = vcombine.low %v3989, %v3990
  %v4065 = vcombine.low %v3991, %v3992
  %v4066 = vcombine.low %v3993, %v3994
  %v4067 = vcombine.low %v3995, %v3996
  %v4069 = vunpack.c.l.s4 1966171168
  %v4070 = vunpack.c.0.s8 %v4069
  %v4071 = vlaneseq
  %v4072 = vshrl.u32 %v4071, 7
  %v4073 = vsub.s32 %v4070, %v4072
  %v4074 = vrot.slane %v4064, %v4073
  %v4076 = vunpack.c.l.s4 1966171168
  %v4077 = vunpack.c.0.s8 %v4076
  %v4078 = vlaneseq
  %v4079 = vshrl.u32 %v4078, 7
  %v4080 = vsub.s32 %v4077, %v4079
  %v4081 = vrot.slane %v4065, %v4080
  %v4083 = vunpack.c.l.s4 1966171168
  %v4084 = vunpack.c.0.s8 %v4083
  %v4085 = vlaneseq
  %v4086 = vshrl.u32 %v4085, 7
  %v4087 = vsub.s32 %v4084, %v4086
  %v4088 = vrot.slane %v4066, %v4087
  %v4090 = vunpack.c.l.s4 1966171168
  %v4091 = vunpack.c.0.s8 %v4090
  %v4092 = vlaneseq
  %v4093 = vshrl.u32 %v4092, 7
  %v4094 = vsub.s32 %v4091, %v4093
  %v4095 = vrot.slane %v4067, %v4094
  %v4096 = vcombine.low %v4074, %v4081
  %v4097 = vcombine.low %v4088, %v4095
  %v4099 = vunpack.c.l.s4 1966171168
  %v4100 = vunpack.c.0.s8 %v4099
  %v4101 = vlaneseq
  %v4102 = vshrl.u32 %v4101, 7
  %v4103 = vsub.s32 %v4100, %v4102
  %v4104 = vrot.slane %v4096, %v4103
  %v4106 = vunpack.c.l.s4 1966171168
  %v4107 = vunpack.c.0.s8 %v4106
  %v4108 = vlaneseq
  %v4109 = vshrl.u32 %v4108, 7
  %v4110 = vsub.s32 %v4107, %v4109
  %v4111 = vrot.slane %v4097, %v4110
  %v4112 = vcombine.low %v4104, %v4111
  %4114 = vst [vmem:[#allocation2] sm:$0xff] %v4112
  %4115 = vst [vmem:[%s2 + $0x5] sm:$0x1] %v3989
  %4116 = vst [vmem:[%s2 + $0x15] sm:$0x1] %v3990
  %4117 = vst [vmem:[%s2 + $0x25] sm:$0x1] %v3991
  %4118 = vst [vmem:[%s2 + $0x35] sm:$0x1] %v3992
  %4119 = vst [vmem:[%s2 + $0x45] sm:$0x1] %v3993
  %4120 = vst [vmem:[%s2 + $0x55] sm:$0x1] %v3994
  %4121 = vst [vmem:[%s2 + $0x65] sm:$0x1] %v3995
  %4122 = vst [vmem:[%s2 + $0x75] sm:$0x1] %v3996
  %s4123 = scalar_lea.vmem %s0, 6
  %v4124 = vld [vmem:[%s4123] ss:$8 sm:$0xf]
  %s4125 = scalar_lea.vmem %s0, 70
  %v4126 = vld [vmem:[%s4125] ss:$8 sm:$0xf]
  %s4127 = scalar_lea.vmem %s0, 134
  %v4128 = vld [vmem:[%s4127] ss:$8 sm:$0xf]
  %s4129 = scalar_lea.vmem %s0, 198
  %v4130 = vld [vmem:[%s4129] ss:$8 sm:$0xf]
  %s4131 = scalar_lea.vmem %s0, 262
  %v4132 = vld [vmem:[%s4131] ss:$8 sm:$0xf]
  %s4133 = scalar_lea.vmem %s0, 326
  %v4134 = vld [vmem:[%s4133] ss:$8 sm:$0xf]
  %s4135 = scalar_lea.vmem %s0, 390
  %v4136 = vld [vmem:[%s4135] ss:$8 sm:$0xf]
  %s4137 = scalar_lea.vmem %s0, 454
  %v4138 = vld [vmem:[%s4137] ss:$8 sm:$0xf]
  %v4139 = vld [vmem:[#allocation2] sm:$0xff]
  %v4140 = vld [vmem:[#allocation4] sm:$0xff]
  %v4141 = vld [vmem:[#allocation4 + $0x8] sm:$0xff]
  %v4142 = vld [vmem:[#allocation4 + $0x10] sm:$0xff]
  %v4143 = vld [vmem:[#allocation4 + $0x18] sm:$0xff]
  %v4144 = vld [vmem:[#allocation4 + $0x20] sm:$0xff]
  %v4145 = vld [vmem:[#allocation4 + $0x28] sm:$0xff]
  %v4146 = vld [vmem:[#allocation4 + $0x30] sm:$0xff]
  %v4147 = vld [vmem:[#allocation4 + $0x38] sm:$0xff]
  %v4148 = vld [vmem:[#allocation4 + $0x40] sm:$0xff]
  %v4149 = vld [vmem:[#allocation4 + $0x48] sm:$0xff]
  %v4150 = vld [vmem:[#allocation4 + $0x50] sm:$0xff]
  %v4151 = vld [vmem:[#allocation4 + $0x58] sm:$0xff]
  %v4152 = vld [vmem:[#allocation4 + $0x60] sm:$0xff]
  %v4153 = vld [vmem:[#allocation4 + $0x68] sm:$0xff]
  %v4154 = vld [vmem:[#allocation4 + $0x70] sm:$0xff]
  %v4155 = vld [vmem:[#allocation4 + $0x78] sm:$0xff]
  %v4156 = vld [vmem:[#allocation4 + $0x80] sm:$0xff]
  %v4157 = vld [vmem:[#allocation4 + $0x88] sm:$0xff]
  %v4158 = vld [vmem:[#allocation4 + $0x90] sm:$0xff]
  %v4159 = vld [vmem:[#allocation4 + $0x98] sm:$0xff]
  %v4160 = vld [vmem:[#allocation4 + $0xa0] sm:$0xff]
  %v4161 = vld [vmem:[#allocation4 + $0xa8] sm:$0xff]
  %v4162 = vld [vmem:[#allocation4 + $0xb0] sm:$0xff]
  %v4163 = vld [vmem:[#allocation4 + $0xb8] sm:$0xff]
  %v4164 = vld [vmem:[#allocation4 + $0xc0] sm:$0xff]
  %v4165 = vld [vmem:[#allocation4 + $0xc8] sm:$0xff]
  %v4166 = vld [vmem:[#allocation4 + $0xd0] sm:$0xff]
  %v4167 = vld [vmem:[#allocation4 + $0xd8] sm:$0xff]
  %v4168 = vld [vmem:[#allocation4 + $0xe0] sm:$0xff]
  %v4169 = vld [vmem:[#allocation4 + $0xe8] sm:$0xff]
  %v4170 = vld [vmem:[#allocation4 + $0xf0] sm:$0xff]
  %v4171 = vld [vmem:[#allocation4 + $0xf8] sm:$0xff]
  %v4172 = vld [vmem:[#allocation4 + $0x100] sm:$0xff]
  %v4173 = vld [vmem:[#allocation4 + $0x108] sm:$0xff]
  %v4174 = vld [vmem:[#allocation4 + $0x110] sm:$0xff]
  %v4175 = vld [vmem:[#allocation4 + $0x118] sm:$0xff]
  %v4176 = vld [vmem:[#allocation4 + $0x120] sm:$0xff]
  %v4177 = vld [vmem:[#allocation4 + $0x128] sm:$0xff]
  %v4178 = vld [vmem:[#allocation4 + $0x130] sm:$0xff]
  %v4179 = vld [vmem:[#allocation4 + $0x138] sm:$0xff]
  %v4180 = vld [vmem:[#allocation4 + $0x140] sm:$0xff]
  %v4181 = vld [vmem:[#allocation4 + $0x148] sm:$0xff]
  %v4182 = vld [vmem:[#allocation4 + $0x150] sm:$0xff]
  %v4183 = vld [vmem:[#allocation4 + $0x158] sm:$0xff]
  %v4184 = vld [vmem:[#allocation4 + $0x160] sm:$0xff]
  %v4185 = vld [vmem:[#allocation4 + $0x168] sm:$0xff]
  %v4186 = vld [vmem:[#allocation4 + $0x170] sm:$0xff]
  %v4187 = vld [vmem:[#allocation4 + $0x178] sm:$0xff]
  %v4188 = vld [vmem:[#allocation4 + $0x180] sm:$0xff]
  %v4189 = vld [vmem:[#allocation4 + $0x188] sm:$0xff]
  %v4190 = vld [vmem:[#allocation4 + $0x190] sm:$0xff]
  %v4191 = vld [vmem:[#allocation4 + $0x198] sm:$0xff]
  %v4192 = vld [vmem:[#allocation4 + $0x1a0] sm:$0xff]
  %v4193 = vld [vmem:[#allocation4 + $0x1a8] sm:$0xff]
  %v4194 = vld [vmem:[#allocation4 + $0x1b0] sm:$0xff]
  %v4195 = vld [vmem:[#allocation4 + $0x1b8] sm:$0xff]
  %v4196 = vld [vmem:[#allocation4 + $0x1c0] sm:$0xff]
  %v4197 = vld [vmem:[#allocation4 + $0x1c8] sm:$0xff]
  %v4198 = vld [vmem:[#allocation4 + $0x1d0] sm:$0xff]
  %v4199 = vld [vmem:[#allocation4 + $0x1d8] sm:$0xff]
  %v4200 = vld [vmem:[#allocation4 + $0x1e0] sm:$0xff]
  %v4201 = vld [vmem:[#allocation4 + $0x1e8] sm:$0xff]
  %v4202 = vld [vmem:[#allocation4 + $0x1f0] sm:$0xff]
  %v4203 = vld [vmem:[#allocation4 + $0x1f8] sm:$0xff]
  %4204 = vmatprep.subr.mxu0 %v4201
  %4205 = vmatpush1.msra.mxu0 %v4200
  %4206 = vmatprep.subr.mxu0 %v4197
  %4207 = vmatpush1.msra.mxu0 %v4196
  %4208 = vmatprep.subr.mxu0 %v4193
  %4209 = vmatpush1.msra.mxu0 %v4192
  %4210 = vmatprep.subr.mxu0 %v4189
  %4211 = vmatpush1.msra.mxu0 %v4188
  %4212 = vmatprep.subr.mxu0 %v4185
  %4213 = vmatpush1.msra.mxu0 %v4184
  %4214 = vmatprep.subr.mxu0 %v4181
  %4215 = vmatpush1.msra.mxu0 %v4180
  %4216 = vmatprep.subr.mxu0 %v4177
  %4217 = vmatpush1.msra.mxu0 %v4176
  %4218 = vmatprep.subr.mxu0 %v4173
  %4219 = vmatpush1.msra.mxu0 %v4172
  %4220 = vmatprep.subr.mxu0 %v4169
  %4221 = vmatpush1.msra.mxu0 %v4168
  %4222 = vmatprep.subr.mxu0 %v4165
  %4223 = vmatpush1.msra.mxu0 %v4164
  %4224 = vmatprep.subr.mxu0 %v4161
  %4225 = vmatpush1.msra.mxu0 %v4160
  %4226 = vmatprep.subr.mxu0 %v4157
  %4227 = vmatpush1.msra.mxu0 %v4156
  %4228 = vmatprep.subr.mxu0 %v4153
  %4229 = vmatpush1.msra.mxu0 %v4152
  %4230 = vmatprep.subr.mxu0 %v4149
  %4231 = vmatpush1.msra.mxu0 %v4148
  %4232 = vmatprep.subr.mxu0 %v4145
  %4233 = vmatpush1.msra.mxu0 %v4144
  %4234 = vmatprep.subr.mxu0 %v4141
  %4235 = vmatpush1.msra.mxu0 %v4140
  %4236 = vmatprep.subr.mxu0 0.0
  %4237 = vmatpush2.msra.mxu0 0.0
  %4238 = vmatprep.subr.mxu0 0.0
  %4239 = vmatpush2.msra.mxu0 0.0
  %4240 = vmatprep.subr.mxu0 0.0
  %4241 = vmatpush2.msra.mxu0 0.0
  %4242 = vmatprep.subr.mxu0 0.0
  %4243 = vmatpush2.msra.mxu0 0.0
  %4244 = vmatprep.subr.mxu0 0.0
  %4245 = vmatpush2.msra.mxu0 0.0
  %4246 = vmatprep.subr.mxu0 0.0
  %4247 = vmatpush2.msra.mxu0 0.0
  %4248 = vmatprep.subr.mxu0 0.0
  %4249 = vmatpush2.msra.mxu0 0.0
  %4250 = vmatprep.subr.mxu0 0.0
  %4251 = vmatpush2.msra.mxu0 0.0
  %4252 = vmatprep.subr.mxu0 0.0
  %4253 = vmatpush2.msra.mxu0 0.0
  %4254 = vmatprep.subr.mxu0 0.0
  %4255 = vmatpush2.msra.mxu0 0.0
  %4256 = vmatprep.subr.mxu0 0.0
  %4257 = vmatpush2.msra.mxu0 0.0
  %4258 = vmatprep.subr.mxu0 0.0
  %4259 = vmatpush2.msra.mxu0 0.0
  %4260 = vmatprep.subr.mxu0 0.0
  %4261 = vmatpush2.msra.mxu0 0.0
  %4262 = vmatprep.subr.mxu0 0.0
  %4263 = vmatpush2.msra.mxu0 0.0
  %4264 = vmatprep.subr.mxu0 0.0
  %4265 = vmatpush2.msra.mxu0 0.0
  %4266 = vmatprep.subr.mxu0 0.0
  %4267 = vmatpush2.msra.mxu0 0.0
  %4268 = vmatprep.mubr.f32.mxu0 0.0
  %4269 = vmatmul.mubr.f32.gmra.mxu0 %v4139
  %v4270 = vpop.f32.mrf.mxu0
  %v4271 = vadd.f32 0.0, %v4270
  %v4272 = vpop.f32.mrf.mxu0
  %v4273 = vadd.f32 0.0, %v4272
  %4274 = vdwg.mxu0
  %4275 = vmatprep.subr.mxu0 %v4203
  %4276 = vmatpush1.msra.mxu0 %v4202
  %4277 = vmatprep.subr.mxu0 %v4199
  %4278 = vmatpush1.msra.mxu0 %v4198
  %4279 = vmatprep.subr.mxu0 %v4195
  %4280 = vmatpush1.msra.mxu0 %v4194
  %4281 = vmatprep.subr.mxu0 %v4191
  %4282 = vmatpush1.msra.mxu0 %v4190
  %4283 = vmatprep.subr.mxu0 %v4187
  %4284 = vmatpush1.msra.mxu0 %v4186
  %4285 = vmatprep.subr.mxu0 %v4183
  %4286 = vmatpush1.msra.mxu0 %v4182
  %4287 = vmatprep.subr.mxu0 %v4179
  %4288 = vmatpush1.msra.mxu0 %v4178
  %4289 = vmatprep.subr.mxu0 %v4175
  %4290 = vmatpush1.msra.mxu0 %v4174
  %4291 = vmatprep.subr.mxu0 %v4171
  %4292 = vmatpush1.msra.mxu0 %v4170
  %4293 = vmatprep.subr.mxu0 %v4167
  %4294 = vmatpush1.msra.mxu0 %v4166
  %4295 = vmatprep.subr.mxu0 %v4163
  %4296 = vmatpush1.msra.mxu0 %v4162
  %4297 = vmatprep.subr.mxu0 %v4159
  %4298 = vmatpush1.msra.mxu0 %v4158
  %4299 = vmatprep.subr.mxu0 %v4155
  %4300 = vmatpush1.msra.mxu0 %v4154
  %4301 = vmatprep.subr.mxu0 %v4151
  %4302 = vmatpush1.msra.mxu0 %v4150
  %4303 = vmatprep.subr.mxu0 %v4147
  %4304 = vmatpush1.msra.mxu0 %v4146
  %4305 = vmatprep.subr.mxu0 %v4143
  %4306 = vmatpush1.msra.mxu0 %v4142
  %4307 = vmatprep.subr.mxu0 0.0
  %4308 = vmatpush2.msra.mxu0 0.0
  %4309 = vmatprep.subr.mxu0 0.0
  %4310 = vmatpush2.msra.mxu0 0.0
  %4311 = vmatprep.subr.mxu0 0.0
  %4312 = vmatpush2.msra.mxu0 0.0
  %4313 = vmatprep.subr.mxu0 0.0
  %4314 = vmatpush2.msra.mxu0 0.0
  %4315 = vmatprep.subr.mxu0 0.0
  %4316 = vmatpush2.msra.mxu0 0.0
  %4317 = vmatprep.subr.mxu0 0.0
  %4318 = vmatpush2.msra.mxu0 0.0
  %4319 = vmatprep.subr.mxu0 0.0
  %4320 = vmatpush2.msra.mxu0 0.0
  %4321 = vmatprep.subr.mxu0 0.0
  %4322 = vmatpush2.msra.mxu0 0.0
  %4323 = vmatprep.subr.mxu0 0.0
  %4324 = vmatpush2.msra.mxu0 0.0
  %4325 = vmatprep.subr.mxu0 0.0
  %4326 = vmatpush2.msra.mxu0 0.0
  %4327 = vmatprep.subr.mxu0 0.0
  %4328 = vmatpush2.msra.mxu0 0.0
  %4329 = vmatprep.subr.mxu0 0.0
  %4330 = vmatpush2.msra.mxu0 0.0
  %4331 = vmatprep.subr.mxu0 0.0
  %4332 = vmatpush2.msra.mxu0 0.0
  %4333 = vmatprep.subr.mxu0 0.0
  %4334 = vmatpush2.msra.mxu0 0.0
  %4335 = vmatprep.subr.mxu0 0.0
  %4336 = vmatpush2.msra.mxu0 0.0
  %4337 = vmatprep.subr.mxu0 0.0
  %4338 = vmatpush2.msra.mxu0 0.0
  %4339 = vmatprep.mubr.f32.mxu0 0.0
  %4340 = vmatmul.mubr.f32.gmra.mxu0 %v4139
  %v4341 = vpop.f32.mrf.mxu0
  %v4342 = vadd.f32 0.0, %v4341
  %v4343 = vpop.f32.mrf.mxu0
  %v4344 = vadd.f32 0.0, %v4343
  %4345 = vdwg.mxu0
  %v4350 = vcombine.low %v4271, %v4273
  %v4351 = vcombine.high %v4271, %v4273
  %v4352 = vcombine.low %v4342, %v4344
  %v4353 = vcombine.high %v4342, %v4344
  %v4355 = vunpack.c.l.s4 1966171168
  %v4356 = vunpack.c.0.s8 %v4355
  %v4357 = vlaneseq
  %v4358 = vshrl.u32 %v4357, 7
  %v4359 = vsub.s32 %v4356, %v4358
  %v4360 = vrot.slane %v4350, %v4359
  %v4362 = vunpack.c.l.s4 1966171168
  %v4363 = vunpack.c.0.s8 %v4362
  %v4364 = vlaneseq
  %v4365 = vshrl.u32 %v4364, 7
  %v4366 = vsub.s32 %v4363, %v4365
  %v4367 = vrot.slane %v4351, %v4366
  %v4369 = vunpack.c.l.s4 1966171168
  %v4370 = vunpack.c.0.s8 %v4369
  %v4371 = vlaneseq
  %v4372 = vshrl.u32 %v4371, 7
  %v4373 = vsub.s32 %v4370, %v4372
  %v4374 = vrot.slane %v4352, %v4373
  %v4376 = vunpack.c.l.s4 1966171168
  %v4377 = vunpack.c.0.s8 %v4376
  %v4378 = vlaneseq
  %v4379 = vshrl.u32 %v4378, 7
  %v4380 = vsub.s32 %v4377, %v4379
  %v4381 = vrot.slane %v4353, %v4380
  %v4382 = vcombine.low %v4360, %v4374
  %v4383 = vcombine.high %v4360, %v4374
  %v4384 = vcombine.low %v4367, %v4381
  %v4385 = vcombine.high %v4367, %v4381
  %v4387 = vunpack.c.l.s4 1966171168
  %v4388 = vunpack.c.0.s8 %v4387
  %v4389 = vlaneseq
  %v4390 = vshrl.u32 %v4389, 7
  %v4391 = vsub.s32 %v4388, %v4390
  %v4392 = vrot.slane %v4382, %v4391
  %v4394 = vunpack.c.l.s4 1966171168
  %v4395 = vunpack.c.0.s8 %v4394
  %v4396 = vlaneseq
  %v4397 = vshrl.u32 %v4396, 7
  %v4398 = vsub.s32 %v4395, %v4397
  %v4399 = vrot.slane %v4384, %v4398
  %v4401 = vunpack.c.l.s4 1966171168
  %v4402 = vunpack.c.0.s8 %v4401
  %v4403 = vlaneseq
  %v4404 = vshrl.u32 %v4403, 7
  %v4405 = vsub.s32 %v4402, %v4404
  %v4406 = vrot.slane %v4383, %v4405
  %v4408 = vunpack.c.l.s4 1966171168
  %v4409 = vunpack.c.0.s8 %v4408
  %v4410 = vlaneseq
  %v4411 = vshrl.u32 %v4410, 7
  %v4412 = vsub.s32 %v4409, %v4411
  %v4413 = vrot.slane %v4385, %v4412
  %v4414 = vcombine.high %v4392, %v4392
  %v4415 = vcombine.high %v4399, %v4399
  %v4416 = vcombine.high %v4406, %v4406
  %v4417 = vcombine.high %v4413, %v4413
  %v4426 = vadd.f32 %v4124, %v4392
  %v4427 = vadd.f32 %v4126, %v4406
  %v4428 = vadd.f32 %v4128, %v4414
  %v4429 = vadd.f32 %v4130, %v4416
  %v4430 = vadd.f32 %v4132, %v4399
  %v4431 = vadd.f32 %v4134, %v4413
  %v4432 = vadd.f32 %v4136, %v4415
  %v4433 = vadd.f32 %v4138, %v4417
  %v4434 = vxor.u32 %v4426, 2147483648
  %v4435 = vxor.u32 %v4427, 2147483648
  %v4436 = vxor.u32 %v4428, 2147483648
  %v4437 = vxor.u32 %v4429, 2147483648
  %v4438 = vxor.u32 %v4430, 2147483648
  %v4439 = vxor.u32 %v4431, 2147483648
  %v4440 = vxor.u32 %v4432, 2147483648
  %v4441 = vxor.u32 %v4433, 2147483648
  %v4442 = vmul.f32 %v4434, 1.442695
  %v4443 = vpow.pop %v4442
  %v4444 = vmul.f32 %v4435, 1.442695
  %v4445 = vpow.pop %v4444
  %v4446 = vmul.f32 %v4436, 1.442695
  %v4447 = vpow.pop %v4446
  %v4448 = vmul.f32 %v4437, 1.442695
  %v4449 = vpow.pop %v4448
  %v4450 = vmul.f32 %v4438, 1.442695
  %v4451 = vpow.pop %v4450
  %v4452 = vmul.f32 %v4439, 1.442695
  %v4453 = vpow.pop %v4452
  %v4454 = vmul.f32 %v4440, 1.442695
  %v4455 = vpow.pop %v4454
  %v4456 = vmul.f32 %v4441, 1.442695
  %v4457 = vpow.pop %v4456
  %v4458 = vadd.f32 %v4443, 1.0
  %v4459 = vadd.f32 %v4445, 1.0
  %v4460 = vadd.f32 %v4447, 1.0
  %v4461 = vadd.f32 %v4449, 1.0
  %v4462 = vadd.f32 %v4451, 1.0
  %v4463 = vadd.f32 %v4453, 1.0
  %v4464 = vadd.f32 %v4455, 1.0
  %v4465 = vadd.f32 %v4457, 1.0
  %v4466 = vrcp.pop %v4458
  %v4467 = vmul.f32 1.0, %v4466
  %v4468 = vrcp.pop %v4459
  %v4469 = vmul.f32 1.0, %v4468
  %v4470 = vrcp.pop %v4460
  %v4471 = vmul.f32 1.0, %v4470
  %v4472 = vrcp.pop %v4461
  %v4473 = vmul.f32 1.0, %v4472
  %v4474 = vrcp.pop %v4462
  %v4475 = vmul.f32 1.0, %v4474
  %v4476 = vrcp.pop %v4463
  %v4477 = vmul.f32 1.0, %v4476
  %v4478 = vrcp.pop %v4464
  %v4479 = vmul.f32 1.0, %v4478
  %v4480 = vrcp.pop %v4465
  %v4481 = vmul.f32 1.0, %v4480
  %v4490 = vrot.slane %v4426, 3
  %v4491 = vrot.slane %v4427, 3
  %v4492 = vrot.slane %v4428, 3
  %v4493 = vrot.slane %v4429, 3
  %v4494 = vrot.slane %v4430, 3
  %v4495 = vrot.slane %v4431, 3
  %v4496 = vrot.slane %v4432, 3
  %v4497 = vrot.slane %v4433, 3
  %v4506 = vtanh.pop %v4490
  %v4507 = vtanh.pop %v4491
  %v4508 = vtanh.pop %v4492
  %v4509 = vtanh.pop %v4493
  %v4510 = vtanh.pop %v4494
  %v4511 = vtanh.pop %v4495
  %v4512 = vtanh.pop %v4496
  %v4513 = vtanh.pop %v4497
  %v4514 = vld [vmem:[#allocation3] sm:$0xff]
  %v4523 = vrot.slane %v4467, 1
  %v4524 = vrot.slane %v4469, 1
  %v4525 = vrot.slane %v4471, 1
  %v4526 = vrot.slane %v4473, 1
  %v4527 = vrot.slane %v4475, 1
  %v4528 = vrot.slane %v4477, 1
  %v4529 = vrot.slane %v4479, 1
  %v4530 = vrot.slane %v4481, 1
  %v4540 = vcombine.high %v4514, %v4514
  %v4542 = vunpack.c.l.s4 1966171168
  %v4543 = vunpack.c.0.s8 %v4542
  %v4544 = vlaneseq
  %v4545 = vshrl.u32 %v4544, 7
  %v4546 = vsub.s32 %v4543, %v4545
  %v4547 = vrot.slane %v4514, %v4546
  %v4549 = vunpack.c.l.s4 1966171168
  %v4550 = vunpack.c.0.s8 %v4549
  %v4551 = vlaneseq
  %v4552 = vshrl.u32 %v4551, 7
  %v4553 = vsub.s32 %v4550, %v4552
  %v4554 = vrot.slane %v4540, %v4553
  %v4555 = vcombine.high %v4547, %v4547
  %v4556 = vcombine.high %v4554, %v4554
  %v4558 = vunpack.c.l.s4 1966171168
  %v4559 = vunpack.c.0.s8 %v4558
  %v4560 = vlaneseq
  %v4561 = vshrl.u32 %v4560, 7
  %v4562 = vsub.s32 %v4559, %v4561
  %v4563 = vrot.slane %v4547, %v4562
  %v4565 = vunpack.c.l.s4 1966171168
  %v4566 = vunpack.c.0.s8 %v4565
  %v4567 = vlaneseq
  %v4568 = vshrl.u32 %v4567, 7
  %v4569 = vsub.s32 %v4566, %v4568
  %v4570 = vrot.slane %v4554, %v4569
  %v4572 = vunpack.c.l.s4 1966171168
  %v4573 = vunpack.c.0.s8 %v4572
  %v4574 = vlaneseq
  %v4575 = vshrl.u32 %v4574, 7
  %v4576 = vsub.s32 %v4573, %v4575
  %v4577 = vrot.slane %v4555, %v4576
  %v4579 = vunpack.c.l.s4 1966171168
  %v4580 = vunpack.c.0.s8 %v4579
  %v4581 = vlaneseq
  %v4582 = vshrl.u32 %v4581, 7
  %v4583 = vsub.s32 %v4580, %v4582
  %v4584 = vrot.slane %v4556, %v4583
  %v4585 = vcombine.high %v4563, %v4563
  %v4586 = vcombine.high %v4570, %v4570
  %v4587 = vcombine.high %v4577, %v4577
  %v4588 = vcombine.high %v4584, %v4584
  %v4597 = vmul.f32 %v4523, %v4563
  %v4598 = vmul.f32 %v4524, %v4577
  %v4599 = vmul.f32 %v4525, %v4585
  %v4600 = vmul.f32 %v4526, %v4587
  %v4601 = vmul.f32 %v4527, %v4570
  %v4602 = vmul.f32 %v4528, %v4584
  %v4603 = vmul.f32 %v4529, %v4586
  %v4604 = vmul.f32 %v4530, %v4588
  %v4605 = vmul.f32 %v4467, %v4506
  %v4606 = vmul.f32 %v4469, %v4507
  %v4607 = vmul.f32 %v4471, %v4508
  %v4608 = vmul.f32 %v4473, %v4509
  %v4609 = vmul.f32 %v4475, %v4510
  %v4610 = vmul.f32 %v4477, %v4511
  %v4611 = vmul.f32 %v4479, %v4512
  %v4612 = vmul.f32 %v4481, %v4513
  %v4613 = vadd.f32 %v4597, %v4605
  %v4614 = vadd.f32 %v4598, %v4606
  %v4615 = vadd.f32 %v4599, %v4607
  %v4616 = vadd.f32 %v4600, %v4608
  %v4617 = vadd.f32 %v4601, %v4609
  %v4618 = vadd.f32 %v4602, %v4610
  %v4619 = vadd.f32 %v4603, %v4611
  %v4620 = vadd.f32 %v4604, %v4612
  %v4621 = vtanh.pop %v4613
  %v4622 = vtanh.pop %v4614
  %v4623 = vtanh.pop %v4615
  %v4624 = vtanh.pop %v4616
  %v4625 = vtanh.pop %v4617
  %v4626 = vtanh.pop %v4618
  %v4627 = vtanh.pop %v4619
  %v4628 = vtanh.pop %v4620
  %v4629 = vrot.slane %v4467, 2
  %v4630 = vrot.slane %v4469, 2
  %v4631 = vrot.slane %v4471, 2
  %v4632 = vrot.slane %v4473, 2
  %v4633 = vrot.slane %v4475, 2
  %v4634 = vrot.slane %v4477, 2
  %v4635 = vrot.slane %v4479, 2
  %v4636 = vrot.slane %v4481, 2
  %v4645 = vmul.f32 %v4629, %v4621
  %v4646 = vmul.f32 %v4630, %v4622
  %v4647 = vmul.f32 %v4631, %v4623
  %v4648 = vmul.f32 %v4632, %v4624
  %v4649 = vmul.f32 %v4633, %v4625
  %v4650 = vmul.f32 %v4634, %v4626
  %v4651 = vmul.f32 %v4635, %v4627
  %v4652 = vmul.f32 %v4636, %v4628
  %v4661 = vcombine.low %v4613, %v4614
  %v4662 = vcombine.low %v4615, %v4616
  %v4663 = vcombine.low %v4617, %v4618
  %v4664 = vcombine.low %v4619, %v4620
  %v4666 = vunpack.c.l.s4 1966171168
  %v4667 = vunpack.c.0.s8 %v4666
  %v4668 = vlaneseq
  %v4669 = vshrl.u32 %v4668, 7
  %v4670 = vsub.s32 %v4667, %v4669
  %v4671 = vrot.slane %v4661, %v4670
  %v4673 = vunpack.c.l.s4 1966171168
  %v4674 = vunpack.c.0.s8 %v4673
  %v4675 = vlaneseq
  %v4676 = vshrl.u32 %v4675, 7
  %v4677 = vsub.s32 %v4674, %v4676
  %v4678 = vrot.slane %v4662, %v4677
  %v4680 = vunpack.c.l.s4 1966171168
  %v4681 = vunpack.c.0.s8 %v4680
  %v4682 = vlaneseq
  %v4683 = vshrl.u32 %v4682, 7
  %v4684 = vsub.s32 %v4681, %v4683
  %v4685 = vrot.slane %v4663, %v4684
  %v4687 = vunpack.c.l.s4 1966171168
  %v4688 = vunpack.c.0.s8 %v4687
  %v4689 = vlaneseq
  %v4690 = vshrl.u32 %v4689, 7
  %v4691 = vsub.s32 %v4688, %v4690
  %v4692 = vrot.slane %v4664, %v4691
  %v4693 = vcombine.low %v4671, %v4678
  %v4694 = vcombine.low %v4685, %v4692
  %v4696 = vunpack.c.l.s4 1966171168
  %v4697 = vunpack.c.0.s8 %v4696
  %v4698 = vlaneseq
  %v4699 = vshrl.u32 %v4698, 7
  %v4700 = vsub.s32 %v4697, %v4699
  %v4701 = vrot.slane %v4693, %v4700
  %v4703 = vunpack.c.l.s4 1966171168
  %v4704 = vunpack.c.0.s8 %v4703
  %v4705 = vlaneseq
  %v4706 = vshrl.u32 %v4705, 7
  %v4707 = vsub.s32 %v4704, %v4706
  %v4708 = vrot.slane %v4694, %v4707
  %v4709 = vcombine.low %v4701, %v4708
  %4711 = vst [vmem:[#allocation3] sm:$0xff] %v4709
  %v4720 = vcombine.low %v4645, %v4646
  %v4721 = vcombine.low %v4647, %v4648
  %v4722 = vcombine.low %v4649, %v4650
  %v4723 = vcombine.low %v4651, %v4652
  %v4725 = vunpack.c.l.s4 1966171168
  %v4726 = vunpack.c.0.s8 %v4725
  %v4727 = vlaneseq
  %v4728 = vshrl.u32 %v4727, 7
  %v4729 = vsub.s32 %v4726, %v4728
  %v4730 = vrot.slane %v4720, %v4729
  %v4732 = vunpack.c.l.s4 1966171168
  %v4733 = vunpack.c.0.s8 %v4732
  %v4734 = vlaneseq
  %v4735 = vshrl.u32 %v4734, 7
  %v4736 = vsub.s32 %v4733, %v4735
  %v4737 = vrot.slane %v4721, %v4736
  %v4739 = vunpack.c.l.s4 1966171168
  %v4740 = vunpack.c.0.s8 %v4739
  %v4741 = vlaneseq
  %v4742 = vshrl.u32 %v4741, 7
  %v4743 = vsub.s32 %v4740, %v4742
  %v4744 = vrot.slane %v4722, %v4743
  %v4746 = vunpack.c.l.s4 1966171168
  %v4747 = vunpack.c.0.s8 %v4746
  %v4748 = vlaneseq
  %v4749 = vshrl.u32 %v4748, 7
  %v4750 = vsub.s32 %v4747, %v4749
  %v4751 = vrot.slane %v4723, %v4750
  %v4752 = vcombine.low %v4730, %v4737
  %v4753 = vcombine.low %v4744, %v4751
  %v4755 = vunpack.c.l.s4 1966171168
  %v4756 = vunpack.c.0.s8 %v4755
  %v4757 = vlaneseq
  %v4758 = vshrl.u32 %v4757, 7
  %v4759 = vsub.s32 %v4756, %v4758
  %v4760 = vrot.slane %v4752, %v4759
  %v4762 = vunpack.c.l.s4 1966171168
  %v4763 = vunpack.c.0.s8 %v4762
  %v4764 = vlaneseq
  %v4765 = vshrl.u32 %v4764, 7
  %v4766 = vsub.s32 %v4763, %v4765
  %v4767 = vrot.slane %v4753, %v4766
  %v4768 = vcombine.low %v4760, %v4767
  %4770 = vst [vmem:[#allocation2] sm:$0xff] %v4768
  %4771 = vst [vmem:[%s2 + $0x6] sm:$0x1] %v4645
  %4772 = vst [vmem:[%s2 + $0x16] sm:$0x1] %v4646
  %4773 = vst [vmem:[%s2 + $0x26] sm:$0x1] %v4647
  %4774 = vst [vmem:[%s2 + $0x36] sm:$0x1] %v4648
  %4775 = vst [vmem:[%s2 + $0x46] sm:$0x1] %v4649
  %4776 = vst [vmem:[%s2 + $0x56] sm:$0x1] %v4650
  %4777 = vst [vmem:[%s2 + $0x66] sm:$0x1] %v4651
  %4778 = vst [vmem:[%s2 + $0x76] sm:$0x1] %v4652
  %s4779 = scalar_lea.vmem %s0, 7
  %v4780 = vld [vmem:[%s4779] ss:$8 sm:$0xf]
  %s4781 = scalar_lea.vmem %s0, 71
  %v4782 = vld [vmem:[%s4781] ss:$8 sm:$0xf]
  %s4783 = scalar_lea.vmem %s0, 135
  %v4784 = vld [vmem:[%s4783] ss:$8 sm:$0xf]
  %s4785 = scalar_lea.vmem %s0, 199
  %v4786 = vld [vmem:[%s4785] ss:$8 sm:$0xf]
  %s4787 = scalar_lea.vmem %s0, 263
  %v4788 = vld [vmem:[%s4787] ss:$8 sm:$0xf]
  %s4789 = scalar_lea.vmem %s0, 327
  %v4790 = vld [vmem:[%s4789] ss:$8 sm:$0xf]
  %s4791 = scalar_lea.vmem %s0, 391
  %v4792 = vld [vmem:[%s4791] ss:$8 sm:$0xf]
  %s4793 = scalar_lea.vmem %s0, 455
  %v4794 = vld [vmem:[%s4793] ss:$8 sm:$0xf]
  %v4795 = vld [vmem:[#allocation2] sm:$0xff]
  %v4796 = vld [vmem:[#allocation4] sm:$0xff]
  %v4797 = vld [vmem:[#allocation4 + $0x8] sm:$0xff]
  %v4798 = vld [vmem:[#allocation4 + $0x10] sm:$0xff]
  %v4799 = vld [vmem:[#allocation4 + $0x18] sm:$0xff]
  %v4800 = vld [vmem:[#allocation4 + $0x20] sm:$0xff]
  %v4801 = vld [vmem:[#allocation4 + $0x28] sm:$0xff]
  %v4802 = vld [vmem:[#allocation4 + $0x30] sm:$0xff]
  %v4803 = vld [vmem:[#allocation4 + $0x38] sm:$0xff]
  %v4804 = vld [vmem:[#allocation4 + $0x40] sm:$0xff]
  %v4805 = vld [vmem:[#allocation4 + $0x48] sm:$0xff]
  %v4806 = vld [vmem:[#allocation4 + $0x50] sm:$0xff]
  %v4807 = vld [vmem:[#allocation4 + $0x58] sm:$0xff]
  %v4808 = vld [vmem:[#allocation4 + $0x60] sm:$0xff]
  %v4809 = vld [vmem:[#allocation4 + $0x68] sm:$0xff]
  %v4810 = vld [vmem:[#allocation4 + $0x70] sm:$0xff]
  %v4811 = vld [vmem:[#allocation4 + $0x78] sm:$0xff]
  %v4812 = vld [vmem:[#allocation4 + $0x80] sm:$0xff]
  %v4813 = vld [vmem:[#allocation4 + $0x88] sm:$0xff]
  %v4814 = vld [vmem:[#allocation4 + $0x90] sm:$0xff]
  %v4815 = vld [vmem:[#allocation4 + $0x98] sm:$0xff]
  %v4816 = vld [vmem:[#allocation4 + $0xa0] sm:$0xff]
  %v4817 = vld [vmem:[#allocation4 + $0xa8] sm:$0xff]
  %v4818 = vld [vmem:[#allocation4 + $0xb0] sm:$0xff]
  %v4819 = vld [vmem:[#allocation4 + $0xb8] sm:$0xff]
  %v4820 = vld [vmem:[#allocation4 + $0xc0] sm:$0xff]
  %v4821 = vld [vmem:[#allocation4 + $0xc8] sm:$0xff]
  %v4822 = vld [vmem:[#allocation4 + $0xd0] sm:$0xff]
  %v4823 = vld [vmem:[#allocation4 + $0xd8] sm:$0xff]
  %v4824 = vld [vmem:[#allocation4 + $0xe0] sm:$0xff]
  %v4825 = vld [vmem:[#allocation4 + $0xe8] sm:$0xff]
  %v4826 = vld [vmem:[#allocation4 + $0xf0] sm:$0xff]
  %v4827 = vld [vmem:[#allocation4 + $0xf8] sm:$0xff]
  %v4828 = vld [vmem:[#allocation4 + $0x100] sm:$0xff]
  %v4829 = vld [vmem:[#allocation4 + $0x108] sm:$0xff]
  %v4830 = vld [vmem:[#allocation4 + $0x110] sm:$0xff]
  %v4831 = vld [vmem:[#allocation4 + $0x118] sm:$0xff]
  %v4832 = vld [vmem:[#allocation4 + $0x120] sm:$0xff]
  %v4833 = vld [vmem:[#allocation4 + $0x128] sm:$0xff]
  %v4834 = vld [vmem:[#allocation4 + $0x130] sm:$0xff]
  %v4835 = vld [vmem:[#allocation4 + $0x138] sm:$0xff]
  %v4836 = vld [vmem:[#allocation4 + $0x140] sm:$0xff]
  %v4837 = vld [vmem:[#allocation4 + $0x148] sm:$0xff]
  %v4838 = vld [vmem:[#allocation4 + $0x150] sm:$0xff]
  %v4839 = vld [vmem:[#allocation4 + $0x158] sm:$0xff]
  %v4840 = vld [vmem:[#allocation4 + $0x160] sm:$0xff]
  %v4841 = vld [vmem:[#allocation4 + $0x168] sm:$0xff]
  %v4842 = vld [vmem:[#allocation4 + $0x170] sm:$0xff]
  %v4843 = vld [vmem:[#allocation4 + $0x178] sm:$0xff]
  %v4844 = vld [vmem:[#allocation4 + $0x180] sm:$0xff]
  %v4845 = vld [vmem:[#allocation4 + $0x188] sm:$0xff]
  %v4846 = vld [vmem:[#allocation4 + $0x190] sm:$0xff]
  %v4847 = vld [vmem:[#allocation4 + $0x198] sm:$0xff]
  %v4848 = vld [vmem:[#allocation4 + $0x1a0] sm:$0xff]
  %v4849 = vld [vmem:[#allocation4 + $0x1a8] sm:$0xff]
  %v4850 = vld [vmem:[#allocation4 + $0x1b0] sm:$0xff]
  %v4851 = vld [vmem:[#allocation4 + $0x1b8] sm:$0xff]
  %v4852 = vld [vmem:[#allocation4 + $0x1c0] sm:$0xff]
  %v4853 = vld [vmem:[#allocation4 + $0x1c8] sm:$0xff]
  %v4854 = vld [vmem:[#allocation4 + $0x1d0] sm:$0xff]
  %v4855 = vld [vmem:[#allocation4 + $0x1d8] sm:$0xff]
  %v4856 = vld [vmem:[#allocation4 + $0x1e0] sm:$0xff]
  %v4857 = vld [vmem:[#allocation4 + $0x1e8] sm:$0xff]
  %v4858 = vld [vmem:[#allocation4 + $0x1f0] sm:$0xff]
  %v4859 = vld [vmem:[#allocation4 + $0x1f8] sm:$0xff]
  %4860 = vmatprep.subr.mxu0 %v4857
  %4861 = vmatpush1.msra.mxu0 %v4856
  %4862 = vmatprep.subr.mxu0 %v4853
  %4863 = vmatpush1.msra.mxu0 %v4852
  %4864 = vmatprep.subr.mxu0 %v4849
  %4865 = vmatpush1.msra.mxu0 %v4848
  %4866 = vmatprep.subr.mxu0 %v4845
  %4867 = vmatpush1.msra.mxu0 %v4844
  %4868 = vmatprep.subr.mxu0 %v4841
  %4869 = vmatpush1.msra.mxu0 %v4840
  %4870 = vmatprep.subr.mxu0 %v4837
  %4871 = vmatpush1.msra.mxu0 %v4836
  %4872 = vmatprep.subr.mxu0 %v4833
  %4873 = vmatpush1.msra.mxu0 %v4832
  %4874 = vmatprep.subr.mxu0 %v4829
  %4875 = vmatpush1.msra.mxu0 %v4828
  %4876 = vmatprep.subr.mxu0 %v4825
  %4877 = vmatpush1.msra.mxu0 %v4824
  %4878 = vmatprep.subr.mxu0 %v4821
  %4879 = vmatpush1.msra.mxu0 %v4820
  %4880 = vmatprep.subr.mxu0 %v4817
  %4881 = vmatpush1.msra.mxu0 %v4816
  %4882 = vmatprep.subr.mxu0 %v4813
  %4883 = vmatpush1.msra.mxu0 %v4812
  %4884 = vmatprep.subr.mxu0 %v4809
  %4885 = vmatpush1.msra.mxu0 %v4808
  %4886 = vmatprep.subr.mxu0 %v4805
  %4887 = vmatpush1.msra.mxu0 %v4804
  %4888 = vmatprep.subr.mxu0 %v4801
  %4889 = vmatpush1.msra.mxu0 %v4800
  %4890 = vmatprep.subr.mxu0 %v4797
  %4891 = vmatpush1.msra.mxu0 %v4796
  %4892 = vmatprep.subr.mxu0 0.0
  %4893 = vmatpush2.msra.mxu0 0.0
  %4894 = vmatprep.subr.mxu0 0.0
  %4895 = vmatpush2.msra.mxu0 0.0
  %4896 = vmatprep.subr.mxu0 0.0
  %4897 = vmatpush2.msra.mxu0 0.0
  %4898 = vmatprep.subr.mxu0 0.0
  %4899 = vmatpush2.msra.mxu0 0.0
  %4900 = vmatprep.subr.mxu0 0.0
  %4901 = vmatpush2.msra.mxu0 0.0
  %4902 = vmatprep.subr.mxu0 0.0
  %4903 = vmatpush2.msra.mxu0 0.0
  %4904 = vmatprep.subr.mxu0 0.0
  %4905 = vmatpush2.msra.mxu0 0.0
  %4906 = vmatprep.subr.mxu0 0.0
  %4907 = vmatpush2.msra.mxu0 0.0
  %4908 = vmatprep.subr.mxu0 0.0
  %4909 = vmatpush2.msra.mxu0 0.0
  %4910 = vmatprep.subr.mxu0 0.0
  %4911 = vmatpush2.msra.mxu0 0.0
  %4912 = vmatprep.subr.mxu0 0.0
  %4913 = vmatpush2.msra.mxu0 0.0
  %4914 = vmatprep.subr.mxu0 0.0
  %4915 = vmatpush2.msra.mxu0 0.0
  %4916 = vmatprep.subr.mxu0 0.0
  %4917 = vmatpush2.msra.mxu0 0.0
  %4918 = vmatprep.subr.mxu0 0.0
  %4919 = vmatpush2.msra.mxu0 0.0
  %4920 = vmatprep.subr.mxu0 0.0
  %4921 = vmatpush2.msra.mxu0 0.0
  %4922 = vmatprep.subr.mxu0 0.0
  %4923 = vmatpush2.msra.mxu0 0.0
  %4924 = vmatprep.mubr.f32.mxu0 0.0
  %4925 = vmatmul.mubr.f32.gmra.mxu0 %v4795
  %v4926 = vpop.f32.mrf.mxu0
  %v4927 = vadd.f32 0.0, %v4926
  %v4928 = vpop.f32.mrf.mxu0
  %v4929 = vadd.f32 0.0, %v4928
  %4930 = vdwg.mxu0
  %4931 = vmatprep.subr.mxu0 %v4859
  %4932 = vmatpush1.msra.mxu0 %v4858
  %4933 = vmatprep.subr.mxu0 %v4855
  %4934 = vmatpush1.msra.mxu0 %v4854
  %4935 = vmatprep.subr.mxu0 %v4851
  %4936 = vmatpush1.msra.mxu0 %v4850
  %4937 = vmatprep.subr.mxu0 %v4847
  %4938 = vmatpush1.msra.mxu0 %v4846
  %4939 = vmatprep.subr.mxu0 %v4843
  %4940 = vmatpush1.msra.mxu0 %v4842
  %4941 = vmatprep.subr.mxu0 %v4839
  %4942 = vmatpush1.msra.mxu0 %v4838
  %4943 = vmatprep.subr.mxu0 %v4835
  %4944 = vmatpush1.msra.mxu0 %v4834
  %4945 = vmatprep.subr.mxu0 %v4831
  %4946 = vmatpush1.msra.mxu0 %v4830
  %4947 = vmatprep.subr.mxu0 %v4827
  %4948 = vmatpush1.msra.mxu0 %v4826
  %4949 = vmatprep.subr.mxu0 %v4823
  %4950 = vmatpush1.msra.mxu0 %v4822
  %4951 = vmatprep.subr.mxu0 %v4819
  %4952 = vmatpush1.msra.mxu0 %v4818
  %4953 = vmatprep.subr.mxu0 %v4815
  %4954 = vmatpush1.msra.mxu0 %v4814
  %4955 = vmatprep.subr.mxu0 %v4811
  %4956 = vmatpush1.msra.mxu0 %v4810
  %4957 = vmatprep.subr.mxu0 %v4807
  %4958 = vmatpush1.msra.mxu0 %v4806
  %4959 = vmatprep.subr.mxu0 %v4803
  %4960 = vmatpush1.msra.mxu0 %v4802
  %4961 = vmatprep.subr.mxu0 %v4799
  %4962 = vmatpush1.msra.mxu0 %v4798
  %4963 = vmatprep.subr.mxu0 0.0
  %4964 = vmatpush2.msra.mxu0 0.0
  %4965 = vmatprep.subr.mxu0 0.0
  %4966 = vmatpush2.msra.mxu0 0.0
  %4967 = vmatprep.subr.mxu0 0.0
  %4968 = vmatpush2.msra.mxu0 0.0
  %4969 = vmatprep.subr.mxu0 0.0
  %4970 = vmatpush2.msra.mxu0 0.0
  %4971 = vmatprep.subr.mxu0 0.0
  %4972 = vmatpush2.msra.mxu0 0.0
  %4973 = vmatprep.subr.mxu0 0.0
  %4974 = vmatpush2.msra.mxu0 0.0
  %4975 = vmatprep.subr.mxu0 0.0
  %4976 = vmatpush2.msra.mxu0 0.0
  %4977 = vmatprep.subr.mxu0 0.0
  %4978 = vmatpush2.msra.mxu0 0.0
  %4979 = vmatprep.subr.mxu0 0.0
  %4980 = vmatpush2.msra.mxu0 0.0
  %4981 = vmatprep.subr.mxu0 0.0
  %4982 = vmatpush2.msra.mxu0 0.0
  %4983 = vmatprep.subr.mxu0 0.0
  %4984 = vmatpush2.msra.mxu0 0.0
  %4985 = vmatprep.subr.mxu0 0.0
  %4986 = vmatpush2.msra.mxu0 0.0
  %4987 = vmatprep.subr.mxu0 0.0
  %4988 = vmatpush2.msra.mxu0 0.0
  %4989 = vmatprep.subr.mxu0 0.0
  %4990 = vmatpush2.msra.mxu0 0.0
  %4991 = vmatprep.subr.mxu0 0.0
  %4992 = vmatpush2.msra.mxu0 0.0
  %4993 = vmatprep.subr.mxu0 0.0
  %4994 = vmatpush2.msra.mxu0 0.0
  %4995 = vmatprep.mubr.f32.mxu0 0.0
  %4996 = vmatmul.mubr.f32.gmra.mxu0 %v4795
  %v4997 = vpop.f32.mrf.mxu0
  %v4998 = vadd.f32 0.0, %v4997
  %v4999 = vpop.f32.mrf.mxu0
  %v5000 = vadd.f32 0.0, %v4999
  %5001 = vdwg.mxu0
  %v5006 = vcombine.low %v4927, %v4929
  %v5007 = vcombine.high %v4927, %v4929
  %v5008 = vcombine.low %v4998, %v5000
  %v5009 = vcombine.high %v4998, %v5000
  %v5011 = vunpack.c.l.s4 1966171168
  %v5012 = vunpack.c.0.s8 %v5011
  %v5013 = vlaneseq
  %v5014 = vshrl.u32 %v5013, 7
  %v5015 = vsub.s32 %v5012, %v5014
  %v5016 = vrot.slane %v5006, %v5015
  %v5018 = vunpack.c.l.s4 1966171168
  %v5019 = vunpack.c.0.s8 %v5018
  %v5020 = vlaneseq
  %v5021 = vshrl.u32 %v5020, 7
  %v5022 = vsub.s32 %v5019, %v5021
  %v5023 = vrot.slane %v5007, %v5022
  %v5025 = vunpack.c.l.s4 1966171168
  %v5026 = vunpack.c.0.s8 %v5025
  %v5027 = vlaneseq
  %v5028 = vshrl.u32 %v5027, 7
  %v5029 = vsub.s32 %v5026, %v5028
  %v5030 = vrot.slane %v5008, %v5029
  %v5032 = vunpack.c.l.s4 1966171168
  %v5033 = vunpack.c.0.s8 %v5032
  %v5034 = vlaneseq
  %v5035 = vshrl.u32 %v5034, 7
  %v5036 = vsub.s32 %v5033, %v5035
  %v5037 = vrot.slane %v5009, %v5036
  %v5038 = vcombine.low %v5016, %v5030
  %v5039 = vcombine.high %v5016, %v5030
  %v5040 = vcombine.low %v5023, %v5037
  %v5041 = vcombine.high %v5023, %v5037
  %v5043 = vunpack.c.l.s4 1966171168
  %v5044 = vunpack.c.0.s8 %v5043
  %v5045 = vlaneseq
  %v5046 = vshrl.u32 %v5045, 7
  %v5047 = vsub.s32 %v5044, %v5046
  %v5048 = vrot.slane %v5038, %v5047
  %v5050 = vunpack.c.l.s4 1966171168
  %v5051 = vunpack.c.0.s8 %v5050
  %v5052 = vlaneseq
  %v5053 = vshrl.u32 %v5052, 7
  %v5054 = vsub.s32 %v5051, %v5053
  %v5055 = vrot.slane %v5040, %v5054
  %v5057 = vunpack.c.l.s4 1966171168
  %v5058 = vunpack.c.0.s8 %v5057
  %v5059 = vlaneseq
  %v5060 = vshrl.u32 %v5059, 7
  %v5061 = vsub.s32 %v5058, %v5060
  %v5062 = vrot.slane %v5039, %v5061
  %v5064 = vunpack.c.l.s4 1966171168
  %v5065 = vunpack.c.0.s8 %v5064
  %v5066 = vlaneseq
  %v5067 = vshrl.u32 %v5066, 7
  %v5068 = vsub.s32 %v5065, %v5067
  %v5069 = vrot.slane %v5041, %v5068
  %v5070 = vcombine.high %v5048, %v5048
  %v5071 = vcombine.high %v5055, %v5055
  %v5072 = vcombine.high %v5062, %v5062
  %v5073 = vcombine.high %v5069, %v5069
  %v5082 = vadd.f32 %v4780, %v5048
  %v5083 = vadd.f32 %v4782, %v5062
  %v5084 = vadd.f32 %v4784, %v5070
  %v5085 = vadd.f32 %v4786, %v5072
  %v5086 = vadd.f32 %v4788, %v5055
  %v5087 = vadd.f32 %v4790, %v5069
  %v5088 = vadd.f32 %v4792, %v5071
  %v5089 = vadd.f32 %v4794, %v5073
  %v5090 = vxor.u32 %v5082, 2147483648
  %v5091 = vxor.u32 %v5083, 2147483648
  %v5092 = vxor.u32 %v5084, 2147483648
  %v5093 = vxor.u32 %v5085, 2147483648
  %v5094 = vxor.u32 %v5086, 2147483648
  %v5095 = vxor.u32 %v5087, 2147483648
  %v5096 = vxor.u32 %v5088, 2147483648
  %v5097 = vxor.u32 %v5089, 2147483648
  %v5098 = vmul.f32 %v5090, 1.442695
  %v5099 = vpow.pop %v5098
  %v5100 = vmul.f32 %v5091, 1.442695
  %v5101 = vpow.pop %v5100
  %v5102 = vmul.f32 %v5092, 1.442695
  %v5103 = vpow.pop %v5102
  %v5104 = vmul.f32 %v5093, 1.442695
  %v5105 = vpow.pop %v5104
  %v5106 = vmul.f32 %v5094, 1.442695
  %v5107 = vpow.pop %v5106
  %v5108 = vmul.f32 %v5095, 1.442695
  %v5109 = vpow.pop %v5108
  %v5110 = vmul.f32 %v5096, 1.442695
  %v5111 = vpow.pop %v5110
  %v5112 = vmul.f32 %v5097, 1.442695
  %v5113 = vpow.pop %v5112
  %v5114 = vadd.f32 %v5099, 1.0
  %v5115 = vadd.f32 %v5101, 1.0
  %v5116 = vadd.f32 %v5103, 1.0
  %v5117 = vadd.f32 %v5105, 1.0
  %v5118 = vadd.f32 %v5107, 1.0
  %v5119 = vadd.f32 %v5109, 1.0
  %v5120 = vadd.f32 %v5111, 1.0
  %v5121 = vadd.f32 %v5113, 1.0
  %v5122 = vrcp.pop %v5114
  %v5123 = vmul.f32 1.0, %v5122
  %v5124 = vrcp.pop %v5115
  %v5125 = vmul.f32 1.0, %v5124
  %v5126 = vrcp.pop %v5116
  %v5127 = vmul.f32 1.0, %v5126
  %v5128 = vrcp.pop %v5117
  %v5129 = vmul.f32 1.0, %v5128
  %v5130 = vrcp.pop %v5118
  %v5131 = vmul.f32 1.0, %v5130
  %v5132 = vrcp.pop %v5119
  %v5133 = vmul.f32 1.0, %v5132
  %v5134 = vrcp.pop %v5120
  %v5135 = vmul.f32 1.0, %v5134
  %v5136 = vrcp.pop %v5121
  %v5137 = vmul.f32 1.0, %v5136
  %v5146 = vrot.slane %v5082, 3
  %v5147 = vrot.slane %v5083, 3
  %v5148 = vrot.slane %v5084, 3
  %v5149 = vrot.slane %v5085, 3
  %v5150 = vrot.slane %v5086, 3
  %v5151 = vrot.slane %v5087, 3
  %v5152 = vrot.slane %v5088, 3
  %v5153 = vrot.slane %v5089, 3
  %v5162 = vtanh.pop %v5146
  %v5163 = vtanh.pop %v5147
  %v5164 = vtanh.pop %v5148
  %v5165 = vtanh.pop %v5149
  %v5166 = vtanh.pop %v5150
  %v5167 = vtanh.pop %v5151
  %v5168 = vtanh.pop %v5152
  %v5169 = vtanh.pop %v5153
  %v5170 = vld [vmem:[#allocation3] sm:$0xff]
  %v5179 = vrot.slane %v5123, 1
  %v5180 = vrot.slane %v5125, 1
  %v5181 = vrot.slane %v5127, 1
  %v5182 = vrot.slane %v5129, 1
  %v5183 = vrot.slane %v5131, 1
  %v5184 = vrot.slane %v5133, 1
  %v5185 = vrot.slane %v5135, 1
  %v5186 = vrot.slane %v5137, 1
  %v5196 = vcombine.high %v5170, %v5170
  %v5198 = vunpack.c.l.s4 1966171168
  %v5199 = vunpack.c.0.s8 %v5198
  %v5200 = vlaneseq
  %v5201 = vshrl.u32 %v5200, 7
  %v5202 = vsub.s32 %v5199, %v5201
  %v5203 = vrot.slane %v5170, %v5202
  %v5205 = vunpack.c.l.s4 1966171168
  %v5206 = vunpack.c.0.s8 %v5205
  %v5207 = vlaneseq
  %v5208 = vshrl.u32 %v5207, 7
  %v5209 = vsub.s32 %v5206, %v5208
  %v5210 = vrot.slane %v5196, %v5209
  %v5211 = vcombine.high %v5203, %v5203
  %v5212 = vcombine.high %v5210, %v5210
  %v5214 = vunpack.c.l.s4 1966171168
  %v5215 = vunpack.c.0.s8 %v5214
  %v5216 = vlaneseq
  %v5217 = vshrl.u32 %v5216, 7
  %v5218 = vsub.s32 %v5215, %v5217
  %v5219 = vrot.slane %v5203, %v5218
  %v5221 = vunpack.c.l.s4 1966171168
  %v5222 = vunpack.c.0.s8 %v5221
  %v5223 = vlaneseq
  %v5224 = vshrl.u32 %v5223, 7
  %v5225 = vsub.s32 %v5222, %v5224
  %v5226 = vrot.slane %v5210, %v5225
  %v5228 = vunpack.c.l.s4 1966171168
  %v5229 = vunpack.c.0.s8 %v5228
  %v5230 = vlaneseq
  %v5231 = vshrl.u32 %v5230, 7
  %v5232 = vsub.s32 %v5229, %v5231
  %v5233 = vrot.slane %v5211, %v5232
  %v5235 = vunpack.c.l.s4 1966171168
  %v5236 = vunpack.c.0.s8 %v5235
  %v5237 = vlaneseq
  %v5238 = vshrl.u32 %v5237, 7
  %v5239 = vsub.s32 %v5236, %v5238
  %v5240 = vrot.slane %v5212, %v5239
  %v5241 = vcombine.high %v5219, %v5219
  %v5242 = vcombine.high %v5226, %v5226
  %v5243 = vcombine.high %v5233, %v5233
  %v5244 = vcombine.high %v5240, %v5240
  %v5253 = vmul.f32 %v5179, %v5219
  %v5254 = vmul.f32 %v5180, %v5233
  %v5255 = vmul.f32 %v5181, %v5241
  %v5256 = vmul.f32 %v5182, %v5243
  %v5257 = vmul.f32 %v5183, %v5226
  %v5258 = vmul.f32 %v5184, %v5240
  %v5259 = vmul.f32 %v5185, %v5242
  %v5260 = vmul.f32 %v5186, %v5244
  %v5261 = vmul.f32 %v5123, %v5162
  %v5262 = vmul.f32 %v5125, %v5163
  %v5263 = vmul.f32 %v5127, %v5164
  %v5264 = vmul.f32 %v5129, %v5165
  %v5265 = vmul.f32 %v5131, %v5166
  %v5266 = vmul.f32 %v5133, %v5167
  %v5267 = vmul.f32 %v5135, %v5168
  %v5268 = vmul.f32 %v5137, %v5169
  %v5269 = vadd.f32 %v5253, %v5261
  %v5270 = vadd.f32 %v5254, %v5262
  %v5271 = vadd.f32 %v5255, %v5263
  %v5272 = vadd.f32 %v5256, %v5264
  %v5273 = vadd.f32 %v5257, %v5265
  %v5274 = vadd.f32 %v5258, %v5266
  %v5275 = vadd.f32 %v5259, %v5267
  %v5276 = vadd.f32 %v5260, %v5268
  %v5277 = vtanh.pop %v5269
  %v5278 = vtanh.pop %v5270
  %v5279 = vtanh.pop %v5271
  %v5280 = vtanh.pop %v5272
  %v5281 = vtanh.pop %v5273
  %v5282 = vtanh.pop %v5274
  %v5283 = vtanh.pop %v5275
  %v5284 = vtanh.pop %v5276
  %v5285 = vrot.slane %v5123, 2
  %v5286 = vrot.slane %v5125, 2
  %v5287 = vrot.slane %v5127, 2
  %v5288 = vrot.slane %v5129, 2
  %v5289 = vrot.slane %v5131, 2
  %v5290 = vrot.slane %v5133, 2
  %v5291 = vrot.slane %v5135, 2
  %v5292 = vrot.slane %v5137, 2
  %v5301 = vmul.f32 %v5285, %v5277
  %v5302 = vmul.f32 %v5286, %v5278
  %v5303 = vmul.f32 %v5287, %v5279
  %v5304 = vmul.f32 %v5288, %v5280
  %v5305 = vmul.f32 %v5289, %v5281
  %v5306 = vmul.f32 %v5290, %v5282
  %v5307 = vmul.f32 %v5291, %v5283
  %v5308 = vmul.f32 %v5292, %v5284
  %v5317 = vcombine.low %v5269, %v5270
  %v5318 = vcombine.low %v5271, %v5272
  %v5319 = vcombine.low %v5273, %v5274
  %v5320 = vcombine.low %v5275, %v5276
  %v5322 = vunpack.c.l.s4 1966171168
  %v5323 = vunpack.c.0.s8 %v5322
  %v5324 = vlaneseq
  %v5325 = vshrl.u32 %v5324, 7
  %v5326 = vsub.s32 %v5323, %v5325
  %v5327 = vrot.slane %v5317, %v5326
  %v5329 = vunpack.c.l.s4 1966171168
  %v5330 = vunpack.c.0.s8 %v5329
  %v5331 = vlaneseq
  %v5332 = vshrl.u32 %v5331, 7
  %v5333 = vsub.s32 %v5330, %v5332
  %v5334 = vrot.slane %v5318, %v5333
  %v5336 = vunpack.c.l.s4 1966171168
  %v5337 = vunpack.c.0.s8 %v5336
  %v5338 = vlaneseq
  %v5339 = vshrl.u32 %v5338, 7
  %v5340 = vsub.s32 %v5337, %v5339
  %v5341 = vrot.slane %v5319, %v5340
  %v5343 = vunpack.c.l.s4 1966171168
  %v5344 = vunpack.c.0.s8 %v5343
  %v5345 = vlaneseq
  %v5346 = vshrl.u32 %v5345, 7
  %v5347 = vsub.s32 %v5344, %v5346
  %v5348 = vrot.slane %v5320, %v5347
  %v5349 = vcombine.low %v5327, %v5334
  %v5350 = vcombine.low %v5341, %v5348
  %v5352 = vunpack.c.l.s4 1966171168
  %v5353 = vunpack.c.0.s8 %v5352
  %v5354 = vlaneseq
  %v5355 = vshrl.u32 %v5354, 7
  %v5356 = vsub.s32 %v5353, %v5355
  %v5357 = vrot.slane %v5349, %v5356
  %v5359 = vunpack.c.l.s4 1966171168
  %v5360 = vunpack.c.0.s8 %v5359
  %v5361 = vlaneseq
  %v5362 = vshrl.u32 %v5361, 7
  %v5363 = vsub.s32 %v5360, %v5362
  %v5364 = vrot.slane %v5350, %v5363
  %v5365 = vcombine.low %v5357, %v5364
  %5367 = vst [vmem:[#allocation3] sm:$0xff] %v5365
  %v5376 = vcombine.low %v5301, %v5302
  %v5377 = vcombine.low %v5303, %v5304
  %v5378 = vcombine.low %v5305, %v5306
  %v5379 = vcombine.low %v5307, %v5308
  %v5381 = vunpack.c.l.s4 1966171168
  %v5382 = vunpack.c.0.s8 %v5381
  %v5383 = vlaneseq
  %v5384 = vshrl.u32 %v5383, 7
  %v5385 = vsub.s32 %v5382, %v5384
  %v5386 = vrot.slane %v5376, %v5385
  %v5388 = vunpack.c.l.s4 1966171168
  %v5389 = vunpack.c.0.s8 %v5388
  %v5390 = vlaneseq
  %v5391 = vshrl.u32 %v5390, 7
  %v5392 = vsub.s32 %v5389, %v5391
  %v5393 = vrot.slane %v5377, %v5392
  %v5395 = vunpack.c.l.s4 1966171168
  %v5396 = vunpack.c.0.s8 %v5395
  %v5397 = vlaneseq
  %v5398 = vshrl.u32 %v5397, 7
  %v5399 = vsub.s32 %v5396, %v5398
  %v5400 = vrot.slane %v5378, %v5399
  %v5402 = vunpack.c.l.s4 1966171168
  %v5403 = vunpack.c.0.s8 %v5402
  %v5404 = vlaneseq
  %v5405 = vshrl.u32 %v5404, 7
  %v5406 = vsub.s32 %v5403, %v5405
  %v5407 = vrot.slane %v5379, %v5406
  %v5408 = vcombine.low %v5386, %v5393
  %v5409 = vcombine.low %v5400, %v5407
  %v5411 = vunpack.c.l.s4 1966171168
  %v5412 = vunpack.c.0.s8 %v5411
  %v5413 = vlaneseq
  %v5414 = vshrl.u32 %v5413, 7
  %v5415 = vsub.s32 %v5412, %v5414
  %v5416 = vrot.slane %v5408, %v5415
  %v5418 = vunpack.c.l.s4 1966171168
  %v5419 = vunpack.c.0.s8 %v5418
  %v5420 = vlaneseq
  %v5421 = vshrl.u32 %v5420, 7
  %v5422 = vsub.s32 %v5419, %v5421
  %v5423 = vrot.slane %v5409, %v5422
  %v5424 = vcombine.low %v5416, %v5423
  %5426 = vst [vmem:[#allocation2] sm:$0xff] %v5424
  %5427 = vst [vmem:[%s2 + $0x7] sm:$0x1] %v5301
  %5428 = vst [vmem:[%s2 + $0x17] sm:$0x1] %v5302
  %5429 = vst [vmem:[%s2 + $0x27] sm:$0x1] %v5303
  %5430 = vst [vmem:[%s2 + $0x37] sm:$0x1] %v5304
  %5431 = vst [vmem:[%s2 + $0x47] sm:$0x1] %v5305
  %5432 = vst [vmem:[%s2 + $0x57] sm:$0x1] %v5306
  %5433 = vst [vmem:[%s2 + $0x67] sm:$0x1] %v5307
  %5434 = vst [vmem:[%s2 + $0x77] sm:$0x1] %v5308
  %s5435 = scalar_lea.vmem %s0, 32
  %v5436 = vld [vmem:[%s5435] ss:$8 sm:$0xf]
  %s5437 = scalar_lea.vmem %s0, 96
  %v5438 = vld [vmem:[%s5437] ss:$8 sm:$0xf]
  %s5439 = scalar_lea.vmem %s0, 160
  %v5440 = vld [vmem:[%s5439] ss:$8 sm:$0xf]
  %s5441 = scalar_lea.vmem %s0, 224
  %v5442 = vld [vmem:[%s5441] ss:$8 sm:$0xf]
  %s5443 = scalar_lea.vmem %s0, 288
  %v5444 = vld [vmem:[%s5443] ss:$8 sm:$0xf]
  %s5445 = scalar_lea.vmem %s0, 352
  %v5446 = vld [vmem:[%s5445] ss:$8 sm:$0xf]
  %s5447 = scalar_lea.vmem %s0, 416
  %v5448 = vld [vmem:[%s5447] ss:$8 sm:$0xf]
  %s5449 = scalar_lea.vmem %s0, 480
  %v5450 = vld [vmem:[%s5449] ss:$8 sm:$0xf]
  %v5451 = vld [vmem:[#allocation2] sm:$0xff]
  %v5452 = vld [vmem:[#allocation4] sm:$0xff]
  %v5453 = vld [vmem:[#allocation4 + $0x8] sm:$0xff]
  %v5454 = vld [vmem:[#allocation4 + $0x10] sm:$0xff]
  %v5455 = vld [vmem:[#allocation4 + $0x18] sm:$0xff]
  %v5456 = vld [vmem:[#allocation4 + $0x20] sm:$0xff]
  %v5457 = vld [vmem:[#allocation4 + $0x28] sm:$0xff]
  %v5458 = vld [vmem:[#allocation4 + $0x30] sm:$0xff]
  %v5459 = vld [vmem:[#allocation4 + $0x38] sm:$0xff]
  %v5460 = vld [vmem:[#allocation4 + $0x40] sm:$0xff]
  %v5461 = vld [vmem:[#allocation4 + $0x48] sm:$0xff]
  %v5462 = vld [vmem:[#allocation4 + $0x50] sm:$0xff]
  %v5463 = vld [vmem:[#allocation4 + $0x58] sm:$0xff]
  %v5464 = vld [vmem:[#allocation4 + $0x60] sm:$0xff]
  %v5465 = vld [vmem:[#allocation4 + $0x68] sm:$0xff]
  %v5466 = vld [vmem:[#allocation4 + $0x70] sm:$0xff]
  %v5467 = vld [vmem:[#allocation4 + $0x78] sm:$0xff]
  %v5468 = vld [vmem:[#allocation4 + $0x80] sm:$0xff]
  %v5469 = vld [vmem:[#allocation4 + $0x88] sm:$0xff]
  %v5470 = vld [vmem:[#allocation4 + $0x90] sm:$0xff]
  %v5471 = vld [vmem:[#allocation4 + $0x98] sm:$0xff]
  %v5472 = vld [vmem:[#allocation4 + $0xa0] sm:$0xff]
  %v5473 = vld [vmem:[#allocation4 + $0xa8] sm:$0xff]
  %v5474 = vld [vmem:[#allocation4 + $0xb0] sm:$0xff]
  %v5475 = vld [vmem:[#allocation4 + $0xb8] sm:$0xff]
  %v5476 = vld [vmem:[#allocation4 + $0xc0] sm:$0xff]
  %v5477 = vld [vmem:[#allocation4 + $0xc8] sm:$0xff]
  %v5478 = vld [vmem:[#allocation4 + $0xd0] sm:$0xff]
  %v5479 = vld [vmem:[#allocation4 + $0xd8] sm:$0xff]
  %v5480 = vld [vmem:[#allocation4 + $0xe0] sm:$0xff]
  %v5481 = vld [vmem:[#allocation4 + $0xe8] sm:$0xff]
  %v5482 = vld [vmem:[#allocation4 + $0xf0] sm:$0xff]
  %v5483 = vld [vmem:[#allocation4 + $0xf8] sm:$0xff]
  %v5484 = vld [vmem:[#allocation4 + $0x100] sm:$0xff]
  %v5485 = vld [vmem:[#allocation4 + $0x108] sm:$0xff]
  %v5486 = vld [vmem:[#allocation4 + $0x110] sm:$0xff]
  %v5487 = vld [vmem:[#allocation4 + $0x118] sm:$0xff]
  %v5488 = vld [vmem:[#allocation4 + $0x120] sm:$0xff]
  %v5489 = vld [vmem:[#allocation4 + $0x128] sm:$0xff]
  %v5490 = vld [vmem:[#allocation4 + $0x130] sm:$0xff]
  %v5491 = vld [vmem:[#allocation4 + $0x138] sm:$0xff]
  %v5492 = vld [vmem:[#allocation4 + $0x140] sm:$0xff]
  %v5493 = vld [vmem:[#allocation4 + $0x148] sm:$0xff]
  %v5494 = vld [vmem:[#allocation4 + $0x150] sm:$0xff]
  %v5495 = vld [vmem:[#allocation4 + $0x158] sm:$0xff]
  %v5496 = vld [vmem:[#allocation4 + $0x160] sm:$0xff]
  %v5497 = vld [vmem:[#allocation4 + $0x168] sm:$0xff]
  %v5498 = vld [vmem:[#allocation4 + $0x170] sm:$0xff]
  %v5499 = vld [vmem:[#allocation4 + $0x178] sm:$0xff]
  %v5500 = vld [vmem:[#allocation4 + $0x180] sm:$0xff]
  %v5501 = vld [vmem:[#allocation4 + $0x188] sm:$0xff]
  %v5502 = vld [vmem:[#allocation4 + $0x190] sm:$0xff]
  %v5503 = vld [vmem:[#allocation4 + $0x198] sm:$0xff]
  %v5504 = vld [vmem:[#allocation4 + $0x1a0] sm:$0xff]
  %v5505 = vld [vmem:[#allocation4 + $0x1a8] sm:$0xff]
  %v5506 = vld [vmem:[#allocation4 + $0x1b0] sm:$0xff]
  %v5507 = vld [vmem:[#allocation4 + $0x1b8] sm:$0xff]
  %v5508 = vld [vmem:[#allocation4 + $0x1c0] sm:$0xff]
  %v5509 = vld [vmem:[#allocation4 + $0x1c8] sm:$0xff]
  %v5510 = vld [vmem:[#allocation4 + $0x1d0] sm:$0xff]
  %v5511 = vld [vmem:[#allocation4 + $0x1d8] sm:$0xff]
  %v5512 = vld [vmem:[#allocation4 + $0x1e0] sm:$0xff]
  %v5513 = vld [vmem:[#allocation4 + $0x1e8] sm:$0xff]
  %v5514 = vld [vmem:[#allocation4 + $0x1f0] sm:$0xff]
  %v5515 = vld [vmem:[#allocation4 + $0x1f8] sm:$0xff]
  %5516 = vmatprep.subr.mxu0 %v5513
  %5517 = vmatpush1.msra.mxu0 %v5512
  %5518 = vmatprep.subr.mxu0 %v5509
  %5519 = vmatpush1.msra.mxu0 %v5508
  %5520 = vmatprep.subr.mxu0 %v5505
  %5521 = vmatpush1.msra.mxu0 %v5504
  %5522 = vmatprep.subr.mxu0 %v5501
  %5523 = vmatpush1.msra.mxu0 %v5500
  %5524 = vmatprep.subr.mxu0 %v5497
  %5525 = vmatpush1.msra.mxu0 %v5496
  %5526 = vmatprep.subr.mxu0 %v5493
  %5527 = vmatpush1.msra.mxu0 %v5492
  %5528 = vmatprep.subr.mxu0 %v5489
  %5529 = vmatpush1.msra.mxu0 %v5488
  %5530 = vmatprep.subr.mxu0 %v5485
  %5531 = vmatpush1.msra.mxu0 %v5484
  %5532 = vmatprep.subr.mxu0 %v5481
  %5533 = vmatpush1.msra.mxu0 %v5480
  %5534 = vmatprep.subr.mxu0 %v5477
  %5535 = vmatpush1.msra.mxu0 %v5476
  %5536 = vmatprep.subr.mxu0 %v5473
  %5537 = vmatpush1.msra.mxu0 %v5472
  %5538 = vmatprep.subr.mxu0 %v5469
  %5539 = vmatpush1.msra.mxu0 %v5468
  %5540 = vmatprep.subr.mxu0 %v5465
  %5541 = vmatpush1.msra.mxu0 %v5464
  %5542 = vmatprep.subr.mxu0 %v5461
  %5543 = vmatpush1.msra.mxu0 %v5460
  %5544 = vmatprep.subr.mxu0 %v5457
  %5545 = vmatpush1.msra.mxu0 %v5456
  %5546 = vmatprep.subr.mxu0 %v5453
  %5547 = vmatpush1.msra.mxu0 %v5452
  %5548 = vmatprep.subr.mxu0 0.0
  %5549 = vmatpush2.msra.mxu0 0.0
  %5550 = vmatprep.subr.mxu0 0.0
  %5551 = vmatpush2.msra.mxu0 0.0
  %5552 = vmatprep.subr.mxu0 0.0
  %5553 = vmatpush2.msra.mxu0 0.0
  %5554 = vmatprep.subr.mxu0 0.0
  %5555 = vmatpush2.msra.mxu0 0.0
  %5556 = vmatprep.subr.mxu0 0.0
  %5557 = vmatpush2.msra.mxu0 0.0
  %5558 = vmatprep.subr.mxu0 0.0
  %5559 = vmatpush2.msra.mxu0 0.0
  %5560 = vmatprep.subr.mxu0 0.0
  %5561 = vmatpush2.msra.mxu0 0.0
  %5562 = vmatprep.subr.mxu0 0.0
  %5563 = vmatpush2.msra.mxu0 0.0
  %5564 = vmatprep.subr.mxu0 0.0
  %5565 = vmatpush2.msra.mxu0 0.0
  %5566 = vmatprep.subr.mxu0 0.0
  %5567 = vmatpush2.msra.mxu0 0.0
  %5568 = vmatprep.subr.mxu0 0.0
  %5569 = vmatpush2.msra.mxu0 0.0
  %5570 = vmatprep.subr.mxu0 0.0
  %5571 = vmatpush2.msra.mxu0 0.0
  %5572 = vmatprep.subr.mxu0 0.0
  %5573 = vmatpush2.msra.mxu0 0.0
  %5574 = vmatprep.subr.mxu0 0.0
  %5575 = vmatpush2.msra.mxu0 0.0
  %5576 = vmatprep.subr.mxu0 0.0
  %5577 = vmatpush2.msra.mxu0 0.0
  %5578 = vmatprep.subr.mxu0 0.0
  %5579 = vmatpush2.msra.mxu0 0.0
  %5580 = vmatprep.mubr.f32.mxu0 0.0
  %5581 = vmatmul.mubr.f32.gmra.mxu0 %v5451
  %v5582 = vpop.f32.mrf.mxu0
  %v5583 = vadd.f32 0.0, %v5582
  %v5584 = vpop.f32.mrf.mxu0
  %v5585 = vadd.f32 0.0, %v5584
  %5586 = vdwg.mxu0
  %5587 = vmatprep.subr.mxu0 %v5515
  %5588 = vmatpush1.msra.mxu0 %v5514
  %5589 = vmatprep.subr.mxu0 %v5511
  %5590 = vmatpush1.msra.mxu0 %v5510
  %5591 = vmatprep.subr.mxu0 %v5507
  %5592 = vmatpush1.msra.mxu0 %v5506
  %5593 = vmatprep.subr.mxu0 %v5503
  %5594 = vmatpush1.msra.mxu0 %v5502
  %5595 = vmatprep.subr.mxu0 %v5499
  %5596 = vmatpush1.msra.mxu0 %v5498
  %5597 = vmatprep.subr.mxu0 %v5495
  %5598 = vmatpush1.msra.mxu0 %v5494
  %5599 = vmatprep.subr.mxu0 %v5491
  %5600 = vmatpush1.msra.mxu0 %v5490
  %5601 = vmatprep.subr.mxu0 %v5487
  %5602 = vmatpush1.msra.mxu0 %v5486
  %5603 = vmatprep.subr.mxu0 %v5483
  %5604 = vmatpush1.msra.mxu0 %v5482
  %5605 = vmatprep.subr.mxu0 %v5479
  %5606 = vmatpush1.msra.mxu0 %v5478
  %5607 = vmatprep.subr.mxu0 %v5475
  %5608 = vmatpush1.msra.mxu0 %v5474
  %5609 = vmatprep.subr.mxu0 %v5471
  %5610 = vmatpush1.msra.mxu0 %v5470
  %5611 = vmatprep.subr.mxu0 %v5467
  %5612 = vmatpush1.msra.mxu0 %v5466
  %5613 = vmatprep.subr.mxu0 %v5463
  %5614 = vmatpush1.msra.mxu0 %v5462
  %5615 = vmatprep.subr.mxu0 %v5459
  %5616 = vmatpush1.msra.mxu0 %v5458
  %5617 = vmatprep.subr.mxu0 %v5455
  %5618 = vmatpush1.msra.mxu0 %v5454
  %5619 = vmatprep.subr.mxu0 0.0
  %5620 = vmatpush2.msra.mxu0 0.0
  %5621 = vmatprep.subr.mxu0 0.0
  %5622 = vmatpush2.msra.mxu0 0.0
  %5623 = vmatprep.subr.mxu0 0.0
  %5624 = vmatpush2.msra.mxu0 0.0
  %5625 = vmatprep.subr.mxu0 0.0
  %5626 = vmatpush2.msra.mxu0 0.0
  %5627 = vmatprep.subr.mxu0 0.0
  %5628 = vmatpush2.msra.mxu0 0.0
  %5629 = vmatprep.subr.mxu0 0.0
  %5630 = vmatpush2.msra.mxu0 0.0
  %5631 = vmatprep.subr.mxu0 0.0
  %5632 = vmatpush2.msra.mxu0 0.0
  %5633 = vmatprep.subr.mxu0 0.0
  %5634 = vmatpush2.msra.mxu0 0.0
  %5635 = vmatprep.subr.mxu0 0.0
  %5636 = vmatpush2.msra.mxu0 0.0
  %5637 = vmatprep.subr.mxu0 0.0
  %5638 = vmatpush2.msra.mxu0 0.0
  %5639 = vmatprep.subr.mxu0 0.0
  %5640 = vmatpush2.msra.mxu0 0.0
  %5641 = vmatprep.subr.mxu0 0.0
  %5642 = vmatpush2.msra.mxu0 0.0
  %5643 = vmatprep.subr.mxu0 0.0
  %5644 = vmatpush2.msra.mxu0 0.0
  %5645 = vmatprep.subr.mxu0 0.0
  %5646 = vmatpush2.msra.mxu0 0.0
  %5647 = vmatprep.subr.mxu0 0.0
  %5648 = vmatpush2.msra.mxu0 0.0
  %5649 = vmatprep.subr.mxu0 0.0
  %5650 = vmatpush2.msra.mxu0 0.0
  %5651 = vmatprep.mubr.f32.mxu0 0.0
  %5652 = vmatmul.mubr.f32.gmra.mxu0 %v5451
  %v5653 = vpop.f32.mrf.mxu0
  %v5654 = vadd.f32 0.0, %v5653
  %v5655 = vpop.f32.mrf.mxu0
  %v5656 = vadd.f32 0.0, %v5655
  %5657 = vdwg.mxu0
  %v5662 = vcombine.low %v5583, %v5585
  %v5663 = vcombine.high %v5583, %v5585
  %v5664 = vcombine.low %v5654, %v5656
  %v5665 = vcombine.high %v5654, %v5656
  %v5667 = vunpack.c.l.s4 1966171168
  %v5668 = vunpack.c.0.s8 %v5667
  %v5669 = vlaneseq
  %v5670 = vshrl.u32 %v5669, 7
  %v5671 = vsub.s32 %v5668, %v5670
  %v5672 = vrot.slane %v5662, %v5671
  %v5674 = vunpack.c.l.s4 1966171168
  %v5675 = vunpack.c.0.s8 %v5674
  %v5676 = vlaneseq
  %v5677 = vshrl.u32 %v5676, 7
  %v5678 = vsub.s32 %v5675, %v5677
  %v5679 = vrot.slane %v5663, %v5678
  %v5681 = vunpack.c.l.s4 1966171168
  %v5682 = vunpack.c.0.s8 %v5681
  %v5683 = vlaneseq
  %v5684 = vshrl.u32 %v5683, 7
  %v5685 = vsub.s32 %v5682, %v5684
  %v5686 = vrot.slane %v5664, %v5685
  %v5688 = vunpack.c.l.s4 1966171168
  %v5689 = vunpack.c.0.s8 %v5688
  %v5690 = vlaneseq
  %v5691 = vshrl.u32 %v5690, 7
  %v5692 = vsub.s32 %v5689, %v5691
  %v5693 = vrot.slane %v5665, %v5692
  %v5694 = vcombine.low %v5672, %v5686
  %v5695 = vcombine.high %v5672, %v5686
  %v5696 = vcombine.low %v5679, %v5693
  %v5697 = vcombine.high %v5679, %v5693
  %v5699 = vunpack.c.l.s4 1966171168
  %v5700 = vunpack.c.0.s8 %v5699
  %v5701 = vlaneseq
  %v5702 = vshrl.u32 %v5701, 7
  %v5703 = vsub.s32 %v5700, %v5702
  %v5704 = vrot.slane %v5694, %v5703
  %v5706 = vunpack.c.l.s4 1966171168
  %v5707 = vunpack.c.0.s8 %v5706
  %v5708 = vlaneseq
  %v5709 = vshrl.u32 %v5708, 7
  %v5710 = vsub.s32 %v5707, %v5709
  %v5711 = vrot.slane %v5696, %v5710
  %v5713 = vunpack.c.l.s4 1966171168
  %v5714 = vunpack.c.0.s8 %v5713
  %v5715 = vlaneseq
  %v5716 = vshrl.u32 %v5715, 7
  %v5717 = vsub.s32 %v5714, %v5716
  %v5718 = vrot.slane %v5695, %v5717
  %v5720 = vunpack.c.l.s4 1966171168
  %v5721 = vunpack.c.0.s8 %v5720
  %v5722 = vlaneseq
  %v5723 = vshrl.u32 %v5722, 7
  %v5724 = vsub.s32 %v5721, %v5723
  %v5725 = vrot.slane %v5697, %v5724
  %v5726 = vcombine.high %v5704, %v5704
  %v5727 = vcombine.high %v5711, %v5711
  %v5728 = vcombine.high %v5718, %v5718
  %v5729 = vcombine.high %v5725, %v5725
  %v5738 = vadd.f32 %v5436, %v5704
  %v5739 = vadd.f32 %v5438, %v5718
  %v5740 = vadd.f32 %v5440, %v5726
  %v5741 = vadd.f32 %v5442, %v5728
  %v5742 = vadd.f32 %v5444, %v5711
  %v5743 = vadd.f32 %v5446, %v5725
  %v5744 = vadd.f32 %v5448, %v5727
  %v5745 = vadd.f32 %v5450, %v5729
  %v5746 = vxor.u32 %v5738, 2147483648
  %v5747 = vxor.u32 %v5739, 2147483648
  %v5748 = vxor.u32 %v5740, 2147483648
  %v5749 = vxor.u32 %v5741, 2147483648
  %v5750 = vxor.u32 %v5742, 2147483648
  %v5751 = vxor.u32 %v5743, 2147483648
  %v5752 = vxor.u32 %v5744, 2147483648
  %v5753 = vxor.u32 %v5745, 2147483648
  %v5754 = vmul.f32 %v5746, 1.442695
  %v5755 = vpow.pop %v5754
  %v5756 = vmul.f32 %v5747, 1.442695
  %v5757 = vpow.pop %v5756
  %v5758 = vmul.f32 %v5748, 1.442695
  %v5759 = vpow.pop %v5758
  %v5760 = vmul.f32 %v5749, 1.442695
  %v5761 = vpow.pop %v5760
  %v5762 = vmul.f32 %v5750, 1.442695
  %v5763 = vpow.pop %v5762
  %v5764 = vmul.f32 %v5751, 1.442695
  %v5765 = vpow.pop %v5764
  %v5766 = vmul.f32 %v5752, 1.442695
  %v5767 = vpow.pop %v5766
  %v5768 = vmul.f32 %v5753, 1.442695
  %v5769 = vpow.pop %v5768
  %v5770 = vadd.f32 %v5755, 1.0
  %v5771 = vadd.f32 %v5757, 1.0
  %v5772 = vadd.f32 %v5759, 1.0
  %v5773 = vadd.f32 %v5761, 1.0
  %v5774 = vadd.f32 %v5763, 1.0
  %v5775 = vadd.f32 %v5765, 1.0
  %v5776 = vadd.f32 %v5767, 1.0
  %v5777 = vadd.f32 %v5769, 1.0
  %v5778 = vrcp.pop %v5770
  %v5779 = vmul.f32 1.0, %v5778
  %v5780 = vrcp.pop %v5771
  %v5781 = vmul.f32 1.0, %v5780
  %v5782 = vrcp.pop %v5772
  %v5783 = vmul.f32 1.0, %v5782
  %v5784 = vrcp.pop %v5773
  %v5785 = vmul.f32 1.0, %v5784
  %v5786 = vrcp.pop %v5774
  %v5787 = vmul.f32 1.0, %v5786
  %v5788 = vrcp.pop %v5775
  %v5789 = vmul.f32 1.0, %v5788
  %v5790 = vrcp.pop %v5776
  %v5791 = vmul.f32 1.0, %v5790
  %v5792 = vrcp.pop %v5777
  %v5793 = vmul.f32 1.0, %v5792
  %v5802 = vrot.slane %v5738, 3
  %v5803 = vrot.slane %v5739, 3
  %v5804 = vrot.slane %v5740, 3
  %v5805 = vrot.slane %v5741, 3
  %v5806 = vrot.slane %v5742, 3
  %v5807 = vrot.slane %v5743, 3
  %v5808 = vrot.slane %v5744, 3
  %v5809 = vrot.slane %v5745, 3
  %v5818 = vtanh.pop %v5802
  %v5819 = vtanh.pop %v5803
  %v5820 = vtanh.pop %v5804
  %v5821 = vtanh.pop %v5805
  %v5822 = vtanh.pop %v5806
  %v5823 = vtanh.pop %v5807
  %v5824 = vtanh.pop %v5808
  %v5825 = vtanh.pop %v5809
  %v5826 = vld [vmem:[#allocation3] sm:$0xff]
  %v5835 = vrot.slane %v5779, 1
  %v5836 = vrot.slane %v5781, 1
  %v5837 = vrot.slane %v5783, 1
  %v5838 = vrot.slane %v5785, 1
  %v5839 = vrot.slane %v5787, 1
  %v5840 = vrot.slane %v5789, 1
  %v5841 = vrot.slane %v5791, 1
  %v5842 = vrot.slane %v5793, 1
  %v5852 = vcombine.high %v5826, %v5826
  %v5854 = vunpack.c.l.s4 1966171168
  %v5855 = vunpack.c.0.s8 %v5854
  %v5856 = vlaneseq
  %v5857 = vshrl.u32 %v5856, 7
  %v5858 = vsub.s32 %v5855, %v5857
  %v5859 = vrot.slane %v5826, %v5858
  %v5861 = vunpack.c.l.s4 1966171168
  %v5862 = vunpack.c.0.s8 %v5861
  %v5863 = vlaneseq
  %v5864 = vshrl.u32 %v5863, 7
  %v5865 = vsub.s32 %v5862, %v5864
  %v5866 = vrot.slane %v5852, %v5865
  %v5867 = vcombine.high %v5859, %v5859
  %v5868 = vcombine.high %v5866, %v5866
  %v5870 = vunpack.c.l.s4 1966171168
  %v5871 = vunpack.c.0.s8 %v5870
  %v5872 = vlaneseq
  %v5873 = vshrl.u32 %v5872, 7
  %v5874 = vsub.s32 %v5871, %v5873
  %v5875 = vrot.slane %v5859, %v5874
  %v5877 = vunpack.c.l.s4 1966171168
  %v5878 = vunpack.c.0.s8 %v5877
  %v5879 = vlaneseq
  %v5880 = vshrl.u32 %v5879, 7
  %v5881 = vsub.s32 %v5878, %v5880
  %v5882 = vrot.slane %v5866, %v5881
  %v5884 = vunpack.c.l.s4 1966171168
  %v5885 = vunpack.c.0.s8 %v5884
  %v5886 = vlaneseq
  %v5887 = vshrl.u32 %v5886, 7
  %v5888 = vsub.s32 %v5885, %v5887
  %v5889 = vrot.slane %v5867, %v5888
  %v5891 = vunpack.c.l.s4 1966171168
  %v5892 = vunpack.c.0.s8 %v5891
  %v5893 = vlaneseq
  %v5894 = vshrl.u32 %v5893, 7
  %v5895 = vsub.s32 %v5892, %v5894
  %v5896 = vrot.slane %v5868, %v5895
  %v5897 = vcombine.high %v5875, %v5875
  %v5898 = vcombine.high %v5882, %v5882
  %v5899 = vcombine.high %v5889, %v5889
  %v5900 = vcombine.high %v5896, %v5896
  %v5909 = vmul.f32 %v5835, %v5875
  %v5910 = vmul.f32 %v5836, %v5889
  %v5911 = vmul.f32 %v5837, %v5897
  %v5912 = vmul.f32 %v5838, %v5899
  %v5913 = vmul.f32 %v5839, %v5882
  %v5914 = vmul.f32 %v5840, %v5896
  %v5915 = vmul.f32 %v5841, %v5898
  %v5916 = vmul.f32 %v5842, %v5900
  %v5917 = vmul.f32 %v5779, %v5818
  %v5918 = vmul.f32 %v5781, %v5819
  %v5919 = vmul.f32 %v5783, %v5820
  %v5920 = vmul.f32 %v5785, %v5821
  %v5921 = vmul.f32 %v5787, %v5822
  %v5922 = vmul.f32 %v5789, %v5823
  %v5923 = vmul.f32 %v5791, %v5824
  %v5924 = vmul.f32 %v5793, %v5825
  %v5925 = vadd.f32 %v5909, %v5917
  %v5926 = vadd.f32 %v5910, %v5918
  %v5927 = vadd.f32 %v5911, %v5919
  %v5928 = vadd.f32 %v5912, %v5920
  %v5929 = vadd.f32 %v5913, %v5921
  %v5930 = vadd.f32 %v5914, %v5922
  %v5931 = vadd.f32 %v5915, %v5923
  %v5932 = vadd.f32 %v5916, %v5924
  %v5933 = vtanh.pop %v5925
  %v5934 = vtanh.pop %v5926
  %v5935 = vtanh.pop %v5927
  %v5936 = vtanh.pop %v5928
  %v5937 = vtanh.pop %v5929
  %v5938 = vtanh.pop %v5930
  %v5939 = vtanh.pop %v5931
  %v5940 = vtanh.pop %v5932
  %v5941 = vrot.slane %v5779, 2
  %v5942 = vrot.slane %v5781, 2
  %v5943 = vrot.slane %v5783, 2
  %v5944 = vrot.slane %v5785, 2
  %v5945 = vrot.slane %v5787, 2
  %v5946 = vrot.slane %v5789, 2
  %v5947 = vrot.slane %v5791, 2
  %v5948 = vrot.slane %v5793, 2
  %v5957 = vmul.f32 %v5941, %v5933
  %v5958 = vmul.f32 %v5942, %v5934
  %v5959 = vmul.f32 %v5943, %v5935
  %v5960 = vmul.f32 %v5944, %v5936
  %v5961 = vmul.f32 %v5945, %v5937
  %v5962 = vmul.f32 %v5946, %v5938
  %v5963 = vmul.f32 %v5947, %v5939
  %v5964 = vmul.f32 %v5948, %v5940
  %v5973 = vcombine.low %v5925, %v5926
  %v5974 = vcombine.low %v5927, %v5928
  %v5975 = vcombine.low %v5929, %v5930
  %v5976 = vcombine.low %v5931, %v5932
  %v5978 = vunpack.c.l.s4 1966171168
  %v5979 = vunpack.c.0.s8 %v5978
  %v5980 = vlaneseq
  %v5981 = vshrl.u32 %v5980, 7
  %v5982 = vsub.s32 %v5979, %v5981
  %v5983 = vrot.slane %v5973, %v5982
  %v5985 = vunpack.c.l.s4 1966171168
  %v5986 = vunpack.c.0.s8 %v5985
  %v5987 = vlaneseq
  %v5988 = vshrl.u32 %v5987, 7
  %v5989 = vsub.s32 %v5986, %v5988
  %v5990 = vrot.slane %v5974, %v5989
  %v5992 = vunpack.c.l.s4 1966171168
  %v5993 = vunpack.c.0.s8 %v5992
  %v5994 = vlaneseq
  %v5995 = vshrl.u32 %v5994, 7
  %v5996 = vsub.s32 %v5993, %v5995
  %v5997 = vrot.slane %v5975, %v5996
  %v5999 = vunpack.c.l.s4 1966171168
  %v6000 = vunpack.c.0.s8 %v5999
  %v6001 = vlaneseq
  %v6002 = vshrl.u32 %v6001, 7
  %v6003 = vsub.s32 %v6000, %v6002
  %v6004 = vrot.slane %v5976, %v6003
  %v6005 = vcombine.low %v5983, %v5990
  %v6006 = vcombine.low %v5997, %v6004
  %v6008 = vunpack.c.l.s4 1966171168
  %v6009 = vunpack.c.0.s8 %v6008
  %v6010 = vlaneseq
  %v6011 = vshrl.u32 %v6010, 7
  %v6012 = vsub.s32 %v6009, %v6011
  %v6013 = vrot.slane %v6005, %v6012
  %v6015 = vunpack.c.l.s4 1966171168
  %v6016 = vunpack.c.0.s8 %v6015
  %v6017 = vlaneseq
  %v6018 = vshrl.u32 %v6017, 7
  %v6019 = vsub.s32 %v6016, %v6018
  %v6020 = vrot.slane %v6006, %v6019
  %v6021 = vcombine.low %v6013, %v6020
  %6023 = vst [vmem:[#allocation3] sm:$0xff] %v6021
  %v6032 = vcombine.low %v5957, %v5958
  %v6033 = vcombine.low %v5959, %v5960
  %v6034 = vcombine.low %v5961, %v5962
  %v6035 = vcombine.low %v5963, %v5964
  %v6037 = vunpack.c.l.s4 1966171168
  %v6038 = vunpack.c.0.s8 %v6037
  %v6039 = vlaneseq
  %v6040 = vshrl.u32 %v6039, 7
  %v6041 = vsub.s32 %v6038, %v6040
  %v6042 = vrot.slane %v6032, %v6041
  %v6044 = vunpack.c.l.s4 1966171168
  %v6045 = vunpack.c.0.s8 %v6044
  %v6046 = vlaneseq
  %v6047 = vshrl.u32 %v6046, 7
  %v6048 = vsub.s32 %v6045, %v6047
  %v6049 = vrot.slane %v6033, %v6048
  %v6051 = vunpack.c.l.s4 1966171168
  %v6052 = vunpack.c.0.s8 %v6051
  %v6053 = vlaneseq
  %v6054 = vshrl.u32 %v6053, 7
  %v6055 = vsub.s32 %v6052, %v6054
  %v6056 = vrot.slane %v6034, %v6055
  %v6058 = vunpack.c.l.s4 1966171168
  %v6059 = vunpack.c.0.s8 %v6058
  %v6060 = vlaneseq
  %v6061 = vshrl.u32 %v6060, 7
  %v6062 = vsub.s32 %v6059, %v6061
  %v6063 = vrot.slane %v6035, %v6062
  %v6064 = vcombine.low %v6042, %v6049
  %v6065 = vcombine.low %v6056, %v6063
  %v6067 = vunpack.c.l.s4 1966171168
  %v6068 = vunpack.c.0.s8 %v6067
  %v6069 = vlaneseq
  %v6070 = vshrl.u32 %v6069, 7
  %v6071 = vsub.s32 %v6068, %v6070
  %v6072 = vrot.slane %v6064, %v6071
  %v6074 = vunpack.c.l.s4 1966171168
  %v6075 = vunpack.c.0.s8 %v6074
  %v6076 = vlaneseq
  %v6077 = vshrl.u32 %v6076, 7
  %v6078 = vsub.s32 %v6075, %v6077
  %v6079 = vrot.slane %v6065, %v6078
  %v6080 = vcombine.low %v6072, %v6079
  %6082 = vst [vmem:[#allocation2] sm:$0xff] %v6080
  %6083 = vst [vmem:[%s2 + $0x8] sm:$0x1] %v5957
  %6084 = vst [vmem:[%s2 + $0x18] sm:$0x1] %v5958
  %6085 = vst [vmem:[%s2 + $0x28] sm:$0x1] %v5959
  %6086 = vst [vmem:[%s2 + $0x38] sm:$0x1] %v5960
  %6087 = vst [vmem:[%s2 + $0x48] sm:$0x1] %v5961
  %6088 = vst [vmem:[%s2 + $0x58] sm:$0x1] %v5962
  %6089 = vst [vmem:[%s2 + $0x68] sm:$0x1] %v5963
  %6090 = vst [vmem:[%s2 + $0x78] sm:$0x1] %v5964
  %s6091 = scalar_lea.vmem %s0, 33
  %v6092 = vld [vmem:[%s6091] ss:$8 sm:$0xf]
  %s6093 = scalar_lea.vmem %s0, 97
  %v6094 = vld [vmem:[%s6093] ss:$8 sm:$0xf]
  %s6095 = scalar_lea.vmem %s0, 161
  %v6096 = vld [vmem:[%s6095] ss:$8 sm:$0xf]
  %s6097 = scalar_lea.vmem %s0, 225
  %v6098 = vld [vmem:[%s6097] ss:$8 sm:$0xf]
  %s6099 = scalar_lea.vmem %s0, 289
  %v6100 = vld [vmem:[%s6099] ss:$8 sm:$0xf]
  %s6101 = scalar_lea.vmem %s0, 353
  %v6102 = vld [vmem:[%s6101] ss:$8 sm:$0xf]
  %s6103 = scalar_lea.vmem %s0, 417
  %v6104 = vld [vmem:[%s6103] ss:$8 sm:$0xf]
  %s6105 = scalar_lea.vmem %s0, 481
  %v6106 = vld [vmem:[%s6105] ss:$8 sm:$0xf]
  %v6107 = vld [vmem:[#allocation2] sm:$0xff]
  %v6108 = vld [vmem:[#allocation4] sm:$0xff]
  %v6109 = vld [vmem:[#allocation4 + $0x8] sm:$0xff]
  %v6110 = vld [vmem:[#allocation4 + $0x10] sm:$0xff]
  %v6111 = vld [vmem:[#allocation4 + $0x18] sm:$0xff]
  %v6112 = vld [vmem:[#allocation4 + $0x20] sm:$0xff]
  %v6113 = vld [vmem:[#allocation4 + $0x28] sm:$0xff]
  %v6114 = vld [vmem:[#allocation4 + $0x30] sm:$0xff]
  %v6115 = vld [vmem:[#allocation4 + $0x38] sm:$0xff]
  %v6116 = vld [vmem:[#allocation4 + $0x40] sm:$0xff]
  %v6117 = vld [vmem:[#allocation4 + $0x48] sm:$0xff]
  %v6118 = vld [vmem:[#allocation4 + $0x50] sm:$0xff]
  %v6119 = vld [vmem:[#allocation4 + $0x58] sm:$0xff]
  %v6120 = vld [vmem:[#allocation4 + $0x60] sm:$0xff]
  %v6121 = vld [vmem:[#allocation4 + $0x68] sm:$0xff]
  %v6122 = vld [vmem:[#allocation4 + $0x70] sm:$0xff]
  %v6123 = vld [vmem:[#allocation4 + $0x78] sm:$0xff]
  %v6124 = vld [vmem:[#allocation4 + $0x80] sm:$0xff]
  %v6125 = vld [vmem:[#allocation4 + $0x88] sm:$0xff]
  %v6126 = vld [vmem:[#allocation4 + $0x90] sm:$0xff]
  %v6127 = vld [vmem:[#allocation4 + $0x98] sm:$0xff]
  %v6128 = vld [vmem:[#allocation4 + $0xa0] sm:$0xff]
  %v6129 = vld [vmem:[#allocation4 + $0xa8] sm:$0xff]
  %v6130 = vld [vmem:[#allocation4 + $0xb0] sm:$0xff]
  %v6131 = vld [vmem:[#allocation4 + $0xb8] sm:$0xff]
  %v6132 = vld [vmem:[#allocation4 + $0xc0] sm:$0xff]
  %v6133 = vld [vmem:[#allocation4 + $0xc8] sm:$0xff]
  %v6134 = vld [vmem:[#allocation4 + $0xd0] sm:$0xff]
  %v6135 = vld [vmem:[#allocation4 + $0xd8] sm:$0xff]
  %v6136 = vld [vmem:[#allocation4 + $0xe0] sm:$0xff]
  %v6137 = vld [vmem:[#allocation4 + $0xe8] sm:$0xff]
  %v6138 = vld [vmem:[#allocation4 + $0xf0] sm:$0xff]
  %v6139 = vld [vmem:[#allocation4 + $0xf8] sm:$0xff]
  %v6140 = vld [vmem:[#allocation4 + $0x100] sm:$0xff]
  %v6141 = vld [vmem:[#allocation4 + $0x108] sm:$0xff]
  %v6142 = vld [vmem:[#allocation4 + $0x110] sm:$0xff]
  %v6143 = vld [vmem:[#allocation4 + $0x118] sm:$0xff]
  %v6144 = vld [vmem:[#allocation4 + $0x120] sm:$0xff]
  %v6145 = vld [vmem:[#allocation4 + $0x128] sm:$0xff]
  %v6146 = vld [vmem:[#allocation4 + $0x130] sm:$0xff]
  %v6147 = vld [vmem:[#allocation4 + $0x138] sm:$0xff]
  %v6148 = vld [vmem:[#allocation4 + $0x140] sm:$0xff]
  %v6149 = vld [vmem:[#allocation4 + $0x148] sm:$0xff]
  %v6150 = vld [vmem:[#allocation4 + $0x150] sm:$0xff]
  %v6151 = vld [vmem:[#allocation4 + $0x158] sm:$0xff]
  %v6152 = vld [vmem:[#allocation4 + $0x160] sm:$0xff]
  %v6153 = vld [vmem:[#allocation4 + $0x168] sm:$0xff]
  %v6154 = vld [vmem:[#allocation4 + $0x170] sm:$0xff]
  %v6155 = vld [vmem:[#allocation4 + $0x178] sm:$0xff]
  %v6156 = vld [vmem:[#allocation4 + $0x180] sm:$0xff]
  %v6157 = vld [vmem:[#allocation4 + $0x188] sm:$0xff]
  %v6158 = vld [vmem:[#allocation4 + $0x190] sm:$0xff]
  %v6159 = vld [vmem:[#allocation4 + $0x198] sm:$0xff]
  %v6160 = vld [vmem:[#allocation4 + $0x1a0] sm:$0xff]
  %v6161 = vld [vmem:[#allocation4 + $0x1a8] sm:$0xff]
  %v6162 = vld [vmem:[#allocation4 + $0x1b0] sm:$0xff]
  %v6163 = vld [vmem:[#allocation4 + $0x1b8] sm:$0xff]
  %v6164 = vld [vmem:[#allocation4 + $0x1c0] sm:$0xff]
  %v6165 = vld [vmem:[#allocation4 + $0x1c8] sm:$0xff]
  %v6166 = vld [vmem:[#allocation4 + $0x1d0] sm:$0xff]
  %v6167 = vld [vmem:[#allocation4 + $0x1d8] sm:$0xff]
  %v6168 = vld [vmem:[#allocation4 + $0x1e0] sm:$0xff]
  %v6169 = vld [vmem:[#allocation4 + $0x1e8] sm:$0xff]
  %v6170 = vld [vmem:[#allocation4 + $0x1f0] sm:$0xff]
  %v6171 = vld [vmem:[#allocation4 + $0x1f8] sm:$0xff]
  %6172 = vmatprep.subr.mxu0 %v6169
  %6173 = vmatpush1.msra.mxu0 %v6168
  %6174 = vmatprep.subr.mxu0 %v6165
  %6175 = vmatpush1.msra.mxu0 %v6164
  %6176 = vmatprep.subr.mxu0 %v6161
  %6177 = vmatpush1.msra.mxu0 %v6160
  %6178 = vmatprep.subr.mxu0 %v6157
  %6179 = vmatpush1.msra.mxu0 %v6156
  %6180 = vmatprep.subr.mxu0 %v6153
  %6181 = vmatpush1.msra.mxu0 %v6152
  %6182 = vmatprep.subr.mxu0 %v6149
  %6183 = vmatpush1.msra.mxu0 %v6148
  %6184 = vmatprep.subr.mxu0 %v6145
  %6185 = vmatpush1.msra.mxu0 %v6144
  %6186 = vmatprep.subr.mxu0 %v6141
  %6187 = vmatpush1.msra.mxu0 %v6140
  %6188 = vmatprep.subr.mxu0 %v6137
  %6189 = vmatpush1.msra.mxu0 %v6136
  %6190 = vmatprep.subr.mxu0 %v6133
  %6191 = vmatpush1.msra.mxu0 %v6132
  %6192 = vmatprep.subr.mxu0 %v6129
  %6193 = vmatpush1.msra.mxu0 %v6128
  %6194 = vmatprep.subr.mxu0 %v6125
  %6195 = vmatpush1.msra.mxu0 %v6124
  %6196 = vmatprep.subr.mxu0 %v6121
  %6197 = vmatpush1.msra.mxu0 %v6120
  %6198 = vmatprep.subr.mxu0 %v6117
  %6199 = vmatpush1.msra.mxu0 %v6116
  %6200 = vmatprep.subr.mxu0 %v6113
  %6201 = vmatpush1.msra.mxu0 %v6112
  %6202 = vmatprep.subr.mxu0 %v6109
  %6203 = vmatpush1.msra.mxu0 %v6108
  %6204 = vmatprep.subr.mxu0 0.0
  %6205 = vmatpush2.msra.mxu0 0.0
  %6206 = vmatprep.subr.mxu0 0.0
  %6207 = vmatpush2.msra.mxu0 0.0
  %6208 = vmatprep.subr.mxu0 0.0
  %6209 = vmatpush2.msra.mxu0 0.0
  %6210 = vmatprep.subr.mxu0 0.0
  %6211 = vmatpush2.msra.mxu0 0.0
  %6212 = vmatprep.subr.mxu0 0.0
  %6213 = vmatpush2.msra.mxu0 0.0
  %6214 = vmatprep.subr.mxu0 0.0
  %6215 = vmatpush2.msra.mxu0 0.0
  %6216 = vmatprep.subr.mxu0 0.0
  %6217 = vmatpush2.msra.mxu0 0.0
  %6218 = vmatprep.subr.mxu0 0.0
  %6219 = vmatpush2.msra.mxu0 0.0
  %6220 = vmatprep.subr.mxu0 0.0
  %6221 = vmatpush2.msra.mxu0 0.0
  %6222 = vmatprep.subr.mxu0 0.0
  %6223 = vmatpush2.msra.mxu0 0.0
  %6224 = vmatprep.subr.mxu0 0.0
  %6225 = vmatpush2.msra.mxu0 0.0
  %6226 = vmatprep.subr.mxu0 0.0
  %6227 = vmatpush2.msra.mxu0 0.0
  %6228 = vmatprep.subr.mxu0 0.0
  %6229 = vmatpush2.msra.mxu0 0.0
  %6230 = vmatprep.subr.mxu0 0.0
  %6231 = vmatpush2.msra.mxu0 0.0
  %6232 = vmatprep.subr.mxu0 0.0
  %6233 = vmatpush2.msra.mxu0 0.0
  %6234 = vmatprep.subr.mxu0 0.0
  %6235 = vmatpush2.msra.mxu0 0.0
  %6236 = vmatprep.mubr.f32.mxu0 0.0
  %6237 = vmatmul.mubr.f32.gmra.mxu0 %v6107
  %v6238 = vpop.f32.mrf.mxu0
  %v6239 = vadd.f32 0.0, %v6238
  %v6240 = vpop.f32.mrf.mxu0
  %v6241 = vadd.f32 0.0, %v6240
  %6242 = vdwg.mxu0
  %6243 = vmatprep.subr.mxu0 %v6171
  %6244 = vmatpush1.msra.mxu0 %v6170
  %6245 = vmatprep.subr.mxu0 %v6167
  %6246 = vmatpush1.msra.mxu0 %v6166
  %6247 = vmatprep.subr.mxu0 %v6163
  %6248 = vmatpush1.msra.mxu0 %v6162
  %6249 = vmatprep.subr.mxu0 %v6159
  %6250 = vmatpush1.msra.mxu0 %v6158
  %6251 = vmatprep.subr.mxu0 %v6155
  %6252 = vmatpush1.msra.mxu0 %v6154
  %6253 = vmatprep.subr.mxu0 %v6151
  %6254 = vmatpush1.msra.mxu0 %v6150
  %6255 = vmatprep.subr.mxu0 %v6147
  %6256 = vmatpush1.msra.mxu0 %v6146
  %6257 = vmatprep.subr.mxu0 %v6143
  %6258 = vmatpush1.msra.mxu0 %v6142
  %6259 = vmatprep.subr.mxu0 %v6139
  %6260 = vmatpush1.msra.mxu0 %v6138
  %6261 = vmatprep.subr.mxu0 %v6135
  %6262 = vmatpush1.msra.mxu0 %v6134
  %6263 = vmatprep.subr.mxu0 %v6131
  %6264 = vmatpush1.msra.mxu0 %v6130
  %6265 = vmatprep.subr.mxu0 %v6127
  %6266 = vmatpush1.msra.mxu0 %v6126
  %6267 = vmatprep.subr.mxu0 %v6123
  %6268 = vmatpush1.msra.mxu0 %v6122
  %6269 = vmatprep.subr.mxu0 %v6119
  %6270 = vmatpush1.msra.mxu0 %v6118
  %6271 = vmatprep.subr.mxu0 %v6115
  %6272 = vmatpush1.msra.mxu0 %v6114
  %6273 = vmatprep.subr.mxu0 %v6111
  %6274 = vmatpush1.msra.mxu0 %v6110
  %6275 = vmatprep.subr.mxu0 0.0
  %6276 = vmatpush2.msra.mxu0 0.0
  %6277 = vmatprep.subr.mxu0 0.0
  %6278 = vmatpush2.msra.mxu0 0.0
  %6279 = vmatprep.subr.mxu0 0.0
  %6280 = vmatpush2.msra.mxu0 0.0
  %6281 = vmatprep.subr.mxu0 0.0
  %6282 = vmatpush2.msra.mxu0 0.0
  %6283 = vmatprep.subr.mxu0 0.0
  %6284 = vmatpush2.msra.mxu0 0.0
  %6285 = vmatprep.subr.mxu0 0.0
  %6286 = vmatpush2.msra.mxu0 0.0
  %6287 = vmatprep.subr.mxu0 0.0
  %6288 = vmatpush2.msra.mxu0 0.0
  %6289 = vmatprep.subr.mxu0 0.0
  %6290 = vmatpush2.msra.mxu0 0.0
  %6291 = vmatprep.subr.mxu0 0.0
  %6292 = vmatpush2.msra.mxu0 0.0
  %6293 = vmatprep.subr.mxu0 0.0
  %6294 = vmatpush2.msra.mxu0 0.0
  %6295 = vmatprep.subr.mxu0 0.0
  %6296 = vmatpush2.msra.mxu0 0.0
  %6297 = vmatprep.subr.mxu0 0.0
  %6298 = vmatpush2.msra.mxu0 0.0
  %6299 = vmatprep.subr.mxu0 0.0
  %6300 = vmatpush2.msra.mxu0 0.0
  %6301 = vmatprep.subr.mxu0 0.0
  %6302 = vmatpush2.msra.mxu0 0.0
  %6303 = vmatprep.subr.mxu0 0.0
  %6304 = vmatpush2.msra.mxu0 0.0
  %6305 = vmatprep.subr.mxu0 0.0
  %6306 = vmatpush2.msra.mxu0 0.0
  %6307 = vmatprep.mubr.f32.mxu0 0.0
  %6308 = vmatmul.mubr.f32.gmra.mxu0 %v6107
  %v6309 = vpop.f32.mrf.mxu0
  %v6310 = vadd.f32 0.0, %v6309
  %v6311 = vpop.f32.mrf.mxu0
  %v6312 = vadd.f32 0.0, %v6311
  %6313 = vdwg.mxu0
  %v6318 = vcombine.low %v6239, %v6241
  %v6319 = vcombine.high %v6239, %v6241
  %v6320 = vcombine.low %v6310, %v6312
  %v6321 = vcombine.high %v6310, %v6312
  %v6323 = vunpack.c.l.s4 1966171168
  %v6324 = vunpack.c.0.s8 %v6323
  %v6325 = vlaneseq
  %v6326 = vshrl.u32 %v6325, 7
  %v6327 = vsub.s32 %v6324, %v6326
  %v6328 = vrot.slane %v6318, %v6327
  %v6330 = vunpack.c.l.s4 1966171168
  %v6331 = vunpack.c.0.s8 %v6330
  %v6332 = vlaneseq
  %v6333 = vshrl.u32 %v6332, 7
  %v6334 = vsub.s32 %v6331, %v6333
  %v6335 = vrot.slane %v6319, %v6334
  %v6337 = vunpack.c.l.s4 1966171168
  %v6338 = vunpack.c.0.s8 %v6337
  %v6339 = vlaneseq
  %v6340 = vshrl.u32 %v6339, 7
  %v6341 = vsub.s32 %v6338, %v6340
  %v6342 = vrot.slane %v6320, %v6341
  %v6344 = vunpack.c.l.s4 1966171168
  %v6345 = vunpack.c.0.s8 %v6344
  %v6346 = vlaneseq
  %v6347 = vshrl.u32 %v6346, 7
  %v6348 = vsub.s32 %v6345, %v6347
  %v6349 = vrot.slane %v6321, %v6348
  %v6350 = vcombine.low %v6328, %v6342
  %v6351 = vcombine.high %v6328, %v6342
  %v6352 = vcombine.low %v6335, %v6349
  %v6353 = vcombine.high %v6335, %v6349
  %v6355 = vunpack.c.l.s4 1966171168
  %v6356 = vunpack.c.0.s8 %v6355
  %v6357 = vlaneseq
  %v6358 = vshrl.u32 %v6357, 7
  %v6359 = vsub.s32 %v6356, %v6358
  %v6360 = vrot.slane %v6350, %v6359
  %v6362 = vunpack.c.l.s4 1966171168
  %v6363 = vunpack.c.0.s8 %v6362
  %v6364 = vlaneseq
  %v6365 = vshrl.u32 %v6364, 7
  %v6366 = vsub.s32 %v6363, %v6365
  %v6367 = vrot.slane %v6352, %v6366
  %v6369 = vunpack.c.l.s4 1966171168
  %v6370 = vunpack.c.0.s8 %v6369
  %v6371 = vlaneseq
  %v6372 = vshrl.u32 %v6371, 7
  %v6373 = vsub.s32 %v6370, %v6372
  %v6374 = vrot.slane %v6351, %v6373
  %v6376 = vunpack.c.l.s4 1966171168
  %v6377 = vunpack.c.0.s8 %v6376
  %v6378 = vlaneseq
  %v6379 = vshrl.u32 %v6378, 7
  %v6380 = vsub.s32 %v6377, %v6379
  %v6381 = vrot.slane %v6353, %v6380
  %v6382 = vcombine.high %v6360, %v6360
  %v6383 = vcombine.high %v6367, %v6367
  %v6384 = vcombine.high %v6374, %v6374
  %v6385 = vcombine.high %v6381, %v6381
  %v6394 = vadd.f32 %v6092, %v6360
  %v6395 = vadd.f32 %v6094, %v6374
  %v6396 = vadd.f32 %v6096, %v6382
  %v6397 = vadd.f32 %v6098, %v6384
  %v6398 = vadd.f32 %v6100, %v6367
  %v6399 = vadd.f32 %v6102, %v6381
  %v6400 = vadd.f32 %v6104, %v6383
  %v6401 = vadd.f32 %v6106, %v6385
  %v6402 = vxor.u32 %v6394, 2147483648
  %v6403 = vxor.u32 %v6395, 2147483648
  %v6404 = vxor.u32 %v6396, 2147483648
  %v6405 = vxor.u32 %v6397, 2147483648
  %v6406 = vxor.u32 %v6398, 2147483648
  %v6407 = vxor.u32 %v6399, 2147483648
  %v6408 = vxor.u32 %v6400, 2147483648
  %v6409 = vxor.u32 %v6401, 2147483648
  %v6410 = vmul.f32 %v6402, 1.442695
  %v6411 = vpow.pop %v6410
  %v6412 = vmul.f32 %v6403, 1.442695
  %v6413 = vpow.pop %v6412
  %v6414 = vmul.f32 %v6404, 1.442695
  %v6415 = vpow.pop %v6414
  %v6416 = vmul.f32 %v6405, 1.442695
  %v6417 = vpow.pop %v6416
  %v6418 = vmul.f32 %v6406, 1.442695
  %v6419 = vpow.pop %v6418
  %v6420 = vmul.f32 %v6407, 1.442695
  %v6421 = vpow.pop %v6420
  %v6422 = vmul.f32 %v6408, 1.442695
  %v6423 = vpow.pop %v6422
  %v6424 = vmul.f32 %v6409, 1.442695
  %v6425 = vpow.pop %v6424
  %v6426 = vadd.f32 %v6411, 1.0
  %v6427 = vadd.f32 %v6413, 1.0
  %v6428 = vadd.f32 %v6415, 1.0
  %v6429 = vadd.f32 %v6417, 1.0
  %v6430 = vadd.f32 %v6419, 1.0
  %v6431 = vadd.f32 %v6421, 1.0
  %v6432 = vadd.f32 %v6423, 1.0
  %v6433 = vadd.f32 %v6425, 1.0
  %v6434 = vrcp.pop %v6426
  %v6435 = vmul.f32 1.0, %v6434
  %v6436 = vrcp.pop %v6427
  %v6437 = vmul.f32 1.0, %v6436
  %v6438 = vrcp.pop %v6428
  %v6439 = vmul.f32 1.0, %v6438
  %v6440 = vrcp.pop %v6429
  %v6441 = vmul.f32 1.0, %v6440
  %v6442 = vrcp.pop %v6430
  %v6443 = vmul.f32 1.0, %v6442
  %v6444 = vrcp.pop %v6431
  %v6445 = vmul.f32 1.0, %v6444
  %v6446 = vrcp.pop %v6432
  %v6447 = vmul.f32 1.0, %v6446
  %v6448 = vrcp.pop %v6433
  %v6449 = vmul.f32 1.0, %v6448
  %v6458 = vrot.slane %v6394, 3
  %v6459 = vrot.slane %v6395, 3
  %v6460 = vrot.slane %v6396, 3
  %v6461 = vrot.slane %v6397, 3
  %v6462 = vrot.slane %v6398, 3
  %v6463 = vrot.slane %v6399, 3
  %v6464 = vrot.slane %v6400, 3
  %v6465 = vrot.slane %v6401, 3
  %v6474 = vtanh.pop %v6458
  %v6475 = vtanh.pop %v6459
  %v6476 = vtanh.pop %v6460
  %v6477 = vtanh.pop %v6461
  %v6478 = vtanh.pop %v6462
  %v6479 = vtanh.pop %v6463
  %v6480 = vtanh.pop %v6464
  %v6481 = vtanh.pop %v6465
  %v6482 = vld [vmem:[#allocation3] sm:$0xff]
  %v6491 = vrot.slane %v6435, 1
  %v6492 = vrot.slane %v6437, 1
  %v6493 = vrot.slane %v6439, 1
  %v6494 = vrot.slane %v6441, 1
  %v6495 = vrot.slane %v6443, 1
  %v6496 = vrot.slane %v6445, 1
  %v6497 = vrot.slane %v6447, 1
  %v6498 = vrot.slane %v6449, 1
  %v6508 = vcombine.high %v6482, %v6482
  %v6510 = vunpack.c.l.s4 1966171168
  %v6511 = vunpack.c.0.s8 %v6510
  %v6512 = vlaneseq
  %v6513 = vshrl.u32 %v6512, 7
  %v6514 = vsub.s32 %v6511, %v6513
  %v6515 = vrot.slane %v6482, %v6514
  %v6517 = vunpack.c.l.s4 1966171168
  %v6518 = vunpack.c.0.s8 %v6517
  %v6519 = vlaneseq
  %v6520 = vshrl.u32 %v6519, 7
  %v6521 = vsub.s32 %v6518, %v6520
  %v6522 = vrot.slane %v6508, %v6521
  %v6523 = vcombine.high %v6515, %v6515
  %v6524 = vcombine.high %v6522, %v6522
  %v6526 = vunpack.c.l.s4 1966171168
  %v6527 = vunpack.c.0.s8 %v6526
  %v6528 = vlaneseq
  %v6529 = vshrl.u32 %v6528, 7
  %v6530 = vsub.s32 %v6527, %v6529
  %v6531 = vrot.slane %v6515, %v6530
  %v6533 = vunpack.c.l.s4 1966171168
  %v6534 = vunpack.c.0.s8 %v6533
  %v6535 = vlaneseq
  %v6536 = vshrl.u32 %v6535, 7
  %v6537 = vsub.s32 %v6534, %v6536
  %v6538 = vrot.slane %v6522, %v6537
  %v6540 = vunpack.c.l.s4 1966171168
  %v6541 = vunpack.c.0.s8 %v6540
  %v6542 = vlaneseq
  %v6543 = vshrl.u32 %v6542, 7
  %v6544 = vsub.s32 %v6541, %v6543
  %v6545 = vrot.slane %v6523, %v6544
  %v6547 = vunpack.c.l.s4 1966171168
  %v6548 = vunpack.c.0.s8 %v6547
  %v6549 = vlaneseq
  %v6550 = vshrl.u32 %v6549, 7
  %v6551 = vsub.s32 %v6548, %v6550
  %v6552 = vrot.slane %v6524, %v6551
  %v6553 = vcombine.high %v6531, %v6531
  %v6554 = vcombine.high %v6538, %v6538
  %v6555 = vcombine.high %v6545, %v6545
  %v6556 = vcombine.high %v6552, %v6552
  %v6565 = vmul.f32 %v6491, %v6531
  %v6566 = vmul.f32 %v6492, %v6545
  %v6567 = vmul.f32 %v6493, %v6553
  %v6568 = vmul.f32 %v6494, %v6555
  %v6569 = vmul.f32 %v6495, %v6538
  %v6570 = vmul.f32 %v6496, %v6552
  %v6571 = vmul.f32 %v6497, %v6554
  %v6572 = vmul.f32 %v6498, %v6556
  %v6573 = vmul.f32 %v6435, %v6474
  %v6574 = vmul.f32 %v6437, %v6475
  %v6575 = vmul.f32 %v6439, %v6476
  %v6576 = vmul.f32 %v6441, %v6477
  %v6577 = vmul.f32 %v6443, %v6478
  %v6578 = vmul.f32 %v6445, %v6479
  %v6579 = vmul.f32 %v6447, %v6480
  %v6580 = vmul.f32 %v6449, %v6481
  %v6581 = vadd.f32 %v6565, %v6573
  %v6582 = vadd.f32 %v6566, %v6574
  %v6583 = vadd.f32 %v6567, %v6575
  %v6584 = vadd.f32 %v6568, %v6576
  %v6585 = vadd.f32 %v6569, %v6577
  %v6586 = vadd.f32 %v6570, %v6578
  %v6587 = vadd.f32 %v6571, %v6579
  %v6588 = vadd.f32 %v6572, %v6580
  %v6589 = vtanh.pop %v6581
  %v6590 = vtanh.pop %v6582
  %v6591 = vtanh.pop %v6583
  %v6592 = vtanh.pop %v6584
  %v6593 = vtanh.pop %v6585
  %v6594 = vtanh.pop %v6586
  %v6595 = vtanh.pop %v6587
  %v6596 = vtanh.pop %v6588
  %v6597 = vrot.slane %v6435, 2
  %v6598 = vrot.slane %v6437, 2
  %v6599 = vrot.slane %v6439, 2
  %v6600 = vrot.slane %v6441, 2
  %v6601 = vrot.slane %v6443, 2
  %v6602 = vrot.slane %v6445, 2
  %v6603 = vrot.slane %v6447, 2
  %v6604 = vrot.slane %v6449, 2
  %v6613 = vmul.f32 %v6597, %v6589
  %v6614 = vmul.f32 %v6598, %v6590
  %v6615 = vmul.f32 %v6599, %v6591
  %v6616 = vmul.f32 %v6600, %v6592
  %v6617 = vmul.f32 %v6601, %v6593
  %v6618 = vmul.f32 %v6602, %v6594
  %v6619 = vmul.f32 %v6603, %v6595
  %v6620 = vmul.f32 %v6604, %v6596
  %v6629 = vcombine.low %v6581, %v6582
  %v6630 = vcombine.low %v6583, %v6584
  %v6631 = vcombine.low %v6585, %v6586
  %v6632 = vcombine.low %v6587, %v6588
  %v6634 = vunpack.c.l.s4 1966171168
  %v6635 = vunpack.c.0.s8 %v6634
  %v6636 = vlaneseq
  %v6637 = vshrl.u32 %v6636, 7
  %v6638 = vsub.s32 %v6635, %v6637
  %v6639 = vrot.slane %v6629, %v6638
  %v6641 = vunpack.c.l.s4 1966171168
  %v6642 = vunpack.c.0.s8 %v6641
  %v6643 = vlaneseq
  %v6644 = vshrl.u32 %v6643, 7
  %v6645 = vsub.s32 %v6642, %v6644
  %v6646 = vrot.slane %v6630, %v6645
  %v6648 = vunpack.c.l.s4 1966171168
  %v6649 = vunpack.c.0.s8 %v6648
  %v6650 = vlaneseq
  %v6651 = vshrl.u32 %v6650, 7
  %v6652 = vsub.s32 %v6649, %v6651
  %v6653 = vrot.slane %v6631, %v6652
  %v6655 = vunpack.c.l.s4 1966171168
  %v6656 = vunpack.c.0.s8 %v6655
  %v6657 = vlaneseq
  %v6658 = vshrl.u32 %v6657, 7
  %v6659 = vsub.s32 %v6656, %v6658
  %v6660 = vrot.slane %v6632, %v6659
  %v6661 = vcombine.low %v6639, %v6646
  %v6662 = vcombine.low %v6653, %v6660
  %v6664 = vunpack.c.l.s4 1966171168
  %v6665 = vunpack.c.0.s8 %v6664
  %v6666 = vlaneseq
  %v6667 = vshrl.u32 %v6666, 7
  %v6668 = vsub.s32 %v6665, %v6667
  %v6669 = vrot.slane %v6661, %v6668
  %v6671 = vunpack.c.l.s4 1966171168
  %v6672 = vunpack.c.0.s8 %v6671
  %v6673 = vlaneseq
  %v6674 = vshrl.u32 %v6673, 7
  %v6675 = vsub.s32 %v6672, %v6674
  %v6676 = vrot.slane %v6662, %v6675
  %v6677 = vcombine.low %v6669, %v6676
  %6679 = vst [vmem:[#allocation3] sm:$0xff] %v6677
  %v6688 = vcombine.low %v6613, %v6614
  %v6689 = vcombine.low %v6615, %v6616
  %v6690 = vcombine.low %v6617, %v6618
  %v6691 = vcombine.low %v6619, %v6620
  %v6693 = vunpack.c.l.s4 1966171168
  %v6694 = vunpack.c.0.s8 %v6693
  %v6695 = vlaneseq
  %v6696 = vshrl.u32 %v6695, 7
  %v6697 = vsub.s32 %v6694, %v6696
  %v6698 = vrot.slane %v6688, %v6697
  %v6700 = vunpack.c.l.s4 1966171168
  %v6701 = vunpack.c.0.s8 %v6700
  %v6702 = vlaneseq
  %v6703 = vshrl.u32 %v6702, 7
  %v6704 = vsub.s32 %v6701, %v6703
  %v6705 = vrot.slane %v6689, %v6704
  %v6707 = vunpack.c.l.s4 1966171168
  %v6708 = vunpack.c.0.s8 %v6707
  %v6709 = vlaneseq
  %v6710 = vshrl.u32 %v6709, 7
  %v6711 = vsub.s32 %v6708, %v6710
  %v6712 = vrot.slane %v6690, %v6711
  %v6714 = vunpack.c.l.s4 1966171168
  %v6715 = vunpack.c.0.s8 %v6714
  %v6716 = vlaneseq
  %v6717 = vshrl.u32 %v6716, 7
  %v6718 = vsub.s32 %v6715, %v6717
  %v6719 = vrot.slane %v6691, %v6718
  %v6720 = vcombine.low %v6698, %v6705
  %v6721 = vcombine.low %v6712, %v6719
  %v6723 = vunpack.c.l.s4 1966171168
  %v6724 = vunpack.c.0.s8 %v6723
  %v6725 = vlaneseq
  %v6726 = vshrl.u32 %v6725, 7
  %v6727 = vsub.s32 %v6724, %v6726
  %v6728 = vrot.slane %v6720, %v6727
  %v6730 = vunpack.c.l.s4 1966171168
  %v6731 = vunpack.c.0.s8 %v6730
  %v6732 = vlaneseq
  %v6733 = vshrl.u32 %v6732, 7
  %v6734 = vsub.s32 %v6731, %v6733
  %v6735 = vrot.slane %v6721, %v6734
  %v6736 = vcombine.low %v6728, %v6735
  %6738 = vst [vmem:[#allocation2] sm:$0xff] %v6736
  %6739 = vst [vmem:[%s2 + $0x9] sm:$0x1] %v6613
  %6740 = vst [vmem:[%s2 + $0x19] sm:$0x1] %v6614
  %6741 = vst [vmem:[%s2 + $0x29] sm:$0x1] %v6615
  %6742 = vst [vmem:[%s2 + $0x39] sm:$0x1] %v6616
  %6743 = vst [vmem:[%s2 + $0x49] sm:$0x1] %v6617
  %6744 = vst [vmem:[%s2 + $0x59] sm:$0x1] %v6618
  %6745 = vst [vmem:[%s2 + $0x69] sm:$0x1] %v6619
  %6746 = vst [vmem:[%s2 + $0x79] sm:$0x1] %v6620
  %s6747 = scalar_lea.vmem %s0, 34
  %v6748 = vld [vmem:[%s6747] ss:$8 sm:$0xf]
  %s6749 = scalar_lea.vmem %s0, 98
  %v6750 = vld [vmem:[%s6749] ss:$8 sm:$0xf]
  %s6751 = scalar_lea.vmem %s0, 162
  %v6752 = vld [vmem:[%s6751] ss:$8 sm:$0xf]
  %s6753 = scalar_lea.vmem %s0, 226
  %v6754 = vld [vmem:[%s6753] ss:$8 sm:$0xf]
  %s6755 = scalar_lea.vmem %s0, 290
  %v6756 = vld [vmem:[%s6755] ss:$8 sm:$0xf]
  %s6757 = scalar_lea.vmem %s0, 354
  %v6758 = vld [vmem:[%s6757] ss:$8 sm:$0xf]
  %s6759 = scalar_lea.vmem %s0, 418
  %v6760 = vld [vmem:[%s6759] ss:$8 sm:$0xf]
  %s6761 = scalar_lea.vmem %s0, 482
  %v6762 = vld [vmem:[%s6761] ss:$8 sm:$0xf]
  %v6763 = vld [vmem:[#allocation2] sm:$0xff]
  %v6764 = vld [vmem:[#allocation4] sm:$0xff]
  %v6765 = vld [vmem:[#allocation4 + $0x8] sm:$0xff]
  %v6766 = vld [vmem:[#allocation4 + $0x10] sm:$0xff]
  %v6767 = vld [vmem:[#allocation4 + $0x18] sm:$0xff]
  %v6768 = vld [vmem:[#allocation4 + $0x20] sm:$0xff]
  %v6769 = vld [vmem:[#allocation4 + $0x28] sm:$0xff]
  %v6770 = vld [vmem:[#allocation4 + $0x30] sm:$0xff]
  %v6771 = vld [vmem:[#allocation4 + $0x38] sm:$0xff]
  %v6772 = vld [vmem:[#allocation4 + $0x40] sm:$0xff]
  %v6773 = vld [vmem:[#allocation4 + $0x48] sm:$0xff]
  %v6774 = vld [vmem:[#allocation4 + $0x50] sm:$0xff]
  %v6775 = vld [vmem:[#allocation4 + $0x58] sm:$0xff]
  %v6776 = vld [vmem:[#allocation4 + $0x60] sm:$0xff]
  %v6777 = vld [vmem:[#allocation4 + $0x68] sm:$0xff]
  %v6778 = vld [vmem:[#allocation4 + $0x70] sm:$0xff]
  %v6779 = vld [vmem:[#allocation4 + $0x78] sm:$0xff]
  %v6780 = vld [vmem:[#allocation4 + $0x80] sm:$0xff]
  %v6781 = vld [vmem:[#allocation4 + $0x88] sm:$0xff]
  %v6782 = vld [vmem:[#allocation4 + $0x90] sm:$0xff]
  %v6783 = vld [vmem:[#allocation4 + $0x98] sm:$0xff]
  %v6784 = vld [vmem:[#allocation4 + $0xa0] sm:$0xff]
  %v6785 = vld [vmem:[#allocation4 + $0xa8] sm:$0xff]
  %v6786 = vld [vmem:[#allocation4 + $0xb0] sm:$0xff]
  %v6787 = vld [vmem:[#allocation4 + $0xb8] sm:$0xff]
  %v6788 = vld [vmem:[#allocation4 + $0xc0] sm:$0xff]
  %v6789 = vld [vmem:[#allocation4 + $0xc8] sm:$0xff]
  %v6790 = vld [vmem:[#allocation4 + $0xd0] sm:$0xff]
  %v6791 = vld [vmem:[#allocation4 + $0xd8] sm:$0xff]
  %v6792 = vld [vmem:[#allocation4 + $0xe0] sm:$0xff]
  %v6793 = vld [vmem:[#allocation4 + $0xe8] sm:$0xff]
  %v6794 = vld [vmem:[#allocation4 + $0xf0] sm:$0xff]
  %v6795 = vld [vmem:[#allocation4 + $0xf8] sm:$0xff]
  %v6796 = vld [vmem:[#allocation4 + $0x100] sm:$0xff]
  %v6797 = vld [vmem:[#allocation4 + $0x108] sm:$0xff]
  %v6798 = vld [vmem:[#allocation4 + $0x110] sm:$0xff]
  %v6799 = vld [vmem:[#allocation4 + $0x118] sm:$0xff]
  %v6800 = vld [vmem:[#allocation4 + $0x120] sm:$0xff]
  %v6801 = vld [vmem:[#allocation4 + $0x128] sm:$0xff]
  %v6802 = vld [vmem:[#allocation4 + $0x130] sm:$0xff]
  %v6803 = vld [vmem:[#allocation4 + $0x138] sm:$0xff]
  %v6804 = vld [vmem:[#allocation4 + $0x140] sm:$0xff]
  %v6805 = vld [vmem:[#allocation4 + $0x148] sm:$0xff]
  %v6806 = vld [vmem:[#allocation4 + $0x150] sm:$0xff]
  %v6807 = vld [vmem:[#allocation4 + $0x158] sm:$0xff]
  %v6808 = vld [vmem:[#allocation4 + $0x160] sm:$0xff]
  %v6809 = vld [vmem:[#allocation4 + $0x168] sm:$0xff]
  %v6810 = vld [vmem:[#allocation4 + $0x170] sm:$0xff]
  %v6811 = vld [vmem:[#allocation4 + $0x178] sm:$0xff]
  %v6812 = vld [vmem:[#allocation4 + $0x180] sm:$0xff]
  %v6813 = vld [vmem:[#allocation4 + $0x188] sm:$0xff]
  %v6814 = vld [vmem:[#allocation4 + $0x190] sm:$0xff]
  %v6815 = vld [vmem:[#allocation4 + $0x198] sm:$0xff]
  %v6816 = vld [vmem:[#allocation4 + $0x1a0] sm:$0xff]
  %v6817 = vld [vmem:[#allocation4 + $0x1a8] sm:$0xff]
  %v6818 = vld [vmem:[#allocation4 + $0x1b0] sm:$0xff]
  %v6819 = vld [vmem:[#allocation4 + $0x1b8] sm:$0xff]
  %v6820 = vld [vmem:[#allocation4 + $0x1c0] sm:$0xff]
  %v6821 = vld [vmem:[#allocation4 + $0x1c8] sm:$0xff]
  %v6822 = vld [vmem:[#allocation4 + $0x1d0] sm:$0xff]
  %v6823 = vld [vmem:[#allocation4 + $0x1d8] sm:$0xff]
  %v6824 = vld [vmem:[#allocation4 + $0x1e0] sm:$0xff]
  %v6825 = vld [vmem:[#allocation4 + $0x1e8] sm:$0xff]
  %v6826 = vld [vmem:[#allocation4 + $0x1f0] sm:$0xff]
  %v6827 = vld [vmem:[#allocation4 + $0x1f8] sm:$0xff]
  %6828 = vmatprep.subr.mxu0 %v6825
  %6829 = vmatpush1.msra.mxu0 %v6824
  %6830 = vmatprep.subr.mxu0 %v6821
  %6831 = vmatpush1.msra.mxu0 %v6820
  %6832 = vmatprep.subr.mxu0 %v6817
  %6833 = vmatpush1.msra.mxu0 %v6816
  %6834 = vmatprep.subr.mxu0 %v6813
  %6835 = vmatpush1.msra.mxu0 %v6812
  %6836 = vmatprep.subr.mxu0 %v6809
  %6837 = vmatpush1.msra.mxu0 %v6808
  %6838 = vmatprep.subr.mxu0 %v6805
  %6839 = vmatpush1.msra.mxu0 %v6804
  %6840 = vmatprep.subr.mxu0 %v6801
  %6841 = vmatpush1.msra.mxu0 %v6800
  %6842 = vmatprep.subr.mxu0 %v6797
  %6843 = vmatpush1.msra.mxu0 %v6796
  %6844 = vmatprep.subr.mxu0 %v6793
  %6845 = vmatpush1.msra.mxu0 %v6792
  %6846 = vmatprep.subr.mxu0 %v6789
  %6847 = vmatpush1.msra.mxu0 %v6788
  %6848 = vmatprep.subr.mxu0 %v6785
  %6849 = vmatpush1.msra.mxu0 %v6784
  %6850 = vmatprep.subr.mxu0 %v6781
  %6851 = vmatpush1.msra.mxu0 %v6780
  %6852 = vmatprep.subr.mxu0 %v6777
  %6853 = vmatpush1.msra.mxu0 %v6776
  %6854 = vmatprep.subr.mxu0 %v6773
  %6855 = vmatpush1.msra.mxu0 %v6772
  %6856 = vmatprep.subr.mxu0 %v6769
  %6857 = vmatpush1.msra.mxu0 %v6768
  %6858 = vmatprep.subr.mxu0 %v6765
  %6859 = vmatpush1.msra.mxu0 %v6764
  %6860 = vmatprep.subr.mxu0 0.0
  %6861 = vmatpush2.msra.mxu0 0.0
  %6862 = vmatprep.subr.mxu0 0.0
  %6863 = vmatpush2.msra.mxu0 0.0
  %6864 = vmatprep.subr.mxu0 0.0
  %6865 = vmatpush2.msra.mxu0 0.0
  %6866 = vmatprep.subr.mxu0 0.0
  %6867 = vmatpush2.msra.mxu0 0.0
  %6868 = vmatprep.subr.mxu0 0.0
  %6869 = vmatpush2.msra.mxu0 0.0
  %6870 = vmatprep.subr.mxu0 0.0
  %6871 = vmatpush2.msra.mxu0 0.0
  %6872 = vmatprep.subr.mxu0 0.0
  %6873 = vmatpush2.msra.mxu0 0.0
  %6874 = vmatprep.subr.mxu0 0.0
  %6875 = vmatpush2.msra.mxu0 0.0
  %6876 = vmatprep.subr.mxu0 0.0
  %6877 = vmatpush2.msra.mxu0 0.0
  %6878 = vmatprep.subr.mxu0 0.0
  %6879 = vmatpush2.msra.mxu0 0.0
  %6880 = vmatprep.subr.mxu0 0.0
  %6881 = vmatpush2.msra.mxu0 0.0
  %6882 = vmatprep.subr.mxu0 0.0
  %6883 = vmatpush2.msra.mxu0 0.0
  %6884 = vmatprep.subr.mxu0 0.0
  %6885 = vmatpush2.msra.mxu0 0.0
  %6886 = vmatprep.subr.mxu0 0.0
  %6887 = vmatpush2.msra.mxu0 0.0
  %6888 = vmatprep.subr.mxu0 0.0
  %6889 = vmatpush2.msra.mxu0 0.0
  %6890 = vmatprep.subr.mxu0 0.0
  %6891 = vmatpush2.msra.mxu0 0.0
  %6892 = vmatprep.mubr.f32.mxu0 0.0
  %6893 = vmatmul.mubr.f32.gmra.mxu0 %v6763
  %v6894 = vpop.f32.mrf.mxu0
  %v6895 = vadd.f32 0.0, %v6894
  %v6896 = vpop.f32.mrf.mxu0
  %v6897 = vadd.f32 0.0, %v6896
  %6898 = vdwg.mxu0
  %6899 = vmatprep.subr.mxu0 %v6827
  %6900 = vmatpush1.msra.mxu0 %v6826
  %6901 = vmatprep.subr.mxu0 %v6823
  %6902 = vmatpush1.msra.mxu0 %v6822
  %6903 = vmatprep.subr.mxu0 %v6819
  %6904 = vmatpush1.msra.mxu0 %v6818
  %6905 = vmatprep.subr.mxu0 %v6815
  %6906 = vmatpush1.msra.mxu0 %v6814
  %6907 = vmatprep.subr.mxu0 %v6811
  %6908 = vmatpush1.msra.mxu0 %v6810
  %6909 = vmatprep.subr.mxu0 %v6807
  %6910 = vmatpush1.msra.mxu0 %v6806
  %6911 = vmatprep.subr.mxu0 %v6803
  %6912 = vmatpush1.msra.mxu0 %v6802
  %6913 = vmatprep.subr.mxu0 %v6799
  %6914 = vmatpush1.msra.mxu0 %v6798
  %6915 = vmatprep.subr.mxu0 %v6795
  %6916 = vmatpush1.msra.mxu0 %v6794
  %6917 = vmatprep.subr.mxu0 %v6791
  %6918 = vmatpush1.msra.mxu0 %v6790
  %6919 = vmatprep.subr.mxu0 %v6787
  %6920 = vmatpush1.msra.mxu0 %v6786
  %6921 = vmatprep.subr.mxu0 %v6783
  %6922 = vmatpush1.msra.mxu0 %v6782
  %6923 = vmatprep.subr.mxu0 %v6779
  %6924 = vmatpush1.msra.mxu0 %v6778
  %6925 = vmatprep.subr.mxu0 %v6775
  %6926 = vmatpush1.msra.mxu0 %v6774
  %6927 = vmatprep.subr.mxu0 %v6771
  %6928 = vmatpush1.msra.mxu0 %v6770
  %6929 = vmatprep.subr.mxu0 %v6767
  %6930 = vmatpush1.msra.mxu0 %v6766
  %6931 = vmatprep.subr.mxu0 0.0
  %6932 = vmatpush2.msra.mxu0 0.0
  %6933 = vmatprep.subr.mxu0 0.0
  %6934 = vmatpush2.msra.mxu0 0.0
  %6935 = vmatprep.subr.mxu0 0.0
  %6936 = vmatpush2.msra.mxu0 0.0
  %6937 = vmatprep.subr.mxu0 0.0
  %6938 = vmatpush2.msra.mxu0 0.0
  %6939 = vmatprep.subr.mxu0 0.0
  %6940 = vmatpush2.msra.mxu0 0.0
  %6941 = vmatprep.subr.mxu0 0.0
  %6942 = vmatpush2.msra.mxu0 0.0
  %6943 = vmatprep.subr.mxu0 0.0
  %6944 = vmatpush2.msra.mxu0 0.0
  %6945 = vmatprep.subr.mxu0 0.0
  %6946 = vmatpush2.msra.mxu0 0.0
  %6947 = vmatprep.subr.mxu0 0.0
  %6948 = vmatpush2.msra.mxu0 0.0
  %6949 = vmatprep.subr.mxu0 0.0
  %6950 = vmatpush2.msra.mxu0 0.0
  %6951 = vmatprep.subr.mxu0 0.0
  %6952 = vmatpush2.msra.mxu0 0.0
  %6953 = vmatprep.subr.mxu0 0.0
  %6954 = vmatpush2.msra.mxu0 0.0
  %6955 = vmatprep.subr.mxu0 0.0
  %6956 = vmatpush2.msra.mxu0 0.0
  %6957 = vmatprep.subr.mxu0 0.0
  %6958 = vmatpush2.msra.mxu0 0.0
  %6959 = vmatprep.subr.mxu0 0.0
  %6960 = vmatpush2.msra.mxu0 0.0
  %6961 = vmatprep.subr.mxu0 0.0
  %6962 = vmatpush2.msra.mxu0 0.0
  %6963 = vmatprep.mubr.f32.mxu0 0.0
  %6964 = vmatmul.mubr.f32.gmra.mxu0 %v6763
  %v6965 = vpop.f32.mrf.mxu0
  %v6966 = vadd.f32 0.0, %v6965
  %v6967 = vpop.f32.mrf.mxu0
  %v6968 = vadd.f32 0.0, %v6967
  %6969 = vdwg.mxu0
  %v6974 = vcombine.low %v6895, %v6897
  %v6975 = vcombine.high %v6895, %v6897
  %v6976 = vcombine.low %v6966, %v6968
  %v6977 = vcombine.high %v6966, %v6968
  %v6979 = vunpack.c.l.s4 1966171168
  %v6980 = vunpack.c.0.s8 %v6979
  %v6981 = vlaneseq
  %v6982 = vshrl.u32 %v6981, 7
  %v6983 = vsub.s32 %v6980, %v6982
  %v6984 = vrot.slane %v6974, %v6983
  %v6986 = vunpack.c.l.s4 1966171168
  %v6987 = vunpack.c.0.s8 %v6986
  %v6988 = vlaneseq
  %v6989 = vshrl.u32 %v6988, 7
  %v6990 = vsub.s32 %v6987, %v6989
  %v6991 = vrot.slane %v6975, %v6990
  %v6993 = vunpack.c.l.s4 1966171168
  %v6994 = vunpack.c.0.s8 %v6993
  %v6995 = vlaneseq
  %v6996 = vshrl.u32 %v6995, 7
  %v6997 = vsub.s32 %v6994, %v6996
  %v6998 = vrot.slane %v6976, %v6997
  %v7000 = vunpack.c.l.s4 1966171168
  %v7001 = vunpack.c.0.s8 %v7000
  %v7002 = vlaneseq
  %v7003 = vshrl.u32 %v7002, 7
  %v7004 = vsub.s32 %v7001, %v7003
  %v7005 = vrot.slane %v6977, %v7004
  %v7006 = vcombine.low %v6984, %v6998
  %v7007 = vcombine.high %v6984, %v6998
  %v7008 = vcombine.low %v6991, %v7005
  %v7009 = vcombine.high %v6991, %v7005
  %v7011 = vunpack.c.l.s4 1966171168
  %v7012 = vunpack.c.0.s8 %v7011
  %v7013 = vlaneseq
  %v7014 = vshrl.u32 %v7013, 7
  %v7015 = vsub.s32 %v7012, %v7014
  %v7016 = vrot.slane %v7006, %v7015
  %v7018 = vunpack.c.l.s4 1966171168
  %v7019 = vunpack.c.0.s8 %v7018
  %v7020 = vlaneseq
  %v7021 = vshrl.u32 %v7020, 7
  %v7022 = vsub.s32 %v7019, %v7021
  %v7023 = vrot.slane %v7008, %v7022
  %v7025 = vunpack.c.l.s4 1966171168
  %v7026 = vunpack.c.0.s8 %v7025
  %v7027 = vlaneseq
  %v7028 = vshrl.u32 %v7027, 7
  %v7029 = vsub.s32 %v7026, %v7028
  %v7030 = vrot.slane %v7007, %v7029
  %v7032 = vunpack.c.l.s4 1966171168
  %v7033 = vunpack.c.0.s8 %v7032
  %v7034 = vlaneseq
  %v7035 = vshrl.u32 %v7034, 7
  %v7036 = vsub.s32 %v7033, %v7035
  %v7037 = vrot.slane %v7009, %v7036
  %v7038 = vcombine.high %v7016, %v7016
  %v7039 = vcombine.high %v7023, %v7023
  %v7040 = vcombine.high %v7030, %v7030
  %v7041 = vcombine.high %v7037, %v7037
  %v7050 = vadd.f32 %v6748, %v7016
  %v7051 = vadd.f32 %v6750, %v7030
  %v7052 = vadd.f32 %v6752, %v7038
  %v7053 = vadd.f32 %v6754, %v7040
  %v7054 = vadd.f32 %v6756, %v7023
  %v7055 = vadd.f32 %v6758, %v7037
  %v7056 = vadd.f32 %v6760, %v7039
  %v7057 = vadd.f32 %v6762, %v7041
  %v7058 = vxor.u32 %v7050, 2147483648
  %v7059 = vxor.u32 %v7051, 2147483648
  %v7060 = vxor.u32 %v7052, 2147483648
  %v7061 = vxor.u32 %v7053, 2147483648
  %v7062 = vxor.u32 %v7054, 2147483648
  %v7063 = vxor.u32 %v7055, 2147483648
  %v7064 = vxor.u32 %v7056, 2147483648
  %v7065 = vxor.u32 %v7057, 2147483648
  %v7066 = vmul.f32 %v7058, 1.442695
  %v7067 = vpow.pop %v7066
  %v7068 = vmul.f32 %v7059, 1.442695
  %v7069 = vpow.pop %v7068
  %v7070 = vmul.f32 %v7060, 1.442695
  %v7071 = vpow.pop %v7070
  %v7072 = vmul.f32 %v7061, 1.442695
  %v7073 = vpow.pop %v7072
  %v7074 = vmul.f32 %v7062, 1.442695
  %v7075 = vpow.pop %v7074
  %v7076 = vmul.f32 %v7063, 1.442695
  %v7077 = vpow.pop %v7076
  %v7078 = vmul.f32 %v7064, 1.442695
  %v7079 = vpow.pop %v7078
  %v7080 = vmul.f32 %v7065, 1.442695
  %v7081 = vpow.pop %v7080
  %v7082 = vadd.f32 %v7067, 1.0
  %v7083 = vadd.f32 %v7069, 1.0
  %v7084 = vadd.f32 %v7071, 1.0
  %v7085 = vadd.f32 %v7073, 1.0
  %v7086 = vadd.f32 %v7075, 1.0
  %v7087 = vadd.f32 %v7077, 1.0
  %v7088 = vadd.f32 %v7079, 1.0
  %v7089 = vadd.f32 %v7081, 1.0
  %v7090 = vrcp.pop %v7082
  %v7091 = vmul.f32 1.0, %v7090
  %v7092 = vrcp.pop %v7083
  %v7093 = vmul.f32 1.0, %v7092
  %v7094 = vrcp.pop %v7084
  %v7095 = vmul.f32 1.0, %v7094
  %v7096 = vrcp.pop %v7085
  %v7097 = vmul.f32 1.0, %v7096
  %v7098 = vrcp.pop %v7086
  %v7099 = vmul.f32 1.0, %v7098
  %v7100 = vrcp.pop %v7087
  %v7101 = vmul.f32 1.0, %v7100
  %v7102 = vrcp.pop %v7088
  %v7103 = vmul.f32 1.0, %v7102
  %v7104 = vrcp.pop %v7089
  %v7105 = vmul.f32 1.0, %v7104
  %v7114 = vrot.slane %v7050, 3
  %v7115 = vrot.slane %v7051, 3
  %v7116 = vrot.slane %v7052, 3
  %v7117 = vrot.slane %v7053, 3
  %v7118 = vrot.slane %v7054, 3
  %v7119 = vrot.slane %v7055, 3
  %v7120 = vrot.slane %v7056, 3
  %v7121 = vrot.slane %v7057, 3
  %v7130 = vtanh.pop %v7114
  %v7131 = vtanh.pop %v7115
  %v7132 = vtanh.pop %v7116
  %v7133 = vtanh.pop %v7117
  %v7134 = vtanh.pop %v7118
  %v7135 = vtanh.pop %v7119
  %v7136 = vtanh.pop %v7120
  %v7137 = vtanh.pop %v7121
  %v7138 = vld [vmem:[#allocation3] sm:$0xff]
  %v7147 = vrot.slane %v7091, 1
  %v7148 = vrot.slane %v7093, 1
  %v7149 = vrot.slane %v7095, 1
  %v7150 = vrot.slane %v7097, 1
  %v7151 = vrot.slane %v7099, 1
  %v7152 = vrot.slane %v7101, 1
  %v7153 = vrot.slane %v7103, 1
  %v7154 = vrot.slane %v7105, 1
  %v7164 = vcombine.high %v7138, %v7138
  %v7166 = vunpack.c.l.s4 1966171168
  %v7167 = vunpack.c.0.s8 %v7166
  %v7168 = vlaneseq
  %v7169 = vshrl.u32 %v7168, 7
  %v7170 = vsub.s32 %v7167, %v7169
  %v7171 = vrot.slane %v7138, %v7170
  %v7173 = vunpack.c.l.s4 1966171168
  %v7174 = vunpack.c.0.s8 %v7173
  %v7175 = vlaneseq
  %v7176 = vshrl.u32 %v7175, 7
  %v7177 = vsub.s32 %v7174, %v7176
  %v7178 = vrot.slane %v7164, %v7177
  %v7179 = vcombine.high %v7171, %v7171
  %v7180 = vcombine.high %v7178, %v7178
  %v7182 = vunpack.c.l.s4 1966171168
  %v7183 = vunpack.c.0.s8 %v7182
  %v7184 = vlaneseq
  %v7185 = vshrl.u32 %v7184, 7
  %v7186 = vsub.s32 %v7183, %v7185
  %v7187 = vrot.slane %v7171, %v7186
  %v7189 = vunpack.c.l.s4 1966171168
  %v7190 = vunpack.c.0.s8 %v7189
  %v7191 = vlaneseq
  %v7192 = vshrl.u32 %v7191, 7
  %v7193 = vsub.s32 %v7190, %v7192
  %v7194 = vrot.slane %v7178, %v7193
  %v7196 = vunpack.c.l.s4 1966171168
  %v7197 = vunpack.c.0.s8 %v7196
  %v7198 = vlaneseq
  %v7199 = vshrl.u32 %v7198, 7
  %v7200 = vsub.s32 %v7197, %v7199
  %v7201 = vrot.slane %v7179, %v7200
  %v7203 = vunpack.c.l.s4 1966171168
  %v7204 = vunpack.c.0.s8 %v7203
  %v7205 = vlaneseq
  %v7206 = vshrl.u32 %v7205, 7
  %v7207 = vsub.s32 %v7204, %v7206
  %v7208 = vrot.slane %v7180, %v7207
  %v7209 = vcombine.high %v7187, %v7187
  %v7210 = vcombine.high %v7194, %v7194
  %v7211 = vcombine.high %v7201, %v7201
  %v7212 = vcombine.high %v7208, %v7208
  %v7221 = vmul.f32 %v7147, %v7187
  %v7222 = vmul.f32 %v7148, %v7201
  %v7223 = vmul.f32 %v7149, %v7209
  %v7224 = vmul.f32 %v7150, %v7211
  %v7225 = vmul.f32 %v7151, %v7194
  %v7226 = vmul.f32 %v7152, %v7208
  %v7227 = vmul.f32 %v7153, %v7210
  %v7228 = vmul.f32 %v7154, %v7212
  %v7229 = vmul.f32 %v7091, %v7130
  %v7230 = vmul.f32 %v7093, %v7131
  %v7231 = vmul.f32 %v7095, %v7132
  %v7232 = vmul.f32 %v7097, %v7133
  %v7233 = vmul.f32 %v7099, %v7134
  %v7234 = vmul.f32 %v7101, %v7135
  %v7235 = vmul.f32 %v7103, %v7136
  %v7236 = vmul.f32 %v7105, %v7137
  %v7237 = vadd.f32 %v7221, %v7229
  %v7238 = vadd.f32 %v7222, %v7230
  %v7239 = vadd.f32 %v7223, %v7231
  %v7240 = vadd.f32 %v7224, %v7232
  %v7241 = vadd.f32 %v7225, %v7233
  %v7242 = vadd.f32 %v7226, %v7234
  %v7243 = vadd.f32 %v7227, %v7235
  %v7244 = vadd.f32 %v7228, %v7236
  %v7245 = vtanh.pop %v7237
  %v7246 = vtanh.pop %v7238
  %v7247 = vtanh.pop %v7239
  %v7248 = vtanh.pop %v7240
  %v7249 = vtanh.pop %v7241
  %v7250 = vtanh.pop %v7242
  %v7251 = vtanh.pop %v7243
  %v7252 = vtanh.pop %v7244
  %v7253 = vrot.slane %v7091, 2
  %v7254 = vrot.slane %v7093, 2
  %v7255 = vrot.slane %v7095, 2
  %v7256 = vrot.slane %v7097, 2
  %v7257 = vrot.slane %v7099, 2
  %v7258 = vrot.slane %v7101, 2
  %v7259 = vrot.slane %v7103, 2
  %v7260 = vrot.slane %v7105, 2
  %v7269 = vmul.f32 %v7253, %v7245
  %v7270 = vmul.f32 %v7254, %v7246
  %v7271 = vmul.f32 %v7255, %v7247
  %v7272 = vmul.f32 %v7256, %v7248
  %v7273 = vmul.f32 %v7257, %v7249
  %v7274 = vmul.f32 %v7258, %v7250
  %v7275 = vmul.f32 %v7259, %v7251
  %v7276 = vmul.f32 %v7260, %v7252
  %v7285 = vcombine.low %v7237, %v7238
  %v7286 = vcombine.low %v7239, %v7240
  %v7287 = vcombine.low %v7241, %v7242
  %v7288 = vcombine.low %v7243, %v7244
  %v7290 = vunpack.c.l.s4 1966171168
  %v7291 = vunpack.c.0.s8 %v7290
  %v7292 = vlaneseq
  %v7293 = vshrl.u32 %v7292, 7
  %v7294 = vsub.s32 %v7291, %v7293
  %v7295 = vrot.slane %v7285, %v7294
  %v7297 = vunpack.c.l.s4 1966171168
  %v7298 = vunpack.c.0.s8 %v7297
  %v7299 = vlaneseq
  %v7300 = vshrl.u32 %v7299, 7
  %v7301 = vsub.s32 %v7298, %v7300
  %v7302 = vrot.slane %v7286, %v7301
  %v7304 = vunpack.c.l.s4 1966171168
  %v7305 = vunpack.c.0.s8 %v7304
  %v7306 = vlaneseq
  %v7307 = vshrl.u32 %v7306, 7
  %v7308 = vsub.s32 %v7305, %v7307
  %v7309 = vrot.slane %v7287, %v7308
  %v7311 = vunpack.c.l.s4 1966171168
  %v7312 = vunpack.c.0.s8 %v7311
  %v7313 = vlaneseq
  %v7314 = vshrl.u32 %v7313, 7
  %v7315 = vsub.s32 %v7312, %v7314
  %v7316 = vrot.slane %v7288, %v7315
  %v7317 = vcombine.low %v7295, %v7302
  %v7318 = vcombine.low %v7309, %v7316
  %v7320 = vunpack.c.l.s4 1966171168
  %v7321 = vunpack.c.0.s8 %v7320
  %v7322 = vlaneseq
  %v7323 = vshrl.u32 %v7322, 7
  %v7324 = vsub.s32 %v7321, %v7323
  %v7325 = vrot.slane %v7317, %v7324
  %v7327 = vunpack.c.l.s4 1966171168
  %v7328 = vunpack.c.0.s8 %v7327
  %v7329 = vlaneseq
  %v7330 = vshrl.u32 %v7329, 7
  %v7331 = vsub.s32 %v7328, %v7330
  %v7332 = vrot.slane %v7318, %v7331
  %v7333 = vcombine.low %v7325, %v7332
  %7335 = vst [vmem:[#allocation3] sm:$0xff] %v7333
  %v7344 = vcombine.low %v7269, %v7270
  %v7345 = vcombine.low %v7271, %v7272
  %v7346 = vcombine.low %v7273, %v7274
  %v7347 = vcombine.low %v7275, %v7276
  %v7349 = vunpack.c.l.s4 1966171168
  %v7350 = vunpack.c.0.s8 %v7349
  %v7351 = vlaneseq
  %v7352 = vshrl.u32 %v7351, 7
  %v7353 = vsub.s32 %v7350, %v7352
  %v7354 = vrot.slane %v7344, %v7353
  %v7356 = vunpack.c.l.s4 1966171168
  %v7357 = vunpack.c.0.s8 %v7356
  %v7358 = vlaneseq
  %v7359 = vshrl.u32 %v7358, 7
  %v7360 = vsub.s32 %v7357, %v7359
  %v7361 = vrot.slane %v7345, %v7360
  %v7363 = vunpack.c.l.s4 1966171168
  %v7364 = vunpack.c.0.s8 %v7363
  %v7365 = vlaneseq
  %v7366 = vshrl.u32 %v7365, 7
  %v7367 = vsub.s32 %v7364, %v7366
  %v7368 = vrot.slane %v7346, %v7367
  %v7370 = vunpack.c.l.s4 1966171168
  %v7371 = vunpack.c.0.s8 %v7370
  %v7372 = vlaneseq
  %v7373 = vshrl.u32 %v7372, 7
  %v7374 = vsub.s32 %v7371, %v7373
  %v7375 = vrot.slane %v7347, %v7374
  %v7376 = vcombine.low %v7354, %v7361
  %v7377 = vcombine.low %v7368, %v7375
  %v7379 = vunpack.c.l.s4 1966171168
  %v7380 = vunpack.c.0.s8 %v7379
  %v7381 = vlaneseq
  %v7382 = vshrl.u32 %v7381, 7
  %v7383 = vsub.s32 %v7380, %v7382
  %v7384 = vrot.slane %v7376, %v7383
  %v7386 = vunpack.c.l.s4 1966171168
  %v7387 = vunpack.c.0.s8 %v7386
  %v7388 = vlaneseq
  %v7389 = vshrl.u32 %v7388, 7
  %v7390 = vsub.s32 %v7387, %v7389
  %v7391 = vrot.slane %v7377, %v7390
  %v7392 = vcombine.low %v7384, %v7391
  %7394 = vst [vmem:[#allocation2] sm:$0xff] %v7392
  %7395 = vst [vmem:[%s2 + $0xa] sm:$0x1] %v7269
  %7396 = vst [vmem:[%s2 + $0x1a] sm:$0x1] %v7270
  %7397 = vst [vmem:[%s2 + $0x2a] sm:$0x1] %v7271
  %7398 = vst [vmem:[%s2 + $0x3a] sm:$0x1] %v7272
  %7399 = vst [vmem:[%s2 + $0x4a] sm:$0x1] %v7273
  %7400 = vst [vmem:[%s2 + $0x5a] sm:$0x1] %v7274
  %7401 = vst [vmem:[%s2 + $0x6a] sm:$0x1] %v7275
  %7402 = vst [vmem:[%s2 + $0x7a] sm:$0x1] %v7276
  %s7403 = scalar_lea.vmem %s0, 35
  %v7404 = vld [vmem:[%s7403] ss:$8 sm:$0xf]
  %s7405 = scalar_lea.vmem %s0, 99
  %v7406 = vld [vmem:[%s7405] ss:$8 sm:$0xf]
  %s7407 = scalar_lea.vmem %s0, 163
  %v7408 = vld [vmem:[%s7407] ss:$8 sm:$0xf]
  %s7409 = scalar_lea.vmem %s0, 227
  %v7410 = vld [vmem:[%s7409] ss:$8 sm:$0xf]
  %s7411 = scalar_lea.vmem %s0, 291
  %v7412 = vld [vmem:[%s7411] ss:$8 sm:$0xf]
  %s7413 = scalar_lea.vmem %s0, 355
  %v7414 = vld [vmem:[%s7413] ss:$8 sm:$0xf]
  %s7415 = scalar_lea.vmem %s0, 419
  %v7416 = vld [vmem:[%s7415] ss:$8 sm:$0xf]
  %s7417 = scalar_lea.vmem %s0, 483
  %v7418 = vld [vmem:[%s7417] ss:$8 sm:$0xf]
  %v7419 = vld [vmem:[#allocation2] sm:$0xff]
  %v7420 = vld [vmem:[#allocation4] sm:$0xff]
  %v7421 = vld [vmem:[#allocation4 + $0x8] sm:$0xff]
  %v7422 = vld [vmem:[#allocation4 + $0x10] sm:$0xff]
  %v7423 = vld [vmem:[#allocation4 + $0x18] sm:$0xff]
  %v7424 = vld [vmem:[#allocation4 + $0x20] sm:$0xff]
  %v7425 = vld [vmem:[#allocation4 + $0x28] sm:$0xff]
  %v7426 = vld [vmem:[#allocation4 + $0x30] sm:$0xff]
  %v7427 = vld [vmem:[#allocation4 + $0x38] sm:$0xff]
  %v7428 = vld [vmem:[#allocation4 + $0x40] sm:$0xff]
  %v7429 = vld [vmem:[#allocation4 + $0x48] sm:$0xff]
  %v7430 = vld [vmem:[#allocation4 + $0x50] sm:$0xff]
  %v7431 = vld [vmem:[#allocation4 + $0x58] sm:$0xff]
  %v7432 = vld [vmem:[#allocation4 + $0x60] sm:$0xff]
  %v7433 = vld [vmem:[#allocation4 + $0x68] sm:$0xff]
  %v7434 = vld [vmem:[#allocation4 + $0x70] sm:$0xff]
  %v7435 = vld [vmem:[#allocation4 + $0x78] sm:$0xff]
  %v7436 = vld [vmem:[#allocation4 + $0x80] sm:$0xff]
  %v7437 = vld [vmem:[#allocation4 + $0x88] sm:$0xff]
  %v7438 = vld [vmem:[#allocation4 + $0x90] sm:$0xff]
  %v7439 = vld [vmem:[#allocation4 + $0x98] sm:$0xff]
  %v7440 = vld [vmem:[#allocation4 + $0xa0] sm:$0xff]
  %v7441 = vld [vmem:[#allocation4 + $0xa8] sm:$0xff]
  %v7442 = vld [vmem:[#allocation4 + $0xb0] sm:$0xff]
  %v7443 = vld [vmem:[#allocation4 + $0xb8] sm:$0xff]
  %v7444 = vld [vmem:[#allocation4 + $0xc0] sm:$0xff]
  %v7445 = vld [vmem:[#allocation4 + $0xc8] sm:$0xff]
  %v7446 = vld [vmem:[#allocation4 + $0xd0] sm:$0xff]
  %v7447 = vld [vmem:[#allocation4 + $0xd8] sm:$0xff]
  %v7448 = vld [vmem:[#allocation4 + $0xe0] sm:$0xff]
  %v7449 = vld [vmem:[#allocation4 + $0xe8] sm:$0xff]
  %v7450 = vld [vmem:[#allocation4 + $0xf0] sm:$0xff]
  %v7451 = vld [vmem:[#allocation4 + $0xf8] sm:$0xff]
  %v7452 = vld [vmem:[#allocation4 + $0x100] sm:$0xff]
  %v7453 = vld [vmem:[#allocation4 + $0x108] sm:$0xff]
  %v7454 = vld [vmem:[#allocation4 + $0x110] sm:$0xff]
  %v7455 = vld [vmem:[#allocation4 + $0x118] sm:$0xff]
  %v7456 = vld [vmem:[#allocation4 + $0x120] sm:$0xff]
  %v7457 = vld [vmem:[#allocation4 + $0x128] sm:$0xff]
  %v7458 = vld [vmem:[#allocation4 + $0x130] sm:$0xff]
  %v7459 = vld [vmem:[#allocation4 + $0x138] sm:$0xff]
  %v7460 = vld [vmem:[#allocation4 + $0x140] sm:$0xff]
  %v7461 = vld [vmem:[#allocation4 + $0x148] sm:$0xff]
  %v7462 = vld [vmem:[#allocation4 + $0x150] sm:$0xff]
  %v7463 = vld [vmem:[#allocation4 + $0x158] sm:$0xff]
  %v7464 = vld [vmem:[#allocation4 + $0x160] sm:$0xff]
  %v7465 = vld [vmem:[#allocation4 + $0x168] sm:$0xff]
  %v7466 = vld [vmem:[#allocation4 + $0x170] sm:$0xff]
  %v7467 = vld [vmem:[#allocation4 + $0x178] sm:$0xff]
  %v7468 = vld [vmem:[#allocation4 + $0x180] sm:$0xff]
  %v7469 = vld [vmem:[#allocation4 + $0x188] sm:$0xff]
  %v7470 = vld [vmem:[#allocation4 + $0x190] sm:$0xff]
  %v7471 = vld [vmem:[#allocation4 + $0x198] sm:$0xff]
  %v7472 = vld [vmem:[#allocation4 + $0x1a0] sm:$0xff]
  %v7473 = vld [vmem:[#allocation4 + $0x1a8] sm:$0xff]
  %v7474 = vld [vmem:[#allocation4 + $0x1b0] sm:$0xff]
  %v7475 = vld [vmem:[#allocation4 + $0x1b8] sm:$0xff]
  %v7476 = vld [vmem:[#allocation4 + $0x1c0] sm:$0xff]
  %v7477 = vld [vmem:[#allocation4 + $0x1c8] sm:$0xff]
  %v7478 = vld [vmem:[#allocation4 + $0x1d0] sm:$0xff]
  %v7479 = vld [vmem:[#allocation4 + $0x1d8] sm:$0xff]
  %v7480 = vld [vmem:[#allocation4 + $0x1e0] sm:$0xff]
  %v7481 = vld [vmem:[#allocation4 + $0x1e8] sm:$0xff]
  %v7482 = vld [vmem:[#allocation4 + $0x1f0] sm:$0xff]
  %v7483 = vld [vmem:[#allocation4 + $0x1f8] sm:$0xff]
  %7484 = vmatprep.subr.mxu0 %v7481
  %7485 = vmatpush1.msra.mxu0 %v7480
  %7486 = vmatprep.subr.mxu0 %v7477
  %7487 = vmatpush1.msra.mxu0 %v7476
  %7488 = vmatprep.subr.mxu0 %v7473
  %7489 = vmatpush1.msra.mxu0 %v7472
  %7490 = vmatprep.subr.mxu0 %v7469
  %7491 = vmatpush1.msra.mxu0 %v7468
  %7492 = vmatprep.subr.mxu0 %v7465
  %7493 = vmatpush1.msra.mxu0 %v7464
  %7494 = vmatprep.subr.mxu0 %v7461
  %7495 = vmatpush1.msra.mxu0 %v7460
  %7496 = vmatprep.subr.mxu0 %v7457
  %7497 = vmatpush1.msra.mxu0 %v7456
  %7498 = vmatprep.subr.mxu0 %v7453
  %7499 = vmatpush1.msra.mxu0 %v7452
  %7500 = vmatprep.subr.mxu0 %v7449
  %7501 = vmatpush1.msra.mxu0 %v7448
  %7502 = vmatprep.subr.mxu0 %v7445
  %7503 = vmatpush1.msra.mxu0 %v7444
  %7504 = vmatprep.subr.mxu0 %v7441
  %7505 = vmatpush1.msra.mxu0 %v7440
  %7506 = vmatprep.subr.mxu0 %v7437
  %7507 = vmatpush1.msra.mxu0 %v7436
  %7508 = vmatprep.subr.mxu0 %v7433
  %7509 = vmatpush1.msra.mxu0 %v7432
  %7510 = vmatprep.subr.mxu0 %v7429
  %7511 = vmatpush1.msra.mxu0 %v7428
  %7512 = vmatprep.subr.mxu0 %v7425
  %7513 = vmatpush1.msra.mxu0 %v7424
  %7514 = vmatprep.subr.mxu0 %v7421
  %7515 = vmatpush1.msra.mxu0 %v7420
  %7516 = vmatprep.subr.mxu0 0.0
  %7517 = vmatpush2.msra.mxu0 0.0
  %7518 = vmatprep.subr.mxu0 0.0
  %7519 = vmatpush2.msra.mxu0 0.0
  %7520 = vmatprep.subr.mxu0 0.0
  %7521 = vmatpush2.msra.mxu0 0.0
  %7522 = vmatprep.subr.mxu0 0.0
  %7523 = vmatpush2.msra.mxu0 0.0
  %7524 = vmatprep.subr.mxu0 0.0
  %7525 = vmatpush2.msra.mxu0 0.0
  %7526 = vmatprep.subr.mxu0 0.0
  %7527 = vmatpush2.msra.mxu0 0.0
  %7528 = vmatprep.subr.mxu0 0.0
  %7529 = vmatpush2.msra.mxu0 0.0
  %7530 = vmatprep.subr.mxu0 0.0
  %7531 = vmatpush2.msra.mxu0 0.0
  %7532 = vmatprep.subr.mxu0 0.0
  %7533 = vmatpush2.msra.mxu0 0.0
  %7534 = vmatprep.subr.mxu0 0.0
  %7535 = vmatpush2.msra.mxu0 0.0
  %7536 = vmatprep.subr.mxu0 0.0
  %7537 = vmatpush2.msra.mxu0 0.0
  %7538 = vmatprep.subr.mxu0 0.0
  %7539 = vmatpush2.msra.mxu0 0.0
  %7540 = vmatprep.subr.mxu0 0.0
  %7541 = vmatpush2.msra.mxu0 0.0
  %7542 = vmatprep.subr.mxu0 0.0
  %7543 = vmatpush2.msra.mxu0 0.0
  %7544 = vmatprep.subr.mxu0 0.0
  %7545 = vmatpush2.msra.mxu0 0.0
  %7546 = vmatprep.subr.mxu0 0.0
  %7547 = vmatpush2.msra.mxu0 0.0
  %7548 = vmatprep.mubr.f32.mxu0 0.0
  %7549 = vmatmul.mubr.f32.gmra.mxu0 %v7419
  %v7550 = vpop.f32.mrf.mxu0
  %v7551 = vadd.f32 0.0, %v7550
  %v7552 = vpop.f32.mrf.mxu0
  %v7553 = vadd.f32 0.0, %v7552
  %7554 = vdwg.mxu0
  %7555 = vmatprep.subr.mxu0 %v7483
  %7556 = vmatpush1.msra.mxu0 %v7482
  %7557 = vmatprep.subr.mxu0 %v7479
  %7558 = vmatpush1.msra.mxu0 %v7478
  %7559 = vmatprep.subr.mxu0 %v7475
  %7560 = vmatpush1.msra.mxu0 %v7474
  %7561 = vmatprep.subr.mxu0 %v7471
  %7562 = vmatpush1.msra.mxu0 %v7470
  %7563 = vmatprep.subr.mxu0 %v7467
  %7564 = vmatpush1.msra.mxu0 %v7466
  %7565 = vmatprep.subr.mxu0 %v7463
  %7566 = vmatpush1.msra.mxu0 %v7462
  %7567 = vmatprep.subr.mxu0 %v7459
  %7568 = vmatpush1.msra.mxu0 %v7458
  %7569 = vmatprep.subr.mxu0 %v7455
  %7570 = vmatpush1.msra.mxu0 %v7454
  %7571 = vmatprep.subr.mxu0 %v7451
  %7572 = vmatpush1.msra.mxu0 %v7450
  %7573 = vmatprep.subr.mxu0 %v7447
  %7574 = vmatpush1.msra.mxu0 %v7446
  %7575 = vmatprep.subr.mxu0 %v7443
  %7576 = vmatpush1.msra.mxu0 %v7442
  %7577 = vmatprep.subr.mxu0 %v7439
  %7578 = vmatpush1.msra.mxu0 %v7438
  %7579 = vmatprep.subr.mxu0 %v7435
  %7580 = vmatpush1.msra.mxu0 %v7434
  %7581 = vmatprep.subr.mxu0 %v7431
  %7582 = vmatpush1.msra.mxu0 %v7430
  %7583 = vmatprep.subr.mxu0 %v7427
  %7584 = vmatpush1.msra.mxu0 %v7426
  %7585 = vmatprep.subr.mxu0 %v7423
  %7586 = vmatpush1.msra.mxu0 %v7422
  %7587 = vmatprep.subr.mxu0 0.0
  %7588 = vmatpush2.msra.mxu0 0.0
  %7589 = vmatprep.subr.mxu0 0.0
  %7590 = vmatpush2.msra.mxu0 0.0
  %7591 = vmatprep.subr.mxu0 0.0
  %7592 = vmatpush2.msra.mxu0 0.0
  %7593 = vmatprep.subr.mxu0 0.0
  %7594 = vmatpush2.msra.mxu0 0.0
  %7595 = vmatprep.subr.mxu0 0.0
  %7596 = vmatpush2.msra.mxu0 0.0
  %7597 = vmatprep.subr.mxu0 0.0
  %7598 = vmatpush2.msra.mxu0 0.0
  %7599 = vmatprep.subr.mxu0 0.0
  %7600 = vmatpush2.msra.mxu0 0.0
  %7601 = vmatprep.subr.mxu0 0.0
  %7602 = vmatpush2.msra.mxu0 0.0
  %7603 = vmatprep.subr.mxu0 0.0
  %7604 = vmatpush2.msra.mxu0 0.0
  %7605 = vmatprep.subr.mxu0 0.0
  %7606 = vmatpush2.msra.mxu0 0.0
  %7607 = vmatprep.subr.mxu0 0.0
  %7608 = vmatpush2.msra.mxu0 0.0
  %7609 = vmatprep.subr.mxu0 0.0
  %7610 = vmatpush2.msra.mxu0 0.0
  %7611 = vmatprep.subr.mxu0 0.0
  %7612 = vmatpush2.msra.mxu0 0.0
  %7613 = vmatprep.subr.mxu0 0.0
  %7614 = vmatpush2.msra.mxu0 0.0
  %7615 = vmatprep.subr.mxu0 0.0
  %7616 = vmatpush2.msra.mxu0 0.0
  %7617 = vmatprep.subr.mxu0 0.0
  %7618 = vmatpush2.msra.mxu0 0.0
  %7619 = vmatprep.mubr.f32.mxu0 0.0
  %7620 = vmatmul.mubr.f32.gmra.mxu0 %v7419
  %v7621 = vpop.f32.mrf.mxu0
  %v7622 = vadd.f32 0.0, %v7621
  %v7623 = vpop.f32.mrf.mxu0
  %v7624 = vadd.f32 0.0, %v7623
  %7625 = vdwg.mxu0
  %v7630 = vcombine.low %v7551, %v7553
  %v7631 = vcombine.high %v7551, %v7553
  %v7632 = vcombine.low %v7622, %v7624
  %v7633 = vcombine.high %v7622, %v7624
  %v7635 = vunpack.c.l.s4 1966171168
  %v7636 = vunpack.c.0.s8 %v7635
  %v7637 = vlaneseq
  %v7638 = vshrl.u32 %v7637, 7
  %v7639 = vsub.s32 %v7636, %v7638
  %v7640 = vrot.slane %v7630, %v7639
  %v7642 = vunpack.c.l.s4 1966171168
  %v7643 = vunpack.c.0.s8 %v7642
  %v7644 = vlaneseq
  %v7645 = vshrl.u32 %v7644, 7
  %v7646 = vsub.s32 %v7643, %v7645
  %v7647 = vrot.slane %v7631, %v7646
  %v7649 = vunpack.c.l.s4 1966171168
  %v7650 = vunpack.c.0.s8 %v7649
  %v7651 = vlaneseq
  %v7652 = vshrl.u32 %v7651, 7
  %v7653 = vsub.s32 %v7650, %v7652
  %v7654 = vrot.slane %v7632, %v7653
  %v7656 = vunpack.c.l.s4 1966171168
  %v7657 = vunpack.c.0.s8 %v7656
  %v7658 = vlaneseq
  %v7659 = vshrl.u32 %v7658, 7
  %v7660 = vsub.s32 %v7657, %v7659
  %v7661 = vrot.slane %v7633, %v7660
  %v7662 = vcombine.low %v7640, %v7654
  %v7663 = vcombine.high %v7640, %v7654
  %v7664 = vcombine.low %v7647, %v7661
  %v7665 = vcombine.high %v7647, %v7661
  %v7667 = vunpack.c.l.s4 1966171168
  %v7668 = vunpack.c.0.s8 %v7667
  %v7669 = vlaneseq
  %v7670 = vshrl.u32 %v7669, 7
  %v7671 = vsub.s32 %v7668, %v7670
  %v7672 = vrot.slane %v7662, %v7671
  %v7674 = vunpack.c.l.s4 1966171168
  %v7675 = vunpack.c.0.s8 %v7674
  %v7676 = vlaneseq
  %v7677 = vshrl.u32 %v7676, 7
  %v7678 = vsub.s32 %v7675, %v7677
  %v7679 = vrot.slane %v7664, %v7678
  %v7681 = vunpack.c.l.s4 1966171168
  %v7682 = vunpack.c.0.s8 %v7681
  %v7683 = vlaneseq
  %v7684 = vshrl.u32 %v7683, 7
  %v7685 = vsub.s32 %v7682, %v7684
  %v7686 = vrot.slane %v7663, %v7685
  %v7688 = vunpack.c.l.s4 1966171168
  %v7689 = vunpack.c.0.s8 %v7688
  %v7690 = vlaneseq
  %v7691 = vshrl.u32 %v7690, 7
  %v7692 = vsub.s32 %v7689, %v7691
  %v7693 = vrot.slane %v7665, %v7692
  %v7694 = vcombine.high %v7672, %v7672
  %v7695 = vcombine.high %v7679, %v7679
  %v7696 = vcombine.high %v7686, %v7686
  %v7697 = vcombine.high %v7693, %v7693
  %v7706 = vadd.f32 %v7404, %v7672
  %v7707 = vadd.f32 %v7406, %v7686
  %v7708 = vadd.f32 %v7408, %v7694
  %v7709 = vadd.f32 %v7410, %v7696
  %v7710 = vadd.f32 %v7412, %v7679
  %v7711 = vadd.f32 %v7414, %v7693
  %v7712 = vadd.f32 %v7416, %v7695
  %v7713 = vadd.f32 %v7418, %v7697
  %v7714 = vxor.u32 %v7706, 2147483648
  %v7715 = vxor.u32 %v7707, 2147483648
  %v7716 = vxor.u32 %v7708, 2147483648
  %v7717 = vxor.u32 %v7709, 2147483648
  %v7718 = vxor.u32 %v7710, 2147483648
  %v7719 = vxor.u32 %v7711, 2147483648
  %v7720 = vxor.u32 %v7712, 2147483648
  %v7721 = vxor.u32 %v7713, 2147483648
  %v7722 = vmul.f32 %v7714, 1.442695
  %v7723 = vpow.pop %v7722
  %v7724 = vmul.f32 %v7715, 1.442695
  %v7725 = vpow.pop %v7724
  %v7726 = vmul.f32 %v7716, 1.442695
  %v7727 = vpow.pop %v7726
  %v7728 = vmul.f32 %v7717, 1.442695
  %v7729 = vpow.pop %v7728
  %v7730 = vmul.f32 %v7718, 1.442695
  %v7731 = vpow.pop %v7730
  %v7732 = vmul.f32 %v7719, 1.442695
  %v7733 = vpow.pop %v7732
  %v7734 = vmul.f32 %v7720, 1.442695
  %v7735 = vpow.pop %v7734
  %v7736 = vmul.f32 %v7721, 1.442695
  %v7737 = vpow.pop %v7736
  %v7738 = vadd.f32 %v7723, 1.0
  %v7739 = vadd.f32 %v7725, 1.0
  %v7740 = vadd.f32 %v7727, 1.0
  %v7741 = vadd.f32 %v7729, 1.0
  %v7742 = vadd.f32 %v7731, 1.0
  %v7743 = vadd.f32 %v7733, 1.0
  %v7744 = vadd.f32 %v7735, 1.0
  %v7745 = vadd.f32 %v7737, 1.0
  %v7746 = vrcp.pop %v7738
  %v7747 = vmul.f32 1.0, %v7746
  %v7748 = vrcp.pop %v7739
  %v7749 = vmul.f32 1.0, %v7748
  %v7750 = vrcp.pop %v7740
  %v7751 = vmul.f32 1.0, %v7750
  %v7752 = vrcp.pop %v7741
  %v7753 = vmul.f32 1.0, %v7752
  %v7754 = vrcp.pop %v7742
  %v7755 = vmul.f32 1.0, %v7754
  %v7756 = vrcp.pop %v7743
  %v7757 = vmul.f32 1.0, %v7756
  %v7758 = vrcp.pop %v7744
  %v7759 = vmul.f32 1.0, %v7758
  %v7760 = vrcp.pop %v7745
  %v7761 = vmul.f32 1.0, %v7760
  %v7770 = vrot.slane %v7706, 3
  %v7771 = vrot.slane %v7707, 3
  %v7772 = vrot.slane %v7708, 3
  %v7773 = vrot.slane %v7709, 3
  %v7774 = vrot.slane %v7710, 3
  %v7775 = vrot.slane %v7711, 3
  %v7776 = vrot.slane %v7712, 3
  %v7777 = vrot.slane %v7713, 3
  %v7786 = vtanh.pop %v7770
  %v7787 = vtanh.pop %v7771
  %v7788 = vtanh.pop %v7772
  %v7789 = vtanh.pop %v7773
  %v7790 = vtanh.pop %v7774
  %v7791 = vtanh.pop %v7775
  %v7792 = vtanh.pop %v7776
  %v7793 = vtanh.pop %v7777
  %v7794 = vld [vmem:[#allocation3] sm:$0xff]
  %v7803 = vrot.slane %v7747, 1
  %v7804 = vrot.slane %v7749, 1
  %v7805 = vrot.slane %v7751, 1
  %v7806 = vrot.slane %v7753, 1
  %v7807 = vrot.slane %v7755, 1
  %v7808 = vrot.slane %v7757, 1
  %v7809 = vrot.slane %v7759, 1
  %v7810 = vrot.slane %v7761, 1
  %v7820 = vcombine.high %v7794, %v7794
  %v7822 = vunpack.c.l.s4 1966171168
  %v7823 = vunpack.c.0.s8 %v7822
  %v7824 = vlaneseq
  %v7825 = vshrl.u32 %v7824, 7
  %v7826 = vsub.s32 %v7823, %v7825
  %v7827 = vrot.slane %v7794, %v7826
  %v7829 = vunpack.c.l.s4 1966171168
  %v7830 = vunpack.c.0.s8 %v7829
  %v7831 = vlaneseq
  %v7832 = vshrl.u32 %v7831, 7
  %v7833 = vsub.s32 %v7830, %v7832
  %v7834 = vrot.slane %v7820, %v7833
  %v7835 = vcombine.high %v7827, %v7827
  %v7836 = vcombine.high %v7834, %v7834
  %v7838 = vunpack.c.l.s4 1966171168
  %v7839 = vunpack.c.0.s8 %v7838
  %v7840 = vlaneseq
  %v7841 = vshrl.u32 %v7840, 7
  %v7842 = vsub.s32 %v7839, %v7841
  %v7843 = vrot.slane %v7827, %v7842
  %v7845 = vunpack.c.l.s4 1966171168
  %v7846 = vunpack.c.0.s8 %v7845
  %v7847 = vlaneseq
  %v7848 = vshrl.u32 %v7847, 7
  %v7849 = vsub.s32 %v7846, %v7848
  %v7850 = vrot.slane %v7834, %v7849
  %v7852 = vunpack.c.l.s4 1966171168
  %v7853 = vunpack.c.0.s8 %v7852
  %v7854 = vlaneseq
  %v7855 = vshrl.u32 %v7854, 7
  %v7856 = vsub.s32 %v7853, %v7855
  %v7857 = vrot.slane %v7835, %v7856
  %v7859 = vunpack.c.l.s4 1966171168
  %v7860 = vunpack.c.0.s8 %v7859
  %v7861 = vlaneseq
  %v7862 = vshrl.u32 %v7861, 7
  %v7863 = vsub.s32 %v7860, %v7862
  %v7864 = vrot.slane %v7836, %v7863
  %v7865 = vcombine.high %v7843, %v7843
  %v7866 = vcombine.high %v7850, %v7850
  %v7867 = vcombine.high %v7857, %v7857
  %v7868 = vcombine.high %v7864, %v7864
  %v7877 = vmul.f32 %v7803, %v7843
  %v7878 = vmul.f32 %v7804, %v7857
  %v7879 = vmul.f32 %v7805, %v7865
  %v7880 = vmul.f32 %v7806, %v7867
  %v7881 = vmul.f32 %v7807, %v7850
  %v7882 = vmul.f32 %v7808, %v7864
  %v7883 = vmul.f32 %v7809, %v7866
  %v7884 = vmul.f32 %v7810, %v7868
  %v7885 = vmul.f32 %v7747, %v7786
  %v7886 = vmul.f32 %v7749, %v7787
  %v7887 = vmul.f32 %v7751, %v7788
  %v7888 = vmul.f32 %v7753, %v7789
  %v7889 = vmul.f32 %v7755, %v7790
  %v7890 = vmul.f32 %v7757, %v7791
  %v7891 = vmul.f32 %v7759, %v7792
  %v7892 = vmul.f32 %v7761, %v7793
  %v7893 = vadd.f32 %v7877, %v7885
  %v7894 = vadd.f32 %v7878, %v7886
  %v7895 = vadd.f32 %v7879, %v7887
  %v7896 = vadd.f32 %v7880, %v7888
  %v7897 = vadd.f32 %v7881, %v7889
  %v7898 = vadd.f32 %v7882, %v7890
  %v7899 = vadd.f32 %v7883, %v7891
  %v7900 = vadd.f32 %v7884, %v7892
  %v7901 = vtanh.pop %v7893
  %v7902 = vtanh.pop %v7894
  %v7903 = vtanh.pop %v7895
  %v7904 = vtanh.pop %v7896
  %v7905 = vtanh.pop %v7897
  %v7906 = vtanh.pop %v7898
  %v7907 = vtanh.pop %v7899
  %v7908 = vtanh.pop %v7900
  %v7909 = vrot.slane %v7747, 2
  %v7910 = vrot.slane %v7749, 2
  %v7911 = vrot.slane %v7751, 2
  %v7912 = vrot.slane %v7753, 2
  %v7913 = vrot.slane %v7755, 2
  %v7914 = vrot.slane %v7757, 2
  %v7915 = vrot.slane %v7759, 2
  %v7916 = vrot.slane %v7761, 2
  %v7925 = vmul.f32 %v7909, %v7901
  %v7926 = vmul.f32 %v7910, %v7902
  %v7927 = vmul.f32 %v7911, %v7903
  %v7928 = vmul.f32 %v7912, %v7904
  %v7929 = vmul.f32 %v7913, %v7905
  %v7930 = vmul.f32 %v7914, %v7906
  %v7931 = vmul.f32 %v7915, %v7907
  %v7932 = vmul.f32 %v7916, %v7908
  %v7941 = vcombine.low %v7893, %v7894
  %v7942 = vcombine.low %v7895, %v7896
  %v7943 = vcombine.low %v7897, %v7898
  %v7944 = vcombine.low %v7899, %v7900
  %v7946 = vunpack.c.l.s4 1966171168
  %v7947 = vunpack.c.0.s8 %v7946
  %v7948 = vlaneseq
  %v7949 = vshrl.u32 %v7948, 7
  %v7950 = vsub.s32 %v7947, %v7949
  %v7951 = vrot.slane %v7941, %v7950
  %v7953 = vunpack.c.l.s4 1966171168
  %v7954 = vunpack.c.0.s8 %v7953
  %v7955 = vlaneseq
  %v7956 = vshrl.u32 %v7955, 7
  %v7957 = vsub.s32 %v7954, %v7956
  %v7958 = vrot.slane %v7942, %v7957
  %v7960 = vunpack.c.l.s4 1966171168
  %v7961 = vunpack.c.0.s8 %v7960
  %v7962 = vlaneseq
  %v7963 = vshrl.u32 %v7962, 7
  %v7964 = vsub.s32 %v7961, %v7963
  %v7965 = vrot.slane %v7943, %v7964
  %v7967 = vunpack.c.l.s4 1966171168
  %v7968 = vunpack.c.0.s8 %v7967
  %v7969 = vlaneseq
  %v7970 = vshrl.u32 %v7969, 7
  %v7971 = vsub.s32 %v7968, %v7970
  %v7972 = vrot.slane %v7944, %v7971
  %v7973 = vcombine.low %v7951, %v7958
  %v7974 = vcombine.low %v7965, %v7972
  %v7976 = vunpack.c.l.s4 1966171168
  %v7977 = vunpack.c.0.s8 %v7976
  %v7978 = vlaneseq
  %v7979 = vshrl.u32 %v7978, 7
  %v7980 = vsub.s32 %v7977, %v7979
  %v7981 = vrot.slane %v7973, %v7980
  %v7983 = vunpack.c.l.s4 1966171168
  %v7984 = vunpack.c.0.s8 %v7983
  %v7985 = vlaneseq
  %v7986 = vshrl.u32 %v7985, 7
  %v7987 = vsub.s32 %v7984, %v7986
  %v7988 = vrot.slane %v7974, %v7987
  %v7989 = vcombine.low %v7981, %v7988
  %7991 = vst [vmem:[#allocation3] sm:$0xff] %v7989
  %v8000 = vcombine.low %v7925, %v7926
  %v8001 = vcombine.low %v7927, %v7928
  %v8002 = vcombine.low %v7929, %v7930
  %v8003 = vcombine.low %v7931, %v7932
  %v8005 = vunpack.c.l.s4 1966171168
  %v8006 = vunpack.c.0.s8 %v8005
  %v8007 = vlaneseq
  %v8008 = vshrl.u32 %v8007, 7
  %v8009 = vsub.s32 %v8006, %v8008
  %v8010 = vrot.slane %v8000, %v8009
  %v8012 = vunpack.c.l.s4 1966171168
  %v8013 = vunpack.c.0.s8 %v8012
  %v8014 = vlaneseq
  %v8015 = vshrl.u32 %v8014, 7
  %v8016 = vsub.s32 %v8013, %v8015
  %v8017 = vrot.slane %v8001, %v8016
  %v8019 = vunpack.c.l.s4 1966171168
  %v8020 = vunpack.c.0.s8 %v8019
  %v8021 = vlaneseq
  %v8022 = vshrl.u32 %v8021, 7
  %v8023 = vsub.s32 %v8020, %v8022
  %v8024 = vrot.slane %v8002, %v8023
  %v8026 = vunpack.c.l.s4 1966171168
  %v8027 = vunpack.c.0.s8 %v8026
  %v8028 = vlaneseq
  %v8029 = vshrl.u32 %v8028, 7
  %v8030 = vsub.s32 %v8027, %v8029
  %v8031 = vrot.slane %v8003, %v8030
  %v8032 = vcombine.low %v8010, %v8017
  %v8033 = vcombine.low %v8024, %v8031
  %v8035 = vunpack.c.l.s4 1966171168
  %v8036 = vunpack.c.0.s8 %v8035
  %v8037 = vlaneseq
  %v8038 = vshrl.u32 %v8037, 7
  %v8039 = vsub.s32 %v8036, %v8038
  %v8040 = vrot.slane %v8032, %v8039
  %v8042 = vunpack.c.l.s4 1966171168
  %v8043 = vunpack.c.0.s8 %v8042
  %v8044 = vlaneseq
  %v8045 = vshrl.u32 %v8044, 7
  %v8046 = vsub.s32 %v8043, %v8045
  %v8047 = vrot.slane %v8033, %v8046
  %v8048 = vcombine.low %v8040, %v8047
  %8050 = vst [vmem:[#allocation2] sm:$0xff] %v8048
  %8051 = vst [vmem:[%s2 + $0xb] sm:$0x1] %v7925
  %8052 = vst [vmem:[%s2 + $0x1b] sm:$0x1] %v7926
  %8053 = vst [vmem:[%s2 + $0x2b] sm:$0x1] %v7927
  %8054 = vst [vmem:[%s2 + $0x3b] sm:$0x1] %v7928
  %8055 = vst [vmem:[%s2 + $0x4b] sm:$0x1] %v7929
  %8056 = vst [vmem:[%s2 + $0x5b] sm:$0x1] %v7930
  %8057 = vst [vmem:[%s2 + $0x6b] sm:$0x1] %v7931
  %8058 = vst [vmem:[%s2 + $0x7b] sm:$0x1] %v7932
  %s8059 = scalar_lea.vmem %s0, 36
  %v8060 = vld [vmem:[%s8059] ss:$8 sm:$0xf]
  %s8061 = scalar_lea.vmem %s0, 100
  %v8062 = vld [vmem:[%s8061] ss:$8 sm:$0xf]
  %s8063 = scalar_lea.vmem %s0, 164
  %v8064 = vld [vmem:[%s8063] ss:$8 sm:$0xf]
  %s8065 = scalar_lea.vmem %s0, 228
  %v8066 = vld [vmem:[%s8065] ss:$8 sm:$0xf]
  %s8067 = scalar_lea.vmem %s0, 292
  %v8068 = vld [vmem:[%s8067] ss:$8 sm:$0xf]
  %s8069 = scalar_lea.vmem %s0, 356
  %v8070 = vld [vmem:[%s8069] ss:$8 sm:$0xf]
  %s8071 = scalar_lea.vmem %s0, 420
  %v8072 = vld [vmem:[%s8071] ss:$8 sm:$0xf]
  %s8073 = scalar_lea.vmem %s0, 484
  %v8074 = vld [vmem:[%s8073] ss:$8 sm:$0xf]
  %v8075 = vld [vmem:[#allocation2] sm:$0xff]
  %v8076 = vld [vmem:[#allocation4] sm:$0xff]
  %v8077 = vld [vmem:[#allocation4 + $0x8] sm:$0xff]
  %v8078 = vld [vmem:[#allocation4 + $0x10] sm:$0xff]
  %v8079 = vld [vmem:[#allocation4 + $0x18] sm:$0xff]
  %v8080 = vld [vmem:[#allocation4 + $0x20] sm:$0xff]
  %v8081 = vld [vmem:[#allocation4 + $0x28] sm:$0xff]
  %v8082 = vld [vmem:[#allocation4 + $0x30] sm:$0xff]
  %v8083 = vld [vmem:[#allocation4 + $0x38] sm:$0xff]
  %v8084 = vld [vmem:[#allocation4 + $0x40] sm:$0xff]
  %v8085 = vld [vmem:[#allocation4 + $0x48] sm:$0xff]
  %v8086 = vld [vmem:[#allocation4 + $0x50] sm:$0xff]
  %v8087 = vld [vmem:[#allocation4 + $0x58] sm:$0xff]
  %v8088 = vld [vmem:[#allocation4 + $0x60] sm:$0xff]
  %v8089 = vld [vmem:[#allocation4 + $0x68] sm:$0xff]
  %v8090 = vld [vmem:[#allocation4 + $0x70] sm:$0xff]
  %v8091 = vld [vmem:[#allocation4 + $0x78] sm:$0xff]
  %v8092 = vld [vmem:[#allocation4 + $0x80] sm:$0xff]
  %v8093 = vld [vmem:[#allocation4 + $0x88] sm:$0xff]
  %v8094 = vld [vmem:[#allocation4 + $0x90] sm:$0xff]
  %v8095 = vld [vmem:[#allocation4 + $0x98] sm:$0xff]
  %v8096 = vld [vmem:[#allocation4 + $0xa0] sm:$0xff]
  %v8097 = vld [vmem:[#allocation4 + $0xa8] sm:$0xff]
  %v8098 = vld [vmem:[#allocation4 + $0xb0] sm:$0xff]
  %v8099 = vld [vmem:[#allocation4 + $0xb8] sm:$0xff]
  %v8100 = vld [vmem:[#allocation4 + $0xc0] sm:$0xff]
  %v8101 = vld [vmem:[#allocation4 + $0xc8] sm:$0xff]
  %v8102 = vld [vmem:[#allocation4 + $0xd0] sm:$0xff]
  %v8103 = vld [vmem:[#allocation4 + $0xd8] sm:$0xff]
  %v8104 = vld [vmem:[#allocation4 + $0xe0] sm:$0xff]
  %v8105 = vld [vmem:[#allocation4 + $0xe8] sm:$0xff]
  %v8106 = vld [vmem:[#allocation4 + $0xf0] sm:$0xff]
  %v8107 = vld [vmem:[#allocation4 + $0xf8] sm:$0xff]
  %v8108 = vld [vmem:[#allocation4 + $0x100] sm:$0xff]
  %v8109 = vld [vmem:[#allocation4 + $0x108] sm:$0xff]
  %v8110 = vld [vmem:[#allocation4 + $0x110] sm:$0xff]
  %v8111 = vld [vmem:[#allocation4 + $0x118] sm:$0xff]
  %v8112 = vld [vmem:[#allocation4 + $0x120] sm:$0xff]
  %v8113 = vld [vmem:[#allocation4 + $0x128] sm:$0xff]
  %v8114 = vld [vmem:[#allocation4 + $0x130] sm:$0xff]
  %v8115 = vld [vmem:[#allocation4 + $0x138] sm:$0xff]
  %v8116 = vld [vmem:[#allocation4 + $0x140] sm:$0xff]
  %v8117 = vld [vmem:[#allocation4 + $0x148] sm:$0xff]
  %v8118 = vld [vmem:[#allocation4 + $0x150] sm:$0xff]
  %v8119 = vld [vmem:[#allocation4 + $0x158] sm:$0xff]
  %v8120 = vld [vmem:[#allocation4 + $0x160] sm:$0xff]
  %v8121 = vld [vmem:[#allocation4 + $0x168] sm:$0xff]
  %v8122 = vld [vmem:[#allocation4 + $0x170] sm:$0xff]
  %v8123 = vld [vmem:[#allocation4 + $0x178] sm:$0xff]
  %v8124 = vld [vmem:[#allocation4 + $0x180] sm:$0xff]
  %v8125 = vld [vmem:[#allocation4 + $0x188] sm:$0xff]
  %v8126 = vld [vmem:[#allocation4 + $0x190] sm:$0xff]
  %v8127 = vld [vmem:[#allocation4 + $0x198] sm:$0xff]
  %v8128 = vld [vmem:[#allocation4 + $0x1a0] sm:$0xff]
  %v8129 = vld [vmem:[#allocation4 + $0x1a8] sm:$0xff]
  %v8130 = vld [vmem:[#allocation4 + $0x1b0] sm:$0xff]
  %v8131 = vld [vmem:[#allocation4 + $0x1b8] sm:$0xff]
  %v8132 = vld [vmem:[#allocation4 + $0x1c0] sm:$0xff]
  %v8133 = vld [vmem:[#allocation4 + $0x1c8] sm:$0xff]
  %v8134 = vld [vmem:[#allocation4 + $0x1d0] sm:$0xff]
  %v8135 = vld [vmem:[#allocation4 + $0x1d8] sm:$0xff]
  %v8136 = vld [vmem:[#allocation4 + $0x1e0] sm:$0xff]
  %v8137 = vld [vmem:[#allocation4 + $0x1e8] sm:$0xff]
  %v8138 = vld [vmem:[#allocation4 + $0x1f0] sm:$0xff]
  %v8139 = vld [vmem:[#allocation4 + $0x1f8] sm:$0xff]
  %8140 = vmatprep.subr.mxu0 %v8137
  %8141 = vmatpush1.msra.mxu0 %v8136
  %8142 = vmatprep.subr.mxu0 %v8133
  %8143 = vmatpush1.msra.mxu0 %v8132
  %8144 = vmatprep.subr.mxu0 %v8129
  %8145 = vmatpush1.msra.mxu0 %v8128
  %8146 = vmatprep.subr.mxu0 %v8125
  %8147 = vmatpush1.msra.mxu0 %v8124
  %8148 = vmatprep.subr.mxu0 %v8121
  %8149 = vmatpush1.msra.mxu0 %v8120
  %8150 = vmatprep.subr.mxu0 %v8117
  %8151 = vmatpush1.msra.mxu0 %v8116
  %8152 = vmatprep.subr.mxu0 %v8113
  %8153 = vmatpush1.msra.mxu0 %v8112
  %8154 = vmatprep.subr.mxu0 %v8109
  %8155 = vmatpush1.msra.mxu0 %v8108
  %8156 = vmatprep.subr.mxu0 %v8105
  %8157 = vmatpush1.msra.mxu0 %v8104
  %8158 = vmatprep.subr.mxu0 %v8101
  %8159 = vmatpush1.msra.mxu0 %v8100
  %8160 = vmatprep.subr.mxu0 %v8097
  %8161 = vmatpush1.msra.mxu0 %v8096
  %8162 = vmatprep.subr.mxu0 %v8093
  %8163 = vmatpush1.msra.mxu0 %v8092
  %8164 = vmatprep.subr.mxu0 %v8089
  %8165 = vmatpush1.msra.mxu0 %v8088
  %8166 = vmatprep.subr.mxu0 %v8085
  %8167 = vmatpush1.msra.mxu0 %v8084
  %8168 = vmatprep.subr.mxu0 %v8081
  %8169 = vmatpush1.msra.mxu0 %v8080
  %8170 = vmatprep.subr.mxu0 %v8077
  %8171 = vmatpush1.msra.mxu0 %v8076
  %8172 = vmatprep.subr.mxu0 0.0
  %8173 = vmatpush2.msra.mxu0 0.0
  %8174 = vmatprep.subr.mxu0 0.0
  %8175 = vmatpush2.msra.mxu0 0.0
  %8176 = vmatprep.subr.mxu0 0.0
  %8177 = vmatpush2.msra.mxu0 0.0
  %8178 = vmatprep.subr.mxu0 0.0
  %8179 = vmatpush2.msra.mxu0 0.0
  %8180 = vmatprep.subr.mxu0 0.0
  %8181 = vmatpush2.msra.mxu0 0.0
  %8182 = vmatprep.subr.mxu0 0.0
  %8183 = vmatpush2.msra.mxu0 0.0
  %8184 = vmatprep.subr.mxu0 0.0
  %8185 = vmatpush2.msra.mxu0 0.0
  %8186 = vmatprep.subr.mxu0 0.0
  %8187 = vmatpush2.msra.mxu0 0.0
  %8188 = vmatprep.subr.mxu0 0.0
  %8189 = vmatpush2.msra.mxu0 0.0
  %8190 = vmatprep.subr.mxu0 0.0
  %8191 = vmatpush2.msra.mxu0 0.0
  %8192 = vmatprep.subr.mxu0 0.0
  %8193 = vmatpush2.msra.mxu0 0.0
  %8194 = vmatprep.subr.mxu0 0.0
  %8195 = vmatpush2.msra.mxu0 0.0
  %8196 = vmatprep.subr.mxu0 0.0
  %8197 = vmatpush2.msra.mxu0 0.0
  %8198 = vmatprep.subr.mxu0 0.0
  %8199 = vmatpush2.msra.mxu0 0.0
  %8200 = vmatprep.subr.mxu0 0.0
  %8201 = vmatpush2.msra.mxu0 0.0
  %8202 = vmatprep.subr.mxu0 0.0
  %8203 = vmatpush2.msra.mxu0 0.0
  %8204 = vmatprep.mubr.f32.mxu0 0.0
  %8205 = vmatmul.mubr.f32.gmra.mxu0 %v8075
  %v8206 = vpop.f32.mrf.mxu0
  %v8207 = vadd.f32 0.0, %v8206
  %v8208 = vpop.f32.mrf.mxu0
  %v8209 = vadd.f32 0.0, %v8208
  %8210 = vdwg.mxu0
  %8211 = vmatprep.subr.mxu0 %v8139
  %8212 = vmatpush1.msra.mxu0 %v8138
  %8213 = vmatprep.subr.mxu0 %v8135
  %8214 = vmatpush1.msra.mxu0 %v8134
  %8215 = vmatprep.subr.mxu0 %v8131
  %8216 = vmatpush1.msra.mxu0 %v8130
  %8217 = vmatprep.subr.mxu0 %v8127
  %8218 = vmatpush1.msra.mxu0 %v8126
  %8219 = vmatprep.subr.mxu0 %v8123
  %8220 = vmatpush1.msra.mxu0 %v8122
  %8221 = vmatprep.subr.mxu0 %v8119
  %8222 = vmatpush1.msra.mxu0 %v8118
  %8223 = vmatprep.subr.mxu0 %v8115
  %8224 = vmatpush1.msra.mxu0 %v8114
  %8225 = vmatprep.subr.mxu0 %v8111
  %8226 = vmatpush1.msra.mxu0 %v8110
  %8227 = vmatprep.subr.mxu0 %v8107
  %8228 = vmatpush1.msra.mxu0 %v8106
  %8229 = vmatprep.subr.mxu0 %v8103
  %8230 = vmatpush1.msra.mxu0 %v8102
  %8231 = vmatprep.subr.mxu0 %v8099
  %8232 = vmatpush1.msra.mxu0 %v8098
  %8233 = vmatprep.subr.mxu0 %v8095
  %8234 = vmatpush1.msra.mxu0 %v8094
  %8235 = vmatprep.subr.mxu0 %v8091
  %8236 = vmatpush1.msra.mxu0 %v8090
  %8237 = vmatprep.subr.mxu0 %v8087
  %8238 = vmatpush1.msra.mxu0 %v8086
  %8239 = vmatprep.subr.mxu0 %v8083
  %8240 = vmatpush1.msra.mxu0 %v8082
  %8241 = vmatprep.subr.mxu0 %v8079
  %8242 = vmatpush1.msra.mxu0 %v8078
  %8243 = vmatprep.subr.mxu0 0.0
  %8244 = vmatpush2.msra.mxu0 0.0
  %8245 = vmatprep.subr.mxu0 0.0
  %8246 = vmatpush2.msra.mxu0 0.0
  %8247 = vmatprep.subr.mxu0 0.0
  %8248 = vmatpush2.msra.mxu0 0.0
  %8249 = vmatprep.subr.mxu0 0.0
  %8250 = vmatpush2.msra.mxu0 0.0
  %8251 = vmatprep.subr.mxu0 0.0
  %8252 = vmatpush2.msra.mxu0 0.0
  %8253 = vmatprep.subr.mxu0 0.0
  %8254 = vmatpush2.msra.mxu0 0.0
  %8255 = vmatprep.subr.mxu0 0.0
  %8256 = vmatpush2.msra.mxu0 0.0
  %8257 = vmatprep.subr.mxu0 0.0
  %8258 = vmatpush2.msra.mxu0 0.0
  %8259 = vmatprep.subr.mxu0 0.0
  %8260 = vmatpush2.msra.mxu0 0.0
  %8261 = vmatprep.subr.mxu0 0.0
  %8262 = vmatpush2.msra.mxu0 0.0
  %8263 = vmatprep.subr.mxu0 0.0
  %8264 = vmatpush2.msra.mxu0 0.0
  %8265 = vmatprep.subr.mxu0 0.0
  %8266 = vmatpush2.msra.mxu0 0.0
  %8267 = vmatprep.subr.mxu0 0.0
  %8268 = vmatpush2.msra.mxu0 0.0
  %8269 = vmatprep.subr.mxu0 0.0
  %8270 = vmatpush2.msra.mxu0 0.0
  %8271 = vmatprep.subr.mxu0 0.0
  %8272 = vmatpush2.msra.mxu0 0.0
  %8273 = vmatprep.subr.mxu0 0.0
  %8274 = vmatpush2.msra.mxu0 0.0
  %8275 = vmatprep.mubr.f32.mxu0 0.0
  %8276 = vmatmul.mubr.f32.gmra.mxu0 %v8075
  %v8277 = vpop.f32.mrf.mxu0
  %v8278 = vadd.f32 0.0, %v8277
  %v8279 = vpop.f32.mrf.mxu0
  %v8280 = vadd.f32 0.0, %v8279
  %8281 = vdwg.mxu0
  %v8286 = vcombine.low %v8207, %v8209
  %v8287 = vcombine.high %v8207, %v8209
  %v8288 = vcombine.low %v8278, %v8280
  %v8289 = vcombine.high %v8278, %v8280
  %v8291 = vunpack.c.l.s4 1966171168
  %v8292 = vunpack.c.0.s8 %v8291
  %v8293 = vlaneseq
  %v8294 = vshrl.u32 %v8293, 7
  %v8295 = vsub.s32 %v8292, %v8294
  %v8296 = vrot.slane %v8286, %v8295
  %v8298 = vunpack.c.l.s4 1966171168
  %v8299 = vunpack.c.0.s8 %v8298
  %v8300 = vlaneseq
  %v8301 = vshrl.u32 %v8300, 7
  %v8302 = vsub.s32 %v8299, %v8301
  %v8303 = vrot.slane %v8287, %v8302
  %v8305 = vunpack.c.l.s4 1966171168
  %v8306 = vunpack.c.0.s8 %v8305
  %v8307 = vlaneseq
  %v8308 = vshrl.u32 %v8307, 7
  %v8309 = vsub.s32 %v8306, %v8308
  %v8310 = vrot.slane %v8288, %v8309
  %v8312 = vunpack.c.l.s4 1966171168
  %v8313 = vunpack.c.0.s8 %v8312
  %v8314 = vlaneseq
  %v8315 = vshrl.u32 %v8314, 7
  %v8316 = vsub.s32 %v8313, %v8315
  %v8317 = vrot.slane %v8289, %v8316
  %v8318 = vcombine.low %v8296, %v8310
  %v8319 = vcombine.high %v8296, %v8310
  %v8320 = vcombine.low %v8303, %v8317
  %v8321 = vcombine.high %v8303, %v8317
  %v8323 = vunpack.c.l.s4 1966171168
  %v8324 = vunpack.c.0.s8 %v8323
  %v8325 = vlaneseq
  %v8326 = vshrl.u32 %v8325, 7
  %v8327 = vsub.s32 %v8324, %v8326
  %v8328 = vrot.slane %v8318, %v8327
  %v8330 = vunpack.c.l.s4 1966171168
  %v8331 = vunpack.c.0.s8 %v8330
  %v8332 = vlaneseq
  %v8333 = vshrl.u32 %v8332, 7
  %v8334 = vsub.s32 %v8331, %v8333
  %v8335 = vrot.slane %v8320, %v8334
  %v8337 = vunpack.c.l.s4 1966171168
  %v8338 = vunpack.c.0.s8 %v8337
  %v8339 = vlaneseq
  %v8340 = vshrl.u32 %v8339, 7
  %v8341 = vsub.s32 %v8338, %v8340
  %v8342 = vrot.slane %v8319, %v8341
  %v8344 = vunpack.c.l.s4 1966171168
  %v8345 = vunpack.c.0.s8 %v8344
  %v8346 = vlaneseq
  %v8347 = vshrl.u32 %v8346, 7
  %v8348 = vsub.s32 %v8345, %v8347
  %v8349 = vrot.slane %v8321, %v8348
  %v8350 = vcombine.high %v8328, %v8328
  %v8351 = vcombine.high %v8335, %v8335
  %v8352 = vcombine.high %v8342, %v8342
  %v8353 = vcombine.high %v8349, %v8349
  %v8362 = vadd.f32 %v8060, %v8328
  %v8363 = vadd.f32 %v8062, %v8342
  %v8364 = vadd.f32 %v8064, %v8350
  %v8365 = vadd.f32 %v8066, %v8352
  %v8366 = vadd.f32 %v8068, %v8335
  %v8367 = vadd.f32 %v8070, %v8349
  %v8368 = vadd.f32 %v8072, %v8351
  %v8369 = vadd.f32 %v8074, %v8353
  %v8370 = vxor.u32 %v8362, 2147483648
  %v8371 = vxor.u32 %v8363, 2147483648
  %v8372 = vxor.u32 %v8364, 2147483648
  %v8373 = vxor.u32 %v8365, 2147483648
  %v8374 = vxor.u32 %v8366, 2147483648
  %v8375 = vxor.u32 %v8367, 2147483648
  %v8376 = vxor.u32 %v8368, 2147483648
  %v8377 = vxor.u32 %v8369, 2147483648
  %v8378 = vmul.f32 %v8370, 1.442695
  %v8379 = vpow.pop %v8378
  %v8380 = vmul.f32 %v8371, 1.442695
  %v8381 = vpow.pop %v8380
  %v8382 = vmul.f32 %v8372, 1.442695
  %v8383 = vpow.pop %v8382
  %v8384 = vmul.f32 %v8373, 1.442695
  %v8385 = vpow.pop %v8384
  %v8386 = vmul.f32 %v8374, 1.442695
  %v8387 = vpow.pop %v8386
  %v8388 = vmul.f32 %v8375, 1.442695
  %v8389 = vpow.pop %v8388
  %v8390 = vmul.f32 %v8376, 1.442695
  %v8391 = vpow.pop %v8390
  %v8392 = vmul.f32 %v8377, 1.442695
  %v8393 = vpow.pop %v8392
  %v8394 = vadd.f32 %v8379, 1.0
  %v8395 = vadd.f32 %v8381, 1.0
  %v8396 = vadd.f32 %v8383, 1.0
  %v8397 = vadd.f32 %v8385, 1.0
  %v8398 = vadd.f32 %v8387, 1.0
  %v8399 = vadd.f32 %v8389, 1.0
  %v8400 = vadd.f32 %v8391, 1.0
  %v8401 = vadd.f32 %v8393, 1.0
  %v8402 = vrcp.pop %v8394
  %v8403 = vmul.f32 1.0, %v8402
  %v8404 = vrcp.pop %v8395
  %v8405 = vmul.f32 1.0, %v8404
  %v8406 = vrcp.pop %v8396
  %v8407 = vmul.f32 1.0, %v8406
  %v8408 = vrcp.pop %v8397
  %v8409 = vmul.f32 1.0, %v8408
  %v8410 = vrcp.pop %v8398
  %v8411 = vmul.f32 1.0, %v8410
  %v8412 = vrcp.pop %v8399
  %v8413 = vmul.f32 1.0, %v8412
  %v8414 = vrcp.pop %v8400
  %v8415 = vmul.f32 1.0, %v8414
  %v8416 = vrcp.pop %v8401
  %v8417 = vmul.f32 1.0, %v8416
  %v8426 = vrot.slane %v8362, 3
  %v8427 = vrot.slane %v8363, 3
  %v8428 = vrot.slane %v8364, 3
  %v8429 = vrot.slane %v8365, 3
  %v8430 = vrot.slane %v8366, 3
  %v8431 = vrot.slane %v8367, 3
  %v8432 = vrot.slane %v8368, 3
  %v8433 = vrot.slane %v8369, 3
  %v8442 = vtanh.pop %v8426
  %v8443 = vtanh.pop %v8427
  %v8444 = vtanh.pop %v8428
  %v8445 = vtanh.pop %v8429
  %v8446 = vtanh.pop %v8430
  %v8447 = vtanh.pop %v8431
  %v8448 = vtanh.pop %v8432
  %v8449 = vtanh.pop %v8433
  %v8450 = vld [vmem:[#allocation3] sm:$0xff]
  %v8459 = vrot.slane %v8403, 1
  %v8460 = vrot.slane %v8405, 1
  %v8461 = vrot.slane %v8407, 1
  %v8462 = vrot.slane %v8409, 1
  %v8463 = vrot.slane %v8411, 1
  %v8464 = vrot.slane %v8413, 1
  %v8465 = vrot.slane %v8415, 1
  %v8466 = vrot.slane %v8417, 1
  %v8476 = vcombine.high %v8450, %v8450
  %v8478 = vunpack.c.l.s4 1966171168
  %v8479 = vunpack.c.0.s8 %v8478
  %v8480 = vlaneseq
  %v8481 = vshrl.u32 %v8480, 7
  %v8482 = vsub.s32 %v8479, %v8481
  %v8483 = vrot.slane %v8450, %v8482
  %v8485 = vunpack.c.l.s4 1966171168
  %v8486 = vunpack.c.0.s8 %v8485
  %v8487 = vlaneseq
  %v8488 = vshrl.u32 %v8487, 7
  %v8489 = vsub.s32 %v8486, %v8488
  %v8490 = vrot.slane %v8476, %v8489
  %v8491 = vcombine.high %v8483, %v8483
  %v8492 = vcombine.high %v8490, %v8490
  %v8494 = vunpack.c.l.s4 1966171168
  %v8495 = vunpack.c.0.s8 %v8494
  %v8496 = vlaneseq
  %v8497 = vshrl.u32 %v8496, 7
  %v8498 = vsub.s32 %v8495, %v8497
  %v8499 = vrot.slane %v8483, %v8498
  %v8501 = vunpack.c.l.s4 1966171168
  %v8502 = vunpack.c.0.s8 %v8501
  %v8503 = vlaneseq
  %v8504 = vshrl.u32 %v8503, 7
  %v8505 = vsub.s32 %v8502, %v8504
  %v8506 = vrot.slane %v8490, %v8505
  %v8508 = vunpack.c.l.s4 1966171168
  %v8509 = vunpack.c.0.s8 %v8508
  %v8510 = vlaneseq
  %v8511 = vshrl.u32 %v8510, 7
  %v8512 = vsub.s32 %v8509, %v8511
  %v8513 = vrot.slane %v8491, %v8512
  %v8515 = vunpack.c.l.s4 1966171168
  %v8516 = vunpack.c.0.s8 %v8515
  %v8517 = vlaneseq
  %v8518 = vshrl.u32 %v8517, 7
  %v8519 = vsub.s32 %v8516, %v8518
  %v8520 = vrot.slane %v8492, %v8519
  %v8521 = vcombine.high %v8499, %v8499
  %v8522 = vcombine.high %v8506, %v8506
  %v8523 = vcombine.high %v8513, %v8513
  %v8524 = vcombine.high %v8520, %v8520
  %v8533 = vmul.f32 %v8459, %v8499
  %v8534 = vmul.f32 %v8460, %v8513
  %v8535 = vmul.f32 %v8461, %v8521
  %v8536 = vmul.f32 %v8462, %v8523
  %v8537 = vmul.f32 %v8463, %v8506
  %v8538 = vmul.f32 %v8464, %v8520
  %v8539 = vmul.f32 %v8465, %v8522
  %v8540 = vmul.f32 %v8466, %v8524
  %v8541 = vmul.f32 %v8403, %v8442
  %v8542 = vmul.f32 %v8405, %v8443
  %v8543 = vmul.f32 %v8407, %v8444
  %v8544 = vmul.f32 %v8409, %v8445
  %v8545 = vmul.f32 %v8411, %v8446
  %v8546 = vmul.f32 %v8413, %v8447
  %v8547 = vmul.f32 %v8415, %v8448
  %v8548 = vmul.f32 %v8417, %v8449
  %v8549 = vadd.f32 %v8533, %v8541
  %v8550 = vadd.f32 %v8534, %v8542
  %v8551 = vadd.f32 %v8535, %v8543
  %v8552 = vadd.f32 %v8536, %v8544
  %v8553 = vadd.f32 %v8537, %v8545
  %v8554 = vadd.f32 %v8538, %v8546
  %v8555 = vadd.f32 %v8539, %v8547
  %v8556 = vadd.f32 %v8540, %v8548
  %v8557 = vtanh.pop %v8549
  %v8558 = vtanh.pop %v8550
  %v8559 = vtanh.pop %v8551
  %v8560 = vtanh.pop %v8552
  %v8561 = vtanh.pop %v8553
  %v8562 = vtanh.pop %v8554
  %v8563 = vtanh.pop %v8555
  %v8564 = vtanh.pop %v8556
  %v8565 = vrot.slane %v8403, 2
  %v8566 = vrot.slane %v8405, 2
  %v8567 = vrot.slane %v8407, 2
  %v8568 = vrot.slane %v8409, 2
  %v8569 = vrot.slane %v8411, 2
  %v8570 = vrot.slane %v8413, 2
  %v8571 = vrot.slane %v8415, 2
  %v8572 = vrot.slane %v8417, 2
  %v8581 = vmul.f32 %v8565, %v8557
  %v8582 = vmul.f32 %v8566, %v8558
  %v8583 = vmul.f32 %v8567, %v8559
  %v8584 = vmul.f32 %v8568, %v8560
  %v8585 = vmul.f32 %v8569, %v8561
  %v8586 = vmul.f32 %v8570, %v8562
  %v8587 = vmul.f32 %v8571, %v8563
  %v8588 = vmul.f32 %v8572, %v8564
  %v8597 = vcombine.low %v8549, %v8550
  %v8598 = vcombine.low %v8551, %v8552
  %v8599 = vcombine.low %v8553, %v8554
  %v8600 = vcombine.low %v8555, %v8556
  %v8602 = vunpack.c.l.s4 1966171168
  %v8603 = vunpack.c.0.s8 %v8602
  %v8604 = vlaneseq
  %v8605 = vshrl.u32 %v8604, 7
  %v8606 = vsub.s32 %v8603, %v8605
  %v8607 = vrot.slane %v8597, %v8606
  %v8609 = vunpack.c.l.s4 1966171168
  %v8610 = vunpack.c.0.s8 %v8609
  %v8611 = vlaneseq
  %v8612 = vshrl.u32 %v8611, 7
  %v8613 = vsub.s32 %v8610, %v8612
  %v8614 = vrot.slane %v8598, %v8613
  %v8616 = vunpack.c.l.s4 1966171168
  %v8617 = vunpack.c.0.s8 %v8616
  %v8618 = vlaneseq
  %v8619 = vshrl.u32 %v8618, 7
  %v8620 = vsub.s32 %v8617, %v8619
  %v8621 = vrot.slane %v8599, %v8620
  %v8623 = vunpack.c.l.s4 1966171168
  %v8624 = vunpack.c.0.s8 %v8623
  %v8625 = vlaneseq
  %v8626 = vshrl.u32 %v8625, 7
  %v8627 = vsub.s32 %v8624, %v8626
  %v8628 = vrot.slane %v8600, %v8627
  %v8629 = vcombine.low %v8607, %v8614
  %v8630 = vcombine.low %v8621, %v8628
  %v8632 = vunpack.c.l.s4 1966171168
  %v8633 = vunpack.c.0.s8 %v8632
  %v8634 = vlaneseq
  %v8635 = vshrl.u32 %v8634, 7
  %v8636 = vsub.s32 %v8633, %v8635
  %v8637 = vrot.slane %v8629, %v8636
  %v8639 = vunpack.c.l.s4 1966171168
  %v8640 = vunpack.c.0.s8 %v8639
  %v8641 = vlaneseq
  %v8642 = vshrl.u32 %v8641, 7
  %v8643 = vsub.s32 %v8640, %v8642
  %v8644 = vrot.slane %v8630, %v8643
  %v8645 = vcombine.low %v8637, %v8644
  %8647 = vst [vmem:[#allocation3] sm:$0xff] %v8645
  %v8656 = vcombine.low %v8581, %v8582
  %v8657 = vcombine.low %v8583, %v8584
  %v8658 = vcombine.low %v8585, %v8586
  %v8659 = vcombine.low %v8587, %v8588
  %v8661 = vunpack.c.l.s4 1966171168
  %v8662 = vunpack.c.0.s8 %v8661
  %v8663 = vlaneseq
  %v8664 = vshrl.u32 %v8663, 7
  %v8665 = vsub.s32 %v8662, %v8664
  %v8666 = vrot.slane %v8656, %v8665
  %v8668 = vunpack.c.l.s4 1966171168
  %v8669 = vunpack.c.0.s8 %v8668
  %v8670 = vlaneseq
  %v8671 = vshrl.u32 %v8670, 7
  %v8672 = vsub.s32 %v8669, %v8671
  %v8673 = vrot.slane %v8657, %v8672
  %v8675 = vunpack.c.l.s4 1966171168
  %v8676 = vunpack.c.0.s8 %v8675
  %v8677 = vlaneseq
  %v8678 = vshrl.u32 %v8677, 7
  %v8679 = vsub.s32 %v8676, %v8678
  %v8680 = vrot.slane %v8658, %v8679
  %v8682 = vunpack.c.l.s4 1966171168
  %v8683 = vunpack.c.0.s8 %v8682
  %v8684 = vlaneseq
  %v8685 = vshrl.u32 %v8684, 7
  %v8686 = vsub.s32 %v8683, %v8685
  %v8687 = vrot.slane %v8659, %v8686
  %v8688 = vcombine.low %v8666, %v8673
  %v8689 = vcombine.low %v8680, %v8687
  %v8691 = vunpack.c.l.s4 1966171168
  %v8692 = vunpack.c.0.s8 %v8691
  %v8693 = vlaneseq
  %v8694 = vshrl.u32 %v8693, 7
  %v8695 = vsub.s32 %v8692, %v8694
  %v8696 = vrot.slane %v8688, %v8695
  %v8698 = vunpack.c.l.s4 1966171168
  %v8699 = vunpack.c.0.s8 %v8698
  %v8700 = vlaneseq
  %v8701 = vshrl.u32 %v8700, 7
  %v8702 = vsub.s32 %v8699, %v8701
  %v8703 = vrot.slane %v8689, %v8702
  %v8704 = vcombine.low %v8696, %v8703
  %8706 = vst [vmem:[#allocation2] sm:$0xff] %v8704
  %8707 = vst [vmem:[%s2 + $0xc] sm:$0x1] %v8581
  %8708 = vst [vmem:[%s2 + $0x1c] sm:$0x1] %v8582
  %8709 = vst [vmem:[%s2 + $0x2c] sm:$0x1] %v8583
  %8710 = vst [vmem:[%s2 + $0x3c] sm:$0x1] %v8584
  %8711 = vst [vmem:[%s2 + $0x4c] sm:$0x1] %v8585
  %8712 = vst [vmem:[%s2 + $0x5c] sm:$0x1] %v8586
  %8713 = vst [vmem:[%s2 + $0x6c] sm:$0x1] %v8587
  %8714 = vst [vmem:[%s2 + $0x7c] sm:$0x1] %v8588
  // Predicated region
  $region44: #{decoder_rnn_forward.1} parent=0 // pred_check
    _
  $region45: #{decoder_rnn_forward.1} parent=0 // pred_check_branch
    %8716 = sbr.rel (0) target = $region47
  $region46: #{decoder_rnn_forward.1} parent=0 // pred_region
    _
  $region47: #{decoder_rnn_forward.1} parent=0 // pred_fallthru
    _
  // Predicated region
  $region48: #{decoder_rnn_forward.1} parent=0 // pred_check
    _
  $region49: #{decoder_rnn_forward.1} parent=0 // pred_check_branch
    %8718 = sbr.rel (0) target = $region51
  $region50: #{decoder_rnn_forward.1} parent=0 // pred_region
    _
  $region51: #{decoder_rnn_forward.1} parent=0 // pred_fallthru
    _
  %8719 = vsyncmov [#allocation5]
  %s8720 = vpop.sfrf %8719
  %p8721 = scmp.eq.s32.totalorder %s8720, 0
  %p8722 = pneg %p8721
  %8724 = shalt.err (%p8722)

</llo_original>
